<compile_context>
chip_gen: v7x
topology: tpu7x:2x2x1
jax: 0.10.0
libtpu: 0.0.40
codegen_flags: <defaults>
</compile_context>

<pallas_src>
import functools

import jax
import jax.numpy as jnp
from jax.experimental import pallas as pl
from jax.experimental.pallas import tpu as pltpu


def _round_up(n, m):
    return (n + m - 1) // m * m


# ----------------------------------------------------------------------------
# Fused kernel: whole CNN forward for the full (tiny) batch
# ----------------------------------------------------------------------------
def _fused_cnn_kernel(x_ref, w0_ref, wtaps_ref, cb_ref,
                      lw1_ref, lb1_ref, lw2_ref, lb2_ref, lw3_ref, lb3_ref,
                      o_ref, act_scr,
                      *, B, H0, C, KH, SL, pad_l, pool_cfg, n_conv):
    """act_scr : (NS, C) f32 zero-bordered padded activations.  Batch b occupies
    rows [b*SL, (b+1)*SL); its data sits at rows [b*SL+pad_l, b*SL+pad_l+H).
    Conv outputs are computed for all N = B*SL rows at once ("frame r"):
    output row r = b*SL + h is valid for h < H; rows in between are garbage
    that is never stored back, so the zero padding between slabs stays intact.
    """
    f32 = jnp.float32
    bf16 = jnp.bfloat16
    N = B * SL

    # Zero the whole padded slab ONCE; afterwards only data rows are rewritten.
    act_scr[...] = jnp.zeros(act_scr.shape, f32)

    def conv(l):
        """Conv2dSame((KH,1)) + folded BN/conv bias + ReLU.  Returns (N, C) f32."""
        if l == 0:
            # layer 0: host-built im2col, already laid out in frame r.
            acc = jnp.dot(x_ref[...], w0_ref[...], preferred_element_type=f32)
        else:
            acc = jnp.zeros((N, C), f32)
            for dh in range(KH):                      # sublane-offset loads: cheap
                xs = act_scr[dh:dh + N, :].astype(bf16)
                acc = acc + jnp.dot(xs, wtaps_ref[l - 1, dh],
                                    preferred_element_type=f32)
        return jnp.maximum(acc + cb_ref[l], 0.0)

    def store(y, H):
        """Write the H valid rows of each batch slab back into act_scr."""
        for b in range(B):
            act_scr[b * SL + pad_l:b * SL + pad_l + H, :] = y[b * SL:b * SL + H, :]

    def pool_store(y, Hin, PK, PS):
        """MaxPool2d((PK,1),(PS,1)) of y written into act_scr; stale rows zeroed."""
        Hout = (Hin - PK) // PS + 1
        for b in range(B):
            dst = b * SL + pad_l
            for j in range(Hout):                     # Hout is tiny (2 here)
                win = y[b * SL + j * PS:b * SL + j * PS + PK, :]
                act_scr[dst + j:dst + j + 1, :] = jnp.max(win, axis=0,
                                                          keepdims=True)
            act_scr[dst + Hout:dst + Hin, :] = jnp.zeros((Hin - Hout, C), f32)
        return Hout

    # ---- conv stack: residual connection every 2 blocks ----------------------
    H = H0
    shortcut = None
    for l in range(n_conv):
        y = conv(l)
        if l % 2 == 1:
            # Residual: shortcut is the (post-ReLU / post-pool) output of the
            # first block of the pair, added after this block's ReLU.
            y = y + shortcut
        if pool_cfg[l] is None:
            store(y, H)
        else:
            H = pool_store(y, H, *pool_cfg[l])
        if l % 2 == 0:
            shortcut = act_scr[pad_l:pad_l + N, :]    # frame-r view, pads are 0

    # ---- linear stack: Linear+ReLU, Linear+ReLU, Linear (once for whole batch)
    # lw1 was host-permuted to (H_out, C, L1) to match torch's NCHW flatten.
    L1 = lw1_ref.shape[-1]
    h1 = jnp.zeros((B, L1), f32)
    for j in range(H):
        rows = [act_scr[b * SL + pad_l + j:b * SL + pad_l + j + 1, :]
                for b in range(B)]
        xj = jnp.concatenate(rows, axis=0) if B > 1 else rows[0]      # (B, C)
        h1 = h1 + jnp.dot(xj.astype(bf16), lw1_ref[j],
                          preferred_element_type=f32)
    h1 = jnp.maximum(h1 + lb1_ref[...], 0.0)
    h2 = jnp.maximum(jnp.dot(h1.astype(bf16), lw2_ref[...],
                             preferred_element_type=f32) + lb2_ref[...], 0.0)
    o_ref[...] = jnp.dot(h2.astype(bf16), lw3_ref[...],
                         preferred_element_type=f32) + lb3_ref[...]    # (B, 1)


# ----------------------------------------------------------------------------
# Wrapper: one pallas_call for the whole forward
# ----------------------------------------------------------------------------
def cnn_forward(x_nchw, params, pool_cfg, KH):
    B, Cin, H, W = x_nchw.shape
    assert W == 1, "one-hot DNA convention: width == 1"
    n_conv = params["cb"].shape[0]
    C = params["cb"].shape[-1]
    # TODO(synk): pools on the second block of a residual pair are rejected
    # (the PyTorch reference would shape-mismatch at `x + ShortCut` anyway).
    for i in range(1, n_conv, 2):
        assert pool_cfg[i] is None

    pad_l = (KH - 1) // 2                        # Conv2dSame: left = total // 2
    pad_r = (KH - 1) - pad_l
    SL = _round_up(H + KH - 1, 8)                # 8-aligned per-batch slab stride
    NS = _round_up(B * SL + KH, 8)               # scratch rows (tap reads overrun)

    # Host-side (XLA) im2col for layer 0 (Cin=4 is the worst case for in-kernel
    # lane-offset staging), laid out directly in the kernel's strided frame.
    x = jnp.transpose(x_nchw[:, :, :, 0], (0, 2, 1))              # (B, H, Cin)
    xp = jnp.pad(x, ((0, 0), (pad_l, pad_r), (0, 0)))             # (B, H+KH-1, Cin)
    cols = jnp.concatenate([xp[:, dh:dh + H, :] for dh in range(KH)], axis=-1)
    cols = jnp.pad(cols, ((0, 0), (0, SL - H), (0, 0)))           # (B, SL, KH*Cin)
    x_cols = cols.reshape(B * SL, KH * Cin).astype(jnp.bfloat16)

    kernel = functools.partial(
        _fused_cnn_kernel, B=B, H0=H, C=C, KH=KH, SL=SL, pad_l=pad_l,
        pool_cfg=tuple(pool_cfg), n_conv=n_conv)

    args = (x_cols, params["w0"], params["wtaps"], params["cb"],
            params["lw1"], params["lb1"], params["lw2"], params["lb2"],
            params["lw3"], params["lb3"])

    def _full_block(a):
        nd = a.ndim
        return pl.BlockSpec(tuple(a.shape), lambda i, _nd=nd: (0,) * _nd)

    out = pl.pallas_call(
        kernel,
        grid=(1,),                               # single fused step (see header)
        in_specs=[_full_block(a) for a in args],
        out_specs=pl.BlockSpec((B, 1), lambda i: (0, 0)),
        out_shape=jax.ShapeDtypeStruct((B, 1), jnp.float32),
        scratch_shapes=[pltpu.VMEM((NS, C), jnp.float32)],
        compiler_params=pltpu.CompilerParams(dimension_semantics=("arbitrary",)),
    )(*args)
    return out.reshape(-1)                       # torch.flatten -> (B,)


# ----------------------------------------------------------------------------
# Deterministic synthetic parameters (shapes follow CNN.__init__), with BN and
# conv bias folded on the host, weights pre-cast to bf16 and pre-reshaped.
# ----------------------------------------------------------------------------
def init_params(key, Cin, H, out_channels, KH, pool_cfg, linear_output):
    eps = 1e-5
    C = out_channels[0]
    assert all(c == C for c in out_channels)
    assert len(linear_output) == 2

    conv_w, conv_bias = [], []
    chans = [Cin] + list(out_channels)
    out_h = H
    for n, cout in enumerate(out_channels):
        cin = chans[n]
        key, kw, kcb, kg, kb, km, kv = jax.random.split(key, 7)
        w = jax.random.normal(kw, (KH, cin, cout), jnp.float32) / jnp.sqrt(cin * KH)
        b_conv = 0.05 * jax.random.normal(kcb, (cout,), jnp.float32)
        gamma = 1.0 + 0.1 * jax.random.normal(kg, (cout,), jnp.float32)
        beta = 0.1 * jax.random.normal(kb, (cout,), jnp.float32)
        mean = 0.1 * jax.random.normal(km, (cout,), jnp.float32)
        var = 1.0 + 0.1 * jnp.abs(jax.random.normal(kv, (cout,), jnp.float32))
        scale = gamma / jnp.sqrt(var + eps)              # BatchNorm2d (eval)
        conv_w.append(w * scale[None, None, :])          # fold BN scale into W
        conv_bias.append((beta + (b_conv - mean) * scale).reshape(1, cout))
        if pool_cfg[n] is not None:
            PK, PS = pool_cfg[n]
            out_h = (out_h - PK) // PS + 1

    flat = C * out_h * 1                                 # Cout * H_out * W_out
    sizes = [flat] + list(linear_output) + [1]
    lin_w, lin_b = [], []
    for n in range(len(sizes) - 1):                      # torch layout (out_f, in_f)
        key, kw, kb2 = jax.random.split(key, 3)
        lin_w.append(jax.random.normal(kw, (sizes[n + 1], sizes[n]), jnp.float32)
                     / jnp.sqrt(sizes[n]))
        lin_b.append(0.1 * jax.random.normal(kb2, (sizes[n + 1],), jnp.float32))

    # First linear consumes torch's NCHW flatten (index = c*H_out + h): permute
    # its weight to (H_out, C, L1) so the kernel contracts per spatial row.
    L1 = sizes[1]
    lw1 = lin_w[0].T.reshape(C, out_h, L1).transpose(1, 0, 2)

    bf16 = jnp.bfloat16
    return dict(
        w0=conv_w[0].reshape(KH * Cin, C).astype(bf16),          # im2col layout
        wtaps=jnp.stack(conv_w[1:], axis=0).astype(bf16),        # (n_conv-1, KH, C, C)
        cb=jnp.stack(conv_bias, axis=0),                         # (n_conv, 1, C) f32
        lw1=lw1.astype(bf16), lb1=lin_b[0].reshape(1, L1),
        lw2=lin_w[1].T.astype(bf16), lb2=lin_b[1].reshape(1, -1),
        lw3=lin_w[2].T.astype(bf16), lb3=lin_b[2].reshape(1, 1),
    )


if __name__ == "__main__":
    # Small config consistent with the module: 6 conv blocks (3 residual pairs),
    # (10,1) "same" convs, MaxPool (10,1)/(4,1) on block 5, two hidden FC layers.
    B, Cin, H, W = 2, 4, 16, 1
    out_channels = [64, 64, 64, 64, 64, 64]
    KH = 10
    pool_cfg = (None, None, None, None, (10, 4), None)   # (pool_kernel_h, stride_h)
    linear_output = [32, 32]

    key = jax.random.PRNGKey(0)
    key, kx = jax.random.split(key)
    x = jax.random.normal(kx, (B, Cin, H, W), jnp.float32)   # NCHW like PyTorch

    params = init_params(key, Cin, H, out_channels, KH, pool_cfg, linear_output)

    out = cnn_forward(x, params, pool_cfg, KH)
    out = jax.block_until_ready(out)
    assert out.shape == (B,) and out.dtype == jnp.float32
    print("KERNEL_OK")
</pallas_src>

<mosaic_0001>
module attributes {stable_mosaic.version = 11 : i64} {
  func.func @_fused_cnn_kernel(%arg0: i32, %arg1: memref<64x40xbf16, #tpu.memory_space<vmem>>, %arg2: memref<40x64xbf16, #tpu.memory_space<vmem>>, %arg3: memref<5x10x64x64xbf16, #tpu.memory_space<vmem>>, %arg4: memref<6x1x64xf32, #tpu.memory_space<vmem>>, %arg5: memref<2x64x32xbf16, #tpu.memory_space<vmem>>, %arg6: memref<1x32xf32, #tpu.memory_space<vmem>>, %arg7: memref<32x32xbf16, #tpu.memory_space<vmem>>, %arg8: memref<1x32xf32, #tpu.memory_space<vmem>>, %arg9: memref<32x1xbf16, #tpu.memory_space<vmem>>, %arg10: memref<1x1xf32, #tpu.memory_space<vmem>>, %arg11: memref<2x1xf32, #tpu.memory_space<vmem>>, %arg12: memref<80x64xf32, #tpu.memory_space<vmem>>) attributes {dimension_semantics = [#tpu.dimension_semantics<arbitrary>], iteration_bounds = array<i64: 1>, scalar_prefetch = 0 : i64, scratch_operands = 1 : i64, tpu.core_type = #tpu.core_type<tc>, window_params = [{pipeline_mode = #tpu.pipeline_mode<synchronous>, transform_indices = @transform_0, window_bounds = array<i64: 64, 40>}, {pipeline_mode = #tpu.pipeline_mode<synchronous>, transform_indices = @transform_1, window_bounds = array<i64: 40, 64>}, {pipeline_mode = #tpu.pipeline_mode<synchronous>, transform_indices = @transform_2, window_bounds = array<i64: 5, 10, 64, 64>}, {pipeline_mode = #tpu.pipeline_mode<synchronous>, transform_indices = @transform_3, window_bounds = array<i64: 6, 1, 64>}, {pipeline_mode = #tpu.pipeline_mode<synchronous>, transform_indices = @transform_4, window_bounds = array<i64: 2, 64, 32>}, {pipeline_mode = #tpu.pipeline_mode<synchronous>, transform_indices = @transform_5, window_bounds = array<i64: 1, 32>}, {pipeline_mode = #tpu.pipeline_mode<synchronous>, transform_indices = @transform_6, window_bounds = array<i64: 32, 32>}, {pipeline_mode = #tpu.pipeline_mode<synchronous>, transform_indices = @transform_7, window_bounds = array<i64: 1, 32>}, {pipeline_mode = #tpu.pipeline_mode<synchronous>, transform_indices = @transform_8, window_bounds = array<i64: 32, 1>}, {pipeline_mode = #tpu.pipeline_mode<synchronous>, transform_indices = @transform_9, window_bounds = array<i64: 1, 1>}, {pipeline_mode = #tpu.pipeline_mode<synchronous>, transform_indices = @transform_10, window_bounds = array<i64: 2, 1>}]} {
    %cst = arith.constant 0.000000e+00 : f32
    %0 = vector.broadcast %cst : f32 to vector<80x64xf32>
    %c0 = arith.constant 0 : index
    %c0_0 = arith.constant 0 : index
    %1 = vector.load %arg12[%c0, %c0_0] : memref<80x64xf32, #tpu.memory_space<vmem>>, vector<80x64xf32>
    tpu.vector_store %arg12[%c0, %c0_0], %0 {strides = array<i32>} : memref<80x64xf32, #tpu.memory_space<vmem>>, vector<80x64xf32>,
    %c0_1 = arith.constant 0 : index
    %c0_2 = arith.constant 0 : index
    %2 = vector.load %arg1[%c0_1, %c0_2] : memref<64x40xbf16, #tpu.memory_space<vmem>>, vector<64x40xbf16>
    %c0_3 = arith.constant 0 : index
    %c0_4 = arith.constant 0 : index
    %3 = vector.load %arg2[%c0_3, %c0_4] : memref<40x64xbf16, #tpu.memory_space<vmem>>, vector<40x64xbf16>
    %cst_5 = arith.constant dense<0.000000e+00> : vector<64x64xf32>
    %4 = tpu.matmul %2, %3, %cst_5 {dimension_numbers = #tpu.dot_dimension_numbers<[1], [0], [0], [1], [0, 0, 1, 1], [], []>} : vector<64x40xbf16>, vector<40x64xbf16>, vector<64x64xf32> -> vector<64x64xf32>
    %c0_6 = arith.constant 0 : index
    %c0_7 = arith.constant 0 : index
    %c0_8 = arith.constant 0 : index
    %5 = vector.load %arg4[%c0_6, %c0_7, %c0_8] : memref<6x1x64xf32, #tpu.memory_space<vmem>>, vector<1x1x64xf32>
    %6 = vector.shape_cast %5 : vector<1x1x64xf32> to vector<1x64xf32>
    %7 = vector.broadcast %6 : vector<1x64xf32> to vector<64x64xf32>
    %8 = arith.addf %4, %7 : vector<64x64xf32>
    %cst_9 = arith.constant 0.000000e+00 : f32
    %9 = vector.broadcast %cst_9 : f32 to vector<64x64xf32>
    %10 = arith.maximumf %8, %9 : vector<64x64xf32>
    %11 = vector.extract_strided_slice %10 {offsets = [0, 0], sizes = [16, 64], strides = [1, 1]} : vector<64x64xf32> to vector<16x64xf32>
    %c4 = arith.constant 4 : index
    %c0_10 = arith.constant 0 : index
    %12 = vector.load %arg12[%c4, %c0_10] : memref<80x64xf32, #tpu.memory_space<vmem>>, vector<16x64xf32>
    tpu.vector_store %arg12[%c4, %c0_10], %11 {strides = array<i32>} : memref<80x64xf32, #tpu.memory_space<vmem>>, vector<16x64xf32>,
    %13 = vector.extract_strided_slice %10 {offsets = [32, 0], sizes = [16, 64], strides = [1, 1]} : vector<64x64xf32> to vector<16x64xf32>
    %c36 = arith.constant 36 : index
    %c0_11 = arith.constant 0 : index
    %14 = vector.load %arg12[%c36, %c0_11] : memref<80x64xf32, #tpu.memory_space<vmem>>, vector<16x64xf32>
    tpu.vector_store %arg12[%c36, %c0_11], %13 {strides = array<i32>} : memref<80x64xf32, #tpu.memory_space<vmem>>, vector<16x64xf32>,
    %c4_12 = arith.constant 4 : index
    %c0_13 = arith.constant 0 : index
    %15 = vector.load %arg12[%c4_12, %c0_13] : memref<80x64xf32, #tpu.memory_space<vmem>>, vector<64x64xf32>
    %cst_14 = arith.constant 0.000000e+00 : f32
    %16 = vector.broadcast %cst_14 : f32 to vector<64x64xf32>
    %c0_15 = arith.constant 0 : index
    %c0_16 = arith.constant 0 : index
    %17 = vector.load %arg12[%c0_15, %c0_16] : memref<80x64xf32, #tpu.memory_space<vmem>>, vector<64x64xf32>
    %18 = arith.truncf %17 : vector<64x64xf32> to vector<64x64xbf16>
    %c0_17 = arith.constant 0 : index
    %c0_18 = arith.constant 0 : index
    %c0_19 = arith.constant 0 : index
    %c0_20 = arith.constant 0 : index
    %19 = vector.load %arg3[%c0_17, %c0_18, %c0_19, %c0_20] : memref<5x10x64x64xbf16, #tpu.memory_space<vmem>>, vector<1x1x64x64xbf16>
    %20 = vector.shape_cast %19 : vector<1x1x64x64xbf16> to vector<64x64xbf16>
    %cst_21 = arith.constant dense<0.000000e+00> : vector<64x64xf32>
    %21 = tpu.matmul %18, %20, %cst_21 {dimension_numbers = #tpu.dot_dimension_numbers<[1], [0], [0], [1], [0, 0, 1, 1], [], []>} : vector<64x64xbf16>, vector<64x64xbf16>, vector<64x64xf32> -> vector<64x64xf32>
    %22 = arith.addf %16, %21 : vector<64x64xf32>
    %c1 = arith.constant 1 : index
    %c0_22 = arith.constant 0 : index
    %23 = vector.load %arg12[%c1, %c0_22] : memref<80x64xf32, #tpu.memory_space<vmem>>, vector<64x64xf32>
    %24 = arith.truncf %23 : vector<64x64xf32> to vector<64x64xbf16>
    %c0_23 = arith.constant 0 : index
    %c1_24 = arith.constant 1 : index
    %c0_25 = arith.constant 0 : index
    %c0_26 = arith.constant 0 : index
    %25 = vector.load %arg3[%c0_23, %c1_24, %c0_25, %c0_26] : memref<5x10x64x64xbf16, #tpu.memory_space<vmem>>, vector<1x1x64x64xbf16>
    %26 = vector.shape_cast %25 : vector<1x1x64x64xbf16> to vector<64x64xbf16>
    %cst_27 = arith.constant dense<0.000000e+00> : vector<64x64xf32>
    %27 = tpu.matmul %24, %26, %cst_27 {dimension_numbers = #tpu.dot_dimension_numbers<[1], [0], [0], [1], [0, 0, 1, 1], [], []>} : vector<64x64xbf16>, vector<64x64xbf16>, vector<64x64xf32> -> vector<64x64xf32>
    %28 = arith.addf %22, %27 : vector<64x64xf32>
    %c2 = arith.constant 2 : index
    %c0_28 = arith.constant 0 : index
    %29 = vector.load %arg12[%c2, %c0_28] : memref<80x64xf32, #tpu.memory_space<vmem>>, vector<64x64xf32>
    %30 = arith.truncf %29 : vector<64x64xf32> to vector<64x64xbf16>
    %c0_29 = arith.constant 0 : index
    %c2_30 = arith.constant 2 : index
    %c0_31 = arith.constant 0 : index
    %c0_32 = arith.constant 0 : index
    %31 = vector.load %arg3[%c0_29, %c2_30, %c0_31, %c0_32] : memref<5x10x64x64xbf16, #tpu.memory_space<vmem>>, vector<1x1x64x64xbf16>
    %32 = vector.shape_cast %31 : vector<1x1x64x64xbf16> to vector<64x64xbf16>
    %cst_33 = arith.constant dense<0.000000e+00> : vector<64x64xf32>
    %33 = tpu.matmul %30, %32, %cst_33 {dimension_numbers = #tpu.dot_dimension_numbers<[1], [0], [0], [1], [0, 0, 1, 1], [], []>} : vector<64x64xbf16>, vector<64x64xbf16>, vector<64x64xf32> -> vector<64x64xf32>
    %34 = arith.addf %28, %33 : vector<64x64xf32>
    %c3 = arith.constant 3 : index
    %c0_34 = arith.constant 0 : index
    %35 = vector.load %arg12[%c3, %c0_34] : memref<80x64xf32, #tpu.memory_space<vmem>>, vector<64x64xf32>
    %36 = arith.truncf %35 : vector<64x64xf32> to vector<64x64xbf16>
    %c0_35 = arith.constant 0 : index
    %c3_36 = arith.constant 3 : index
    %c0_37 = arith.constant 0 : index
    %c0_38 = arith.constant 0 : index
    %37 = vector.load %arg3[%c0_35, %c3_36, %c0_37, %c0_38] : memref<5x10x64x64xbf16, #tpu.memory_space<vmem>>, vector<1x1x64x64xbf16>
    %38 = vector.shape_cast %37 : vector<1x1x64x64xbf16> to vector<64x64xbf16>
    %cst_39 = arith.constant dense<0.000000e+00> : vector<64x64xf32>
    %39 = tpu.matmul %36, %38, %cst_39 {dimension_numbers = #tpu.dot_dimension_numbers<[1], [0], [0], [1], [0, 0, 1, 1], [], []>} : vector<64x64xbf16>, vector<64x64xbf16>, vector<64x64xf32> -> vector<64x64xf32>
    %40 = arith.addf %34, %39 : vector<64x64xf32>
    %c4_40 = arith.constant 4 : index
    %c0_41 = arith.constant 0 : index
    %41 = vector.load %arg12[%c4_40, %c0_41] : memref<80x64xf32, #tpu.memory_space<vmem>>, vector<64x64xf32>
    %42 = arith.truncf %41 : vector<64x64xf32> to vector<64x64xbf16>
    %c0_42 = arith.constant 0 : index
    %c4_43 = arith.constant 4 : index
    %c0_44 = arith.constant 0 : index
    %c0_45 = arith.constant 0 : index
    %43 = vector.load %arg3[%c0_42, %c4_43, %c0_44, %c0_45] : memref<5x10x64x64xbf16, #tpu.memory_space<vmem>>, vector<1x1x64x64xbf16>
    %44 = vector.shape_cast %43 : vector<1x1x64x64xbf16> to vector<64x64xbf16>
    %cst_46 = arith.constant dense<0.000000e+00> : vector<64x64xf32>
    %45 = tpu.matmul %42, %44, %cst_46 {dimension_numbers = #tpu.dot_dimension_numbers<[1], [0], [0], [1], [0, 0, 1, 1], [], []>} : vector<64x64xbf16>, vector<64x64xbf16>, vector<64x64xf32> -> vector<64x64xf32>
    %46 = arith.addf %40, %45 : vector<64x64xf32>
    %c5 = arith.constant 5 : index
    %c0_47 = arith.constant 0 : index
    %47 = vector.load %arg12[%c5, %c0_47] : memref<80x64xf32, #tpu.memory_space<vmem>>, vector<64x64xf32>
    %48 = arith.truncf %47 : vector<64x64xf32> to vector<64x64xbf16>
    %c0_48 = arith.constant 0 : index
    %c5_49 = arith.constant 5 : index
    %c0_50 = arith.constant 0 : index
    %c0_51 = arith.constant 0 : index
    %49 = vector.load %arg3[%c0_48, %c5_49, %c0_50, %c0_51] : memref<5x10x64x64xbf16, #tpu.memory_space<vmem>>, vector<1x1x64x64xbf16>
    %50 = vector.shape_cast %49 : vector<1x1x64x64xbf16> to vector<64x64xbf16>
    %cst_52 = arith.constant dense<0.000000e+00> : vector<64x64xf32>
    %51 = tpu.matmul %48, %50, %cst_52 {dimension_numbers = #tpu.dot_dimension_numbers<[1], [0], [0], [1], [0, 0, 1, 1], [], []>} : vector<64x64xbf16>, vector<64x64xbf16>, vector<64x64xf32> -> vector<64x64xf32>
    %52 = arith.addf %46, %51 : vector<64x64xf32>
    %c6 = arith.constant 6 : index
    %c0_53 = arith.constant 0 : index
    %53 = vector.load %arg12[%c6, %c0_53] : memref<80x64xf32, #tpu.memory_space<vmem>>, vector<64x64xf32>
    %54 = arith.truncf %53 : vector<64x64xf32> to vector<64x64xbf16>
    %c0_54 = arith.constant 0 : index
    %c6_55 = arith.constant 6 : index
    %c0_56 = arith.constant 0 : index
    %c0_57 = arith.constant 0 : index
    %55 = vector.load %arg3[%c0_54, %c6_55, %c0_56, %c0_57] : memref<5x10x64x64xbf16, #tpu.memory_space<vmem>>, vector<1x1x64x64xbf16>
    %56 = vector.shape_cast %55 : vector<1x1x64x64xbf16> to vector<64x64xbf16>
    %cst_58 = arith.constant dense<0.000000e+00> : vector<64x64xf32>
    %57 = tpu.matmul %54, %56, %cst_58 {dimension_numbers = #tpu.dot_dimension_numbers<[1], [0], [0], [1], [0, 0, 1, 1], [], []>} : vector<64x64xbf16>, vector<64x64xbf16>, vector<64x64xf32> -> vector<64x64xf32>
    %58 = arith.addf %52, %57 : vector<64x64xf32>
    %c7 = arith.constant 7 : index
    %c0_59 = arith.constant 0 : index
    %59 = vector.load %arg12[%c7, %c0_59] : memref<80x64xf32, #tpu.memory_space<vmem>>, vector<64x64xf32>
    %60 = arith.truncf %59 : vector<64x64xf32> to vector<64x64xbf16>
    %c0_60 = arith.constant 0 : index
    %c7_61 = arith.constant 7 : index
    %c0_62 = arith.constant 0 : index
    %c0_63 = arith.constant 0 : index
    %61 = vector.load %arg3[%c0_60, %c7_61, %c0_62, %c0_63] : memref<5x10x64x64xbf16, #tpu.memory_space<vmem>>, vector<1x1x64x64xbf16>
    %62 = vector.shape_cast %61 : vector<1x1x64x64xbf16> to vector<64x64xbf16>
    %cst_64 = arith.constant dense<0.000000e+00> : vector<64x64xf32>
    %63 = tpu.matmul %60, %62, %cst_64 {dimension_numbers = #tpu.dot_dimension_numbers<[1], [0], [0], [1], [0, 0, 1, 1], [], []>} : vector<64x64xbf16>, vector<64x64xbf16>, vector<64x64xf32> -> vector<64x64xf32>
    %64 = arith.addf %58, %63 : vector<64x64xf32>
    %c8 = arith.constant 8 : index
    %c0_65 = arith.constant 0 : index
    %65 = vector.load %arg12[%c8, %c0_65] : memref<80x64xf32, #tpu.memory_space<vmem>>, vector<64x64xf32>
    %66 = arith.truncf %65 : vector<64x64xf32> to vector<64x64xbf16>
    %c0_66 = arith.constant 0 : index
    %c8_67 = arith.constant 8 : index
    %c0_68 = arith.constant 0 : index
    %c0_69 = arith.constant 0 : index
    %67 = vector.load %arg3[%c0_66, %c8_67, %c0_68, %c0_69] : memref<5x10x64x64xbf16, #tpu.memory_space<vmem>>, vector<1x1x64x64xbf16>
    %68 = vector.shape_cast %67 : vector<1x1x64x64xbf16> to vector<64x64xbf16>
    %cst_70 = arith.constant dense<0.000000e+00> : vector<64x64xf32>
    %69 = tpu.matmul %66, %68, %cst_70 {dimension_numbers = #tpu.dot_dimension_numbers<[1], [0], [0], [1], [0, 0, 1, 1], [], []>} : vector<64x64xbf16>, vector<64x64xbf16>, vector<64x64xf32> -> vector<64x64xf32>
    %70 = arith.addf %64, %69 : vector<64x64xf32>
    %c9 = arith.constant 9 : index
    %c0_71 = arith.constant 0 : index
    %71 = vector.load %arg12[%c9, %c0_71] : memref<80x64xf32, #tpu.memory_space<vmem>>, vector<64x64xf32>
    %72 = arith.truncf %71 : vector<64x64xf32> to vector<64x64xbf16>
    %c0_72 = arith.constant 0 : index
    %c9_73 = arith.constant 9 : index
    %c0_74 = arith.constant 0 : index
    %c0_75 = arith.constant 0 : index
    %73 = vector.load %arg3[%c0_72, %c9_73, %c0_74, %c0_75] : memref<5x10x64x64xbf16, #tpu.memory_space<vmem>>, vector<1x1x64x64xbf16>
    %74 = vector.shape_cast %73 : vector<1x1x64x64xbf16> to vector<64x64xbf16>
    %cst_76 = arith.constant dense<0.000000e+00> : vector<64x64xf32>
    %75 = tpu.matmul %72, %74, %cst_76 {dimension_numbers = #tpu.dot_dimension_numbers<[1], [0], [0], [1], [0, 0, 1, 1], [], []>} : vector<64x64xbf16>, vector<64x64xbf16>, vector<64x64xf32> -> vector<64x64xf32>
    %76 = arith.addf %70, %75 : vector<64x64xf32>
    %c1_77 = arith.constant 1 : index
    %c0_78 = arith.constant 0 : index
    %c0_79 = arith.constant 0 : index
    %77 = vector.load %arg4[%c1_77, %c0_78, %c0_79] : memref<6x1x64xf32, #tpu.memory_space<vmem>>, vector<1x1x64xf32>
    %78 = vector.shape_cast %77 : vector<1x1x64xf32> to vector<1x64xf32>
    %79 = vector.broadcast %78 : vector<1x64xf32> to vector<64x64xf32>
    %80 = arith.addf %76, %79 : vector<64x64xf32>
    %cst_80 = arith.constant 0.000000e+00 : f32
    %81 = vector.broadcast %cst_80 : f32 to vector<64x64xf32>
    %82 = arith.maximumf %80, %81 : vector<64x64xf32>
    %83 = arith.addf %82, %15 : vector<64x64xf32>
    %84 = vector.extract_strided_slice %83 {offsets = [0, 0], sizes = [16, 64], strides = [1, 1]} : vector<64x64xf32> to vector<16x64xf32>
    %c4_81 = arith.constant 4 : index
    %c0_82 = arith.constant 0 : index
    %85 = vector.load %arg12[%c4_81, %c0_82] : memref<80x64xf32, #tpu.memory_space<vmem>>, vector<16x64xf32>
    tpu.vector_store %arg12[%c4_81, %c0_82], %84 {strides = array<i32>} : memref<80x64xf32, #tpu.memory_space<vmem>>, vector<16x64xf32>,
    %86 = vector.extract_strided_slice %83 {offsets = [32, 0], sizes = [16, 64], strides = [1, 1]} : vector<64x64xf32> to vector<16x64xf32>
    %c36_83 = arith.constant 36 : index
    %c0_84 = arith.constant 0 : index
    %87 = vector.load %arg12[%c36_83, %c0_84] : memref<80x64xf32, #tpu.memory_space<vmem>>, vector<16x64xf32>
    tpu.vector_store %arg12[%c36_83, %c0_84], %86 {strides = array<i32>} : memref<80x64xf32, #tpu.memory_space<vmem>>, vector<16x64xf32>,
    %cst_85 = arith.constant 0.000000e+00 : f32
    %88 = vector.broadcast %cst_85 : f32 to vector<64x64xf32>
    %c0_86 = arith.constant 0 : index
    %c0_87 = arith.constant 0 : index
    %89 = vector.load %arg12[%c0_86, %c0_87] : memref<80x64xf32, #tpu.memory_space<vmem>>, vector<64x64xf32>
    %90 = arith.truncf %89 : vector<64x64xf32> to vector<64x64xbf16>
    %c1_88 = arith.constant 1 : index
    %c0_89 = arith.constant 0 : index
    %c0_90 = arith.constant 0 : index
    %c0_91 = arith.constant 0 : index
    %91 = vector.load %arg3[%c1_88, %c0_89, %c0_90, %c0_91] : memref<5x10x64x64xbf16, #tpu.memory_space<vmem>>, vector<1x1x64x64xbf16>
    %92 = vector.shape_cast %91 : vector<1x1x64x64xbf16> to vector<64x64xbf16>
    %cst_92 = arith.constant dense<0.000000e+00> : vector<64x64xf32>
    %93 = tpu.matmul %90, %92, %cst_92 {dimension_numbers = #tpu.dot_dimension_numbers<[1], [0], [0], [1], [0, 0, 1, 1], [], []>} : vector<64x64xbf16>, vector<64x64xbf16>, vector<64x64xf32> -> vector<64x64xf32>
    %94 = arith.addf %88, %93 : vector<64x64xf32>
    %c1_93 = arith.constant 1 : index
    %c0_94 = arith.constant 0 : index
    %95 = vector.load %arg12[%c1_93, %c0_94] : memref<80x64xf32, #tpu.memory_space<vmem>>, vector<64x64xf32>
    %96 = arith.truncf %95 : vector<64x64xf32> to vector<64x64xbf16>
    %c1_95 = arith.constant 1 : index
    %c1_96 = arith.constant 1 : index
    %c0_97 = arith.constant 0 : index
    %c0_98 = arith.constant 0 : index
    %97 = vector.load %arg3[%c1_95, %c1_96, %c0_97, %c0_98] : memref<5x10x64x64xbf16, #tpu.memory_space<vmem>>, vector<1x1x64x64xbf16>
    %98 = vector.shape_cast %97 : vector<1x1x64x64xbf16> to vector<64x64xbf16>
    %cst_99 = arith.constant dense<0.000000e+00> : vector<64x64xf32>
    %99 = tpu.matmul %96, %98, %cst_99 {dimension_numbers = #tpu.dot_dimension_numbers<[1], [0], [0], [1], [0, 0, 1, 1], [], []>} : vector<64x64xbf16>, vector<64x64xbf16>, vector<64x64xf32> -> vector<64x64xf32>
    %100 = arith.addf %94, %99 : vector<64x64xf32>
    %c2_100 = arith.constant 2 : index
    %c0_101 = arith.constant 0 : index
    %101 = vector.load %arg12[%c2_100, %c0_101] : memref<80x64xf32, #tpu.memory_space<vmem>>, vector<64x64xf32>
    %102 = arith.truncf %101 : vector<64x64xf32> to vector<64x64xbf16>
    %c1_102 = arith.constant 1 : index
    %c2_103 = arith.constant 2 : index
    %c0_104 = arith.constant 0 : index
    %c0_105 = arith.constant 0 : index
    %103 = vector.load %arg3[%c1_102, %c2_103, %c0_104, %c0_105] : memref<5x10x64x64xbf16, #tpu.memory_space<vmem>>, vector<1x1x64x64xbf16>
    %104 = vector.shape_cast %103 : vector<1x1x64x64xbf16> to vector<64x64xbf16>
    %cst_106 = arith.constant dense<0.000000e+00> : vector<64x64xf32>
    %105 = tpu.matmul %102, %104, %cst_106 {dimension_numbers = #tpu.dot_dimension_numbers<[1], [0], [0], [1], [0, 0, 1, 1], [], []>} : vector<64x64xbf16>, vector<64x64xbf16>, vector<64x64xf32> -> vector<64x64xf32>
    %106 = arith.addf %100, %105 : vector<64x64xf32>
    %c3_107 = arith.constant 3 : index
    %c0_108 = arith.constant 0 : index
    %107 = vector.load %arg12[%c3_107, %c0_108] : memref<80x64xf32, #tpu.memory_space<vmem>>, vector<64x64xf32>
    %108 = arith.truncf %107 : vector<64x64xf32> to vector<64x64xbf16>
    %c1_109 = arith.constant 1 : index
    %c3_110 = arith.constant 3 : index
    %c0_111 = arith.constant 0 : index
    %c0_112 = arith.constant 0 : index
    %109 = vector.load %arg3[%c1_109, %c3_110, %c0_111, %c0_112] : memref<5x10x64x64xbf16, #tpu.memory_space<vmem>>, vector<1x1x64x64xbf16>
    %110 = vector.shape_cast %109 : vector<1x1x64x64xbf16> to vector<64x64xbf16>
    %cst_113 = arith.constant dense<0.000000e+00> : vector<64x64xf32>
    %111 = tpu.matmul %108, %110, %cst_113 {dimension_numbers = #tpu.dot_dimension_numbers<[1], [0], [0], [1], [0, 0, 1, 1], [], []>} : vector<64x64xbf16>, vector<64x64xbf16>, vector<64x64xf32> -> vector<64x64xf32>
    %112 = arith.addf %106, %111 : vector<64x64xf32>
    %c4_114 = arith.constant 4 : index
    %c0_115 = arith.constant 0 : index
    %113 = vector.load %arg12[%c4_114, %c0_115] : memref<80x64xf32, #tpu.memory_space<vmem>>, vector<64x64xf32>
    %114 = arith.truncf %113 : vector<64x64xf32> to vector<64x64xbf16>
    %c1_116 = arith.constant 1 : index
    %c4_117 = arith.constant 4 : index
    %c0_118 = arith.constant 0 : index
    %c0_119 = arith.constant 0 : index
    %115 = vector.load %arg3[%c1_116, %c4_117, %c0_118, %c0_119] : memref<5x10x64x64xbf16, #tpu.memory_space<vmem>>, vector<1x1x64x64xbf16>
    %116 = vector.shape_cast %115 : vector<1x1x64x64xbf16> to vector<64x64xbf16>
    %cst_120 = arith.constant dense<0.000000e+00> : vector<64x64xf32>
    %117 = tpu.matmul %114, %116, %cst_120 {dimension_numbers = #tpu.dot_dimension_numbers<[1], [0], [0], [1], [0, 0, 1, 1], [], []>} : vector<64x64xbf16>, vector<64x64xbf16>, vector<64x64xf32> -> vector<64x64xf32>
    %118 = arith.addf %112, %117 : vector<64x64xf32>
    %c5_121 = arith.constant 5 : index
    %c0_122 = arith.constant 0 : index
    %119 = vector.load %arg12[%c5_121, %c0_122] : memref<80x64xf32, #tpu.memory_space<vmem>>, vector<64x64xf32>
    %120 = arith.truncf %119 : vector<64x64xf32> to vector<64x64xbf16>
    %c1_123 = arith.constant 1 : index
    %c5_124 = arith.constant 5 : index
    %c0_125 = arith.constant 0 : index
    %c0_126 = arith.constant 0 : index
    %121 = vector.load %arg3[%c1_123, %c5_124, %c0_125, %c0_126] : memref<5x10x64x64xbf16, #tpu.memory_space<vmem>>, vector<1x1x64x64xbf16>
    %122 = vector.shape_cast %121 : vector<1x1x64x64xbf16> to vector<64x64xbf16>
    %cst_127 = arith.constant dense<0.000000e+00> : vector<64x64xf32>
    %123 = tpu.matmul %120, %122, %cst_127 {dimension_numbers = #tpu.dot_dimension_numbers<[1], [0], [0], [1], [0, 0, 1, 1], [], []>} : vector<64x64xbf16>, vector<64x64xbf16>, vector<64x64xf32> -> vector<64x64xf32>
    %124 = arith.addf %118, %123 : vector<64x64xf32>
    %c6_128 = arith.constant 6 : index
    %c0_129 = arith.constant 0 : index
    %125 = vector.load %arg12[%c6_128, %c0_129] : memref<80x64xf32, #tpu.memory_space<vmem>>, vector<64x64xf32>
    %126 = arith.truncf %125 : vector<64x64xf32> to vector<64x64xbf16>
    %c1_130 = arith.constant 1 : index
    %c6_131 = arith.constant 6 : index
    %c0_132 = arith.constant 0 : index
    %c0_133 = arith.constant 0 : index
    %127 = vector.load %arg3[%c1_130, %c6_131, %c0_132, %c0_133] : memref<5x10x64x64xbf16, #tpu.memory_space<vmem>>, vector<1x1x64x64xbf16>
    %128 = vector.shape_cast %127 : vector<1x1x64x64xbf16> to vector<64x64xbf16>
    %cst_134 = arith.constant dense<0.000000e+00> : vector<64x64xf32>
    %129 = tpu.matmul %126, %128, %cst_134 {dimension_numbers = #tpu.dot_dimension_numbers<[1], [0], [0], [1], [0, 0, 1, 1], [], []>} : vector<64x64xbf16>, vector<64x64xbf16>, vector<64x64xf32> -> vector<64x64xf32>
    %130 = arith.addf %124, %129 : vector<64x64xf32>
    %c7_135 = arith.constant 7 : index
    %c0_136 = arith.constant 0 : index
    %131 = vector.load %arg12[%c7_135, %c0_136] : memref<80x64xf32, #tpu.memory_space<vmem>>, vector<64x64xf32>
    %132 = arith.truncf %131 : vector<64x64xf32> to vector<64x64xbf16>
    %c1_137 = arith.constant 1 : index
    %c7_138 = arith.constant 7 : index
    %c0_139 = arith.constant 0 : index
    %c0_140 = arith.constant 0 : index
    %133 = vector.load %arg3[%c1_137, %c7_138, %c0_139, %c0_140] : memref<5x10x64x64xbf16, #tpu.memory_space<vmem>>, vector<1x1x64x64xbf16>
    %134 = vector.shape_cast %133 : vector<1x1x64x64xbf16> to vector<64x64xbf16>
    %cst_141 = arith.constant dense<0.000000e+00> : vector<64x64xf32>
    %135 = tpu.matmul %132, %134, %cst_141 {dimension_numbers = #tpu.dot_dimension_numbers<[1], [0], [0], [1], [0, 0, 1, 1], [], []>} : vector<64x64xbf16>, vector<64x64xbf16>, vector<64x64xf32> -> vector<64x64xf32>
    %136 = arith.addf %130, %135 : vector<64x64xf32>
    %c8_142 = arith.constant 8 : index
    %c0_143 = arith.constant 0 : index
    %137 = vector.load %arg12[%c8_142, %c0_143] : memref<80x64xf32, #tpu.memory_space<vmem>>, vector<64x64xf32>
    %138 = arith.truncf %137 : vector<64x64xf32> to vector<64x64xbf16>
    %c1_144 = arith.constant 1 : index
    %c8_145 = arith.constant 8 : index
    %c0_146 = arith.constant 0 : index
    %c0_147 = arith.constant 0 : index
    %139 = vector.load %arg3[%c1_144, %c8_145, %c0_146, %c0_147] : memref<5x10x64x64xbf16, #tpu.memory_space<vmem>>, vector<1x1x64x64xbf16>
    %140 = vector.shape_cast %139 : vector<1x1x64x64xbf16> to vector<64x64xbf16>
    %cst_148 = arith.constant dense<0.000000e+00> : vector<64x64xf32>
    %141 = tpu.matmul %138, %140, %cst_148 {dimension_numbers = #tpu.dot_dimension_numbers<[1], [0], [0], [1], [0, 0, 1, 1], [], []>} : vector<64x64xbf16>, vector<64x64xbf16>, vector<64x64xf32> -> vector<64x64xf32>
    %142 = arith.addf %136, %141 : vector<64x64xf32>
    %c9_149 = arith.constant 9 : index
    %c0_150 = arith.constant 0 : index
    %143 = vector.load %arg12[%c9_149, %c0_150] : memref<80x64xf32, #tpu.memory_space<vmem>>, vector<64x64xf32>
    %144 = arith.truncf %143 : vector<64x64xf32> to vector<64x64xbf16>
    %c1_151 = arith.constant 1 : index
    %c9_152 = arith.constant 9 : index
    %c0_153 = arith.constant 0 : index
    %c0_154 = arith.constant 0 : index
    %145 = vector.load %arg3[%c1_151, %c9_152, %c0_153, %c0_154] : memref<5x10x64x64xbf16, #tpu.memory_space<vmem>>, vector<1x1x64x64xbf16>
    %146 = vector.shape_cast %145 : vector<1x1x64x64xbf16> to vector<64x64xbf16>
    %cst_155 = arith.constant dense<0.000000e+00> : vector<64x64xf32>
    %147 = tpu.matmul %144, %146, %cst_155 {dimension_numbers = #tpu.dot_dimension_numbers<[1], [0], [0], [1], [0, 0, 1, 1], [], []>} : vector<64x64xbf16>, vector<64x64xbf16>, vector<64x64xf32> -> vector<64x64xf32>
    %148 = arith.addf %142, %147 : vector<64x64xf32>
    %c2_156 = arith.constant 2 : index
    %c0_157 = arith.constant 0 : index
    %c0_158 = arith.constant 0 : index
    %149 = vector.load %arg4[%c2_156, %c0_157, %c0_158] : memref<6x1x64xf32, #tpu.memory_space<vmem>>, vector<1x1x64xf32>
    %150 = vector.shape_cast %149 : vector<1x1x64xf32> to vector<1x64xf32>
    %151 = vector.broadcast %150 : vector<1x64xf32> to vector<64x64xf32>
    %152 = arith.addf %148, %151 : vector<64x64xf32>
    %cst_159 = arith.constant 0.000000e+00 : f32
    %153 = vector.broadcast %cst_159 : f32 to vector<64x64xf32>
    %154 = arith.maximumf %152, %153 : vector<64x64xf32>
    %155 = vector.extract_strided_slice %154 {offsets = [0, 0], sizes = [16, 64], strides = [1, 1]} : vector<64x64xf32> to vector<16x64xf32>
    %c4_160 = arith.constant 4 : index
    %c0_161 = arith.constant 0 : index
    %156 = vector.load %arg12[%c4_160, %c0_161] : memref<80x64xf32, #tpu.memory_space<vmem>>, vector<16x64xf32>
    tpu.vector_store %arg12[%c4_160, %c0_161], %155 {strides = array<i32>} : memref<80x64xf32, #tpu.memory_space<vmem>>, vector<16x64xf32>,
    %157 = vector.extract_strided_slice %154 {offsets = [32, 0], sizes = [16, 64], strides = [1, 1]} : vector<64x64xf32> to vector<16x64xf32>
    %c36_162 = arith.constant 36 : index
    %c0_163 = arith.constant 0 : index
    %158 = vector.load %arg12[%c36_162, %c0_163] : memref<80x64xf32, #tpu.memory_space<vmem>>, vector<16x64xf32>
    tpu.vector_store %arg12[%c36_162, %c0_163], %157 {strides = array<i32>} : memref<80x64xf32, #tpu.memory_space<vmem>>, vector<16x64xf32>,
    %c4_164 = arith.constant 4 : index
    %c0_165 = arith.constant 0 : index
    %159 = vector.load %arg12[%c4_164, %c0_165] : memref<80x64xf32, #tpu.memory_space<vmem>>, vector<64x64xf32>
    %cst_166 = arith.constant 0.000000e+00 : f32
    %160 = vector.broadcast %cst_166 : f32 to vector<64x64xf32>
    %c0_167 = arith.constant 0 : index
    %c0_168 = arith.constant 0 : index
    %161 = vector.load %arg12[%c0_167, %c0_168] : memref<80x64xf32, #tpu.memory_space<vmem>>, vector<64x64xf32>
    %162 = arith.truncf %161 : vector<64x64xf32> to vector<64x64xbf16>
    %c2_169 = arith.constant 2 : index
    %c0_170 = arith.constant 0 : index
    %c0_171 = arith.constant 0 : index
    %c0_172 = arith.constant 0 : index
    %163 = vector.load %arg3[%c2_169, %c0_170, %c0_171, %c0_172] : memref<5x10x64x64xbf16, #tpu.memory_space<vmem>>, vector<1x1x64x64xbf16>
    %164 = vector.shape_cast %163 : vector<1x1x64x64xbf16> to vector<64x64xbf16>
    %cst_173 = arith.constant dense<0.000000e+00> : vector<64x64xf32>
    %165 = tpu.matmul %162, %164, %cst_173 {dimension_numbers = #tpu.dot_dimension_numbers<[1], [0], [0], [1], [0, 0, 1, 1], [], []>} : vector<64x64xbf16>, vector<64x64xbf16>, vector<64x64xf32> -> vector<64x64xf32>
    %166 = arith.addf %160, %165 : vector<64x64xf32>
    %c1_174 = arith.constant 1 : index
    %c0_175 = arith.constant 0 : index
    %167 = vector.load %arg12[%c1_174, %c0_175] : memref<80x64xf32, #tpu.memory_space<vmem>>, vector<64x64xf32>
    %168 = arith.truncf %167 : vector<64x64xf32> to vector<64x64xbf16>
    %c2_176 = arith.constant 2 : index
    %c1_177 = arith.constant 1 : index
    %c0_178 = arith.constant 0 : index
    %c0_179 = arith.constant 0 : index
    %169 = vector.load %arg3[%c2_176, %c1_177, %c0_178, %c0_179] : memref<5x10x64x64xbf16, #tpu.memory_space<vmem>>, vector<1x1x64x64xbf16>
    %170 = vector.shape_cast %169 : vector<1x1x64x64xbf16> to vector<64x64xbf16>
    %cst_180 = arith.constant dense<0.000000e+00> : vector<64x64xf32>
    %171 = tpu.matmul %168, %170, %cst_180 {dimension_numbers = #tpu.dot_dimension_numbers<[1], [0], [0], [1], [0, 0, 1, 1], [], []>} : vector<64x64xbf16>, vector<64x64xbf16>, vector<64x64xf32> -> vector<64x64xf32>
    %172 = arith.addf %166, %171 : vector<64x64xf32>
    %c2_181 = arith.constant 2 : index
    %c0_182 = arith.constant 0 : index
    %173 = vector.load %arg12[%c2_181, %c0_182] : memref<80x64xf32, #tpu.memory_space<vmem>>, vector<64x64xf32>
    %174 = arith.truncf %173 : vector<64x64xf32> to vector<64x64xbf16>
    %c2_183 = arith.constant 2 : index
    %c2_184 = arith.constant 2 : index
    %c0_185 = arith.constant 0 : index
    %c0_186 = arith.constant 0 : index
    %175 = vector.load %arg3[%c2_183, %c2_184, %c0_185, %c0_186] : memref<5x10x64x64xbf16, #tpu.memory_space<vmem>>, vector<1x1x64x64xbf16>
    %176 = vector.shape_cast %175 : vector<1x1x64x64xbf16> to vector<64x64xbf16>
    %cst_187 = arith.constant dense<0.000000e+00> : vector<64x64xf32>
    %177 = tpu.matmul %174, %176, %cst_187 {dimension_numbers = #tpu.dot_dimension_numbers<[1], [0], [0], [1], [0, 0, 1, 1], [], []>} : vector<64x64xbf16>, vector<64x64xbf16>, vector<64x64xf32> -> vector<64x64xf32>
    %178 = arith.addf %172, %177 : vector<64x64xf32>
    %c3_188 = arith.constant 3 : index
    %c0_189 = arith.constant 0 : index
    %179 = vector.load %arg12[%c3_188, %c0_189] : memref<80x64xf32, #tpu.memory_space<vmem>>, vector<64x64xf32>
    %180 = arith.truncf %179 : vector<64x64xf32> to vector<64x64xbf16>
    %c2_190 = arith.constant 2 : index
    %c3_191 = arith.constant 3 : index
    %c0_192 = arith.constant 0 : index
    %c0_193 = arith.constant 0 : index
    %181 = vector.load %arg3[%c2_190, %c3_191, %c0_192, %c0_193] : memref<5x10x64x64xbf16, #tpu.memory_space<vmem>>, vector<1x1x64x64xbf16>
    %182 = vector.shape_cast %181 : vector<1x1x64x64xbf16> to vector<64x64xbf16>
    %cst_194 = arith.constant dense<0.000000e+00> : vector<64x64xf32>
    %183 = tpu.matmul %180, %182, %cst_194 {dimension_numbers = #tpu.dot_dimension_numbers<[1], [0], [0], [1], [0, 0, 1, 1], [], []>} : vector<64x64xbf16>, vector<64x64xbf16>, vector<64x64xf32> -> vector<64x64xf32>
    %184 = arith.addf %178, %183 : vector<64x64xf32>
    %c4_195 = arith.constant 4 : index
    %c0_196 = arith.constant 0 : index
    %185 = vector.load %arg12[%c4_195, %c0_196] : memref<80x64xf32, #tpu.memory_space<vmem>>, vector<64x64xf32>
    %186 = arith.truncf %185 : vector<64x64xf32> to vector<64x64xbf16>
    %c2_197 = arith.constant 2 : index
    %c4_198 = arith.constant 4 : index
    %c0_199 = arith.constant 0 : index
    %c0_200 = arith.constant 0 : index
    %187 = vector.load %arg3[%c2_197, %c4_198, %c0_199, %c0_200] : memref<5x10x64x64xbf16, #tpu.memory_space<vmem>>, vector<1x1x64x64xbf16>
    %188 = vector.shape_cast %187 : vector<1x1x64x64xbf16> to vector<64x64xbf16>
    %cst_201 = arith.constant dense<0.000000e+00> : vector<64x64xf32>
    %189 = tpu.matmul %186, %188, %cst_201 {dimension_numbers = #tpu.dot_dimension_numbers<[1], [0], [0], [1], [0, 0, 1, 1], [], []>} : vector<64x64xbf16>, vector<64x64xbf16>, vector<64x64xf32> -> vector<64x64xf32>
    %190 = arith.addf %184, %189 : vector<64x64xf32>
    %c5_202 = arith.constant 5 : index
    %c0_203 = arith.constant 0 : index
    %191 = vector.load %arg12[%c5_202, %c0_203] : memref<80x64xf32, #tpu.memory_space<vmem>>, vector<64x64xf32>
    %192 = arith.truncf %191 : vector<64x64xf32> to vector<64x64xbf16>
    %c2_204 = arith.constant 2 : index
    %c5_205 = arith.constant 5 : index
    %c0_206 = arith.constant 0 : index
    %c0_207 = arith.constant 0 : index
    %193 = vector.load %arg3[%c2_204, %c5_205, %c0_206, %c0_207] : memref<5x10x64x64xbf16, #tpu.memory_space<vmem>>, vector<1x1x64x64xbf16>
    %194 = vector.shape_cast %193 : vector<1x1x64x64xbf16> to vector<64x64xbf16>
    %cst_208 = arith.constant dense<0.000000e+00> : vector<64x64xf32>
    %195 = tpu.matmul %192, %194, %cst_208 {dimension_numbers = #tpu.dot_dimension_numbers<[1], [0], [0], [1], [0, 0, 1, 1], [], []>} : vector<64x64xbf16>, vector<64x64xbf16>, vector<64x64xf32> -> vector<64x64xf32>
    %196 = arith.addf %190, %195 : vector<64x64xf32>
    %c6_209 = arith.constant 6 : index
    %c0_210 = arith.constant 0 : index
    %197 = vector.load %arg12[%c6_209, %c0_210] : memref<80x64xf32, #tpu.memory_space<vmem>>, vector<64x64xf32>
    %198 = arith.truncf %197 : vector<64x64xf32> to vector<64x64xbf16>
    %c2_211 = arith.constant 2 : index
    %c6_212 = arith.constant 6 : index
    %c0_213 = arith.constant 0 : index
    %c0_214 = arith.constant 0 : index
    %199 = vector.load %arg3[%c2_211, %c6_212, %c0_213, %c0_214] : memref<5x10x64x64xbf16, #tpu.memory_space<vmem>>, vector<1x1x64x64xbf16>
    %200 = vector.shape_cast %199 : vector<1x1x64x64xbf16> to vector<64x64xbf16>
    %cst_215 = arith.constant dense<0.000000e+00> : vector<64x64xf32>
    %201 = tpu.matmul %198, %200, %cst_215 {dimension_numbers = #tpu.dot_dimension_numbers<[1], [0], [0], [1], [0, 0, 1, 1], [], []>} : vector<64x64xbf16>, vector<64x64xbf16>, vector<64x64xf32> -> vector<64x64xf32>
    %202 = arith.addf %196, %201 : vector<64x64xf32>
    %c7_216 = arith.constant 7 : index
    %c0_217 = arith.constant 0 : index
    %203 = vector.load %arg12[%c7_216, %c0_217] : memref<80x64xf32, #tpu.memory_space<vmem>>, vector<64x64xf32>
    %204 = arith.truncf %203 : vector<64x64xf32> to vector<64x64xbf16>
    %c2_218 = arith.constant 2 : index
    %c7_219 = arith.constant 7 : index
    %c0_220 = arith.constant 0 : index
    %c0_221 = arith.constant 0 : index
    %205 = vector.load %arg3[%c2_218, %c7_219, %c0_220, %c0_221] : memref<5x10x64x64xbf16, #tpu.memory_space<vmem>>, vector<1x1x64x64xbf16>
    %206 = vector.shape_cast %205 : vector<1x1x64x64xbf16> to vector<64x64xbf16>
    %cst_222 = arith.constant dense<0.000000e+00> : vector<64x64xf32>
    %207 = tpu.matmul %204, %206, %cst_222 {dimension_numbers = #tpu.dot_dimension_numbers<[1], [0], [0], [1], [0, 0, 1, 1], [], []>} : vector<64x64xbf16>, vector<64x64xbf16>, vector<64x64xf32> -> vector<64x64xf32>
    %208 = arith.addf %202, %207 : vector<64x64xf32>
    %c8_223 = arith.constant 8 : index
    %c0_224 = arith.constant 0 : index
    %209 = vector.load %arg12[%c8_223, %c0_224] : memref<80x64xf32, #tpu.memory_space<vmem>>, vector<64x64xf32>
    %210 = arith.truncf %209 : vector<64x64xf32> to vector<64x64xbf16>
    %c2_225 = arith.constant 2 : index
    %c8_226 = arith.constant 8 : index
    %c0_227 = arith.constant 0 : index
    %c0_228 = arith.constant 0 : index
    %211 = vector.load %arg3[%c2_225, %c8_226, %c0_227, %c0_228] : memref<5x10x64x64xbf16, #tpu.memory_space<vmem>>, vector<1x1x64x64xbf16>
    %212 = vector.shape_cast %211 : vector<1x1x64x64xbf16> to vector<64x64xbf16>
    %cst_229 = arith.constant dense<0.000000e+00> : vector<64x64xf32>
    %213 = tpu.matmul %210, %212, %cst_229 {dimension_numbers = #tpu.dot_dimension_numbers<[1], [0], [0], [1], [0, 0, 1, 1], [], []>} : vector<64x64xbf16>, vector<64x64xbf16>, vector<64x64xf32> -> vector<64x64xf32>
    %214 = arith.addf %208, %213 : vector<64x64xf32>
    %c9_230 = arith.constant 9 : index
    %c0_231 = arith.constant 0 : index
    %215 = vector.load %arg12[%c9_230, %c0_231] : memref<80x64xf32, #tpu.memory_space<vmem>>, vector<64x64xf32>
    %216 = arith.truncf %215 : vector<64x64xf32> to vector<64x64xbf16>
    %c2_232 = arith.constant 2 : index
    %c9_233 = arith.constant 9 : index
    %c0_234 = arith.constant 0 : index
    %c0_235 = arith.constant 0 : index
    %217 = vector.load %arg3[%c2_232, %c9_233, %c0_234, %c0_235] : memref<5x10x64x64xbf16, #tpu.memory_space<vmem>>, vector<1x1x64x64xbf16>
    %218 = vector.shape_cast %217 : vector<1x1x64x64xbf16> to vector<64x64xbf16>
    %cst_236 = arith.constant dense<0.000000e+00> : vector<64x64xf32>
    %219 = tpu.matmul %216, %218, %cst_236 {dimension_numbers = #tpu.dot_dimension_numbers<[1], [0], [0], [1], [0, 0, 1, 1], [], []>} : vector<64x64xbf16>, vector<64x64xbf16>, vector<64x64xf32> -> vector<64x64xf32>
    %220 = arith.addf %214, %219 : vector<64x64xf32>
    %c3_237 = arith.constant 3 : index
    %c0_238 = arith.constant 0 : index
    %c0_239 = arith.constant 0 : index
    %221 = vector.load %arg4[%c3_237, %c0_238, %c0_239] : memref<6x1x64xf32, #tpu.memory_space<vmem>>, vector<1x1x64xf32>
    %222 = vector.shape_cast %221 : vector<1x1x64xf32> to vector<1x64xf32>
    %223 = vector.broadcast %222 : vector<1x64xf32> to vector<64x64xf32>
    %224 = arith.addf %220, %223 : vector<64x64xf32>
    %cst_240 = arith.constant 0.000000e+00 : f32
    %225 = vector.broadcast %cst_240 : f32 to vector<64x64xf32>
    %226 = arith.maximumf %224, %225 : vector<64x64xf32>
    %227 = arith.addf %226, %159 : vector<64x64xf32>
    %228 = vector.extract_strided_slice %227 {offsets = [0, 0], sizes = [16, 64], strides = [1, 1]} : vector<64x64xf32> to vector<16x64xf32>
    %c4_241 = arith.constant 4 : index
    %c0_242 = arith.constant 0 : index
    %229 = vector.load %arg12[%c4_241, %c0_242] : memref<80x64xf32, #tpu.memory_space<vmem>>, vector<16x64xf32>
    tpu.vector_store %arg12[%c4_241, %c0_242], %228 {strides = array<i32>} : memref<80x64xf32, #tpu.memory_space<vmem>>, vector<16x64xf32>,
    %230 = vector.extract_strided_slice %227 {offsets = [32, 0], sizes = [16, 64], strides = [1, 1]} : vector<64x64xf32> to vector<16x64xf32>
    %c36_243 = arith.constant 36 : index
    %c0_244 = arith.constant 0 : index
    %231 = vector.load %arg12[%c36_243, %c0_244] : memref<80x64xf32, #tpu.memory_space<vmem>>, vector<16x64xf32>
    tpu.vector_store %arg12[%c36_243, %c0_244], %230 {strides = array<i32>} : memref<80x64xf32, #tpu.memory_space<vmem>>, vector<16x64xf32>,
    %cst_245 = arith.constant 0.000000e+00 : f32
    %232 = vector.broadcast %cst_245 : f32 to vector<64x64xf32>
    %c0_246 = arith.constant 0 : index
    %c0_247 = arith.constant 0 : index
    %233 = vector.load %arg12[%c0_246, %c0_247] : memref<80x64xf32, #tpu.memory_space<vmem>>, vector<64x64xf32>
    %234 = arith.truncf %233 : vector<64x64xf32> to vector<64x64xbf16>
    %c3_248 = arith.constant 3 : index
    %c0_249 = arith.constant 0 : index
    %c0_250 = arith.constant 0 : index
    %c0_251 = arith.constant 0 : index
    %235 = vector.load %arg3[%c3_248, %c0_249, %c0_250, %c0_251] : memref<5x10x64x64xbf16, #tpu.memory_space<vmem>>, vector<1x1x64x64xbf16>
    %236 = vector.shape_cast %235 : vector<1x1x64x64xbf16> to vector<64x64xbf16>
    %cst_252 = arith.constant dense<0.000000e+00> : vector<64x64xf32>
    %237 = tpu.matmul %234, %236, %cst_252 {dimension_numbers = #tpu.dot_dimension_numbers<[1], [0], [0], [1], [0, 0, 1, 1], [], []>} : vector<64x64xbf16>, vector<64x64xbf16>, vector<64x64xf32> -> vector<64x64xf32>
    %238 = arith.addf %232, %237 : vector<64x64xf32>
    %c1_253 = arith.constant 1 : index
    %c0_254 = arith.constant 0 : index
    %239 = vector.load %arg12[%c1_253, %c0_254] : memref<80x64xf32, #tpu.memory_space<vmem>>, vector<64x64xf32>
    %240 = arith.truncf %239 : vector<64x64xf32> to vector<64x64xbf16>
    %c3_255 = arith.constant 3 : index
    %c1_256 = arith.constant 1 : index
    %c0_257 = arith.constant 0 : index
    %c0_258 = arith.constant 0 : index
    %241 = vector.load %arg3[%c3_255, %c1_256, %c0_257, %c0_258] : memref<5x10x64x64xbf16, #tpu.memory_space<vmem>>, vector<1x1x64x64xbf16>
    %242 = vector.shape_cast %241 : vector<1x1x64x64xbf16> to vector<64x64xbf16>
    %cst_259 = arith.constant dense<0.000000e+00> : vector<64x64xf32>
    %243 = tpu.matmul %240, %242, %cst_259 {dimension_numbers = #tpu.dot_dimension_numbers<[1], [0], [0], [1], [0, 0, 1, 1], [], []>} : vector<64x64xbf16>, vector<64x64xbf16>, vector<64x64xf32> -> vector<64x64xf32>
    %244 = arith.addf %238, %243 : vector<64x64xf32>
    %c2_260 = arith.constant 2 : index
    %c0_261 = arith.constant 0 : index
    %245 = vector.load %arg12[%c2_260, %c0_261] : memref<80x64xf32, #tpu.memory_space<vmem>>, vector<64x64xf32>
    %246 = arith.truncf %245 : vector<64x64xf32> to vector<64x64xbf16>
    %c3_262 = arith.constant 3 : index
    %c2_263 = arith.constant 2 : index
    %c0_264 = arith.constant 0 : index
    %c0_265 = arith.constant 0 : index
    %247 = vector.load %arg3[%c3_262, %c2_263, %c0_264, %c0_265] : memref<5x10x64x64xbf16, #tpu.memory_space<vmem>>, vector<1x1x64x64xbf16>
    %248 = vector.shape_cast %247 : vector<1x1x64x64xbf16> to vector<64x64xbf16>
    %cst_266 = arith.constant dense<0.000000e+00> : vector<64x64xf32>
    %249 = tpu.matmul %246, %248, %cst_266 {dimension_numbers = #tpu.dot_dimension_numbers<[1], [0], [0], [1], [0, 0, 1, 1], [], []>} : vector<64x64xbf16>, vector<64x64xbf16>, vector<64x64xf32> -> vector<64x64xf32>
    %250 = arith.addf %244, %249 : vector<64x64xf32>
    %c3_267 = arith.constant 3 : index
    %c0_268 = arith.constant 0 : index
    %251 = vector.load %arg12[%c3_267, %c0_268] : memref<80x64xf32, #tpu.memory_space<vmem>>, vector<64x64xf32>
    %252 = arith.truncf %251 : vector<64x64xf32> to vector<64x64xbf16>
    %c3_269 = arith.constant 3 : index
    %c3_270 = arith.constant 3 : index
    %c0_271 = arith.constant 0 : index
    %c0_272 = arith.constant 0 : index
    %253 = vector.load %arg3[%c3_269, %c3_270, %c0_271, %c0_272] : memref<5x10x64x64xbf16, #tpu.memory_space<vmem>>, vector<1x1x64x64xbf16>
    %254 = vector.shape_cast %253 : vector<1x1x64x64xbf16> to vector<64x64xbf16>
    %cst_273 = arith.constant dense<0.000000e+00> : vector<64x64xf32>
    %255 = tpu.matmul %252, %254, %cst_273 {dimension_numbers = #tpu.dot_dimension_numbers<[1], [0], [0], [1], [0, 0, 1, 1], [], []>} : vector<64x64xbf16>, vector<64x64xbf16>, vector<64x64xf32> -> vector<64x64xf32>
    %256 = arith.addf %250, %255 : vector<64x64xf32>
    %c4_274 = arith.constant 4 : index
    %c0_275 = arith.constant 0 : index
    %257 = vector.load %arg12[%c4_274, %c0_275] : memref<80x64xf32, #tpu.memory_space<vmem>>, vector<64x64xf32>
    %258 = arith.truncf %257 : vector<64x64xf32> to vector<64x64xbf16>
    %c3_276 = arith.constant 3 : index
    %c4_277 = arith.constant 4 : index
    %c0_278 = arith.constant 0 : index
    %c0_279 = arith.constant 0 : index
    %259 = vector.load %arg3[%c3_276, %c4_277, %c0_278, %c0_279] : memref<5x10x64x64xbf16, #tpu.memory_space<vmem>>, vector<1x1x64x64xbf16>
    %260 = vector.shape_cast %259 : vector<1x1x64x64xbf16> to vector<64x64xbf16>
    %cst_280 = arith.constant dense<0.000000e+00> : vector<64x64xf32>
    %261 = tpu.matmul %258, %260, %cst_280 {dimension_numbers = #tpu.dot_dimension_numbers<[1], [0], [0], [1], [0, 0, 1, 1], [], []>} : vector<64x64xbf16>, vector<64x64xbf16>, vector<64x64xf32> -> vector<64x64xf32>
    %262 = arith.addf %256, %261 : vector<64x64xf32>
    %c5_281 = arith.constant 5 : index
    %c0_282 = arith.constant 0 : index
    %263 = vector.load %arg12[%c5_281, %c0_282] : memref<80x64xf32, #tpu.memory_space<vmem>>, vector<64x64xf32>
    %264 = arith.truncf %263 : vector<64x64xf32> to vector<64x64xbf16>
    %c3_283 = arith.constant 3 : index
    %c5_284 = arith.constant 5 : index
    %c0_285 = arith.constant 0 : index
    %c0_286 = arith.constant 0 : index
    %265 = vector.load %arg3[%c3_283, %c5_284, %c0_285, %c0_286] : memref<5x10x64x64xbf16, #tpu.memory_space<vmem>>, vector<1x1x64x64xbf16>
    %266 = vector.shape_cast %265 : vector<1x1x64x64xbf16> to vector<64x64xbf16>
    %cst_287 = arith.constant dense<0.000000e+00> : vector<64x64xf32>
    %267 = tpu.matmul %264, %266, %cst_287 {dimension_numbers = #tpu.dot_dimension_numbers<[1], [0], [0], [1], [0, 0, 1, 1], [], []>} : vector<64x64xbf16>, vector<64x64xbf16>, vector<64x64xf32> -> vector<64x64xf32>
    %268 = arith.addf %262, %267 : vector<64x64xf32>
    %c6_288 = arith.constant 6 : index
    %c0_289 = arith.constant 0 : index
    %269 = vector.load %arg12[%c6_288, %c0_289] : memref<80x64xf32, #tpu.memory_space<vmem>>, vector<64x64xf32>
    %270 = arith.truncf %269 : vector<64x64xf32> to vector<64x64xbf16>
    %c3_290 = arith.constant 3 : index
    %c6_291 = arith.constant 6 : index
    %c0_292 = arith.constant 0 : index
    %c0_293 = arith.constant 0 : index
    %271 = vector.load %arg3[%c3_290, %c6_291, %c0_292, %c0_293] : memref<5x10x64x64xbf16, #tpu.memory_space<vmem>>, vector<1x1x64x64xbf16>
    %272 = vector.shape_cast %271 : vector<1x1x64x64xbf16> to vector<64x64xbf16>
    %cst_294 = arith.constant dense<0.000000e+00> : vector<64x64xf32>
    %273 = tpu.matmul %270, %272, %cst_294 {dimension_numbers = #tpu.dot_dimension_numbers<[1], [0], [0], [1], [0, 0, 1, 1], [], []>} : vector<64x64xbf16>, vector<64x64xbf16>, vector<64x64xf32> -> vector<64x64xf32>
    %274 = arith.addf %268, %273 : vector<64x64xf32>
    %c7_295 = arith.constant 7 : index
    %c0_296 = arith.constant 0 : index
    %275 = vector.load %arg12[%c7_295, %c0_296] : memref<80x64xf32, #tpu.memory_space<vmem>>, vector<64x64xf32>
    %276 = arith.truncf %275 : vector<64x64xf32> to vector<64x64xbf16>
    %c3_297 = arith.constant 3 : index
    %c7_298 = arith.constant 7 : index
    %c0_299 = arith.constant 0 : index
    %c0_300 = arith.constant 0 : index
    %277 = vector.load %arg3[%c3_297, %c7_298, %c0_299, %c0_300] : memref<5x10x64x64xbf16, #tpu.memory_space<vmem>>, vector<1x1x64x64xbf16>
    %278 = vector.shape_cast %277 : vector<1x1x64x64xbf16> to vector<64x64xbf16>
    %cst_301 = arith.constant dense<0.000000e+00> : vector<64x64xf32>
    %279 = tpu.matmul %276, %278, %cst_301 {dimension_numbers = #tpu.dot_dimension_numbers<[1], [0], [0], [1], [0, 0, 1, 1], [], []>} : vector<64x64xbf16>, vector<64x64xbf16>, vector<64x64xf32> -> vector<64x64xf32>
    %280 = arith.addf %274, %279 : vector<64x64xf32>
    %c8_302 = arith.constant 8 : index
    %c0_303 = arith.constant 0 : index
    %281 = vector.load %arg12[%c8_302, %c0_303] : memref<80x64xf32, #tpu.memory_space<vmem>>, vector<64x64xf32>
    %282 = arith.truncf %281 : vector<64x64xf32> to vector<64x64xbf16>
    %c3_304 = arith.constant 3 : index
    %c8_305 = arith.constant 8 : index
    %c0_306 = arith.constant 0 : index
    %c0_307 = arith.constant 0 : index
    %283 = vector.load %arg3[%c3_304, %c8_305, %c0_306, %c0_307] : memref<5x10x64x64xbf16, #tpu.memory_space<vmem>>, vector<1x1x64x64xbf16>
    %284 = vector.shape_cast %283 : vector<1x1x64x64xbf16> to vector<64x64xbf16>
    %cst_308 = arith.constant dense<0.000000e+00> : vector<64x64xf32>
    %285 = tpu.matmul %282, %284, %cst_308 {dimension_numbers = #tpu.dot_dimension_numbers<[1], [0], [0], [1], [0, 0, 1, 1], [], []>} : vector<64x64xbf16>, vector<64x64xbf16>, vector<64x64xf32> -> vector<64x64xf32>
    %286 = arith.addf %280, %285 : vector<64x64xf32>
    %c9_309 = arith.constant 9 : index
    %c0_310 = arith.constant 0 : index
    %287 = vector.load %arg12[%c9_309, %c0_310] : memref<80x64xf32, #tpu.memory_space<vmem>>, vector<64x64xf32>
    %288 = arith.truncf %287 : vector<64x64xf32> to vector<64x64xbf16>
    %c3_311 = arith.constant 3 : index
    %c9_312 = arith.constant 9 : index
    %c0_313 = arith.constant 0 : index
    %c0_314 = arith.constant 0 : index
    %289 = vector.load %arg3[%c3_311, %c9_312, %c0_313, %c0_314] : memref<5x10x64x64xbf16, #tpu.memory_space<vmem>>, vector<1x1x64x64xbf16>
    %290 = vector.shape_cast %289 : vector<1x1x64x64xbf16> to vector<64x64xbf16>
    %cst_315 = arith.constant dense<0.000000e+00> : vector<64x64xf32>
    %291 = tpu.matmul %288, %290, %cst_315 {dimension_numbers = #tpu.dot_dimension_numbers<[1], [0], [0], [1], [0, 0, 1, 1], [], []>} : vector<64x64xbf16>, vector<64x64xbf16>, vector<64x64xf32> -> vector<64x64xf32>
    %292 = arith.addf %286, %291 : vector<64x64xf32>
    %c4_316 = arith.constant 4 : index
    %c0_317 = arith.constant 0 : index
    %c0_318 = arith.constant 0 : index
    %293 = vector.load %arg4[%c4_316, %c0_317, %c0_318] : memref<6x1x64xf32, #tpu.memory_space<vmem>>, vector<1x1x64xf32>
    %294 = vector.shape_cast %293 : vector<1x1x64xf32> to vector<1x64xf32>
    %295 = vector.broadcast %294 : vector<1x64xf32> to vector<64x64xf32>
    %296 = arith.addf %292, %295 : vector<64x64xf32>
    %cst_319 = arith.constant 0.000000e+00 : f32
    %297 = vector.broadcast %cst_319 : f32 to vector<64x64xf32>
    %298 = arith.maximumf %296, %297 : vector<64x64xf32>
    %299 = vector.extract_strided_slice %298 {offsets = [0, 0], sizes = [10, 64], strides = [1, 1]} : vector<64x64xf32> to vector<10x64xf32>
    %cst_320 = arith.constant dense<0xFF800000> : vector<64xf32>
    %300 = vector.multi_reduction <maximumf>, %299, %cst_320 [0] : vector<10x64xf32> to vector<64xf32>
    %301 = vector.shape_cast %300 : vector<64xf32> to vector<1x64xf32>
    %c4_321 = arith.constant 4 : index
    %c0_322 = arith.constant 0 : index
    %302 = vector.load %arg12[%c4_321, %c0_322] : memref<80x64xf32, #tpu.memory_space<vmem>>, vector<1x64xf32>
    tpu.vector_store %arg12[%c4_321, %c0_322], %301 {strides = array<i32>} : memref<80x64xf32, #tpu.memory_space<vmem>>, vector<1x64xf32>,
    %303 = vector.extract_strided_slice %298 {offsets = [4, 0], sizes = [10, 64], strides = [1, 1]} : vector<64x64xf32> to vector<10x64xf32>
    %cst_323 = arith.constant dense<0xFF800000> : vector<64xf32>
    %304 = vector.multi_reduction <maximumf>, %303, %cst_323 [0] : vector<10x64xf32> to vector<64xf32>
    %305 = vector.shape_cast %304 : vector<64xf32> to vector<1x64xf32>
    %c5_324 = arith.constant 5 : index
    %c0_325 = arith.constant 0 : index
    %306 = vector.load %arg12[%c5_324, %c0_325] : memref<80x64xf32, #tpu.memory_space<vmem>>, vector<1x64xf32>
    tpu.vector_store %arg12[%c5_324, %c0_325], %305 {strides = array<i32>} : memref<80x64xf32, #tpu.memory_space<vmem>>, vector<1x64xf32>,
    %cst_326 = arith.constant 0.000000e+00 : f32
    %307 = vector.broadcast %cst_326 : f32 to vector<14x64xf32>
    %c6_327 = arith.constant 6 : index
    %c0_328 = arith.constant 0 : index
    %308 = vector.load %arg12[%c6_327, %c0_328] : memref<80x64xf32, #tpu.memory_space<vmem>>, vector<14x64xf32>
    tpu.vector_store %arg12[%c6_327, %c0_328], %307 {strides = array<i32>} : memref<80x64xf32, #tpu.memory_space<vmem>>, vector<14x64xf32>,
    %309 = vector.extract_strided_slice %298 {offsets = [32, 0], sizes = [10, 64], strides = [1, 1]} : vector<64x64xf32> to vector<10x64xf32>
    %cst_329 = arith.constant dense<0xFF800000> : vector<64xf32>
    %310 = vector.multi_reduction <maximumf>, %309, %cst_329 [0] : vector<10x64xf32> to vector<64xf32>
    %311 = vector.shape_cast %310 : vector<64xf32> to vector<1x64xf32>
    %c36_330 = arith.constant 36 : index
    %c0_331 = arith.constant 0 : index
    %312 = vector.load %arg12[%c36_330, %c0_331] : memref<80x64xf32, #tpu.memory_space<vmem>>, vector<1x64xf32>
    tpu.vector_store %arg12[%c36_330, %c0_331], %311 {strides = array<i32>} : memref<80x64xf32, #tpu.memory_space<vmem>>, vector<1x64xf32>,
    %313 = vector.extract_strided_slice %298 {offsets = [36, 0], sizes = [10, 64], strides = [1, 1]} : vector<64x64xf32> to vector<10x64xf32>
    %cst_332 = arith.constant dense<0xFF800000> : vector<64xf32>
    %314 = vector.multi_reduction <maximumf>, %313, %cst_332 [0] : vector<10x64xf32> to vector<64xf32>
    %315 = vector.shape_cast %314 : vector<64xf32> to vector<1x64xf32>
    %c37 = arith.constant 37 : index
    %c0_333 = arith.constant 0 : index
    %316 = vector.load %arg12[%c37, %c0_333] : memref<80x64xf32, #tpu.memory_space<vmem>>, vector<1x64xf32>
    tpu.vector_store %arg12[%c37, %c0_333], %315 {strides = array<i32>} : memref<80x64xf32, #tpu.memory_space<vmem>>, vector<1x64xf32>,
    %cst_334 = arith.constant 0.000000e+00 : f32
    %317 = vector.broadcast %cst_334 : f32 to vector<14x64xf32>
    %c38 = arith.constant 38 : index
    %c0_335 = arith.constant 0 : index
    %318 = vector.load %arg12[%c38, %c0_335] : memref<80x64xf32, #tpu.memory_space<vmem>>, vector<14x64xf32>
    tpu.vector_store %arg12[%c38, %c0_335], %317 {strides = array<i32>} : memref<80x64xf32, #tpu.memory_space<vmem>>, vector<14x64xf32>,
    %c4_336 = arith.constant 4 : index
    %c0_337 = arith.constant 0 : index
    %319 = vector.load %arg12[%c4_336, %c0_337] : memref<80x64xf32, #tpu.memory_space<vmem>>, vector<64x64xf32>
    %cst_338 = arith.constant 0.000000e+00 : f32
    %320 = vector.broadcast %cst_338 : f32 to vector<64x64xf32>
    %c0_339 = arith.constant 0 : index
    %c0_340 = arith.constant 0 : index
    %321 = vector.load %arg12[%c0_339, %c0_340] : memref<80x64xf32, #tpu.memory_space<vmem>>, vector<64x64xf32>
    %322 = arith.truncf %321 : vector<64x64xf32> to vector<64x64xbf16>
    %c4_341 = arith.constant 4 : index
    %c0_342 = arith.constant 0 : index
    %c0_343 = arith.constant 0 : index
    %c0_344 = arith.constant 0 : index
    %323 = vector.load %arg3[%c4_341, %c0_342, %c0_343, %c0_344] : memref<5x10x64x64xbf16, #tpu.memory_space<vmem>>, vector<1x1x64x64xbf16>
    %324 = vector.shape_cast %323 : vector<1x1x64x64xbf16> to vector<64x64xbf16>
    %cst_345 = arith.constant dense<0.000000e+00> : vector<64x64xf32>
    %325 = tpu.matmul %322, %324, %cst_345 {dimension_numbers = #tpu.dot_dimension_numbers<[1], [0], [0], [1], [0, 0, 1, 1], [], []>} : vector<64x64xbf16>, vector<64x64xbf16>, vector<64x64xf32> -> vector<64x64xf32>
    %326 = arith.addf %320, %325 : vector<64x64xf32>
    %c1_346 = arith.constant 1 : index
    %c0_347 = arith.constant 0 : index
    %327 = vector.load %arg12[%c1_346, %c0_347] : memref<80x64xf32, #tpu.memory_space<vmem>>, vector<64x64xf32>
    %328 = arith.truncf %327 : vector<64x64xf32> to vector<64x64xbf16>
    %c4_348 = arith.constant 4 : index
    %c1_349 = arith.constant 1 : index
    %c0_350 = arith.constant 0 : index
    %c0_351 = arith.constant 0 : index
    %329 = vector.load %arg3[%c4_348, %c1_349, %c0_350, %c0_351] : memref<5x10x64x64xbf16, #tpu.memory_space<vmem>>, vector<1x1x64x64xbf16>
    %330 = vector.shape_cast %329 : vector<1x1x64x64xbf16> to vector<64x64xbf16>
    %cst_352 = arith.constant dense<0.000000e+00> : vector<64x64xf32>
    %331 = tpu.matmul %328, %330, %cst_352 {dimension_numbers = #tpu.dot_dimension_numbers<[1], [0], [0], [1], [0, 0, 1, 1], [], []>} : vector<64x64xbf16>, vector<64x64xbf16>, vector<64x64xf32> -> vector<64x64xf32>
    %332 = arith.addf %326, %331 : vector<64x64xf32>
    %c2_353 = arith.constant 2 : index
    %c0_354 = arith.constant 0 : index
    %333 = vector.load %arg12[%c2_353, %c0_354] : memref<80x64xf32, #tpu.memory_space<vmem>>, vector<64x64xf32>
    %334 = arith.truncf %333 : vector<64x64xf32> to vector<64x64xbf16>
    %c4_355 = arith.constant 4 : index
    %c2_356 = arith.constant 2 : index
    %c0_357 = arith.constant 0 : index
    %c0_358 = arith.constant 0 : index
    %335 = vector.load %arg3[%c4_355, %c2_356, %c0_357, %c0_358] : memref<5x10x64x64xbf16, #tpu.memory_space<vmem>>, vector<1x1x64x64xbf16>
    %336 = vector.shape_cast %335 : vector<1x1x64x64xbf16> to vector<64x64xbf16>
    %cst_359 = arith.constant dense<0.000000e+00> : vector<64x64xf32>
    %337 = tpu.matmul %334, %336, %cst_359 {dimension_numbers = #tpu.dot_dimension_numbers<[1], [0], [0], [1], [0, 0, 1, 1], [], []>} : vector<64x64xbf16>, vector<64x64xbf16>, vector<64x64xf32> -> vector<64x64xf32>
    %338 = arith.addf %332, %337 : vector<64x64xf32>
    %c3_360 = arith.constant 3 : index
    %c0_361 = arith.constant 0 : index
    %339 = vector.load %arg12[%c3_360, %c0_361] : memref<80x64xf32, #tpu.memory_space<vmem>>, vector<64x64xf32>
    %340 = arith.truncf %339 : vector<64x64xf32> to vector<64x64xbf16>
    %c4_362 = arith.constant 4 : index
    %c3_363 = arith.constant 3 : index
    %c0_364 = arith.constant 0 : index
    %c0_365 = arith.constant 0 : index
    %341 = vector.load %arg3[%c4_362, %c3_363, %c0_364, %c0_365] : memref<5x10x64x64xbf16, #tpu.memory_space<vmem>>, vector<1x1x64x64xbf16>
    %342 = vector.shape_cast %341 : vector<1x1x64x64xbf16> to vector<64x64xbf16>
    %cst_366 = arith.constant dense<0.000000e+00> : vector<64x64xf32>
    %343 = tpu.matmul %340, %342, %cst_366 {dimension_numbers = #tpu.dot_dimension_numbers<[1], [0], [0], [1], [0, 0, 1, 1], [], []>} : vector<64x64xbf16>, vector<64x64xbf16>, vector<64x64xf32> -> vector<64x64xf32>
    %344 = arith.addf %338, %343 : vector<64x64xf32>
    %c4_367 = arith.constant 4 : index
    %c0_368 = arith.constant 0 : index
    %345 = vector.load %arg12[%c4_367, %c0_368] : memref<80x64xf32, #tpu.memory_space<vmem>>, vector<64x64xf32>
    %346 = arith.truncf %345 : vector<64x64xf32> to vector<64x64xbf16>
    %c4_369 = arith.constant 4 : index
    %c4_370 = arith.constant 4 : index
    %c0_371 = arith.constant 0 : index
    %c0_372 = arith.constant 0 : index
    %347 = vector.load %arg3[%c4_369, %c4_370, %c0_371, %c0_372] : memref<5x10x64x64xbf16, #tpu.memory_space<vmem>>, vector<1x1x64x64xbf16>
    %348 = vector.shape_cast %347 : vector<1x1x64x64xbf16> to vector<64x64xbf16>
    %cst_373 = arith.constant dense<0.000000e+00> : vector<64x64xf32>
    %349 = tpu.matmul %346, %348, %cst_373 {dimension_numbers = #tpu.dot_dimension_numbers<[1], [0], [0], [1], [0, 0, 1, 1], [], []>} : vector<64x64xbf16>, vector<64x64xbf16>, vector<64x64xf32> -> vector<64x64xf32>
    %350 = arith.addf %344, %349 : vector<64x64xf32>
    %c5_374 = arith.constant 5 : index
    %c0_375 = arith.constant 0 : index
    %351 = vector.load %arg12[%c5_374, %c0_375] : memref<80x64xf32, #tpu.memory_space<vmem>>, vector<64x64xf32>
    %352 = arith.truncf %351 : vector<64x64xf32> to vector<64x64xbf16>
    %c4_376 = arith.constant 4 : index
    %c5_377 = arith.constant 5 : index
    %c0_378 = arith.constant 0 : index
    %c0_379 = arith.constant 0 : index
    %353 = vector.load %arg3[%c4_376, %c5_377, %c0_378, %c0_379] : memref<5x10x64x64xbf16, #tpu.memory_space<vmem>>, vector<1x1x64x64xbf16>
    %354 = vector.shape_cast %353 : vector<1x1x64x64xbf16> to vector<64x64xbf16>
    %cst_380 = arith.constant dense<0.000000e+00> : vector<64x64xf32>
    %355 = tpu.matmul %352, %354, %cst_380 {dimension_numbers = #tpu.dot_dimension_numbers<[1], [0], [0], [1], [0, 0, 1, 1], [], []>} : vector<64x64xbf16>, vector<64x64xbf16>, vector<64x64xf32> -> vector<64x64xf32>
    %356 = arith.addf %350, %355 : vector<64x64xf32>
    %c6_381 = arith.constant 6 : index
    %c0_382 = arith.constant 0 : index
    %357 = vector.load %arg12[%c6_381, %c0_382] : memref<80x64xf32, #tpu.memory_space<vmem>>, vector<64x64xf32>
    %358 = arith.truncf %357 : vector<64x64xf32> to vector<64x64xbf16>
    %c4_383 = arith.constant 4 : index
    %c6_384 = arith.constant 6 : index
    %c0_385 = arith.constant 0 : index
    %c0_386 = arith.constant 0 : index
    %359 = vector.load %arg3[%c4_383, %c6_384, %c0_385, %c0_386] : memref<5x10x64x64xbf16, #tpu.memory_space<vmem>>, vector<1x1x64x64xbf16>
    %360 = vector.shape_cast %359 : vector<1x1x64x64xbf16> to vector<64x64xbf16>
    %cst_387 = arith.constant dense<0.000000e+00> : vector<64x64xf32>
    %361 = tpu.matmul %358, %360, %cst_387 {dimension_numbers = #tpu.dot_dimension_numbers<[1], [0], [0], [1], [0, 0, 1, 1], [], []>} : vector<64x64xbf16>, vector<64x64xbf16>, vector<64x64xf32> -> vector<64x64xf32>
    %362 = arith.addf %356, %361 : vector<64x64xf32>
    %c7_388 = arith.constant 7 : index
    %c0_389 = arith.constant 0 : index
    %363 = vector.load %arg12[%c7_388, %c0_389] : memref<80x64xf32, #tpu.memory_space<vmem>>, vector<64x64xf32>
    %364 = arith.truncf %363 : vector<64x64xf32> to vector<64x64xbf16>
    %c4_390 = arith.constant 4 : index
    %c7_391 = arith.constant 7 : index
    %c0_392 = arith.constant 0 : index
    %c0_393 = arith.constant 0 : index
    %365 = vector.load %arg3[%c4_390, %c7_391, %c0_392, %c0_393] : memref<5x10x64x64xbf16, #tpu.memory_space<vmem>>, vector<1x1x64x64xbf16>
    %366 = vector.shape_cast %365 : vector<1x1x64x64xbf16> to vector<64x64xbf16>
    %cst_394 = arith.constant dense<0.000000e+00> : vector<64x64xf32>
    %367 = tpu.matmul %364, %366, %cst_394 {dimension_numbers = #tpu.dot_dimension_numbers<[1], [0], [0], [1], [0, 0, 1, 1], [], []>} : vector<64x64xbf16>, vector<64x64xbf16>, vector<64x64xf32> -> vector<64x64xf32>
    %368 = arith.addf %362, %367 : vector<64x64xf32>
    %c8_395 = arith.constant 8 : index
    %c0_396 = arith.constant 0 : index
    %369 = vector.load %arg12[%c8_395, %c0_396] : memref<80x64xf32, #tpu.memory_space<vmem>>, vector<64x64xf32>
    %370 = arith.truncf %369 : vector<64x64xf32> to vector<64x64xbf16>
    %c4_397 = arith.constant 4 : index
    %c8_398 = arith.constant 8 : index
    %c0_399 = arith.constant 0 : index
    %c0_400 = arith.constant 0 : index
    %371 = vector.load %arg3[%c4_397, %c8_398, %c0_399, %c0_400] : memref<5x10x64x64xbf16, #tpu.memory_space<vmem>>, vector<1x1x64x64xbf16>
    %372 = vector.shape_cast %371 : vector<1x1x64x64xbf16> to vector<64x64xbf16>
    %cst_401 = arith.constant dense<0.000000e+00> : vector<64x64xf32>
    %373 = tpu.matmul %370, %372, %cst_401 {dimension_numbers = #tpu.dot_dimension_numbers<[1], [0], [0], [1], [0, 0, 1, 1], [], []>} : vector<64x64xbf16>, vector<64x64xbf16>, vector<64x64xf32> -> vector<64x64xf32>
    %374 = arith.addf %368, %373 : vector<64x64xf32>
    %c9_402 = arith.constant 9 : index
    %c0_403 = arith.constant 0 : index
    %375 = vector.load %arg12[%c9_402, %c0_403] : memref<80x64xf32, #tpu.memory_space<vmem>>, vector<64x64xf32>
    %376 = arith.truncf %375 : vector<64x64xf32> to vector<64x64xbf16>
    %c4_404 = arith.constant 4 : index
    %c9_405 = arith.constant 9 : index
    %c0_406 = arith.constant 0 : index
    %c0_407 = arith.constant 0 : index
    %377 = vector.load %arg3[%c4_404, %c9_405, %c0_406, %c0_407] : memref<5x10x64x64xbf16, #tpu.memory_space<vmem>>, vector<1x1x64x64xbf16>
    %378 = vector.shape_cast %377 : vector<1x1x64x64xbf16> to vector<64x64xbf16>
    %cst_408 = arith.constant dense<0.000000e+00> : vector<64x64xf32>
    %379 = tpu.matmul %376, %378, %cst_408 {dimension_numbers = #tpu.dot_dimension_numbers<[1], [0], [0], [1], [0, 0, 1, 1], [], []>} : vector<64x64xbf16>, vector<64x64xbf16>, vector<64x64xf32> -> vector<64x64xf32>
    %380 = arith.addf %374, %379 : vector<64x64xf32>
    %c5_409 = arith.constant 5 : index
    %c0_410 = arith.constant 0 : index
    %c0_411 = arith.constant 0 : index
    %381 = vector.load %arg4[%c5_409, %c0_410, %c0_411] : memref<6x1x64xf32, #tpu.memory_space<vmem>>, vector<1x1x64xf32>
    %382 = vector.shape_cast %381 : vector<1x1x64xf32> to vector<1x64xf32>
    %383 = vector.broadcast %382 : vector<1x64xf32> to vector<64x64xf32>
    %384 = arith.addf %380, %383 : vector<64x64xf32>
    %cst_412 = arith.constant 0.000000e+00 : f32
    %385 = vector.broadcast %cst_412 : f32 to vector<64x64xf32>
    %386 = arith.maximumf %384, %385 : vector<64x64xf32>
    %387 = arith.addf %386, %319 : vector<64x64xf32>
    %388 = vector.extract_strided_slice %387 {offsets = [0, 0], sizes = [2, 64], strides = [1, 1]} : vector<64x64xf32> to vector<2x64xf32>
    %c4_413 = arith.constant 4 : index
    %c0_414 = arith.constant 0 : index
    %389 = vector.load %arg12[%c4_413, %c0_414] : memref<80x64xf32, #tpu.memory_space<vmem>>, vector<2x64xf32>
    tpu.vector_store %arg12[%c4_413, %c0_414], %388 {strides = array<i32>} : memref<80x64xf32, #tpu.memory_space<vmem>>, vector<2x64xf32>,
    %390 = vector.extract_strided_slice %387 {offsets = [32, 0], sizes = [2, 64], strides = [1, 1]} : vector<64x64xf32> to vector<2x64xf32>
    %c36_415 = arith.constant 36 : index
    %c0_416 = arith.constant 0 : index
    %391 = vector.load %arg12[%c36_415, %c0_416] : memref<80x64xf32, #tpu.memory_space<vmem>>, vector<2x64xf32>
    tpu.vector_store %arg12[%c36_415, %c0_416], %390 {strides = array<i32>} : memref<80x64xf32, #tpu.memory_space<vmem>>, vector<2x64xf32>,
    %cst_417 = arith.constant 0.000000e+00 : f32
    %392 = vector.broadcast %cst_417 : f32 to vector<2x32xf32>
    %c4_418 = arith.constant 4 : index
    %c0_419 = arith.constant 0 : index
    %393 = vector.load %arg12[%c4_418, %c0_419] : memref<80x64xf32, #tpu.memory_space<vmem>>, vector<1x64xf32>
    %c36_420 = arith.constant 36 : index
    %c0_421 = arith.constant 0 : index
    %394 = vector.load %arg12[%c36_420, %c0_421] : memref<80x64xf32, #tpu.memory_space<vmem>>, vector<1x64xf32>
    %395 = tpu.concatenate %393, %394 in 0 : vector<1x64xf32>, vector<1x64xf32> -> vector<2x64xf32>
    %396 = arith.truncf %395 : vector<2x64xf32> to vector<2x64xbf16>
    %c0_422 = arith.constant 0 : index
    %c0_423 = arith.constant 0 : index
    %c0_424 = arith.constant 0 : index
    %397 = vector.load %arg5[%c0_422, %c0_423, %c0_424] : memref<2x64x32xbf16, #tpu.memory_space<vmem>>, vector<1x64x32xbf16>
    %398 = vector.shape_cast %397 : vector<1x64x32xbf16> to vector<64x32xbf16>
    %cst_425 = arith.constant dense<0.000000e+00> : vector<2x32xf32>
    %399 = tpu.matmul %396, %398, %cst_425 {dimension_numbers = #tpu.dot_dimension_numbers<[1], [0], [0], [1], [0, 0, 1, 1], [], []>} : vector<2x64xbf16>, vector<64x32xbf16>, vector<2x32xf32> -> vector<2x32xf32>
    %400 = arith.addf %392, %399 : vector<2x32xf32>
    %c5_426 = arith.constant 5 : index
    %c0_427 = arith.constant 0 : index
    %401 = vector.load %arg12[%c5_426, %c0_427] : memref<80x64xf32, #tpu.memory_space<vmem>>, vector<1x64xf32>
    %c37_428 = arith.constant 37 : index
    %c0_429 = arith.constant 0 : index
    %402 = vector.load %arg12[%c37_428, %c0_429] : memref<80x64xf32, #tpu.memory_space<vmem>>, vector<1x64xf32>
    %403 = tpu.concatenate %401, %402 in 0 : vector<1x64xf32>, vector<1x64xf32> -> vector<2x64xf32>
    %404 = arith.truncf %403 : vector<2x64xf32> to vector<2x64xbf16>
    %c1_430 = arith.constant 1 : index
    %c0_431 = arith.constant 0 : index
    %c0_432 = arith.constant 0 : index
    %405 = vector.load %arg5[%c1_430, %c0_431, %c0_432] : memref<2x64x32xbf16, #tpu.memory_space<vmem>>, vector<1x64x32xbf16>
    %406 = vector.shape_cast %405 : vector<1x64x32xbf16> to vector<64x32xbf16>
    %cst_433 = arith.constant dense<0.000000e+00> : vector<2x32xf32>
    %407 = tpu.matmul %404, %406, %cst_433 {dimension_numbers = #tpu.dot_dimension_numbers<[1], [0], [0], [1], [0, 0, 1, 1], [], []>} : vector<2x64xbf16>, vector<64x32xbf16>, vector<2x32xf32> -> vector<2x32xf32>
    %408 = arith.addf %400, %407 : vector<2x32xf32>
    %c0_434 = arith.constant 0 : index
    %c0_435 = arith.constant 0 : index
    %409 = vector.load %arg6[%c0_434, %c0_435] : memref<1x32xf32, #tpu.memory_space<vmem>>, vector<1x32xf32>
    %410 = vector.broadcast %409 : vector<1x32xf32> to vector<2x32xf32>
    %411 = arith.addf %408, %410 : vector<2x32xf32>
    %cst_436 = arith.constant 0.000000e+00 : f32
    %412 = vector.broadcast %cst_436 : f32 to vector<2x32xf32>
    %413 = arith.maximumf %411, %412 : vector<2x32xf32>
    %414 = arith.truncf %413 : vector<2x32xf32> to vector<2x32xbf16>
    %c0_437 = arith.constant 0 : index
    %c0_438 = arith.constant 0 : index
    %415 = vector.load %arg7[%c0_437, %c0_438] : memref<32x32xbf16, #tpu.memory_space<vmem>>, vector<32x32xbf16>
    %cst_439 = arith.constant dense<0.000000e+00> : vector<2x32xf32>
    %416 = tpu.matmul %414, %415, %cst_439 {dimension_numbers = #tpu.dot_dimension_numbers<[1], [0], [0], [1], [0, 0, 1, 1], [], []>} : vector<2x32xbf16>, vector<32x32xbf16>, vector<2x32xf32> -> vector<2x32xf32>
    %c0_440 = arith.constant 0 : index
    %c0_441 = arith.constant 0 : index
    %417 = vector.load %arg8[%c0_440, %c0_441] : memref<1x32xf32, #tpu.memory_space<vmem>>, vector<1x32xf32>
    %418 = vector.broadcast %417 : vector<1x32xf32> to vector<2x32xf32>
    %419 = arith.addf %416, %418 : vector<2x32xf32>
    %cst_442 = arith.constant 0.000000e+00 : f32
    %420 = vector.broadcast %cst_442 : f32 to vector<2x32xf32>
    %421 = arith.maximumf %419, %420 : vector<2x32xf32>
    %422 = arith.truncf %421 : vector<2x32xf32> to vector<2x32xbf16>
    %c0_443 = arith.constant 0 : index
    %c0_444 = arith.constant 0 : index
    %423 = vector.load %arg9[%c0_443, %c0_444] : memref<32x1xbf16, #tpu.memory_space<vmem>>, vector<32x1xbf16>
    %cst_445 = arith.constant dense<0.000000e+00> : vector<2x1xf32>
    %424 = tpu.matmul %422, %423, %cst_445 {dimension_numbers = #tpu.dot_dimension_numbers<[1], [0], [0], [1], [0, 0, 1, 1], [], []>} : vector<2x32xbf16>, vector<32x1xbf16>, vector<2x1xf32> -> vector<2x1xf32>
    %c0_446 = arith.constant 0 : index
    %c0_447 = arith.constant 0 : index
    %425 = vector.load %arg10[%c0_446, %c0_447] : memref<1x1xf32, #tpu.memory_space<vmem>>, vector<1x1xf32>
    %426 = vector.broadcast %425 : vector<1x1xf32> to vector<2x1xf32>
    %427 = arith.addf %424, %426 : vector<2x1xf32>
    %c0_448 = arith.constant 0 : index
    %c0_449 = arith.constant 0 : index
    %428 = vector.load %arg11[%c0_448, %c0_449] : memref<2x1xf32, #tpu.memory_space<vmem>>, vector<2x1xf32>
    tpu.vector_store %arg11[%c0_448, %c0_449], %427 {strides = array<i32>} : memref<2x1xf32, #tpu.memory_space<vmem>>, vector<2x1xf32>,
    return
  }
  func.func @transform_0(%arg0: i32) -> (i32, i32) {
    %c0_i32 = arith.constant 0 : i32
    %c0_i32_0 = arith.constant 0 : i32
    %c0_i32_1 = arith.constant 0 : i32
    return %c0_i32, %c0_i32_0 : i32, i32
  }
  func.func @transform_1(%arg0: i32) -> (i32, i32) {
    %c0_i32 = arith.constant 0 : i32
    %c0_i32_0 = arith.constant 0 : i32
    %c0_i32_1 = arith.constant 0 : i32
    return %c0_i32, %c0_i32_0 : i32, i32
  }
  func.func @transform_2(%arg0: i32) -> (i32, i32, i32, i32) {
    %c0_i32 = arith.constant 0 : i32
    %c0_i32_0 = arith.constant 0 : i32
    %c0_i32_1 = arith.constant 0 : i32
    %c0_i32_2 = arith.constant 0 : i32
    %c0_i32_3 = arith.constant 0 : i32
    return %c0_i32, %c0_i32_0, %c0_i32_1, %c0_i32_2 : i32, i32, i32, i32
  }
  func.func @transform_3(%arg0: i32) -> (i32, i32, i32) {
    %c0_i32 = arith.constant 0 : i32
    %c0_i32_0 = arith.constant 0 : i32
    %c0_i32_1 = arith.constant 0 : i32
    %c0_i32_2 = arith.constant 0 : i32
    return %c0_i32, %c0_i32_0, %c0_i32_1 : i32, i32, i32
  }
  func.func @transform_4(%arg0: i32) -> (i32, i32, i32) {
    %c0_i32 = arith.constant 0 : i32
    %c0_i32_0 = arith.constant 0 : i32
    %c0_i32_1 = arith.constant 0 : i32
    %c0_i32_2 = arith.constant 0 : i32
    return %c0_i32, %c0_i32_0, %c0_i32_1 : i32, i32, i32
  }
  func.func @transform_5(%arg0: i32) -> (i32, i32) {
    %c0_i32 = arith.constant 0 : i32
    %c0_i32_0 = arith.constant 0 : i32
    %c0_i32_1 = arith.constant 0 : i32
    return %c0_i32, %c0_i32_0 : i32, i32
  }
  func.func @transform_6(%arg0: i32) -> (i32, i32) {
    %c0_i32 = arith.constant 0 : i32
    %c0_i32_0 = arith.constant 0 : i32
    %c0_i32_1 = arith.constant 0 : i32
    return %c0_i32, %c0_i32_0 : i32, i32
  }
  func.func @transform_7(%arg0: i32) -> (i32, i32) {
    %c0_i32 = arith.constant 0 : i32
    %c0_i32_0 = arith.constant 0 : i32
    %c0_i32_1 = arith.constant 0 : i32
    return %c0_i32, %c0_i32_0 : i32, i32
  }
  func.func @transform_8(%arg0: i32) -> (i32, i32) {
    %c0_i32 = arith.constant 0 : i32
    %c0_i32_0 = arith.constant 0 : i32
    %c0_i32_1 = arith.constant 0 : i32
    return %c0_i32, %c0_i32_0 : i32, i32
  }
  func.func @transform_9(%arg0: i32) -> (i32, i32) {
    %c0_i32 = arith.constant 0 : i32
    %c0_i32_0 = arith.constant 0 : i32
    %c0_i32_1 = arith.constant 0 : i32
    return %c0_i32, %c0_i32_0 : i32, i32
  }
  func.func @transform_10(%arg0: i32) -> (i32, i32) {
    %c0_i32 = arith.constant 0 : i32
    %c0_i32_0 = arith.constant 0 : i32
    %c0_i32_1 = arith.constant 0 : i32
    return %c0_i32, %c0_i32_0 : i32, i32
  }
}

</mosaic_0001>

<llo_original>
// kernel: tpu_custom_call.1
$region0: #{tpu_custom_call.1}
  #allocation0 [shape = 'u32[]', space=smem, size = 0x4, offset = 0x4, fixed_abs, tag = 'smem constant byte address 0x4 - core index']
  #allocation1 [shape = 'u32[144,128]{1,0:T(1,128)}', space=vmem, size = 0x12000, scoped, tag = 'internal scratch']
  #allocation2 [shape = 'f32[80,64]{1,0:T(8,128)}', space=vmem, size = 0xa000, scoped, tag = 'scratch operand']
  #allocation3 [shape = 'f32[1,1]{1,0:T(1,128)S(1)}', space=vmem, size = 0x200, scoped, tag = 'scoped memory for tpu_custom_call.1']
  %s0 = inlined_call_operand.vmem [shape: bf16[64,40], index: 0, kind: input, shape index: {}]
  %s1 = inlined_call_operand.vmem [shape: bf16[40,64], index: 1, kind: input, shape index: {}]
  %s2 = inlined_call_operand.hbm [shape: bf16[5,10,64,64], index: 2, kind: input, shape index: {}]
  %s3 = inlined_call_operand.vmem [shape: f32[6,1,64], index: 3, kind: input, shape index: {}]
  %s4 = inlined_call_operand.vmem [shape: bf16[2,64,32], index: 4, kind: input, shape index: {}]
  %s5 = inlined_call_operand.vmem [shape: f32[1,32], index: 5, kind: input, shape index: {}]
  %s6 = inlined_call_operand.vmem [shape: bf16[32,32], index: 6, kind: input, shape index: {}]
  %s7 = inlined_call_operand.vmem [shape: f32[1,32], index: 7, kind: input, shape index: {}]
  %s8 = inlined_call_operand.vmem [shape: bf16[32,1], index: 8, kind: input, shape index: {}]
  %s9 = inlined_call_operand.<no memory space> [shape: f32[1,1], index: 9, kind: input, shape index: {}]
  %s10 = inlined_call_operand.vmem [shape: f32[2,1], index: 10, kind: output, shape index: {}]
  %s11 = sld [smem:[#allocation0]]
  $region54: #{tpu_custom_call.1} parent=0
    _
  %s13 = ssub.s32 1, %s11
  %s14 = scalar_select 0, %s13, %s11
  %v15 = vstv %s9
  %16 = vst [vmem:[#allocation3] sm:$0x1] %v15
  $region1: #{tpu_custom_call.1} parent=0
    #allocation4 [shape = 'u8[819200]{0}', space=vmem, size = 0xc8000, scoped, tag = 'input window, operand 2, single buffered']
    #allocation5 [shape = 's32[1]{0}', space=sflag, size = 0x4, scoped, tag = 'scoped memory for tpu_custom_call.1']
    %17 = vsyncpa [#allocation5], 0
    // Predicated region
    $region2: #{tpu_custom_call.1} parent=1 // pred_check
      _
    $region3: #{tpu_custom_call.1} parent=1 // pred_check_branch
      %19 = sbr.rel (0) target = $region5
    $region4: #{tpu_custom_call.1} parent=1 // pred_region
      _
    $region5: #{tpu_custom_call.1} parent=1 // pred_fallthru
      _
    // Predicated region
    $region6: #{tpu_custom_call.1} parent=1 // pred_check
      _
    $region7: #{tpu_custom_call.1} parent=1 // pred_check_branch
      %21 = sbr.rel (0) target = $region9
    $region8: #{tpu_custom_call.1} parent=1 // pred_region
      _
    $region9: #{tpu_custom_call.1} parent=1 // pred_fallthru
      _
    // Predicated region
    $region10: #{tpu_custom_call.1} parent=1 // pred_check
      _
    $region11: #{tpu_custom_call.1} parent=1 // pred_check_branch
      %23 = sbr.rel (0) target = $region13
    $region12: #{tpu_custom_call.1} parent=1 // pred_region
      %s25 = ssub.s32 25600, 25600
      %26 = vsyncadd [#allocation5], %s25
      %s27 = sshll.u32 [#allocation4], 4
      %s28 = int_to_ptr.vmem [resolvable:$true] %s27
      %33 = dma.hbm_to_vmem [thread:$0]  %s2, 25600, %s28, [#allocation5], 64, 64, 4
    $region13: #{tpu_custom_call.1} parent=1 // pred_fallthru
      _
    // Predicated region
    $region14: #{tpu_custom_call.1} parent=1 // pred_check
      _
    $region15: #{tpu_custom_call.1} parent=1 // pred_check_branch
      %35 = sbr.rel (0) target = $region17
    $region16: #{tpu_custom_call.1} parent=1 // pred_region
      _
    $region17: #{tpu_custom_call.1} parent=1 // pred_fallthru
      _
    // Predicated region
    $region18: #{tpu_custom_call.1} parent=1 // pred_check
      _
    $region19: #{tpu_custom_call.1} parent=1 // pred_check_branch
      %37 = sbr.rel (0) target = $region21
    $region20: #{tpu_custom_call.1} parent=1 // pred_region
      _
    $region21: #{tpu_custom_call.1} parent=1 // pred_fallthru
      _
    // Predicated region
    $region22: #{tpu_custom_call.1} parent=1 // pred_check
      _
    $region23: #{tpu_custom_call.1} parent=1 // pred_check_branch
      %39 = sbr.rel (0) target = $region25
    $region24: #{tpu_custom_call.1} parent=1 // pred_region
      _
    $region25: #{tpu_custom_call.1} parent=1 // pred_fallthru
      _
    // Predicated region
    $region26: #{tpu_custom_call.1} parent=1 // pred_check
      _
    $region27: #{tpu_custom_call.1} parent=1 // pred_check_branch
      %41 = sbr.rel (0) target = $region29
    $region28: #{tpu_custom_call.1} parent=1 // pred_region
      _
    $region29: #{tpu_custom_call.1} parent=1 // pred_fallthru
      _
    // Predicated region
    $region30: #{tpu_custom_call.1} parent=1 // pred_check
      _
    $region31: #{tpu_custom_call.1} parent=1 // pred_check_branch
      %43 = sbr.rel (0) target = $region33
    $region32: #{tpu_custom_call.1} parent=1 // pred_region
      _
    $region33: #{tpu_custom_call.1} parent=1 // pred_fallthru
      _
    // Predicated region
    $region34: #{tpu_custom_call.1} parent=1 // pred_check
      _
    $region35: #{tpu_custom_call.1} parent=1 // pred_check_branch
      %45 = sbr.rel (0) target = $region37
    $region36: #{tpu_custom_call.1} parent=1 // pred_region
      _
    $region37: #{tpu_custom_call.1} parent=1 // pred_fallthru
      _
    // Predicated region
    $region38: #{tpu_custom_call.1} parent=1 // pred_check
      _
    $region39: #{tpu_custom_call.1} parent=1 // pred_check_branch
      %47 = sbr.rel (0) target = $region41
    $region40: #{tpu_custom_call.1} parent=1 // pred_region
      _
    $region41: #{tpu_custom_call.1} parent=1 // pred_fallthru
      _
    // Predicated region
    $region42: #{tpu_custom_call.1} parent=1 // pred_check
      _
    $region43: #{tpu_custom_call.1} parent=1 // pred_check_branch
      %49 = sbr.rel (0) target = $region45
    $region44: #{tpu_custom_call.1} parent=1 // pred_region
      %50 = dma.done [#allocation5], 25600
    $region45: #{tpu_custom_call.1} parent=1 // pred_fallthru
      _
    %vm52 = vcmask 523264
    %53 = vst.msk [vmem:[#allocation2] sm:$0xff] %vm52, 0.0
    %54 = vst.msk [vmem:[#allocation2 + $0x8] sm:$0xff] %vm52, 0.0
    %55 = vst.msk [vmem:[#allocation2 + $0x10] sm:$0xff] %vm52, 0.0
    %56 = vst.msk [vmem:[#allocation2 + $0x18] sm:$0xff] %vm52, 0.0
    %57 = vst.msk [vmem:[#allocation2 + $0x20] sm:$0xff] %vm52, 0.0
    %58 = vst.msk [vmem:[#allocation2 + $0x28] sm:$0xff] %vm52, 0.0
    %59 = vst.msk [vmem:[#allocation2 + $0x30] sm:$0xff] %vm52, 0.0
    %60 = vst.msk [vmem:[#allocation2 + $0x38] sm:$0xff] %vm52, 0.0
    %61 = vst.msk [vmem:[#allocation2 + $0x40] sm:$0xff] %vm52, 0.0
    %62 = vst.msk [vmem:[#allocation2 + $0x48] sm:$0xff] %vm52, 0.0
    %v63 = vld [vmem:[%s0] sm:$0xf]
    %v64 = vld [vmem:[%s0 + $0x4] sm:$0xf]
    %v65 = vld [vmem:[%s0 + $0x8] sm:$0xf]
    %v66 = vld [vmem:[%s0 + $0xc] sm:$0xf]
    %v67 = vld [vmem:[%s0 + $0x10] sm:$0xf]
    %v68 = vld [vmem:[%s0 + $0x14] sm:$0xf]
    %v69 = vld [vmem:[%s0 + $0x18] sm:$0xf]
    %v70 = vld [vmem:[%s0 + $0x1c] sm:$0xf]
    %v71 = vld [vmem:[%s1] sm:$0xf]
    %v72 = vld [vmem:[%s1 + $0x4] sm:$0xf]
    %v73 = vld [vmem:[%s1 + $0x8] sm:$0xf]
    %v74 = vld [vmem:[%s1 + $0xc] sm:$0xf]
    %v75 = vld [vmem:[%s1 + $0x10] sm:$0xf]
    %v76 = vld [vmem:[%s3] sm:$0x1]
    %v78 = vlaneseq
    %v79 = vshrl.u32 %v78, 7
    %v80 = vsub.s32 0, %v79
    %v81 = vrot.slane %v76, %v80
    %v91 = vunpack.c.l.b16 %v63
    %v92 = vunpack.c.l.b16 %v64
    %v93 = vunpack.c.l.b16 %v65
    %v94 = vunpack.c.l.b16 %v66
    %v95 = vunpack.c.l.b16 %v67
    %v96 = vunpack.c.l.b16 %v68
    %v97 = vunpack.c.l.b16 %v69
    %v98 = vunpack.c.l.b16 %v70
    %v99 = vpack.c.b16 %v92, %v91
    %v100 = vpack.c.b16 %v94, %v93
    %v101 = vpack.c.b16 %v96, %v95
    %v102 = vpack.c.b16 %v98, %v97
    %v108 = vunpack.c.l.b16 %v71
    %v109 = vunpack.c.l.b16 %v72
    %v110 = vunpack.c.l.b16 %v73
    %v111 = vunpack.c.l.b16 %v74
    %v112 = vunpack.c.l.b16 %v75
    %v113 = vpack.c.b16 %v109, %v108
    %v114 = vpack.c.b16 %v111, %v110
    %v115 = vpack.c.b16 %v112, %v112
    %vm118 = vcmask 326656
    %v120 = vsel %vm118, %v99, 0
    %v123 = vsel %vm118, %v100, 0
    %v126 = vsel %vm118, %v101, 0
    %v129 = vsel %vm118, %v102, 0
    %vm131 = vcmask 1043456
    %v133 = vsel %vm131, %v115, 0
    %135 = vmatprep.subr.bf16.mxu0 0
    %136 = vmatpush1.bf16.msra.mxu0 %v113
    %137 = vmatprep.subr.bf16.mxu0 0
    %138 = vmatpush1.bf16.msra.mxu0 %v114
    %139 = vmatprep.subr.bf16.mxu0 0
    %140 = vmatpush1.bf16.msra.mxu0 %v133
    %141 = vmatprep.subr.bf16.mxu0 0
    %142 = vmatpush1.bf16.msra.mxu0 0
    %143 = vmatprep.subr.bf16.mxu0 0
    %144 = vmatpush1.bf16.msra.mxu0 0
    %145 = vmatprep.subr.bf16.mxu0 0
    %146 = vmatpush1.bf16.msra.mxu0 0
    %147 = vmatprep.subr.bf16.mxu0 0
    %148 = vmatpush1.bf16.msra.mxu0 0
    %149 = vmatprep.subr.bf16.mxu0 0
    %150 = vmatpush1.bf16.msra.mxu0 0
    %151 = vmatprep.subr.bf16.mxu0 0
    %152 = vmatpush1.bf16.msra.mxu0 0
    %153 = vmatprep.subr.bf16.mxu0 0
    %154 = vmatpush1.bf16.msra.mxu0 0
    %155 = vmatprep.subr.bf16.mxu0 0
    %156 = vmatpush1.bf16.msra.mxu0 0
    %157 = vmatprep.subr.bf16.mxu0 0
    %158 = vmatpush1.bf16.msra.mxu0 0
    %159 = vmatprep.subr.bf16.mxu0 0
    %160 = vmatpush1.bf16.msra.mxu0 0
    %161 = vmatprep.subr.bf16.mxu0 0
    %162 = vmatpush1.bf16.msra.mxu0 0
    %163 = vmatprep.subr.bf16.mxu0 0
    %164 = vmatpush1.bf16.msra.mxu0 0
    %165 = vmatprep.subr.bf16.mxu0 0
    %166 = vmatpush1.bf16.msra.mxu0 0
    %167 = vmatprep.mubr.bf16.mxu0 0
    %168 = vmatmul.mubr.bf16.gmra.mrb[0].mxu0 %v120
    %v169 = vpop.f32.mrb[0].mxu0
    %v170 = vadd.f32 %v81, %v169
    %v171 = vpop.f32.mrb[0].mxu0
    %v172 = vpop.f32.mrb[0].mxu0
    %v173 = vadd.f32 %v81, %v172
    %v174 = vpop.f32.mrb[0].mxu0
    %175 = vmatprep.mubr.bf16.mxu0 0
    %176 = vmatmul.mubr.bf16.gmra.mrb[0].mxu0 %v123
    %v177 = vpop.f32.mrb[0].mxu0
    %v178 = vpop.f32.mrb[0].mxu0
    %v179 = vpop.f32.mrb[0].mxu0
    %v180 = vpop.f32.mrb[0].mxu0
    %181 = vmatprep.mubr.bf16.mxu0 0
    %182 = vmatmul.mubr.bf16.gmra.mrb[0].mxu0 %v126
    %v183 = vpop.f32.mrb[0].mxu0
    %v184 = vadd.f32 %v81, %v183
    %v185 = vpop.f32.mrb[0].mxu0
    %v186 = vpop.f32.mrb[0].mxu0
    %v187 = vadd.f32 %v81, %v186
    %v188 = vpop.f32.mrb[0].mxu0
    %189 = vmatprep.mubr.bf16.mxu0 0
    %190 = vmatmul.mubr.bf16.gmra.mrb[0].mxu0 %v129
    %v191 = vpop.f32.mrb[0].mxu0
    %v192 = vpop.f32.mrb[0].mxu0
    %v193 = vpop.f32.mrb[0].mxu0
    %v194 = vpop.f32.mrb[0].mxu0
    %195 = vdwg.mxu0
    %v196 = vmax.f32 %v170, 0.0
    %v197 = vmax.f32 %v173, 0.0
    %v198 = vmax.f32 %v184, 0.0
    %v199 = vmax.f32 %v187, 0.0
    %200 = vst.msk [vmem:[#allocation2 + $0x4] sm:$0xff] %vm52, %v196
    %201 = vst.msk [vmem:[#allocation2 + $0xc] sm:$0xff] %vm52, %v197
    %202 = vst.msk [vmem:[#allocation2 + $0x24] sm:$0xff] %vm52, %v198
    %203 = vst.msk [vmem:[#allocation2 + $0x2c] sm:$0xff] %vm52, %v199
    %v204 = vld [vmem:[#allocation2 + $0x4] sm:$0xff]
    %v205 = vld [vmem:[#allocation2 + $0xc] sm:$0xff]
    %v206 = vld [vmem:[#allocation2 + $0x14] sm:$0xff]
    %v207 = vld [vmem:[#allocation2 + $0x1c] sm:$0xff]
    %v208 = vld [vmem:[#allocation2 + $0x24] sm:$0xff]
    %v209 = vld [vmem:[#allocation2 + $0x2c] sm:$0xff]
    %v210 = vld [vmem:[#allocation2 + $0x34] sm:$0xff]
    %v211 = vld [vmem:[#allocation2 + $0x3c] sm:$0xff]
    %v212 = vld [vmem:[#allocation2] sm:$0xff]
    %v213 = vld [vmem:[#allocation2 + $0x8] sm:$0xff]
    %v214 = vld [vmem:[#allocation2 + $0x10] sm:$0xff]
    %v215 = vld [vmem:[#allocation2 + $0x18] sm:$0xff]
    %v216 = vld [vmem:[#allocation2 + $0x20] sm:$0xff]
    %v217 = vld [vmem:[#allocation2 + $0x28] sm:$0xff]
    %v218 = vld [vmem:[#allocation2 + $0x30] sm:$0xff]
    %v219 = vld [vmem:[#allocation2 + $0x38] sm:$0xff]
    %v220 = vpack.c.bf16 %v213, %v212
    %v221 = vpack.c.bf16 %v215, %v214
    %v222 = vpack.c.bf16 %v217, %v216
    %v223 = vpack.c.bf16 %v219, %v218
    %v224 = vld [vmem:[#allocation4] sm:$0xf]
    %v225 = vld [vmem:[#allocation4 + $0x4] sm:$0xf]
    %v226 = vld [vmem:[#allocation4 + $0x8] sm:$0xf]
    %v227 = vld [vmem:[#allocation4 + $0xc] sm:$0xf]
    %v228 = vld [vmem:[#allocation4 + $0x10] sm:$0xf]
    %v229 = vld [vmem:[#allocation4 + $0x14] sm:$0xf]
    %v230 = vld [vmem:[#allocation4 + $0x18] sm:$0xf]
    %v231 = vld [vmem:[#allocation4 + $0x1c] sm:$0xf]
    %v232 = vld [vmem:[#allocation2 + $0x1] sm:$0xff]
    %v233 = vld [vmem:[#allocation2 + $0x9] sm:$0xff]
    %v234 = vld [vmem:[#allocation2 + $0x11] sm:$0xff]
    %v235 = vld [vmem:[#allocation2 + $0x19] sm:$0xff]
    %v236 = vld [vmem:[#allocation2 + $0x21] sm:$0xff]
    %v237 = vld [vmem:[#allocation2 + $0x29] sm:$0xff]
    %v238 = vld [vmem:[#allocation2 + $0x31] sm:$0xff]
    %v239 = vld [vmem:[#allocation2 + $0x39] sm:$0xff]
    %v240 = vpack.c.bf16 %v233, %v232
    %v241 = vpack.c.bf16 %v235, %v234
    %v242 = vpack.c.bf16 %v237, %v236
    %v243 = vpack.c.bf16 %v239, %v238
    %s244 = scalar_lea.vmem [#allocation4], 32
    %v245 = vld [vmem:[%s244] sm:$0xf]
    %v246 = vld [vmem:[%s244 + $0x4] sm:$0xf]
    %v247 = vld [vmem:[%s244 + $0x8] sm:$0xf]
    %v248 = vld [vmem:[%s244 + $0xc] sm:$0xf]
    %v249 = vld [vmem:[%s244 + $0x10] sm:$0xf]
    %v250 = vld [vmem:[%s244 + $0x14] sm:$0xf]
    %v251 = vld [vmem:[%s244 + $0x18] sm:$0xf]
    %v252 = vld [vmem:[%s244 + $0x1c] sm:$0xf]
    %v261 = vunpack.c.l.b16 %v245
    %v262 = vunpack.c.l.b16 %v246
    %v263 = vunpack.c.l.b16 %v247
    %v264 = vunpack.c.l.b16 %v248
    %v265 = vunpack.c.l.b16 %v249
    %v266 = vunpack.c.l.b16 %v250
    %v267 = vunpack.c.l.b16 %v251
    %v268 = vunpack.c.l.b16 %v252
    %v269 = vpack.c.b16 %v262, %v261
    %v270 = vpack.c.b16 %v264, %v263
    %v271 = vpack.c.b16 %v266, %v265
    %v272 = vpack.c.b16 %v268, %v267
    %v278 = vsel %vm52, %v240, 0
    %v281 = vsel %vm52, %v241, 0
    %v284 = vsel %vm52, %v242, 0
    %v287 = vsel %vm52, %v243, 0
    %289 = vmatprep.subr.bf16.mxu0 0
    %290 = vmatpush1.bf16.msra.mxu0 %v269
    %291 = vmatprep.subr.bf16.mxu0 0
    %292 = vmatpush1.bf16.msra.mxu0 %v270
    %293 = vmatprep.subr.bf16.mxu0 0
    %294 = vmatpush1.bf16.msra.mxu0 %v271
    %295 = vmatprep.subr.bf16.mxu0 0
    %296 = vmatpush1.bf16.msra.mxu0 %v272
    %297 = vmatprep.subr.bf16.mxu0 0
    %298 = vmatpush1.bf16.msra.mxu0 0
    %299 = vmatprep.subr.bf16.mxu0 0
    %300 = vmatpush1.bf16.msra.mxu0 0
    %301 = vmatprep.subr.bf16.mxu0 0
    %302 = vmatpush1.bf16.msra.mxu0 0
    %303 = vmatprep.subr.bf16.mxu0 0
    %304 = vmatpush1.bf16.msra.mxu0 0
    %305 = vmatprep.subr.bf16.mxu0 0
    %306 = vmatpush1.bf16.msra.mxu0 0
    %307 = vmatprep.subr.bf16.mxu0 0
    %308 = vmatpush1.bf16.msra.mxu0 0
    %309 = vmatprep.subr.bf16.mxu0 0
    %310 = vmatpush1.bf16.msra.mxu0 0
    %311 = vmatprep.subr.bf16.mxu0 0
    %312 = vmatpush1.bf16.msra.mxu0 0
    %313 = vmatprep.subr.bf16.mxu0 0
    %314 = vmatpush1.bf16.msra.mxu0 0
    %315 = vmatprep.subr.bf16.mxu0 0
    %316 = vmatpush1.bf16.msra.mxu0 0
    %317 = vmatprep.subr.bf16.mxu0 0
    %318 = vmatpush1.bf16.msra.mxu0 0
    %319 = vmatprep.subr.bf16.mxu0 0
    %320 = vmatpush1.bf16.msra.mxu0 0
    %321 = vmatprep.mubr.bf16.mxu0 0
    %322 = vmatmul.mubr.bf16.gmra.mrb[0].mxu0 %v278
    %v323 = vpop.f32.mrb[0].mxu0
    %v324 = vadd.f32 0.0, %v323
    %v325 = vpop.f32.mrb[0].mxu0
    %v326 = vpop.f32.mrb[0].mxu0
    %v327 = vadd.f32 0.0, %v326
    %v328 = vpop.f32.mrb[0].mxu0
    %329 = vmatprep.mubr.bf16.mxu0 0
    %330 = vmatmul.mubr.bf16.gmra.mrb[0].mxu0 %v281
    %v331 = vpop.f32.mrb[0].mxu0
    %v332 = vpop.f32.mrb[0].mxu0
    %v333 = vpop.f32.mrb[0].mxu0
    %v334 = vpop.f32.mrb[0].mxu0
    %335 = vmatprep.mubr.bf16.mxu0 0
    %336 = vmatmul.mubr.bf16.gmra.mrb[0].mxu0 %v284
    %v337 = vpop.f32.mrb[0].mxu0
    %v338 = vadd.f32 0.0, %v337
    %v339 = vpop.f32.mrb[0].mxu0
    %v340 = vpop.f32.mrb[0].mxu0
    %v341 = vadd.f32 0.0, %v340
    %v342 = vpop.f32.mrb[0].mxu0
    %343 = vmatprep.mubr.bf16.mxu0 0
    %344 = vmatmul.mubr.bf16.gmra.mrb[0].mxu0 %v287
    %v345 = vpop.f32.mrb[0].mxu0
    %v346 = vpop.f32.mrb[0].mxu0
    %v347 = vpop.f32.mrb[0].mxu0
    %v348 = vpop.f32.mrb[0].mxu0
    %349 = vdwg.mxu0
    %v358 = vunpack.c.l.b16 %v224
    %v359 = vunpack.c.l.b16 %v225
    %v360 = vunpack.c.l.b16 %v226
    %v361 = vunpack.c.l.b16 %v227
    %v362 = vunpack.c.l.b16 %v228
    %v363 = vunpack.c.l.b16 %v229
    %v364 = vunpack.c.l.b16 %v230
    %v365 = vunpack.c.l.b16 %v231
    %v366 = vpack.c.b16 %v359, %v358
    %v367 = vpack.c.b16 %v361, %v360
    %v368 = vpack.c.b16 %v363, %v362
    %v369 = vpack.c.b16 %v365, %v364
    %v375 = vsel %vm52, %v220, 0
    %v378 = vsel %vm52, %v221, 0
    %v381 = vsel %vm52, %v222, 0
    %v384 = vsel %vm52, %v223, 0
    %386 = vmatprep.subr.bf16.mxu0 0
    %387 = vmatpush1.bf16.msra.mxu0 %v366
    %388 = vmatprep.subr.bf16.mxu0 0
    %389 = vmatpush1.bf16.msra.mxu0 %v367
    %390 = vmatprep.subr.bf16.mxu0 0
    %391 = vmatpush1.bf16.msra.mxu0 %v368
    %392 = vmatprep.subr.bf16.mxu0 0
    %393 = vmatpush1.bf16.msra.mxu0 %v369
    %394 = vmatprep.subr.bf16.mxu0 0
    %395 = vmatpush1.bf16.msra.mxu0 0
    %396 = vmatprep.subr.bf16.mxu0 0
    %397 = vmatpush1.bf16.msra.mxu0 0
    %398 = vmatprep.subr.bf16.mxu0 0
    %399 = vmatpush1.bf16.msra.mxu0 0
    %400 = vmatprep.subr.bf16.mxu0 0
    %401 = vmatpush1.bf16.msra.mxu0 0
    %402 = vmatprep.subr.bf16.mxu0 0
    %403 = vmatpush1.bf16.msra.mxu0 0
    %404 = vmatprep.subr.bf16.mxu0 0
    %405 = vmatpush1.bf16.msra.mxu0 0
    %406 = vmatprep.subr.bf16.mxu0 0
    %407 = vmatpush1.bf16.msra.mxu0 0
    %408 = vmatprep.subr.bf16.mxu0 0
    %409 = vmatpush1.bf16.msra.mxu0 0
    %410 = vmatprep.subr.bf16.mxu0 0
    %411 = vmatpush1.bf16.msra.mxu0 0
    %412 = vmatprep.subr.bf16.mxu0 0
    %413 = vmatpush1.bf16.msra.mxu0 0
    %414 = vmatprep.subr.bf16.mxu0 0
    %415 = vmatpush1.bf16.msra.mxu0 0
    %416 = vmatprep.subr.bf16.mxu0 0
    %417 = vmatpush1.bf16.msra.mxu0 0
    %418 = vmatprep.mubr.bf16.mxu0 0
    %419 = vmatmul.mubr.bf16.gmra.mrb[0].mxu0 %v375
    %v420 = vpop.f32.mrb[0].mxu0
    %v421 = vadd.f32 %v324, %v420
    %v422 = vpop.f32.mrb[0].mxu0
    %v423 = vpop.f32.mrb[0].mxu0
    %v424 = vadd.f32 %v327, %v423
    %v425 = vpop.f32.mrb[0].mxu0
    %426 = vmatprep.mubr.bf16.mxu0 0
    %427 = vmatmul.mubr.bf16.gmra.mrb[0].mxu0 %v378
    %v428 = vpop.f32.mrb[0].mxu0
    %v429 = vpop.f32.mrb[0].mxu0
    %v430 = vpop.f32.mrb[0].mxu0
    %v431 = vpop.f32.mrb[0].mxu0
    %432 = vmatprep.mubr.bf16.mxu0 0
    %433 = vmatmul.mubr.bf16.gmra.mrb[0].mxu0 %v381
    %v434 = vpop.f32.mrb[0].mxu0
    %v435 = vadd.f32 %v338, %v434
    %v436 = vpop.f32.mrb[0].mxu0
    %v437 = vpop.f32.mrb[0].mxu0
    %v438 = vadd.f32 %v341, %v437
    %v439 = vpop.f32.mrb[0].mxu0
    %440 = vmatprep.mubr.bf16.mxu0 0
    %441 = vmatmul.mubr.bf16.gmra.mrb[0].mxu0 %v384
    %v442 = vpop.f32.mrb[0].mxu0
    %v443 = vpop.f32.mrb[0].mxu0
    %v444 = vpop.f32.mrb[0].mxu0
    %v445 = vpop.f32.mrb[0].mxu0
    %446 = vdwg.mxu0
    %v447 = vld [vmem:[#allocation2 + $0x2] sm:$0xff]
    %v448 = vld [vmem:[#allocation2 + $0xa] sm:$0xff]
    %v449 = vld [vmem:[#allocation2 + $0x12] sm:$0xff]
    %v450 = vld [vmem:[#allocation2 + $0x1a] sm:$0xff]
    %v451 = vld [vmem:[#allocation2 + $0x22] sm:$0xff]
    %v452 = vld [vmem:[#allocation2 + $0x2a] sm:$0xff]
    %v453 = vld [vmem:[#allocation2 + $0x32] sm:$0xff]
    %v454 = vld [vmem:[#allocation2 + $0x3a] sm:$0xff]
    %v455 = vpack.c.bf16 %v448, %v447
    %v456 = vpack.c.bf16 %v450, %v449
    %v457 = vpack.c.bf16 %v452, %v451
    %v458 = vpack.c.bf16 %v454, %v453
    %s459 = scalar_lea.vmem [#allocation4], 64
    %v460 = vld [vmem:[%s459] sm:$0xf]
    %v461 = vld [vmem:[%s459 + $0x4] sm:$0xf]
    %v462 = vld [vmem:[%s459 + $0x8] sm:$0xf]
    %v463 = vld [vmem:[%s459 + $0xc] sm:$0xf]
    %v464 = vld [vmem:[%s459 + $0x10] sm:$0xf]
    %v465 = vld [vmem:[%s459 + $0x14] sm:$0xf]
    %v466 = vld [vmem:[%s459 + $0x18] sm:$0xf]
    %v467 = vld [vmem:[%s459 + $0x1c] sm:$0xf]
    %v476 = vunpack.c.l.b16 %v460
    %v477 = vunpack.c.l.b16 %v461
    %v478 = vunpack.c.l.b16 %v462
    %v479 = vunpack.c.l.b16 %v463
    %v480 = vunpack.c.l.b16 %v464
    %v481 = vunpack.c.l.b16 %v465
    %v482 = vunpack.c.l.b16 %v466
    %v483 = vunpack.c.l.b16 %v467
    %v484 = vpack.c.b16 %v477, %v476
    %v485 = vpack.c.b16 %v479, %v478
    %v486 = vpack.c.b16 %v481, %v480
    %v487 = vpack.c.b16 %v483, %v482
    %v493 = vsel %vm52, %v455, 0
    %v496 = vsel %vm52, %v456, 0
    %v499 = vsel %vm52, %v457, 0
    %v502 = vsel %vm52, %v458, 0
    %504 = vmatprep.subr.bf16.mxu0 0
    %505 = vmatpush1.bf16.msra.mxu0 %v484
    %506 = vmatprep.subr.bf16.mxu0 0
    %507 = vmatpush1.bf16.msra.mxu0 %v485
    %508 = vmatprep.subr.bf16.mxu0 0
    %509 = vmatpush1.bf16.msra.mxu0 %v486
    %510 = vmatprep.subr.bf16.mxu0 0
    %511 = vmatpush1.bf16.msra.mxu0 %v487
    %512 = vmatprep.subr.bf16.mxu0 0
    %513 = vmatpush1.bf16.msra.mxu0 0
    %514 = vmatprep.subr.bf16.mxu0 0
    %515 = vmatpush1.bf16.msra.mxu0 0
    %516 = vmatprep.subr.bf16.mxu0 0
    %517 = vmatpush1.bf16.msra.mxu0 0
    %518 = vmatprep.subr.bf16.mxu0 0
    %519 = vmatpush1.bf16.msra.mxu0 0
    %520 = vmatprep.subr.bf16.mxu0 0
    %521 = vmatpush1.bf16.msra.mxu0 0
    %522 = vmatprep.subr.bf16.mxu0 0
    %523 = vmatpush1.bf16.msra.mxu0 0
    %524 = vmatprep.subr.bf16.mxu0 0
    %525 = vmatpush1.bf16.msra.mxu0 0
    %526 = vmatprep.subr.bf16.mxu0 0
    %527 = vmatpush1.bf16.msra.mxu0 0
    %528 = vmatprep.subr.bf16.mxu0 0
    %529 = vmatpush1.bf16.msra.mxu0 0
    %530 = vmatprep.subr.bf16.mxu0 0
    %531 = vmatpush1.bf16.msra.mxu0 0
    %532 = vmatprep.subr.bf16.mxu0 0
    %533 = vmatpush1.bf16.msra.mxu0 0
    %534 = vmatprep.subr.bf16.mxu0 0
    %535 = vmatpush1.bf16.msra.mxu0 0
    %536 = vmatprep.mubr.bf16.mxu0 0
    %537 = vmatmul.mubr.bf16.gmra.mrb[0].mxu0 %v493
    %v538 = vpop.f32.mrb[0].mxu0
    %v539 = vadd.f32 0.0, %v538
    %v540 = vpop.f32.mrb[0].mxu0
    %v541 = vpop.f32.mrb[0].mxu0
    %v542 = vadd.f32 0.0, %v541
    %v543 = vpop.f32.mrb[0].mxu0
    %544 = vmatprep.mubr.bf16.mxu0 0
    %545 = vmatmul.mubr.bf16.gmra.mrb[0].mxu0 %v496
    %v546 = vpop.f32.mrb[0].mxu0
    %v547 = vpop.f32.mrb[0].mxu0
    %v548 = vpop.f32.mrb[0].mxu0
    %v549 = vpop.f32.mrb[0].mxu0
    %550 = vmatprep.mubr.bf16.mxu0 0
    %551 = vmatmul.mubr.bf16.gmra.mrb[0].mxu0 %v499
    %v552 = vpop.f32.mrb[0].mxu0
    %v553 = vadd.f32 0.0, %v552
    %v554 = vpop.f32.mrb[0].mxu0
    %v555 = vpop.f32.mrb[0].mxu0
    %v556 = vadd.f32 0.0, %v555
    %v557 = vpop.f32.mrb[0].mxu0
    %558 = vmatprep.mubr.bf16.mxu0 0
    %559 = vmatmul.mubr.bf16.gmra.mrb[0].mxu0 %v502
    %v560 = vpop.f32.mrb[0].mxu0
    %v561 = vpop.f32.mrb[0].mxu0
    %v562 = vpop.f32.mrb[0].mxu0
    %v563 = vpop.f32.mrb[0].mxu0
    %564 = vdwg.mxu0
    %v565 = vadd.f32 %v421, %v539
    %v566 = vadd.f32 %v424, %v542
    %v567 = vadd.f32 %v435, %v553
    %v568 = vadd.f32 %v438, %v556
    %v569 = vld [vmem:[#allocation2 + $0x3] sm:$0xff]
    %v570 = vld [vmem:[#allocation2 + $0xb] sm:$0xff]
    %v571 = vld [vmem:[#allocation2 + $0x13] sm:$0xff]
    %v572 = vld [vmem:[#allocation2 + $0x1b] sm:$0xff]
    %v573 = vld [vmem:[#allocation2 + $0x23] sm:$0xff]
    %v574 = vld [vmem:[#allocation2 + $0x2b] sm:$0xff]
    %v575 = vld [vmem:[#allocation2 + $0x33] sm:$0xff]
    %v576 = vld [vmem:[#allocation2 + $0x3b] sm:$0xff]
    %v577 = vpack.c.bf16 %v570, %v569
    %v578 = vpack.c.bf16 %v572, %v571
    %v579 = vpack.c.bf16 %v574, %v573
    %v580 = vpack.c.bf16 %v576, %v575
    %s581 = scalar_lea.vmem [#allocation4], 96
    %v582 = vld [vmem:[%s581] sm:$0xf]
    %v583 = vld [vmem:[%s581 + $0x4] sm:$0xf]
    %v584 = vld [vmem:[%s581 + $0x8] sm:$0xf]
    %v585 = vld [vmem:[%s581 + $0xc] sm:$0xf]
    %v586 = vld [vmem:[%s581 + $0x10] sm:$0xf]
    %v587 = vld [vmem:[%s581 + $0x14] sm:$0xf]
    %v588 = vld [vmem:[%s581 + $0x18] sm:$0xf]
    %v589 = vld [vmem:[%s581 + $0x1c] sm:$0xf]
    %v598 = vunpack.c.l.b16 %v582
    %v599 = vunpack.c.l.b16 %v583
    %v600 = vunpack.c.l.b16 %v584
    %v601 = vunpack.c.l.b16 %v585
    %v602 = vunpack.c.l.b16 %v586
    %v603 = vunpack.c.l.b16 %v587
    %v604 = vunpack.c.l.b16 %v588
    %v605 = vunpack.c.l.b16 %v589
    %v606 = vpack.c.b16 %v599, %v598
    %v607 = vpack.c.b16 %v601, %v600
    %v608 = vpack.c.b16 %v603, %v602
    %v609 = vpack.c.b16 %v605, %v604
    %v615 = vsel %vm52, %v577, 0
    %v618 = vsel %vm52, %v578, 0
    %v621 = vsel %vm52, %v579, 0
    %v624 = vsel %vm52, %v580, 0
    %626 = vmatprep.subr.bf16.mxu0 0
    %627 = vmatpush1.bf16.msra.mxu0 %v606
    %628 = vmatprep.subr.bf16.mxu0 0
    %629 = vmatpush1.bf16.msra.mxu0 %v607
    %630 = vmatprep.subr.bf16.mxu0 0
    %631 = vmatpush1.bf16.msra.mxu0 %v608
    %632 = vmatprep.subr.bf16.mxu0 0
    %633 = vmatpush1.bf16.msra.mxu0 %v609
    %634 = vmatprep.subr.bf16.mxu0 0
    %635 = vmatpush1.bf16.msra.mxu0 0
    %636 = vmatprep.subr.bf16.mxu0 0
    %637 = vmatpush1.bf16.msra.mxu0 0
    %638 = vmatprep.subr.bf16.mxu0 0
    %639 = vmatpush1.bf16.msra.mxu0 0
    %640 = vmatprep.subr.bf16.mxu0 0
    %641 = vmatpush1.bf16.msra.mxu0 0
    %642 = vmatprep.subr.bf16.mxu0 0
    %643 = vmatpush1.bf16.msra.mxu0 0
    %644 = vmatprep.subr.bf16.mxu0 0
    %645 = vmatpush1.bf16.msra.mxu0 0
    %646 = vmatprep.subr.bf16.mxu0 0
    %647 = vmatpush1.bf16.msra.mxu0 0
    %648 = vmatprep.subr.bf16.mxu0 0
    %649 = vmatpush1.bf16.msra.mxu0 0
    %650 = vmatprep.subr.bf16.mxu0 0
    %651 = vmatpush1.bf16.msra.mxu0 0
    %652 = vmatprep.subr.bf16.mxu0 0
    %653 = vmatpush1.bf16.msra.mxu0 0
    %654 = vmatprep.subr.bf16.mxu0 0
    %655 = vmatpush1.bf16.msra.mxu0 0
    %656 = vmatprep.subr.bf16.mxu0 0
    %657 = vmatpush1.bf16.msra.mxu0 0
    %658 = vmatprep.mubr.bf16.mxu0 0
    %659 = vmatmul.mubr.bf16.gmra.mrb[0].mxu0 %v615
    %v660 = vpop.f32.mrb[0].mxu0
    %v661 = vadd.f32 0.0, %v660
    %v662 = vpop.f32.mrb[0].mxu0
    %v663 = vpop.f32.mrb[0].mxu0
    %v664 = vadd.f32 0.0, %v663
    %v665 = vpop.f32.mrb[0].mxu0
    %666 = vmatprep.mubr.bf16.mxu0 0
    %667 = vmatmul.mubr.bf16.gmra.mrb[0].mxu0 %v618
    %v668 = vpop.f32.mrb[0].mxu0
    %v669 = vpop.f32.mrb[0].mxu0
    %v670 = vpop.f32.mrb[0].mxu0
    %v671 = vpop.f32.mrb[0].mxu0
    %672 = vmatprep.mubr.bf16.mxu0 0
    %673 = vmatmul.mubr.bf16.gmra.mrb[0].mxu0 %v621
    %v674 = vpop.f32.mrb[0].mxu0
    %v675 = vadd.f32 0.0, %v674
    %v676 = vpop.f32.mrb[0].mxu0
    %v677 = vpop.f32.mrb[0].mxu0
    %v678 = vadd.f32 0.0, %v677
    %v679 = vpop.f32.mrb[0].mxu0
    %680 = vmatprep.mubr.bf16.mxu0 0
    %681 = vmatmul.mubr.bf16.gmra.mrb[0].mxu0 %v624
    %v682 = vpop.f32.mrb[0].mxu0
    %v683 = vpop.f32.mrb[0].mxu0
    %v684 = vpop.f32.mrb[0].mxu0
    %v685 = vpop.f32.mrb[0].mxu0
    %686 = vdwg.mxu0
    %v687 = vadd.f32 %v565, %v661
    %v688 = vadd.f32 %v566, %v664
    %v689 = vadd.f32 %v567, %v675
    %v690 = vadd.f32 %v568, %v678
    %v691 = vpack.c.bf16 %v205, %v204
    %v692 = vpack.c.bf16 %v207, %v206
    %v693 = vpack.c.bf16 %v209, %v208
    %v694 = vpack.c.bf16 %v211, %v210
    %s695 = scalar_lea.vmem [#allocation4], 128
    %v696 = vld [vmem:[%s695] sm:$0xf]
    %v697 = vld [vmem:[%s695 + $0x4] sm:$0xf]
    %v698 = vld [vmem:[%s695 + $0x8] sm:$0xf]
    %v699 = vld [vmem:[%s695 + $0xc] sm:$0xf]
    %v700 = vld [vmem:[%s695 + $0x10] sm:$0xf]
    %v701 = vld [vmem:[%s695 + $0x14] sm:$0xf]
    %v702 = vld [vmem:[%s695 + $0x18] sm:$0xf]
    %v703 = vld [vmem:[%s695 + $0x1c] sm:$0xf]
    %v712 = vunpack.c.l.b16 %v696
    %v713 = vunpack.c.l.b16 %v697
    %v714 = vunpack.c.l.b16 %v698
    %v715 = vunpack.c.l.b16 %v699
    %v716 = vunpack.c.l.b16 %v700
    %v717 = vunpack.c.l.b16 %v701
    %v718 = vunpack.c.l.b16 %v702
    %v719 = vunpack.c.l.b16 %v703
    %v720 = vpack.c.b16 %v713, %v712
    %v721 = vpack.c.b16 %v715, %v714
    %v722 = vpack.c.b16 %v717, %v716
    %v723 = vpack.c.b16 %v719, %v718
    %v729 = vsel %vm52, %v691, 0
    %v732 = vsel %vm52, %v692, 0
    %v735 = vsel %vm52, %v693, 0
    %v738 = vsel %vm52, %v694, 0
    %740 = vmatprep.subr.bf16.mxu0 0
    %741 = vmatpush1.bf16.msra.mxu0 %v720
    %742 = vmatprep.subr.bf16.mxu0 0
    %743 = vmatpush1.bf16.msra.mxu0 %v721
    %744 = vmatprep.subr.bf16.mxu0 0
    %745 = vmatpush1.bf16.msra.mxu0 %v722
    %746 = vmatprep.subr.bf16.mxu0 0
    %747 = vmatpush1.bf16.msra.mxu0 %v723
    %748 = vmatprep.subr.bf16.mxu0 0
    %749 = vmatpush1.bf16.msra.mxu0 0
    %750 = vmatprep.subr.bf16.mxu0 0
    %751 = vmatpush1.bf16.msra.mxu0 0
    %752 = vmatprep.subr.bf16.mxu0 0
    %753 = vmatpush1.bf16.msra.mxu0 0
    %754 = vmatprep.subr.bf16.mxu0 0
    %755 = vmatpush1.bf16.msra.mxu0 0
    %756 = vmatprep.subr.bf16.mxu0 0
    %757 = vmatpush1.bf16.msra.mxu0 0
    %758 = vmatprep.subr.bf16.mxu0 0
    %759 = vmatpush1.bf16.msra.mxu0 0
    %760 = vmatprep.subr.bf16.mxu0 0
    %761 = vmatpush1.bf16.msra.mxu0 0
    %762 = vmatprep.subr.bf16.mxu0 0
    %763 = vmatpush1.bf16.msra.mxu0 0
    %764 = vmatprep.subr.bf16.mxu0 0
    %765 = vmatpush1.bf16.msra.mxu0 0
    %766 = vmatprep.subr.bf16.mxu0 0
    %767 = vmatpush1.bf16.msra.mxu0 0
    %768 = vmatprep.subr.bf16.mxu0 0
    %769 = vmatpush1.bf16.msra.mxu0 0
    %770 = vmatprep.subr.bf16.mxu0 0
    %771 = vmatpush1.bf16.msra.mxu0 0
    %772 = vmatprep.mubr.bf16.mxu0 0
    %773 = vmatmul.mubr.bf16.gmra.mrb[0].mxu0 %v729
    %v774 = vpop.f32.mrb[0].mxu0
    %v775 = vadd.f32 0.0, %v774
    %v776 = vpop.f32.mrb[0].mxu0
    %v777 = vpop.f32.mrb[0].mxu0
    %v778 = vadd.f32 0.0, %v777
    %v779 = vpop.f32.mrb[0].mxu0
    %780 = vmatprep.mubr.bf16.mxu0 0
    %781 = vmatmul.mubr.bf16.gmra.mrb[0].mxu0 %v732
    %v782 = vpop.f32.mrb[0].mxu0
    %v783 = vpop.f32.mrb[0].mxu0
    %v784 = vpop.f32.mrb[0].mxu0
    %v785 = vpop.f32.mrb[0].mxu0
    %786 = vmatprep.mubr.bf16.mxu0 0
    %787 = vmatmul.mubr.bf16.gmra.mrb[0].mxu0 %v735
    %v788 = vpop.f32.mrb[0].mxu0
    %v789 = vadd.f32 0.0, %v788
    %v790 = vpop.f32.mrb[0].mxu0
    %v791 = vpop.f32.mrb[0].mxu0
    %v792 = vadd.f32 0.0, %v791
    %v793 = vpop.f32.mrb[0].mxu0
    %794 = vmatprep.mubr.bf16.mxu0 0
    %795 = vmatmul.mubr.bf16.gmra.mrb[0].mxu0 %v738
    %v796 = vpop.f32.mrb[0].mxu0
    %v797 = vpop.f32.mrb[0].mxu0
    %v798 = vpop.f32.mrb[0].mxu0
    %v799 = vpop.f32.mrb[0].mxu0
    %800 = vdwg.mxu0
    %v801 = vadd.f32 %v687, %v775
    %v802 = vadd.f32 %v688, %v778
    %v803 = vadd.f32 %v689, %v789
    %v804 = vadd.f32 %v690, %v792
    %v805 = vld [vmem:[#allocation2 + $0x5] sm:$0xff]
    %v806 = vld [vmem:[#allocation2 + $0xd] sm:$0xff]
    %v807 = vld [vmem:[#allocation2 + $0x15] sm:$0xff]
    %v808 = vld [vmem:[#allocation2 + $0x1d] sm:$0xff]
    %v809 = vld [vmem:[#allocation2 + $0x25] sm:$0xff]
    %v810 = vld [vmem:[#allocation2 + $0x2d] sm:$0xff]
    %v811 = vld [vmem:[#allocation2 + $0x35] sm:$0xff]
    %v812 = vld [vmem:[#allocation2 + $0x3d] sm:$0xff]
    %v813 = vpack.c.bf16 %v806, %v805
    %v814 = vpack.c.bf16 %v808, %v807
    %v815 = vpack.c.bf16 %v810, %v809
    %v816 = vpack.c.bf16 %v812, %v811
    %s817 = scalar_lea.vmem [#allocation4], 160
    %v818 = vld [vmem:[%s817] sm:$0xf]
    %v819 = vld [vmem:[%s817 + $0x4] sm:$0xf]
    %v820 = vld [vmem:[%s817 + $0x8] sm:$0xf]
    %v821 = vld [vmem:[%s817 + $0xc] sm:$0xf]
    %v822 = vld [vmem:[%s817 + $0x10] sm:$0xf]
    %v823 = vld [vmem:[%s817 + $0x14] sm:$0xf]
    %v824 = vld [vmem:[%s817 + $0x18] sm:$0xf]
    %v825 = vld [vmem:[%s817 + $0x1c] sm:$0xf]
    %v834 = vunpack.c.l.b16 %v818
    %v835 = vunpack.c.l.b16 %v819
    %v836 = vunpack.c.l.b16 %v820
    %v837 = vunpack.c.l.b16 %v821
    %v838 = vunpack.c.l.b16 %v822
    %v839 = vunpack.c.l.b16 %v823
    %v840 = vunpack.c.l.b16 %v824
    %v841 = vunpack.c.l.b16 %v825
    %v842 = vpack.c.b16 %v835, %v834
    %v843 = vpack.c.b16 %v837, %v836
    %v844 = vpack.c.b16 %v839, %v838
    %v845 = vpack.c.b16 %v841, %v840
    %v851 = vsel %vm52, %v813, 0
    %v854 = vsel %vm52, %v814, 0
    %v857 = vsel %vm52, %v815, 0
    %v860 = vsel %vm52, %v816, 0
    %862 = vmatprep.subr.bf16.mxu0 0
    %863 = vmatpush1.bf16.msra.mxu0 %v842
    %864 = vmatprep.subr.bf16.mxu0 0
    %865 = vmatpush1.bf16.msra.mxu0 %v843
    %866 = vmatprep.subr.bf16.mxu0 0
    %867 = vmatpush1.bf16.msra.mxu0 %v844
    %868 = vmatprep.subr.bf16.mxu0 0
    %869 = vmatpush1.bf16.msra.mxu0 %v845
    %870 = vmatprep.subr.bf16.mxu0 0
    %871 = vmatpush1.bf16.msra.mxu0 0
    %872 = vmatprep.subr.bf16.mxu0 0
    %873 = vmatpush1.bf16.msra.mxu0 0
    %874 = vmatprep.subr.bf16.mxu0 0
    %875 = vmatpush1.bf16.msra.mxu0 0
    %876 = vmatprep.subr.bf16.mxu0 0
    %877 = vmatpush1.bf16.msra.mxu0 0
    %878 = vmatprep.subr.bf16.mxu0 0
    %879 = vmatpush1.bf16.msra.mxu0 0
    %880 = vmatprep.subr.bf16.mxu0 0
    %881 = vmatpush1.bf16.msra.mxu0 0
    %882 = vmatprep.subr.bf16.mxu0 0
    %883 = vmatpush1.bf16.msra.mxu0 0
    %884 = vmatprep.subr.bf16.mxu0 0
    %885 = vmatpush1.bf16.msra.mxu0 0
    %886 = vmatprep.subr.bf16.mxu0 0
    %887 = vmatpush1.bf16.msra.mxu0 0
    %888 = vmatprep.subr.bf16.mxu0 0
    %889 = vmatpush1.bf16.msra.mxu0 0
    %890 = vmatprep.subr.bf16.mxu0 0
    %891 = vmatpush1.bf16.msra.mxu0 0
    %892 = vmatprep.subr.bf16.mxu0 0
    %893 = vmatpush1.bf16.msra.mxu0 0
    %894 = vmatprep.mubr.bf16.mxu0 0
    %895 = vmatmul.mubr.bf16.gmra.mrb[0].mxu0 %v851
    %v896 = vpop.f32.mrb[0].mxu0
    %v897 = vadd.f32 0.0, %v896
    %v898 = vpop.f32.mrb[0].mxu0
    %v899 = vpop.f32.mrb[0].mxu0
    %v900 = vadd.f32 0.0, %v899
    %v901 = vpop.f32.mrb[0].mxu0
    %902 = vmatprep.mubr.bf16.mxu0 0
    %903 = vmatmul.mubr.bf16.gmra.mrb[0].mxu0 %v854
    %v904 = vpop.f32.mrb[0].mxu0
    %v905 = vpop.f32.mrb[0].mxu0
    %v906 = vpop.f32.mrb[0].mxu0
    %v907 = vpop.f32.mrb[0].mxu0
    %908 = vmatprep.mubr.bf16.mxu0 0
    %909 = vmatmul.mubr.bf16.gmra.mrb[0].mxu0 %v857
    %v910 = vpop.f32.mrb[0].mxu0
    %v911 = vadd.f32 0.0, %v910
    %v912 = vpop.f32.mrb[0].mxu0
    %v913 = vpop.f32.mrb[0].mxu0
    %v914 = vadd.f32 0.0, %v913
    %v915 = vpop.f32.mrb[0].mxu0
    %916 = vmatprep.mubr.bf16.mxu0 0
    %917 = vmatmul.mubr.bf16.gmra.mrb[0].mxu0 %v860
    %v918 = vpop.f32.mrb[0].mxu0
    %v919 = vpop.f32.mrb[0].mxu0
    %v920 = vpop.f32.mrb[0].mxu0
    %v921 = vpop.f32.mrb[0].mxu0
    %922 = vdwg.mxu0
    %v923 = vadd.f32 %v801, %v897
    %v924 = vadd.f32 %v802, %v900
    %v925 = vadd.f32 %v803, %v911
    %v926 = vadd.f32 %v804, %v914
    %v927 = vld [vmem:[#allocation2 + $0x6] sm:$0xff]
    %v928 = vld [vmem:[#allocation2 + $0xe] sm:$0xff]
    %v929 = vld [vmem:[#allocation2 + $0x16] sm:$0xff]
    %v930 = vld [vmem:[#allocation2 + $0x1e] sm:$0xff]
    %v931 = vld [vmem:[#allocation2 + $0x26] sm:$0xff]
    %v932 = vld [vmem:[#allocation2 + $0x2e] sm:$0xff]
    %v933 = vld [vmem:[#allocation2 + $0x36] sm:$0xff]
    %v934 = vld [vmem:[#allocation2 + $0x3e] sm:$0xff]
    %v935 = vpack.c.bf16 %v928, %v927
    %v936 = vpack.c.bf16 %v930, %v929
    %v937 = vpack.c.bf16 %v932, %v931
    %v938 = vpack.c.bf16 %v934, %v933
    %s939 = scalar_lea.vmem [#allocation4], 192
    %v940 = vld [vmem:[%s939] sm:$0xf]
    %v941 = vld [vmem:[%s939 + $0x4] sm:$0xf]
    %v942 = vld [vmem:[%s939 + $0x8] sm:$0xf]
    %v943 = vld [vmem:[%s939 + $0xc] sm:$0xf]
    %v944 = vld [vmem:[%s939 + $0x10] sm:$0xf]
    %v945 = vld [vmem:[%s939 + $0x14] sm:$0xf]
    %v946 = vld [vmem:[%s939 + $0x18] sm:$0xf]
    %v947 = vld [vmem:[%s939 + $0x1c] sm:$0xf]
    %v956 = vunpack.c.l.b16 %v940
    %v957 = vunpack.c.l.b16 %v941
    %v958 = vunpack.c.l.b16 %v942
    %v959 = vunpack.c.l.b16 %v943
    %v960 = vunpack.c.l.b16 %v944
    %v961 = vunpack.c.l.b16 %v945
    %v962 = vunpack.c.l.b16 %v946
    %v963 = vunpack.c.l.b16 %v947
    %v964 = vpack.c.b16 %v957, %v956
    %v965 = vpack.c.b16 %v959, %v958
    %v966 = vpack.c.b16 %v961, %v960
    %v967 = vpack.c.b16 %v963, %v962
    %v973 = vsel %vm52, %v935, 0
    %v976 = vsel %vm52, %v936, 0
    %v979 = vsel %vm52, %v937, 0
    %v982 = vsel %vm52, %v938, 0
    %984 = vmatprep.subr.bf16.mxu0 0
    %985 = vmatpush1.bf16.msra.mxu0 %v964
    %986 = vmatprep.subr.bf16.mxu0 0
    %987 = vmatpush1.bf16.msra.mxu0 %v965
    %988 = vmatprep.subr.bf16.mxu0 0
    %989 = vmatpush1.bf16.msra.mxu0 %v966
    %990 = vmatprep.subr.bf16.mxu0 0
    %991 = vmatpush1.bf16.msra.mxu0 %v967
    %992 = vmatprep.subr.bf16.mxu0 0
    %993 = vmatpush1.bf16.msra.mxu0 0
    %994 = vmatprep.subr.bf16.mxu0 0
    %995 = vmatpush1.bf16.msra.mxu0 0
    %996 = vmatprep.subr.bf16.mxu0 0
    %997 = vmatpush1.bf16.msra.mxu0 0
    %998 = vmatprep.subr.bf16.mxu0 0
    %999 = vmatpush1.bf16.msra.mxu0 0
    %1000 = vmatprep.subr.bf16.mxu0 0
    %1001 = vmatpush1.bf16.msra.mxu0 0
    %1002 = vmatprep.subr.bf16.mxu0 0
    %1003 = vmatpush1.bf16.msra.mxu0 0
    %1004 = vmatprep.subr.bf16.mxu0 0
    %1005 = vmatpush1.bf16.msra.mxu0 0
    %1006 = vmatprep.subr.bf16.mxu0 0
    %1007 = vmatpush1.bf16.msra.mxu0 0
    %1008 = vmatprep.subr.bf16.mxu0 0
    %1009 = vmatpush1.bf16.msra.mxu0 0
    %1010 = vmatprep.subr.bf16.mxu0 0
    %1011 = vmatpush1.bf16.msra.mxu0 0
    %1012 = vmatprep.subr.bf16.mxu0 0
    %1013 = vmatpush1.bf16.msra.mxu0 0
    %1014 = vmatprep.subr.bf16.mxu0 0
    %1015 = vmatpush1.bf16.msra.mxu0 0
    %1016 = vmatprep.mubr.bf16.mxu0 0
    %1017 = vmatmul.mubr.bf16.gmra.mrb[0].mxu0 %v973
    %v1018 = vpop.f32.mrb[0].mxu0
    %v1019 = vadd.f32 0.0, %v1018
    %v1020 = vpop.f32.mrb[0].mxu0
    %v1021 = vpop.f32.mrb[0].mxu0
    %v1022 = vadd.f32 0.0, %v1021
    %v1023 = vpop.f32.mrb[0].mxu0
    %1024 = vmatprep.mubr.bf16.mxu0 0
    %1025 = vmatmul.mubr.bf16.gmra.mrb[0].mxu0 %v976
    %v1026 = vpop.f32.mrb[0].mxu0
    %v1027 = vpop.f32.mrb[0].mxu0
    %v1028 = vpop.f32.mrb[0].mxu0
    %v1029 = vpop.f32.mrb[0].mxu0
    %1030 = vmatprep.mubr.bf16.mxu0 0
    %1031 = vmatmul.mubr.bf16.gmra.mrb[0].mxu0 %v979
    %v1032 = vpop.f32.mrb[0].mxu0
    %v1033 = vadd.f32 0.0, %v1032
    %v1034 = vpop.f32.mrb[0].mxu0
    %v1035 = vpop.f32.mrb[0].mxu0
    %v1036 = vadd.f32 0.0, %v1035
    %v1037 = vpop.f32.mrb[0].mxu0
    %1038 = vmatprep.mubr.bf16.mxu0 0
    %1039 = vmatmul.mubr.bf16.gmra.mrb[0].mxu0 %v982
    %v1040 = vpop.f32.mrb[0].mxu0
    %v1041 = vpop.f32.mrb[0].mxu0
    %v1042 = vpop.f32.mrb[0].mxu0
    %v1043 = vpop.f32.mrb[0].mxu0
    %1044 = vdwg.mxu0
    %v1045 = vadd.f32 %v923, %v1019
    %v1046 = vadd.f32 %v924, %v1022
    %v1047 = vadd.f32 %v925, %v1033
    %v1048 = vadd.f32 %v926, %v1036
    %v1049 = vld [vmem:[#allocation2 + $0x7] sm:$0xff]
    %v1050 = vld [vmem:[#allocation2 + $0xf] sm:$0xff]
    %v1051 = vld [vmem:[#allocation2 + $0x17] sm:$0xff]
    %v1052 = vld [vmem:[#allocation2 + $0x1f] sm:$0xff]
    %v1053 = vld [vmem:[#allocation2 + $0x27] sm:$0xff]
    %v1054 = vld [vmem:[#allocation2 + $0x2f] sm:$0xff]
    %v1055 = vld [vmem:[#allocation2 + $0x37] sm:$0xff]
    %v1056 = vld [vmem:[#allocation2 + $0x3f] sm:$0xff]
    %v1057 = vpack.c.bf16 %v1050, %v1049
    %v1058 = vpack.c.bf16 %v1052, %v1051
    %v1059 = vpack.c.bf16 %v1054, %v1053
    %v1060 = vpack.c.bf16 %v1056, %v1055
    %s1061 = scalar_lea.vmem [#allocation4], 224
    %v1062 = vld [vmem:[%s1061] sm:$0xf]
    %v1063 = vld [vmem:[%s1061 + $0x4] sm:$0xf]
    %v1064 = vld [vmem:[%s1061 + $0x8] sm:$0xf]
    %v1065 = vld [vmem:[%s1061 + $0xc] sm:$0xf]
    %v1066 = vld [vmem:[%s1061 + $0x10] sm:$0xf]
    %v1067 = vld [vmem:[%s1061 + $0x14] sm:$0xf]
    %v1068 = vld [vmem:[%s1061 + $0x18] sm:$0xf]
    %v1069 = vld [vmem:[%s1061 + $0x1c] sm:$0xf]
    %v1078 = vunpack.c.l.b16 %v1062
    %v1079 = vunpack.c.l.b16 %v1063
    %v1080 = vunpack.c.l.b16 %v1064
    %v1081 = vunpack.c.l.b16 %v1065
    %v1082 = vunpack.c.l.b16 %v1066
    %v1083 = vunpack.c.l.b16 %v1067
    %v1084 = vunpack.c.l.b16 %v1068
    %v1085 = vunpack.c.l.b16 %v1069
    %v1086 = vpack.c.b16 %v1079, %v1078
    %v1087 = vpack.c.b16 %v1081, %v1080
    %v1088 = vpack.c.b16 %v1083, %v1082
    %v1089 = vpack.c.b16 %v1085, %v1084
    %v1095 = vsel %vm52, %v1057, 0
    %v1098 = vsel %vm52, %v1058, 0
    %v1101 = vsel %vm52, %v1059, 0
    %v1104 = vsel %vm52, %v1060, 0
    %1106 = vmatprep.subr.bf16.mxu0 0
    %1107 = vmatpush1.bf16.msra.mxu0 %v1086
    %1108 = vmatprep.subr.bf16.mxu0 0
    %1109 = vmatpush1.bf16.msra.mxu0 %v1087
    %1110 = vmatprep.subr.bf16.mxu0 0
    %1111 = vmatpush1.bf16.msra.mxu0 %v1088
    %1112 = vmatprep.subr.bf16.mxu0 0
    %1113 = vmatpush1.bf16.msra.mxu0 %v1089
    %1114 = vmatprep.subr.bf16.mxu0 0
    %1115 = vmatpush1.bf16.msra.mxu0 0
    %1116 = vmatprep.subr.bf16.mxu0 0
    %1117 = vmatpush1.bf16.msra.mxu0 0
    %1118 = vmatprep.subr.bf16.mxu0 0
    %1119 = vmatpush1.bf16.msra.mxu0 0
    %1120 = vmatprep.subr.bf16.mxu0 0
    %1121 = vmatpush1.bf16.msra.mxu0 0
    %1122 = vmatprep.subr.bf16.mxu0 0
    %1123 = vmatpush1.bf16.msra.mxu0 0
    %1124 = vmatprep.subr.bf16.mxu0 0
    %1125 = vmatpush1.bf16.msra.mxu0 0
    %1126 = vmatprep.subr.bf16.mxu0 0
    %1127 = vmatpush1.bf16.msra.mxu0 0
    %1128 = vmatprep.subr.bf16.mxu0 0
    %1129 = vmatpush1.bf16.msra.mxu0 0
    %1130 = vmatprep.subr.bf16.mxu0 0
    %1131 = vmatpush1.bf16.msra.mxu0 0
    %1132 = vmatprep.subr.bf16.mxu0 0
    %1133 = vmatpush1.bf16.msra.mxu0 0
    %1134 = vmatprep.subr.bf16.mxu0 0
    %1135 = vmatpush1.bf16.msra.mxu0 0
    %1136 = vmatprep.subr.bf16.mxu0 0
    %1137 = vmatpush1.bf16.msra.mxu0 0
    %1138 = vmatprep.mubr.bf16.mxu0 0
    %1139 = vmatmul.mubr.bf16.gmra.mrb[0].mxu0 %v1095
    %v1140 = vpop.f32.mrb[0].mxu0
    %v1141 = vadd.f32 0.0, %v1140
    %v1142 = vpop.f32.mrb[0].mxu0
    %v1143 = vpop.f32.mrb[0].mxu0
    %v1144 = vadd.f32 0.0, %v1143
    %v1145 = vpop.f32.mrb[0].mxu0
    %1146 = vmatprep.mubr.bf16.mxu0 0
    %1147 = vmatmul.mubr.bf16.gmra.mrb[0].mxu0 %v1098
    %v1148 = vpop.f32.mrb[0].mxu0
    %v1149 = vpop.f32.mrb[0].mxu0
    %v1150 = vpop.f32.mrb[0].mxu0
    %v1151 = vpop.f32.mrb[0].mxu0
    %1152 = vmatprep.mubr.bf16.mxu0 0
    %1153 = vmatmul.mubr.bf16.gmra.mrb[0].mxu0 %v1101
    %v1154 = vpop.f32.mrb[0].mxu0
    %v1155 = vadd.f32 0.0, %v1154
    %v1156 = vpop.f32.mrb[0].mxu0
    %v1157 = vpop.f32.mrb[0].mxu0
    %v1158 = vadd.f32 0.0, %v1157
    %v1159 = vpop.f32.mrb[0].mxu0
    %1160 = vmatprep.mubr.bf16.mxu0 0
    %1161 = vmatmul.mubr.bf16.gmra.mrb[0].mxu0 %v1104
    %v1162 = vpop.f32.mrb[0].mxu0
    %v1163 = vpop.f32.mrb[0].mxu0
    %v1164 = vpop.f32.mrb[0].mxu0
    %v1165 = vpop.f32.mrb[0].mxu0
    %1166 = vdwg.mxu0
    %v1167 = vadd.f32 %v1045, %v1141
    %v1168 = vadd.f32 %v1046, %v1144
    %v1169 = vadd.f32 %v1047, %v1155
    %v1170 = vadd.f32 %v1048, %v1158
    %v1171 = vld [vmem:[#allocation2 + $0x8] sm:$0xff]
    %v1172 = vld [vmem:[#allocation2 + $0x10] sm:$0xff]
    %v1173 = vld [vmem:[#allocation2 + $0x18] sm:$0xff]
    %v1174 = vld [vmem:[#allocation2 + $0x20] sm:$0xff]
    %v1175 = vld [vmem:[#allocation2 + $0x28] sm:$0xff]
    %v1176 = vld [vmem:[#allocation2 + $0x30] sm:$0xff]
    %v1177 = vld [vmem:[#allocation2 + $0x38] sm:$0xff]
    %v1178 = vld [vmem:[#allocation2 + $0x40] sm:$0xff]
    %v1179 = vpack.c.bf16 %v1172, %v1171
    %v1180 = vpack.c.bf16 %v1174, %v1173
    %v1181 = vpack.c.bf16 %v1176, %v1175
    %v1182 = vpack.c.bf16 %v1178, %v1177
    %s1183 = scalar_lea.vmem [#allocation4], 256
    %v1184 = vld [vmem:[%s1183] sm:$0xf]
    %v1185 = vld [vmem:[%s1183 + $0x4] sm:$0xf]
    %v1186 = vld [vmem:[%s1183 + $0x8] sm:$0xf]
    %v1187 = vld [vmem:[%s1183 + $0xc] sm:$0xf]
    %v1188 = vld [vmem:[%s1183 + $0x10] sm:$0xf]
    %v1189 = vld [vmem:[%s1183 + $0x14] sm:$0xf]
    %v1190 = vld [vmem:[%s1183 + $0x18] sm:$0xf]
    %v1191 = vld [vmem:[%s1183 + $0x1c] sm:$0xf]
    %v1200 = vunpack.c.l.b16 %v1184
    %v1201 = vunpack.c.l.b16 %v1185
    %v1202 = vunpack.c.l.b16 %v1186
    %v1203 = vunpack.c.l.b16 %v1187
    %v1204 = vunpack.c.l.b16 %v1188
    %v1205 = vunpack.c.l.b16 %v1189
    %v1206 = vunpack.c.l.b16 %v1190
    %v1207 = vunpack.c.l.b16 %v1191
    %v1208 = vpack.c.b16 %v1201, %v1200
    %v1209 = vpack.c.b16 %v1203, %v1202
    %v1210 = vpack.c.b16 %v1205, %v1204
    %v1211 = vpack.c.b16 %v1207, %v1206
    %v1217 = vsel %vm52, %v1179, 0
    %v1220 = vsel %vm52, %v1180, 0
    %v1223 = vsel %vm52, %v1181, 0
    %v1226 = vsel %vm52, %v1182, 0
    %1228 = vmatprep.subr.bf16.mxu0 0
    %1229 = vmatpush1.bf16.msra.mxu0 %v1208
    %1230 = vmatprep.subr.bf16.mxu0 0
    %1231 = vmatpush1.bf16.msra.mxu0 %v1209
    %1232 = vmatprep.subr.bf16.mxu0 0
    %1233 = vmatpush1.bf16.msra.mxu0 %v1210
    %1234 = vmatprep.subr.bf16.mxu0 0
    %1235 = vmatpush1.bf16.msra.mxu0 %v1211
    %1236 = vmatprep.subr.bf16.mxu0 0
    %1237 = vmatpush1.bf16.msra.mxu0 0
    %1238 = vmatprep.subr.bf16.mxu0 0
    %1239 = vmatpush1.bf16.msra.mxu0 0
    %1240 = vmatprep.subr.bf16.mxu0 0
    %1241 = vmatpush1.bf16.msra.mxu0 0
    %1242 = vmatprep.subr.bf16.mxu0 0
    %1243 = vmatpush1.bf16.msra.mxu0 0
    %1244 = vmatprep.subr.bf16.mxu0 0
    %1245 = vmatpush1.bf16.msra.mxu0 0
    %1246 = vmatprep.subr.bf16.mxu0 0
    %1247 = vmatpush1.bf16.msra.mxu0 0
    %1248 = vmatprep.subr.bf16.mxu0 0
    %1249 = vmatpush1.bf16.msra.mxu0 0
    %1250 = vmatprep.subr.bf16.mxu0 0
    %1251 = vmatpush1.bf16.msra.mxu0 0
    %1252 = vmatprep.subr.bf16.mxu0 0
    %1253 = vmatpush1.bf16.msra.mxu0 0
    %1254 = vmatprep.subr.bf16.mxu0 0
    %1255 = vmatpush1.bf16.msra.mxu0 0
    %1256 = vmatprep.subr.bf16.mxu0 0
    %1257 = vmatpush1.bf16.msra.mxu0 0
    %1258 = vmatprep.subr.bf16.mxu0 0
    %1259 = vmatpush1.bf16.msra.mxu0 0
    %1260 = vmatprep.mubr.bf16.mxu0 0
    %1261 = vmatmul.mubr.bf16.gmra.mrb[0].mxu0 %v1217
    %v1262 = vpop.f32.mrb[0].mxu0
    %v1263 = vadd.f32 0.0, %v1262
    %v1264 = vpop.f32.mrb[0].mxu0
    %v1265 = vpop.f32.mrb[0].mxu0
    %v1266 = vadd.f32 0.0, %v1265
    %v1267 = vpop.f32.mrb[0].mxu0
    %1268 = vmatprep.mubr.bf16.mxu0 0
    %1269 = vmatmul.mubr.bf16.gmra.mrb[0].mxu0 %v1220
    %v1270 = vpop.f32.mrb[0].mxu0
    %v1271 = vpop.f32.mrb[0].mxu0
    %v1272 = vpop.f32.mrb[0].mxu0
    %v1273 = vpop.f32.mrb[0].mxu0
    %1274 = vmatprep.mubr.bf16.mxu0 0
    %1275 = vmatmul.mubr.bf16.gmra.mrb[0].mxu0 %v1223
    %v1276 = vpop.f32.mrb[0].mxu0
    %v1277 = vadd.f32 0.0, %v1276
    %v1278 = vpop.f32.mrb[0].mxu0
    %v1279 = vpop.f32.mrb[0].mxu0
    %v1280 = vadd.f32 0.0, %v1279
    %v1281 = vpop.f32.mrb[0].mxu0
    %1282 = vmatprep.mubr.bf16.mxu0 0
    %1283 = vmatmul.mubr.bf16.gmra.mrb[0].mxu0 %v1226
    %v1284 = vpop.f32.mrb[0].mxu0
    %v1285 = vpop.f32.mrb[0].mxu0
    %v1286 = vpop.f32.mrb[0].mxu0
    %v1287 = vpop.f32.mrb[0].mxu0
    %1288 = vdwg.mxu0
    %v1289 = vadd.f32 %v1167, %v1263
    %v1290 = vadd.f32 %v1168, %v1266
    %v1291 = vadd.f32 %v1169, %v1277
    %v1292 = vadd.f32 %v1170, %v1280
    %v1293 = vld [vmem:[#allocation2 + $0x9] sm:$0xff]
    %v1294 = vld [vmem:[#allocation2 + $0x11] sm:$0xff]
    %v1295 = vld [vmem:[#allocation2 + $0x19] sm:$0xff]
    %v1296 = vld [vmem:[#allocation2 + $0x21] sm:$0xff]
    %v1297 = vld [vmem:[#allocation2 + $0x29] sm:$0xff]
    %v1298 = vld [vmem:[#allocation2 + $0x31] sm:$0xff]
    %v1299 = vld [vmem:[#allocation2 + $0x39] sm:$0xff]
    %v1300 = vld [vmem:[#allocation2 + $0x41] sm:$0xff]
    %v1301 = vpack.c.bf16 %v1294, %v1293
    %v1302 = vpack.c.bf16 %v1296, %v1295
    %v1303 = vpack.c.bf16 %v1298, %v1297
    %v1304 = vpack.c.bf16 %v1300, %v1299
    %s1305 = scalar_lea.vmem [#allocation4], 288
    %v1306 = vld [vmem:[%s1305] sm:$0xf]
    %v1307 = vld [vmem:[%s1305 + $0x4] sm:$0xf]
    %v1308 = vld [vmem:[%s1305 + $0x8] sm:$0xf]
    %v1309 = vld [vmem:[%s1305 + $0xc] sm:$0xf]
    %v1310 = vld [vmem:[%s1305 + $0x10] sm:$0xf]
    %v1311 = vld [vmem:[%s1305 + $0x14] sm:$0xf]
    %v1312 = vld [vmem:[%s1305 + $0x18] sm:$0xf]
    %v1313 = vld [vmem:[%s1305 + $0x1c] sm:$0xf]
    %v1322 = vunpack.c.l.b16 %v1306
    %v1323 = vunpack.c.l.b16 %v1307
    %v1324 = vunpack.c.l.b16 %v1308
    %v1325 = vunpack.c.l.b16 %v1309
    %v1326 = vunpack.c.l.b16 %v1310
    %v1327 = vunpack.c.l.b16 %v1311
    %v1328 = vunpack.c.l.b16 %v1312
    %v1329 = vunpack.c.l.b16 %v1313
    %v1330 = vpack.c.b16 %v1323, %v1322
    %v1331 = vpack.c.b16 %v1325, %v1324
    %v1332 = vpack.c.b16 %v1327, %v1326
    %v1333 = vpack.c.b16 %v1329, %v1328
    %v1339 = vsel %vm52, %v1301, 0
    %v1342 = vsel %vm52, %v1302, 0
    %v1345 = vsel %vm52, %v1303, 0
    %v1348 = vsel %vm52, %v1304, 0
    %1350 = vmatprep.subr.bf16.mxu0 0
    %1351 = vmatpush1.bf16.msra.mxu0 %v1330
    %1352 = vmatprep.subr.bf16.mxu0 0
    %1353 = vmatpush1.bf16.msra.mxu0 %v1331
    %1354 = vmatprep.subr.bf16.mxu0 0
    %1355 = vmatpush1.bf16.msra.mxu0 %v1332
    %1356 = vmatprep.subr.bf16.mxu0 0
    %1357 = vmatpush1.bf16.msra.mxu0 %v1333
    %1358 = vmatprep.subr.bf16.mxu0 0
    %1359 = vmatpush1.bf16.msra.mxu0 0
    %1360 = vmatprep.subr.bf16.mxu0 0
    %1361 = vmatpush1.bf16.msra.mxu0 0
    %1362 = vmatprep.subr.bf16.mxu0 0
    %1363 = vmatpush1.bf16.msra.mxu0 0
    %1364 = vmatprep.subr.bf16.mxu0 0
    %1365 = vmatpush1.bf16.msra.mxu0 0
    %1366 = vmatprep.subr.bf16.mxu0 0
    %1367 = vmatpush1.bf16.msra.mxu0 0
    %1368 = vmatprep.subr.bf16.mxu0 0
    %1369 = vmatpush1.bf16.msra.mxu0 0
    %1370 = vmatprep.subr.bf16.mxu0 0
    %1371 = vmatpush1.bf16.msra.mxu0 0
    %1372 = vmatprep.subr.bf16.mxu0 0
    %1373 = vmatpush1.bf16.msra.mxu0 0
    %1374 = vmatprep.subr.bf16.mxu0 0
    %1375 = vmatpush1.bf16.msra.mxu0 0
    %1376 = vmatprep.subr.bf16.mxu0 0
    %1377 = vmatpush1.bf16.msra.mxu0 0
    %1378 = vmatprep.subr.bf16.mxu0 0
    %1379 = vmatpush1.bf16.msra.mxu0 0
    %1380 = vmatprep.subr.bf16.mxu0 0
    %1381 = vmatpush1.bf16.msra.mxu0 0
    %1382 = vmatprep.mubr.bf16.mxu0 0
    %1383 = vmatmul.mubr.bf16.gmra.mrb[0].mxu0 %v1339
    %v1384 = vpop.f32.mrb[0].mxu0
    %v1385 = vadd.f32 0.0, %v1384
    %v1386 = vpop.f32.mrb[0].mxu0
    %v1387 = vpop.f32.mrb[0].mxu0
    %v1388 = vadd.f32 0.0, %v1387
    %v1389 = vpop.f32.mrb[0].mxu0
    %1390 = vmatprep.mubr.bf16.mxu0 0
    %1391 = vmatmul.mubr.bf16.gmra.mrb[0].mxu0 %v1342
    %v1392 = vpop.f32.mrb[0].mxu0
    %v1393 = vpop.f32.mrb[0].mxu0
    %v1394 = vpop.f32.mrb[0].mxu0
    %v1395 = vpop.f32.mrb[0].mxu0
    %1396 = vmatprep.mubr.bf16.mxu0 0
    %1397 = vmatmul.mubr.bf16.gmra.mrb[0].mxu0 %v1345
    %v1398 = vpop.f32.mrb[0].mxu0
    %v1399 = vadd.f32 0.0, %v1398
    %v1400 = vpop.f32.mrb[0].mxu0
    %v1401 = vpop.f32.mrb[0].mxu0
    %v1402 = vadd.f32 0.0, %v1401
    %v1403 = vpop.f32.mrb[0].mxu0
    %1404 = vmatprep.mubr.bf16.mxu0 0
    %1405 = vmatmul.mubr.bf16.gmra.mrb[0].mxu0 %v1348
    %v1406 = vpop.f32.mrb[0].mxu0
    %v1407 = vpop.f32.mrb[0].mxu0
    %v1408 = vpop.f32.mrb[0].mxu0
    %v1409 = vpop.f32.mrb[0].mxu0
    %1410 = vdwg.mxu0
    %v1411 = vadd.f32 %v1289, %v1385
    %v1412 = vadd.f32 %v1290, %v1388
    %v1413 = vadd.f32 %v1291, %v1399
    %v1414 = vadd.f32 %v1292, %v1402
    %s1415 = scalar_lea.vmem %s3, 1
    %v1416 = vld [vmem:[%s1415] sm:$0x1]
    %v1418 = vlaneseq
    %v1419 = vshrl.u32 %v1418, 7
    %v1420 = vsub.s32 0, %v1419
    %v1421 = vrot.slane %v1416, %v1420
    %v1423 = vadd.f32 %v1411, %v1421
    %v1424 = vadd.f32 %v1412, %v1421
    %v1425 = vadd.f32 %v1413, %v1421
    %v1426 = vadd.f32 %v1414, %v1421
    %v1427 = vmax.f32 %v1423, 0.0
    %v1428 = vmax.f32 %v1424, 0.0
    %v1429 = vmax.f32 %v1425, 0.0
    %v1430 = vmax.f32 %v1426, 0.0
    %v1431 = vadd.f32 %v1427, %v204
    %v1432 = vadd.f32 %v1428, %v205
    %v1433 = vadd.f32 %v1429, %v208
    %v1434 = vadd.f32 %v1430, %v209
    %1435 = vst.msk [vmem:[#allocation2 + $0x4] sm:$0xff] %vm52, %v1431
    %1436 = vst.msk [vmem:[#allocation2 + $0xc] sm:$0xff] %vm52, %v1432
    %1437 = vst.msk [vmem:[#allocation2 + $0x24] sm:$0xff] %vm52, %v1433
    %1438 = vst.msk [vmem:[#allocation2 + $0x2c] sm:$0xff] %vm52, %v1434
    %v1439 = vld [vmem:[#allocation2] sm:$0xff]
    %v1440 = vld [vmem:[#allocation2 + $0x8] sm:$0xff]
    %v1441 = vld [vmem:[#allocation2 + $0x10] sm:$0xff]
    %v1442 = vld [vmem:[#allocation2 + $0x18] sm:$0xff]
    %v1443 = vld [vmem:[#allocation2 + $0x20] sm:$0xff]
    %v1444 = vld [vmem:[#allocation2 + $0x28] sm:$0xff]
    %v1445 = vld [vmem:[#allocation2 + $0x30] sm:$0xff]
    %v1446 = vld [vmem:[#allocation2 + $0x38] sm:$0xff]
    %v1447 = vpack.c.bf16 %v1440, %v1439
    %v1448 = vpack.c.bf16 %v1442, %v1441
    %v1449 = vpack.c.bf16 %v1444, %v1443
    %v1450 = vpack.c.bf16 %v1446, %v1445
    %s1451 = scalar_lea.vmem [#allocation4], 320
    %v1452 = vld [vmem:[%s1451] sm:$0xf]
    %v1453 = vld [vmem:[%s1451 + $0x4] sm:$0xf]
    %v1454 = vld [vmem:[%s1451 + $0x8] sm:$0xf]
    %v1455 = vld [vmem:[%s1451 + $0xc] sm:$0xf]
    %v1456 = vld [vmem:[%s1451 + $0x10] sm:$0xf]
    %v1457 = vld [vmem:[%s1451 + $0x14] sm:$0xf]
    %v1458 = vld [vmem:[%s1451 + $0x18] sm:$0xf]
    %v1459 = vld [vmem:[%s1451 + $0x1c] sm:$0xf]
    %v1460 = vld [vmem:[#allocation2 + $0x1] sm:$0xff]
    %v1461 = vld [vmem:[#allocation2 + $0x9] sm:$0xff]
    %v1462 = vld [vmem:[#allocation2 + $0x11] sm:$0xff]
    %v1463 = vld [vmem:[#allocation2 + $0x19] sm:$0xff]
    %v1464 = vld [vmem:[#allocation2 + $0x21] sm:$0xff]
    %v1465 = vld [vmem:[#allocation2 + $0x29] sm:$0xff]
    %v1466 = vld [vmem:[#allocation2 + $0x31] sm:$0xff]
    %v1467 = vld [vmem:[#allocation2 + $0x39] sm:$0xff]
    %v1468 = vpack.c.bf16 %v1461, %v1460
    %v1469 = vpack.c.bf16 %v1463, %v1462
    %v1470 = vpack.c.bf16 %v1465, %v1464
    %v1471 = vpack.c.bf16 %v1467, %v1466
    %s1472 = scalar_lea.vmem [#allocation4], 352
    %v1473 = vld [vmem:[%s1472] sm:$0xf]
    %v1474 = vld [vmem:[%s1472 + $0x4] sm:$0xf]
    %v1475 = vld [vmem:[%s1472 + $0x8] sm:$0xf]
    %v1476 = vld [vmem:[%s1472 + $0xc] sm:$0xf]
    %v1477 = vld [vmem:[%s1472 + $0x10] sm:$0xf]
    %v1478 = vld [vmem:[%s1472 + $0x14] sm:$0xf]
    %v1479 = vld [vmem:[%s1472 + $0x18] sm:$0xf]
    %v1480 = vld [vmem:[%s1472 + $0x1c] sm:$0xf]
    %v1489 = vunpack.c.l.b16 %v1473
    %v1490 = vunpack.c.l.b16 %v1474
    %v1491 = vunpack.c.l.b16 %v1475
    %v1492 = vunpack.c.l.b16 %v1476
    %v1493 = vunpack.c.l.b16 %v1477
    %v1494 = vunpack.c.l.b16 %v1478
    %v1495 = vunpack.c.l.b16 %v1479
    %v1496 = vunpack.c.l.b16 %v1480
    %v1497 = vpack.c.b16 %v1490, %v1489
    %v1498 = vpack.c.b16 %v1492, %v1491
    %v1499 = vpack.c.b16 %v1494, %v1493
    %v1500 = vpack.c.b16 %v1496, %v1495
    %v1506 = vsel %vm52, %v1468, 0
    %v1509 = vsel %vm52, %v1469, 0
    %v1512 = vsel %vm52, %v1470, 0
    %v1515 = vsel %vm52, %v1471, 0
    %1517 = vmatprep.subr.bf16.mxu0 0
    %1518 = vmatpush1.bf16.msra.mxu0 %v1497
    %1519 = vmatprep.subr.bf16.mxu0 0
    %1520 = vmatpush1.bf16.msra.mxu0 %v1498
    %1521 = vmatprep.subr.bf16.mxu0 0
    %1522 = vmatpush1.bf16.msra.mxu0 %v1499
    %1523 = vmatprep.subr.bf16.mxu0 0
    %1524 = vmatpush1.bf16.msra.mxu0 %v1500
    %1525 = vmatprep.subr.bf16.mxu0 0
    %1526 = vmatpush1.bf16.msra.mxu0 0
    %1527 = vmatprep.subr.bf16.mxu0 0
    %1528 = vmatpush1.bf16.msra.mxu0 0
    %1529 = vmatprep.subr.bf16.mxu0 0
    %1530 = vmatpush1.bf16.msra.mxu0 0
    %1531 = vmatprep.subr.bf16.mxu0 0
    %1532 = vmatpush1.bf16.msra.mxu0 0
    %1533 = vmatprep.subr.bf16.mxu0 0
    %1534 = vmatpush1.bf16.msra.mxu0 0
    %1535 = vmatprep.subr.bf16.mxu0 0
    %1536 = vmatpush1.bf16.msra.mxu0 0
    %1537 = vmatprep.subr.bf16.mxu0 0
    %1538 = vmatpush1.bf16.msra.mxu0 0
    %1539 = vmatprep.subr.bf16.mxu0 0
    %1540 = vmatpush1.bf16.msra.mxu0 0
    %1541 = vmatprep.subr.bf16.mxu0 0
    %1542 = vmatpush1.bf16.msra.mxu0 0
    %1543 = vmatprep.subr.bf16.mxu0 0
    %1544 = vmatpush1.bf16.msra.mxu0 0
    %1545 = vmatprep.subr.bf16.mxu0 0
    %1546 = vmatpush1.bf16.msra.mxu0 0
    %1547 = vmatprep.subr.bf16.mxu0 0
    %1548 = vmatpush1.bf16.msra.mxu0 0
    %1549 = vmatprep.mubr.bf16.mxu0 0
    %1550 = vmatmul.mubr.bf16.gmra.mrb[0].mxu0 %v1506
    %v1551 = vpop.f32.mrb[0].mxu0
    %v1552 = vadd.f32 0.0, %v1551
    %v1553 = vpop.f32.mrb[0].mxu0
    %v1554 = vpop.f32.mrb[0].mxu0
    %v1555 = vadd.f32 0.0, %v1554
    %v1556 = vpop.f32.mrb[0].mxu0
    %1557 = vmatprep.mubr.bf16.mxu0 0
    %1558 = vmatmul.mubr.bf16.gmra.mrb[0].mxu0 %v1509
    %v1559 = vpop.f32.mrb[0].mxu0
    %v1560 = vpop.f32.mrb[0].mxu0
    %v1561 = vpop.f32.mrb[0].mxu0
    %v1562 = vpop.f32.mrb[0].mxu0
    %1563 = vmatprep.mubr.bf16.mxu0 0
    %1564 = vmatmul.mubr.bf16.gmra.mrb[0].mxu0 %v1512
    %v1565 = vpop.f32.mrb[0].mxu0
    %v1566 = vadd.f32 0.0, %v1565
    %v1567 = vpop.f32.mrb[0].mxu0
    %v1568 = vpop.f32.mrb[0].mxu0
    %v1569 = vadd.f32 0.0, %v1568
    %v1570 = vpop.f32.mrb[0].mxu0
    %1571 = vmatprep.mubr.bf16.mxu0 0
    %1572 = vmatmul.mubr.bf16.gmra.mrb[0].mxu0 %v1515
    %v1573 = vpop.f32.mrb[0].mxu0
    %v1574 = vpop.f32.mrb[0].mxu0
    %v1575 = vpop.f32.mrb[0].mxu0
    %v1576 = vpop.f32.mrb[0].mxu0
    %1577 = vdwg.mxu0
    %v1586 = vunpack.c.l.b16 %v1452
    %v1587 = vunpack.c.l.b16 %v1453
    %v1588 = vunpack.c.l.b16 %v1454
    %v1589 = vunpack.c.l.b16 %v1455
    %v1590 = vunpack.c.l.b16 %v1456
    %v1591 = vunpack.c.l.b16 %v1457
    %v1592 = vunpack.c.l.b16 %v1458
    %v1593 = vunpack.c.l.b16 %v1459
    %v1594 = vpack.c.b16 %v1587, %v1586
    %v1595 = vpack.c.b16 %v1589, %v1588
    %v1596 = vpack.c.b16 %v1591, %v1590
    %v1597 = vpack.c.b16 %v1593, %v1592
    %v1603 = vsel %vm52, %v1447, 0
    %v1606 = vsel %vm52, %v1448, 0
    %v1609 = vsel %vm52, %v1449, 0
    %v1612 = vsel %vm52, %v1450, 0
    %1614 = vmatprep.subr.bf16.mxu0 0
    %1615 = vmatpush1.bf16.msra.mxu0 %v1594
    %1616 = vmatprep.subr.bf16.mxu0 0
    %1617 = vmatpush1.bf16.msra.mxu0 %v1595
    %1618 = vmatprep.subr.bf16.mxu0 0
    %1619 = vmatpush1.bf16.msra.mxu0 %v1596
    %1620 = vmatprep.subr.bf16.mxu0 0
    %1621 = vmatpush1.bf16.msra.mxu0 %v1597
    %1622 = vmatprep.subr.bf16.mxu0 0
    %1623 = vmatpush1.bf16.msra.mxu0 0
    %1624 = vmatprep.subr.bf16.mxu0 0
    %1625 = vmatpush1.bf16.msra.mxu0 0
    %1626 = vmatprep.subr.bf16.mxu0 0
    %1627 = vmatpush1.bf16.msra.mxu0 0
    %1628 = vmatprep.subr.bf16.mxu0 0
    %1629 = vmatpush1.bf16.msra.mxu0 0
    %1630 = vmatprep.subr.bf16.mxu0 0
    %1631 = vmatpush1.bf16.msra.mxu0 0
    %1632 = vmatprep.subr.bf16.mxu0 0
    %1633 = vmatpush1.bf16.msra.mxu0 0
    %1634 = vmatprep.subr.bf16.mxu0 0
    %1635 = vmatpush1.bf16.msra.mxu0 0
    %1636 = vmatprep.subr.bf16.mxu0 0
    %1637 = vmatpush1.bf16.msra.mxu0 0
    %1638 = vmatprep.subr.bf16.mxu0 0
    %1639 = vmatpush1.bf16.msra.mxu0 0
    %1640 = vmatprep.subr.bf16.mxu0 0
    %1641 = vmatpush1.bf16.msra.mxu0 0
    %1642 = vmatprep.subr.bf16.mxu0 0
    %1643 = vmatpush1.bf16.msra.mxu0 0
    %1644 = vmatprep.subr.bf16.mxu0 0
    %1645 = vmatpush1.bf16.msra.mxu0 0
    %1646 = vmatprep.mubr.bf16.mxu0 0
    %1647 = vmatmul.mubr.bf16.gmra.mrb[0].mxu0 %v1603
    %v1648 = vpop.f32.mrb[0].mxu0
    %v1649 = vadd.f32 %v1552, %v1648
    %v1650 = vpop.f32.mrb[0].mxu0
    %v1651 = vpop.f32.mrb[0].mxu0
    %v1652 = vadd.f32 %v1555, %v1651
    %v1653 = vpop.f32.mrb[0].mxu0
    %1654 = vmatprep.mubr.bf16.mxu0 0
    %1655 = vmatmul.mubr.bf16.gmra.mrb[0].mxu0 %v1606
    %v1656 = vpop.f32.mrb[0].mxu0
    %v1657 = vpop.f32.mrb[0].mxu0
    %v1658 = vpop.f32.mrb[0].mxu0
    %v1659 = vpop.f32.mrb[0].mxu0
    %1660 = vmatprep.mubr.bf16.mxu0 0
    %1661 = vmatmul.mubr.bf16.gmra.mrb[0].mxu0 %v1609
    %v1662 = vpop.f32.mrb[0].mxu0
    %v1663 = vadd.f32 %v1566, %v1662
    %v1664 = vpop.f32.mrb[0].mxu0
    %v1665 = vpop.f32.mrb[0].mxu0
    %v1666 = vadd.f32 %v1569, %v1665
    %v1667 = vpop.f32.mrb[0].mxu0
    %1668 = vmatprep.mubr.bf16.mxu0 0
    %1669 = vmatmul.mubr.bf16.gmra.mrb[0].mxu0 %v1612
    %v1670 = vpop.f32.mrb[0].mxu0
    %v1671 = vpop.f32.mrb[0].mxu0
    %v1672 = vpop.f32.mrb[0].mxu0
    %v1673 = vpop.f32.mrb[0].mxu0
    %1674 = vdwg.mxu0
    %v1675 = vld [vmem:[#allocation2 + $0x2] sm:$0xff]
    %v1676 = vld [vmem:[#allocation2 + $0xa] sm:$0xff]
    %v1677 = vld [vmem:[#allocation2 + $0x12] sm:$0xff]
    %v1678 = vld [vmem:[#allocation2 + $0x1a] sm:$0xff]
    %v1679 = vld [vmem:[#allocation2 + $0x22] sm:$0xff]
    %v1680 = vld [vmem:[#allocation2 + $0x2a] sm:$0xff]
    %v1681 = vld [vmem:[#allocation2 + $0x32] sm:$0xff]
    %v1682 = vld [vmem:[#allocation2 + $0x3a] sm:$0xff]
    %v1683 = vpack.c.bf16 %v1676, %v1675
    %v1684 = vpack.c.bf16 %v1678, %v1677
    %v1685 = vpack.c.bf16 %v1680, %v1679
    %v1686 = vpack.c.bf16 %v1682, %v1681
    %s1687 = scalar_lea.vmem [#allocation4], 384
    %v1688 = vld [vmem:[%s1687] sm:$0xf]
    %v1689 = vld [vmem:[%s1687 + $0x4] sm:$0xf]
    %v1690 = vld [vmem:[%s1687 + $0x8] sm:$0xf]
    %v1691 = vld [vmem:[%s1687 + $0xc] sm:$0xf]
    %v1692 = vld [vmem:[%s1687 + $0x10] sm:$0xf]
    %v1693 = vld [vmem:[%s1687 + $0x14] sm:$0xf]
    %v1694 = vld [vmem:[%s1687 + $0x18] sm:$0xf]
    %v1695 = vld [vmem:[%s1687 + $0x1c] sm:$0xf]
    %v1704 = vunpack.c.l.b16 %v1688
    %v1705 = vunpack.c.l.b16 %v1689
    %v1706 = vunpack.c.l.b16 %v1690
    %v1707 = vunpack.c.l.b16 %v1691
    %v1708 = vunpack.c.l.b16 %v1692
    %v1709 = vunpack.c.l.b16 %v1693
    %v1710 = vunpack.c.l.b16 %v1694
    %v1711 = vunpack.c.l.b16 %v1695
    %v1712 = vpack.c.b16 %v1705, %v1704
    %v1713 = vpack.c.b16 %v1707, %v1706
    %v1714 = vpack.c.b16 %v1709, %v1708
    %v1715 = vpack.c.b16 %v1711, %v1710
    %v1721 = vsel %vm52, %v1683, 0
    %v1724 = vsel %vm52, %v1684, 0
    %v1727 = vsel %vm52, %v1685, 0
    %v1730 = vsel %vm52, %v1686, 0
    %1732 = vmatprep.subr.bf16.mxu0 0
    %1733 = vmatpush1.bf16.msra.mxu0 %v1712
    %1734 = vmatprep.subr.bf16.mxu0 0
    %1735 = vmatpush1.bf16.msra.mxu0 %v1713
    %1736 = vmatprep.subr.bf16.mxu0 0
    %1737 = vmatpush1.bf16.msra.mxu0 %v1714
    %1738 = vmatprep.subr.bf16.mxu0 0
    %1739 = vmatpush1.bf16.msra.mxu0 %v1715
    %1740 = vmatprep.subr.bf16.mxu0 0
    %1741 = vmatpush1.bf16.msra.mxu0 0
    %1742 = vmatprep.subr.bf16.mxu0 0
    %1743 = vmatpush1.bf16.msra.mxu0 0
    %1744 = vmatprep.subr.bf16.mxu0 0
    %1745 = vmatpush1.bf16.msra.mxu0 0
    %1746 = vmatprep.subr.bf16.mxu0 0
    %1747 = vmatpush1.bf16.msra.mxu0 0
    %1748 = vmatprep.subr.bf16.mxu0 0
    %1749 = vmatpush1.bf16.msra.mxu0 0
    %1750 = vmatprep.subr.bf16.mxu0 0
    %1751 = vmatpush1.bf16.msra.mxu0 0
    %1752 = vmatprep.subr.bf16.mxu0 0
    %1753 = vmatpush1.bf16.msra.mxu0 0
    %1754 = vmatprep.subr.bf16.mxu0 0
    %1755 = vmatpush1.bf16.msra.mxu0 0
    %1756 = vmatprep.subr.bf16.mxu0 0
    %1757 = vmatpush1.bf16.msra.mxu0 0
    %1758 = vmatprep.subr.bf16.mxu0 0
    %1759 = vmatpush1.bf16.msra.mxu0 0
    %1760 = vmatprep.subr.bf16.mxu0 0
    %1761 = vmatpush1.bf16.msra.mxu0 0
    %1762 = vmatprep.subr.bf16.mxu0 0
    %1763 = vmatpush1.bf16.msra.mxu0 0
    %1764 = vmatprep.mubr.bf16.mxu0 0
    %1765 = vmatmul.mubr.bf16.gmra.mrb[0].mxu0 %v1721
    %v1766 = vpop.f32.mrb[0].mxu0
    %v1767 = vadd.f32 0.0, %v1766
    %v1768 = vpop.f32.mrb[0].mxu0
    %v1769 = vpop.f32.mrb[0].mxu0
    %v1770 = vadd.f32 0.0, %v1769
    %v1771 = vpop.f32.mrb[0].mxu0
    %1772 = vmatprep.mubr.bf16.mxu0 0
    %1773 = vmatmul.mubr.bf16.gmra.mrb[0].mxu0 %v1724
    %v1774 = vpop.f32.mrb[0].mxu0
    %v1775 = vpop.f32.mrb[0].mxu0
    %v1776 = vpop.f32.mrb[0].mxu0
    %v1777 = vpop.f32.mrb[0].mxu0
    %1778 = vmatprep.mubr.bf16.mxu0 0
    %1779 = vmatmul.mubr.bf16.gmra.mrb[0].mxu0 %v1727
    %v1780 = vpop.f32.mrb[0].mxu0
    %v1781 = vadd.f32 0.0, %v1780
    %v1782 = vpop.f32.mrb[0].mxu0
    %v1783 = vpop.f32.mrb[0].mxu0
    %v1784 = vadd.f32 0.0, %v1783
    %v1785 = vpop.f32.mrb[0].mxu0
    %1786 = vmatprep.mubr.bf16.mxu0 0
    %1787 = vmatmul.mubr.bf16.gmra.mrb[0].mxu0 %v1730
    %v1788 = vpop.f32.mrb[0].mxu0
    %v1789 = vpop.f32.mrb[0].mxu0
    %v1790 = vpop.f32.mrb[0].mxu0
    %v1791 = vpop.f32.mrb[0].mxu0
    %1792 = vdwg.mxu0
    %v1793 = vadd.f32 %v1649, %v1767
    %v1794 = vadd.f32 %v1652, %v1770
    %v1795 = vadd.f32 %v1663, %v1781
    %v1796 = vadd.f32 %v1666, %v1784
    %v1797 = vld [vmem:[#allocation2 + $0x3] sm:$0xff]
    %v1798 = vld [vmem:[#allocation2 + $0xb] sm:$0xff]
    %v1799 = vld [vmem:[#allocation2 + $0x13] sm:$0xff]
    %v1800 = vld [vmem:[#allocation2 + $0x1b] sm:$0xff]
    %v1801 = vld [vmem:[#allocation2 + $0x23] sm:$0xff]
    %v1802 = vld [vmem:[#allocation2 + $0x2b] sm:$0xff]
    %v1803 = vld [vmem:[#allocation2 + $0x33] sm:$0xff]
    %v1804 = vld [vmem:[#allocation2 + $0x3b] sm:$0xff]
    %v1805 = vpack.c.bf16 %v1798, %v1797
    %v1806 = vpack.c.bf16 %v1800, %v1799
    %v1807 = vpack.c.bf16 %v1802, %v1801
    %v1808 = vpack.c.bf16 %v1804, %v1803
    %s1809 = scalar_lea.vmem [#allocation4], 416
    %v1810 = vld [vmem:[%s1809] sm:$0xf]
    %v1811 = vld [vmem:[%s1809 + $0x4] sm:$0xf]
    %v1812 = vld [vmem:[%s1809 + $0x8] sm:$0xf]
    %v1813 = vld [vmem:[%s1809 + $0xc] sm:$0xf]
    %v1814 = vld [vmem:[%s1809 + $0x10] sm:$0xf]
    %v1815 = vld [vmem:[%s1809 + $0x14] sm:$0xf]
    %v1816 = vld [vmem:[%s1809 + $0x18] sm:$0xf]
    %v1817 = vld [vmem:[%s1809 + $0x1c] sm:$0xf]
    %v1826 = vunpack.c.l.b16 %v1810
    %v1827 = vunpack.c.l.b16 %v1811
    %v1828 = vunpack.c.l.b16 %v1812
    %v1829 = vunpack.c.l.b16 %v1813
    %v1830 = vunpack.c.l.b16 %v1814
    %v1831 = vunpack.c.l.b16 %v1815
    %v1832 = vunpack.c.l.b16 %v1816
    %v1833 = vunpack.c.l.b16 %v1817
    %v1834 = vpack.c.b16 %v1827, %v1826
    %v1835 = vpack.c.b16 %v1829, %v1828
    %v1836 = vpack.c.b16 %v1831, %v1830
    %v1837 = vpack.c.b16 %v1833, %v1832
    %v1843 = vsel %vm52, %v1805, 0
    %v1846 = vsel %vm52, %v1806, 0
    %v1849 = vsel %vm52, %v1807, 0
    %v1852 = vsel %vm52, %v1808, 0
    %1854 = vmatprep.subr.bf16.mxu0 0
    %1855 = vmatpush1.bf16.msra.mxu0 %v1834
    %1856 = vmatprep.subr.bf16.mxu0 0
    %1857 = vmatpush1.bf16.msra.mxu0 %v1835
    %1858 = vmatprep.subr.bf16.mxu0 0
    %1859 = vmatpush1.bf16.msra.mxu0 %v1836
    %1860 = vmatprep.subr.bf16.mxu0 0
    %1861 = vmatpush1.bf16.msra.mxu0 %v1837
    %1862 = vmatprep.subr.bf16.mxu0 0
    %1863 = vmatpush1.bf16.msra.mxu0 0
    %1864 = vmatprep.subr.bf16.mxu0 0
    %1865 = vmatpush1.bf16.msra.mxu0 0
    %1866 = vmatprep.subr.bf16.mxu0 0
    %1867 = vmatpush1.bf16.msra.mxu0 0
    %1868 = vmatprep.subr.bf16.mxu0 0
    %1869 = vmatpush1.bf16.msra.mxu0 0
    %1870 = vmatprep.subr.bf16.mxu0 0
    %1871 = vmatpush1.bf16.msra.mxu0 0
    %1872 = vmatprep.subr.bf16.mxu0 0
    %1873 = vmatpush1.bf16.msra.mxu0 0
    %1874 = vmatprep.subr.bf16.mxu0 0
    %1875 = vmatpush1.bf16.msra.mxu0 0
    %1876 = vmatprep.subr.bf16.mxu0 0
    %1877 = vmatpush1.bf16.msra.mxu0 0
    %1878 = vmatprep.subr.bf16.mxu0 0
    %1879 = vmatpush1.bf16.msra.mxu0 0
    %1880 = vmatprep.subr.bf16.mxu0 0
    %1881 = vmatpush1.bf16.msra.mxu0 0
    %1882 = vmatprep.subr.bf16.mxu0 0
    %1883 = vmatpush1.bf16.msra.mxu0 0
    %1884 = vmatprep.subr.bf16.mxu0 0
    %1885 = vmatpush1.bf16.msra.mxu0 0
    %1886 = vmatprep.mubr.bf16.mxu0 0
    %1887 = vmatmul.mubr.bf16.gmra.mrb[0].mxu0 %v1843
    %v1888 = vpop.f32.mrb[0].mxu0
    %v1889 = vadd.f32 0.0, %v1888
    %v1890 = vpop.f32.mrb[0].mxu0
    %v1891 = vpop.f32.mrb[0].mxu0
    %v1892 = vadd.f32 0.0, %v1891
    %v1893 = vpop.f32.mrb[0].mxu0
    %1894 = vmatprep.mubr.bf16.mxu0 0
    %1895 = vmatmul.mubr.bf16.gmra.mrb[0].mxu0 %v1846
    %v1896 = vpop.f32.mrb[0].mxu0
    %v1897 = vpop.f32.mrb[0].mxu0
    %v1898 = vpop.f32.mrb[0].mxu0
    %v1899 = vpop.f32.mrb[0].mxu0
    %1900 = vmatprep.mubr.bf16.mxu0 0
    %1901 = vmatmul.mubr.bf16.gmra.mrb[0].mxu0 %v1849
    %v1902 = vpop.f32.mrb[0].mxu0
    %v1903 = vadd.f32 0.0, %v1902
    %v1904 = vpop.f32.mrb[0].mxu0
    %v1905 = vpop.f32.mrb[0].mxu0
    %v1906 = vadd.f32 0.0, %v1905
    %v1907 = vpop.f32.mrb[0].mxu0
    %1908 = vmatprep.mubr.bf16.mxu0 0
    %1909 = vmatmul.mubr.bf16.gmra.mrb[0].mxu0 %v1852
    %v1910 = vpop.f32.mrb[0].mxu0
    %v1911 = vpop.f32.mrb[0].mxu0
    %v1912 = vpop.f32.mrb[0].mxu0
    %v1913 = vpop.f32.mrb[0].mxu0
    %1914 = vdwg.mxu0
    %v1915 = vadd.f32 %v1793, %v1889
    %v1916 = vadd.f32 %v1794, %v1892
    %v1917 = vadd.f32 %v1795, %v1903
    %v1918 = vadd.f32 %v1796, %v1906
    %v1919 = vld [vmem:[#allocation2 + $0x4] sm:$0xff]
    %v1920 = vld [vmem:[#allocation2 + $0xc] sm:$0xff]
    %v1921 = vld [vmem:[#allocation2 + $0x14] sm:$0xff]
    %v1922 = vld [vmem:[#allocation2 + $0x1c] sm:$0xff]
    %v1923 = vld [vmem:[#allocation2 + $0x24] sm:$0xff]
    %v1924 = vld [vmem:[#allocation2 + $0x2c] sm:$0xff]
    %v1925 = vld [vmem:[#allocation2 + $0x34] sm:$0xff]
    %v1926 = vld [vmem:[#allocation2 + $0x3c] sm:$0xff]
    %v1927 = vpack.c.bf16 %v1920, %v1919
    %v1928 = vpack.c.bf16 %v1922, %v1921
    %v1929 = vpack.c.bf16 %v1924, %v1923
    %v1930 = vpack.c.bf16 %v1926, %v1925
    %s1931 = scalar_lea.vmem [#allocation4], 448
    %v1932 = vld [vmem:[%s1931] sm:$0xf]
    %v1933 = vld [vmem:[%s1931 + $0x4] sm:$0xf]
    %v1934 = vld [vmem:[%s1931 + $0x8] sm:$0xf]
    %v1935 = vld [vmem:[%s1931 + $0xc] sm:$0xf]
    %v1936 = vld [vmem:[%s1931 + $0x10] sm:$0xf]
    %v1937 = vld [vmem:[%s1931 + $0x14] sm:$0xf]
    %v1938 = vld [vmem:[%s1931 + $0x18] sm:$0xf]
    %v1939 = vld [vmem:[%s1931 + $0x1c] sm:$0xf]
    %v1948 = vunpack.c.l.b16 %v1932
    %v1949 = vunpack.c.l.b16 %v1933
    %v1950 = vunpack.c.l.b16 %v1934
    %v1951 = vunpack.c.l.b16 %v1935
    %v1952 = vunpack.c.l.b16 %v1936
    %v1953 = vunpack.c.l.b16 %v1937
    %v1954 = vunpack.c.l.b16 %v1938
    %v1955 = vunpack.c.l.b16 %v1939
    %v1956 = vpack.c.b16 %v1949, %v1948
    %v1957 = vpack.c.b16 %v1951, %v1950
    %v1958 = vpack.c.b16 %v1953, %v1952
    %v1959 = vpack.c.b16 %v1955, %v1954
    %v1965 = vsel %vm52, %v1927, 0
    %v1968 = vsel %vm52, %v1928, 0
    %v1971 = vsel %vm52, %v1929, 0
    %v1974 = vsel %vm52, %v1930, 0
    %1976 = vmatprep.subr.bf16.mxu0 0
    %1977 = vmatpush1.bf16.msra.mxu0 %v1956
    %1978 = vmatprep.subr.bf16.mxu0 0
    %1979 = vmatpush1.bf16.msra.mxu0 %v1957
    %1980 = vmatprep.subr.bf16.mxu0 0
    %1981 = vmatpush1.bf16.msra.mxu0 %v1958
    %1982 = vmatprep.subr.bf16.mxu0 0
    %1983 = vmatpush1.bf16.msra.mxu0 %v1959
    %1984 = vmatprep.subr.bf16.mxu0 0
    %1985 = vmatpush1.bf16.msra.mxu0 0
    %1986 = vmatprep.subr.bf16.mxu0 0
    %1987 = vmatpush1.bf16.msra.mxu0 0
    %1988 = vmatprep.subr.bf16.mxu0 0
    %1989 = vmatpush1.bf16.msra.mxu0 0
    %1990 = vmatprep.subr.bf16.mxu0 0
    %1991 = vmatpush1.bf16.msra.mxu0 0
    %1992 = vmatprep.subr.bf16.mxu0 0
    %1993 = vmatpush1.bf16.msra.mxu0 0
    %1994 = vmatprep.subr.bf16.mxu0 0
    %1995 = vmatpush1.bf16.msra.mxu0 0
    %1996 = vmatprep.subr.bf16.mxu0 0
    %1997 = vmatpush1.bf16.msra.mxu0 0
    %1998 = vmatprep.subr.bf16.mxu0 0
    %1999 = vmatpush1.bf16.msra.mxu0 0
    %2000 = vmatprep.subr.bf16.mxu0 0
    %2001 = vmatpush1.bf16.msra.mxu0 0
    %2002 = vmatprep.subr.bf16.mxu0 0
    %2003 = vmatpush1.bf16.msra.mxu0 0
    %2004 = vmatprep.subr.bf16.mxu0 0
    %2005 = vmatpush1.bf16.msra.mxu0 0
    %2006 = vmatprep.subr.bf16.mxu0 0
    %2007 = vmatpush1.bf16.msra.mxu0 0
    %2008 = vmatprep.mubr.bf16.mxu0 0
    %2009 = vmatmul.mubr.bf16.gmra.mrb[0].mxu0 %v1965
    %v2010 = vpop.f32.mrb[0].mxu0
    %v2011 = vadd.f32 0.0, %v2010
    %v2012 = vpop.f32.mrb[0].mxu0
    %v2013 = vpop.f32.mrb[0].mxu0
    %v2014 = vadd.f32 0.0, %v2013
    %v2015 = vpop.f32.mrb[0].mxu0
    %2016 = vmatprep.mubr.bf16.mxu0 0
    %2017 = vmatmul.mubr.bf16.gmra.mrb[0].mxu0 %v1968
    %v2018 = vpop.f32.mrb[0].mxu0
    %v2019 = vpop.f32.mrb[0].mxu0
    %v2020 = vpop.f32.mrb[0].mxu0
    %v2021 = vpop.f32.mrb[0].mxu0
    %2022 = vmatprep.mubr.bf16.mxu0 0
    %2023 = vmatmul.mubr.bf16.gmra.mrb[0].mxu0 %v1971
    %v2024 = vpop.f32.mrb[0].mxu0
    %v2025 = vadd.f32 0.0, %v2024
    %v2026 = vpop.f32.mrb[0].mxu0
    %v2027 = vpop.f32.mrb[0].mxu0
    %v2028 = vadd.f32 0.0, %v2027
    %v2029 = vpop.f32.mrb[0].mxu0
    %2030 = vmatprep.mubr.bf16.mxu0 0
    %2031 = vmatmul.mubr.bf16.gmra.mrb[0].mxu0 %v1974
    %v2032 = vpop.f32.mrb[0].mxu0
    %v2033 = vpop.f32.mrb[0].mxu0
    %v2034 = vpop.f32.mrb[0].mxu0
    %v2035 = vpop.f32.mrb[0].mxu0
    %2036 = vdwg.mxu0
    %v2037 = vadd.f32 %v1915, %v2011
    %v2038 = vadd.f32 %v1916, %v2014
    %v2039 = vadd.f32 %v1917, %v2025
    %v2040 = vadd.f32 %v1918, %v2028
    %v2041 = vld [vmem:[#allocation2 + $0x5] sm:$0xff]
    %v2042 = vld [vmem:[#allocation2 + $0xd] sm:$0xff]
    %v2043 = vld [vmem:[#allocation2 + $0x15] sm:$0xff]
    %v2044 = vld [vmem:[#allocation2 + $0x1d] sm:$0xff]
    %v2045 = vld [vmem:[#allocation2 + $0x25] sm:$0xff]
    %v2046 = vld [vmem:[#allocation2 + $0x2d] sm:$0xff]
    %v2047 = vld [vmem:[#allocation2 + $0x35] sm:$0xff]
    %v2048 = vld [vmem:[#allocation2 + $0x3d] sm:$0xff]
    %v2049 = vpack.c.bf16 %v2042, %v2041
    %v2050 = vpack.c.bf16 %v2044, %v2043
    %v2051 = vpack.c.bf16 %v2046, %v2045
    %v2052 = vpack.c.bf16 %v2048, %v2047
    %s2053 = scalar_lea.vmem [#allocation4], 480
    %v2054 = vld [vmem:[%s2053] sm:$0xf]
    %v2055 = vld [vmem:[%s2053 + $0x4] sm:$0xf]
    %v2056 = vld [vmem:[%s2053 + $0x8] sm:$0xf]
    %v2057 = vld [vmem:[%s2053 + $0xc] sm:$0xf]
    %v2058 = vld [vmem:[%s2053 + $0x10] sm:$0xf]
    %v2059 = vld [vmem:[%s2053 + $0x14] sm:$0xf]
    %v2060 = vld [vmem:[%s2053 + $0x18] sm:$0xf]
    %v2061 = vld [vmem:[%s2053 + $0x1c] sm:$0xf]
    %v2070 = vunpack.c.l.b16 %v2054
    %v2071 = vunpack.c.l.b16 %v2055
    %v2072 = vunpack.c.l.b16 %v2056
    %v2073 = vunpack.c.l.b16 %v2057
    %v2074 = vunpack.c.l.b16 %v2058
    %v2075 = vunpack.c.l.b16 %v2059
    %v2076 = vunpack.c.l.b16 %v2060
    %v2077 = vunpack.c.l.b16 %v2061
    %v2078 = vpack.c.b16 %v2071, %v2070
    %v2079 = vpack.c.b16 %v2073, %v2072
    %v2080 = vpack.c.b16 %v2075, %v2074
    %v2081 = vpack.c.b16 %v2077, %v2076
    %v2087 = vsel %vm52, %v2049, 0
    %v2090 = vsel %vm52, %v2050, 0
    %v2093 = vsel %vm52, %v2051, 0
    %v2096 = vsel %vm52, %v2052, 0
    %2098 = vmatprep.subr.bf16.mxu0 0
    %2099 = vmatpush1.bf16.msra.mxu0 %v2078
    %2100 = vmatprep.subr.bf16.mxu0 0
    %2101 = vmatpush1.bf16.msra.mxu0 %v2079
    %2102 = vmatprep.subr.bf16.mxu0 0
    %2103 = vmatpush1.bf16.msra.mxu0 %v2080
    %2104 = vmatprep.subr.bf16.mxu0 0
    %2105 = vmatpush1.bf16.msra.mxu0 %v2081
    %2106 = vmatprep.subr.bf16.mxu0 0
    %2107 = vmatpush1.bf16.msra.mxu0 0
    %2108 = vmatprep.subr.bf16.mxu0 0
    %2109 = vmatpush1.bf16.msra.mxu0 0
    %2110 = vmatprep.subr.bf16.mxu0 0
    %2111 = vmatpush1.bf16.msra.mxu0 0
    %2112 = vmatprep.subr.bf16.mxu0 0
    %2113 = vmatpush1.bf16.msra.mxu0 0
    %2114 = vmatprep.subr.bf16.mxu0 0
    %2115 = vmatpush1.bf16.msra.mxu0 0
    %2116 = vmatprep.subr.bf16.mxu0 0
    %2117 = vmatpush1.bf16.msra.mxu0 0
    %2118 = vmatprep.subr.bf16.mxu0 0
    %2119 = vmatpush1.bf16.msra.mxu0 0
    %2120 = vmatprep.subr.bf16.mxu0 0
    %2121 = vmatpush1.bf16.msra.mxu0 0
    %2122 = vmatprep.subr.bf16.mxu0 0
    %2123 = vmatpush1.bf16.msra.mxu0 0
    %2124 = vmatprep.subr.bf16.mxu0 0
    %2125 = vmatpush1.bf16.msra.mxu0 0
    %2126 = vmatprep.subr.bf16.mxu0 0
    %2127 = vmatpush1.bf16.msra.mxu0 0
    %2128 = vmatprep.subr.bf16.mxu0 0
    %2129 = vmatpush1.bf16.msra.mxu0 0
    %2130 = vmatprep.mubr.bf16.mxu0 0
    %2131 = vmatmul.mubr.bf16.gmra.mrb[0].mxu0 %v2087
    %v2132 = vpop.f32.mrb[0].mxu0
    %v2133 = vadd.f32 0.0, %v2132
    %v2134 = vpop.f32.mrb[0].mxu0
    %v2135 = vpop.f32.mrb[0].mxu0
    %v2136 = vadd.f32 0.0, %v2135
    %v2137 = vpop.f32.mrb[0].mxu0
    %2138 = vmatprep.mubr.bf16.mxu0 0
    %2139 = vmatmul.mubr.bf16.gmra.mrb[0].mxu0 %v2090
    %v2140 = vpop.f32.mrb[0].mxu0
    %v2141 = vpop.f32.mrb[0].mxu0
    %v2142 = vpop.f32.mrb[0].mxu0
    %v2143 = vpop.f32.mrb[0].mxu0
    %2144 = vmatprep.mubr.bf16.mxu0 0
    %2145 = vmatmul.mubr.bf16.gmra.mrb[0].mxu0 %v2093
    %v2146 = vpop.f32.mrb[0].mxu0
    %v2147 = vadd.f32 0.0, %v2146
    %v2148 = vpop.f32.mrb[0].mxu0
    %v2149 = vpop.f32.mrb[0].mxu0
    %v2150 = vadd.f32 0.0, %v2149
    %v2151 = vpop.f32.mrb[0].mxu0
    %2152 = vmatprep.mubr.bf16.mxu0 0
    %2153 = vmatmul.mubr.bf16.gmra.mrb[0].mxu0 %v2096
    %v2154 = vpop.f32.mrb[0].mxu0
    %v2155 = vpop.f32.mrb[0].mxu0
    %v2156 = vpop.f32.mrb[0].mxu0
    %v2157 = vpop.f32.mrb[0].mxu0
    %2158 = vdwg.mxu0
    %v2159 = vadd.f32 %v2037, %v2133
    %v2160 = vadd.f32 %v2038, %v2136
    %v2161 = vadd.f32 %v2039, %v2147
    %v2162 = vadd.f32 %v2040, %v2150
    %v2163 = vld [vmem:[#allocation2 + $0x6] sm:$0xff]
    %v2164 = vld [vmem:[#allocation2 + $0xe] sm:$0xff]
    %v2165 = vld [vmem:[#allocation2 + $0x16] sm:$0xff]
    %v2166 = vld [vmem:[#allocation2 + $0x1e] sm:$0xff]
    %v2167 = vld [vmem:[#allocation2 + $0x26] sm:$0xff]
    %v2168 = vld [vmem:[#allocation2 + $0x2e] sm:$0xff]
    %v2169 = vld [vmem:[#allocation2 + $0x36] sm:$0xff]
    %v2170 = vld [vmem:[#allocation2 + $0x3e] sm:$0xff]
    %v2171 = vpack.c.bf16 %v2164, %v2163
    %v2172 = vpack.c.bf16 %v2166, %v2165
    %v2173 = vpack.c.bf16 %v2168, %v2167
    %v2174 = vpack.c.bf16 %v2170, %v2169
    %s2175 = scalar_lea.vmem [#allocation4], 512
    %v2176 = vld [vmem:[%s2175] sm:$0xf]
    %v2177 = vld [vmem:[%s2175 + $0x4] sm:$0xf]
    %v2178 = vld [vmem:[%s2175 + $0x8] sm:$0xf]
    %v2179 = vld [vmem:[%s2175 + $0xc] sm:$0xf]
    %v2180 = vld [vmem:[%s2175 + $0x10] sm:$0xf]
    %v2181 = vld [vmem:[%s2175 + $0x14] sm:$0xf]
    %v2182 = vld [vmem:[%s2175 + $0x18] sm:$0xf]
    %v2183 = vld [vmem:[%s2175 + $0x1c] sm:$0xf]
    %v2192 = vunpack.c.l.b16 %v2176
    %v2193 = vunpack.c.l.b16 %v2177
    %v2194 = vunpack.c.l.b16 %v2178
    %v2195 = vunpack.c.l.b16 %v2179
    %v2196 = vunpack.c.l.b16 %v2180
    %v2197 = vunpack.c.l.b16 %v2181
    %v2198 = vunpack.c.l.b16 %v2182
    %v2199 = vunpack.c.l.b16 %v2183
    %v2200 = vpack.c.b16 %v2193, %v2192
    %v2201 = vpack.c.b16 %v2195, %v2194
    %v2202 = vpack.c.b16 %v2197, %v2196
    %v2203 = vpack.c.b16 %v2199, %v2198
    %v2209 = vsel %vm52, %v2171, 0
    %v2212 = vsel %vm52, %v2172, 0
    %v2215 = vsel %vm52, %v2173, 0
    %v2218 = vsel %vm52, %v2174, 0
    %2220 = vmatprep.subr.bf16.mxu0 0
    %2221 = vmatpush1.bf16.msra.mxu0 %v2200
    %2222 = vmatprep.subr.bf16.mxu0 0
    %2223 = vmatpush1.bf16.msra.mxu0 %v2201
    %2224 = vmatprep.subr.bf16.mxu0 0
    %2225 = vmatpush1.bf16.msra.mxu0 %v2202
    %2226 = vmatprep.subr.bf16.mxu0 0
    %2227 = vmatpush1.bf16.msra.mxu0 %v2203
    %2228 = vmatprep.subr.bf16.mxu0 0
    %2229 = vmatpush1.bf16.msra.mxu0 0
    %2230 = vmatprep.subr.bf16.mxu0 0
    %2231 = vmatpush1.bf16.msra.mxu0 0
    %2232 = vmatprep.subr.bf16.mxu0 0
    %2233 = vmatpush1.bf16.msra.mxu0 0
    %2234 = vmatprep.subr.bf16.mxu0 0
    %2235 = vmatpush1.bf16.msra.mxu0 0
    %2236 = vmatprep.subr.bf16.mxu0 0
    %2237 = vmatpush1.bf16.msra.mxu0 0
    %2238 = vmatprep.subr.bf16.mxu0 0
    %2239 = vmatpush1.bf16.msra.mxu0 0
    %2240 = vmatprep.subr.bf16.mxu0 0
    %2241 = vmatpush1.bf16.msra.mxu0 0
    %2242 = vmatprep.subr.bf16.mxu0 0
    %2243 = vmatpush1.bf16.msra.mxu0 0
    %2244 = vmatprep.subr.bf16.mxu0 0
    %2245 = vmatpush1.bf16.msra.mxu0 0
    %2246 = vmatprep.subr.bf16.mxu0 0
    %2247 = vmatpush1.bf16.msra.mxu0 0
    %2248 = vmatprep.subr.bf16.mxu0 0
    %2249 = vmatpush1.bf16.msra.mxu0 0
    %2250 = vmatprep.subr.bf16.mxu0 0
    %2251 = vmatpush1.bf16.msra.mxu0 0
    %2252 = vmatprep.mubr.bf16.mxu0 0
    %2253 = vmatmul.mubr.bf16.gmra.mrb[0].mxu0 %v2209
    %v2254 = vpop.f32.mrb[0].mxu0
    %v2255 = vadd.f32 0.0, %v2254
    %v2256 = vpop.f32.mrb[0].mxu0
    %v2257 = vpop.f32.mrb[0].mxu0
    %v2258 = vadd.f32 0.0, %v2257
    %v2259 = vpop.f32.mrb[0].mxu0
    %2260 = vmatprep.mubr.bf16.mxu0 0
    %2261 = vmatmul.mubr.bf16.gmra.mrb[0].mxu0 %v2212
    %v2262 = vpop.f32.mrb[0].mxu0
    %v2263 = vpop.f32.mrb[0].mxu0
    %v2264 = vpop.f32.mrb[0].mxu0
    %v2265 = vpop.f32.mrb[0].mxu0
    %2266 = vmatprep.mubr.bf16.mxu0 0
    %2267 = vmatmul.mubr.bf16.gmra.mrb[0].mxu0 %v2215
    %v2268 = vpop.f32.mrb[0].mxu0
    %v2269 = vadd.f32 0.0, %v2268
    %v2270 = vpop.f32.mrb[0].mxu0
    %v2271 = vpop.f32.mrb[0].mxu0
    %v2272 = vadd.f32 0.0, %v2271
    %v2273 = vpop.f32.mrb[0].mxu0
    %2274 = vmatprep.mubr.bf16.mxu0 0
    %2275 = vmatmul.mubr.bf16.gmra.mrb[0].mxu0 %v2218
    %v2276 = vpop.f32.mrb[0].mxu0
    %v2277 = vpop.f32.mrb[0].mxu0
    %v2278 = vpop.f32.mrb[0].mxu0
    %v2279 = vpop.f32.mrb[0].mxu0
    %2280 = vdwg.mxu0
    %v2281 = vadd.f32 %v2159, %v2255
    %v2282 = vadd.f32 %v2160, %v2258
    %v2283 = vadd.f32 %v2161, %v2269
    %v2284 = vadd.f32 %v2162, %v2272
    %v2285 = vld [vmem:[#allocation2 + $0x7] sm:$0xff]
    %v2286 = vld [vmem:[#allocation2 + $0xf] sm:$0xff]
    %v2287 = vld [vmem:[#allocation2 + $0x17] sm:$0xff]
    %v2288 = vld [vmem:[#allocation2 + $0x1f] sm:$0xff]
    %v2289 = vld [vmem:[#allocation2 + $0x27] sm:$0xff]
    %v2290 = vld [vmem:[#allocation2 + $0x2f] sm:$0xff]
    %v2291 = vld [vmem:[#allocation2 + $0x37] sm:$0xff]
    %v2292 = vld [vmem:[#allocation2 + $0x3f] sm:$0xff]
    %v2293 = vpack.c.bf16 %v2286, %v2285
    %v2294 = vpack.c.bf16 %v2288, %v2287
    %v2295 = vpack.c.bf16 %v2290, %v2289
    %v2296 = vpack.c.bf16 %v2292, %v2291
    %s2297 = scalar_lea.vmem [#allocation4], 544
    %v2298 = vld [vmem:[%s2297] sm:$0xf]
    %v2299 = vld [vmem:[%s2297 + $0x4] sm:$0xf]
    %v2300 = vld [vmem:[%s2297 + $0x8] sm:$0xf]
    %v2301 = vld [vmem:[%s2297 + $0xc] sm:$0xf]
    %v2302 = vld [vmem:[%s2297 + $0x10] sm:$0xf]
    %v2303 = vld [vmem:[%s2297 + $0x14] sm:$0xf]
    %v2304 = vld [vmem:[%s2297 + $0x18] sm:$0xf]
    %v2305 = vld [vmem:[%s2297 + $0x1c] sm:$0xf]
    %v2314 = vunpack.c.l.b16 %v2298
    %v2315 = vunpack.c.l.b16 %v2299
    %v2316 = vunpack.c.l.b16 %v2300
    %v2317 = vunpack.c.l.b16 %v2301
    %v2318 = vunpack.c.l.b16 %v2302
    %v2319 = vunpack.c.l.b16 %v2303
    %v2320 = vunpack.c.l.b16 %v2304
    %v2321 = vunpack.c.l.b16 %v2305
    %v2322 = vpack.c.b16 %v2315, %v2314
    %v2323 = vpack.c.b16 %v2317, %v2316
    %v2324 = vpack.c.b16 %v2319, %v2318
    %v2325 = vpack.c.b16 %v2321, %v2320
    %v2331 = vsel %vm52, %v2293, 0
    %v2334 = vsel %vm52, %v2294, 0
    %v2337 = vsel %vm52, %v2295, 0
    %v2340 = vsel %vm52, %v2296, 0
    %2342 = vmatprep.subr.bf16.mxu0 0
    %2343 = vmatpush1.bf16.msra.mxu0 %v2322
    %2344 = vmatprep.subr.bf16.mxu0 0
    %2345 = vmatpush1.bf16.msra.mxu0 %v2323
    %2346 = vmatprep.subr.bf16.mxu0 0
    %2347 = vmatpush1.bf16.msra.mxu0 %v2324
    %2348 = vmatprep.subr.bf16.mxu0 0
    %2349 = vmatpush1.bf16.msra.mxu0 %v2325
    %2350 = vmatprep.subr.bf16.mxu0 0
    %2351 = vmatpush1.bf16.msra.mxu0 0
    %2352 = vmatprep.subr.bf16.mxu0 0
    %2353 = vmatpush1.bf16.msra.mxu0 0
    %2354 = vmatprep.subr.bf16.mxu0 0
    %2355 = vmatpush1.bf16.msra.mxu0 0
    %2356 = vmatprep.subr.bf16.mxu0 0
    %2357 = vmatpush1.bf16.msra.mxu0 0
    %2358 = vmatprep.subr.bf16.mxu0 0
    %2359 = vmatpush1.bf16.msra.mxu0 0
    %2360 = vmatprep.subr.bf16.mxu0 0
    %2361 = vmatpush1.bf16.msra.mxu0 0
    %2362 = vmatprep.subr.bf16.mxu0 0
    %2363 = vmatpush1.bf16.msra.mxu0 0
    %2364 = vmatprep.subr.bf16.mxu0 0
    %2365 = vmatpush1.bf16.msra.mxu0 0
    %2366 = vmatprep.subr.bf16.mxu0 0
    %2367 = vmatpush1.bf16.msra.mxu0 0
    %2368 = vmatprep.subr.bf16.mxu0 0
    %2369 = vmatpush1.bf16.msra.mxu0 0
    %2370 = vmatprep.subr.bf16.mxu0 0
    %2371 = vmatpush1.bf16.msra.mxu0 0
    %2372 = vmatprep.subr.bf16.mxu0 0
    %2373 = vmatpush1.bf16.msra.mxu0 0
    %2374 = vmatprep.mubr.bf16.mxu0 0
    %2375 = vmatmul.mubr.bf16.gmra.mrb[0].mxu0 %v2331
    %v2376 = vpop.f32.mrb[0].mxu0
    %v2377 = vadd.f32 0.0, %v2376
    %v2378 = vpop.f32.mrb[0].mxu0
    %v2379 = vpop.f32.mrb[0].mxu0
    %v2380 = vadd.f32 0.0, %v2379
    %v2381 = vpop.f32.mrb[0].mxu0
    %2382 = vmatprep.mubr.bf16.mxu0 0
    %2383 = vmatmul.mubr.bf16.gmra.mrb[0].mxu0 %v2334
    %v2384 = vpop.f32.mrb[0].mxu0
    %v2385 = vpop.f32.mrb[0].mxu0
    %v2386 = vpop.f32.mrb[0].mxu0
    %v2387 = vpop.f32.mrb[0].mxu0
    %2388 = vmatprep.mubr.bf16.mxu0 0
    %2389 = vmatmul.mubr.bf16.gmra.mrb[0].mxu0 %v2337
    %v2390 = vpop.f32.mrb[0].mxu0
    %v2391 = vadd.f32 0.0, %v2390
    %v2392 = vpop.f32.mrb[0].mxu0
    %v2393 = vpop.f32.mrb[0].mxu0
    %v2394 = vadd.f32 0.0, %v2393
    %v2395 = vpop.f32.mrb[0].mxu0
    %2396 = vmatprep.mubr.bf16.mxu0 0
    %2397 = vmatmul.mubr.bf16.gmra.mrb[0].mxu0 %v2340
    %v2398 = vpop.f32.mrb[0].mxu0
    %v2399 = vpop.f32.mrb[0].mxu0
    %v2400 = vpop.f32.mrb[0].mxu0
    %v2401 = vpop.f32.mrb[0].mxu0
    %2402 = vdwg.mxu0
    %v2403 = vadd.f32 %v2281, %v2377
    %v2404 = vadd.f32 %v2282, %v2380
    %v2405 = vadd.f32 %v2283, %v2391
    %v2406 = vadd.f32 %v2284, %v2394
    %v2407 = vld [vmem:[#allocation2 + $0x8] sm:$0xff]
    %v2408 = vld [vmem:[#allocation2 + $0x10] sm:$0xff]
    %v2409 = vld [vmem:[#allocation2 + $0x18] sm:$0xff]
    %v2410 = vld [vmem:[#allocation2 + $0x20] sm:$0xff]
    %v2411 = vld [vmem:[#allocation2 + $0x28] sm:$0xff]
    %v2412 = vld [vmem:[#allocation2 + $0x30] sm:$0xff]
    %v2413 = vld [vmem:[#allocation2 + $0x38] sm:$0xff]
    %v2414 = vld [vmem:[#allocation2 + $0x40] sm:$0xff]
    %v2415 = vpack.c.bf16 %v2408, %v2407
    %v2416 = vpack.c.bf16 %v2410, %v2409
    %v2417 = vpack.c.bf16 %v2412, %v2411
    %v2418 = vpack.c.bf16 %v2414, %v2413
    %s2419 = scalar_lea.vmem [#allocation4], 576
    %v2420 = vld [vmem:[%s2419] sm:$0xf]
    %v2421 = vld [vmem:[%s2419 + $0x4] sm:$0xf]
    %v2422 = vld [vmem:[%s2419 + $0x8] sm:$0xf]
    %v2423 = vld [vmem:[%s2419 + $0xc] sm:$0xf]
    %v2424 = vld [vmem:[%s2419 + $0x10] sm:$0xf]
    %v2425 = vld [vmem:[%s2419 + $0x14] sm:$0xf]
    %v2426 = vld [vmem:[%s2419 + $0x18] sm:$0xf]
    %v2427 = vld [vmem:[%s2419 + $0x1c] sm:$0xf]
    %v2436 = vunpack.c.l.b16 %v2420
    %v2437 = vunpack.c.l.b16 %v2421
    %v2438 = vunpack.c.l.b16 %v2422
    %v2439 = vunpack.c.l.b16 %v2423
    %v2440 = vunpack.c.l.b16 %v2424
    %v2441 = vunpack.c.l.b16 %v2425
    %v2442 = vunpack.c.l.b16 %v2426
    %v2443 = vunpack.c.l.b16 %v2427
    %v2444 = vpack.c.b16 %v2437, %v2436
    %v2445 = vpack.c.b16 %v2439, %v2438
    %v2446 = vpack.c.b16 %v2441, %v2440
    %v2447 = vpack.c.b16 %v2443, %v2442
    %v2453 = vsel %vm52, %v2415, 0
    %v2456 = vsel %vm52, %v2416, 0
    %v2459 = vsel %vm52, %v2417, 0
    %v2462 = vsel %vm52, %v2418, 0
    %2464 = vmatprep.subr.bf16.mxu0 0
    %2465 = vmatpush1.bf16.msra.mxu0 %v2444
    %2466 = vmatprep.subr.bf16.mxu0 0
    %2467 = vmatpush1.bf16.msra.mxu0 %v2445
    %2468 = vmatprep.subr.bf16.mxu0 0
    %2469 = vmatpush1.bf16.msra.mxu0 %v2446
    %2470 = vmatprep.subr.bf16.mxu0 0
    %2471 = vmatpush1.bf16.msra.mxu0 %v2447
    %2472 = vmatprep.subr.bf16.mxu0 0
    %2473 = vmatpush1.bf16.msra.mxu0 0
    %2474 = vmatprep.subr.bf16.mxu0 0
    %2475 = vmatpush1.bf16.msra.mxu0 0
    %2476 = vmatprep.subr.bf16.mxu0 0
    %2477 = vmatpush1.bf16.msra.mxu0 0
    %2478 = vmatprep.subr.bf16.mxu0 0
    %2479 = vmatpush1.bf16.msra.mxu0 0
    %2480 = vmatprep.subr.bf16.mxu0 0
    %2481 = vmatpush1.bf16.msra.mxu0 0
    %2482 = vmatprep.subr.bf16.mxu0 0
    %2483 = vmatpush1.bf16.msra.mxu0 0
    %2484 = vmatprep.subr.bf16.mxu0 0
    %2485 = vmatpush1.bf16.msra.mxu0 0
    %2486 = vmatprep.subr.bf16.mxu0 0
    %2487 = vmatpush1.bf16.msra.mxu0 0
    %2488 = vmatprep.subr.bf16.mxu0 0
    %2489 = vmatpush1.bf16.msra.mxu0 0
    %2490 = vmatprep.subr.bf16.mxu0 0
    %2491 = vmatpush1.bf16.msra.mxu0 0
    %2492 = vmatprep.subr.bf16.mxu0 0
    %2493 = vmatpush1.bf16.msra.mxu0 0
    %2494 = vmatprep.subr.bf16.mxu0 0
    %2495 = vmatpush1.bf16.msra.mxu0 0
    %2496 = vmatprep.mubr.bf16.mxu0 0
    %2497 = vmatmul.mubr.bf16.gmra.mrb[0].mxu0 %v2453
    %v2498 = vpop.f32.mrb[0].mxu0
    %v2499 = vadd.f32 0.0, %v2498
    %v2500 = vpop.f32.mrb[0].mxu0
    %v2501 = vpop.f32.mrb[0].mxu0
    %v2502 = vadd.f32 0.0, %v2501
    %v2503 = vpop.f32.mrb[0].mxu0
    %2504 = vmatprep.mubr.bf16.mxu0 0
    %2505 = vmatmul.mubr.bf16.gmra.mrb[0].mxu0 %v2456
    %v2506 = vpop.f32.mrb[0].mxu0
    %v2507 = vpop.f32.mrb[0].mxu0
    %v2508 = vpop.f32.mrb[0].mxu0
    %v2509 = vpop.f32.mrb[0].mxu0
    %2510 = vmatprep.mubr.bf16.mxu0 0
    %2511 = vmatmul.mubr.bf16.gmra.mrb[0].mxu0 %v2459
    %v2512 = vpop.f32.mrb[0].mxu0
    %v2513 = vadd.f32 0.0, %v2512
    %v2514 = vpop.f32.mrb[0].mxu0
    %v2515 = vpop.f32.mrb[0].mxu0
    %v2516 = vadd.f32 0.0, %v2515
    %v2517 = vpop.f32.mrb[0].mxu0
    %2518 = vmatprep.mubr.bf16.mxu0 0
    %2519 = vmatmul.mubr.bf16.gmra.mrb[0].mxu0 %v2462
    %v2520 = vpop.f32.mrb[0].mxu0
    %v2521 = vpop.f32.mrb[0].mxu0
    %v2522 = vpop.f32.mrb[0].mxu0
    %v2523 = vpop.f32.mrb[0].mxu0
    %2524 = vdwg.mxu0
    %v2525 = vadd.f32 %v2403, %v2499
    %v2526 = vadd.f32 %v2404, %v2502
    %v2527 = vadd.f32 %v2405, %v2513
    %v2528 = vadd.f32 %v2406, %v2516
    %v2529 = vld [vmem:[#allocation2 + $0x9] sm:$0xff]
    %v2530 = vld [vmem:[#allocation2 + $0x11] sm:$0xff]
    %v2531 = vld [vmem:[#allocation2 + $0x19] sm:$0xff]
    %v2532 = vld [vmem:[#allocation2 + $0x21] sm:$0xff]
    %v2533 = vld [vmem:[#allocation2 + $0x29] sm:$0xff]
    %v2534 = vld [vmem:[#allocation2 + $0x31] sm:$0xff]
    %v2535 = vld [vmem:[#allocation2 + $0x39] sm:$0xff]
    %v2536 = vld [vmem:[#allocation2 + $0x41] sm:$0xff]
    %v2537 = vpack.c.bf16 %v2530, %v2529
    %v2538 = vpack.c.bf16 %v2532, %v2531
    %v2539 = vpack.c.bf16 %v2534, %v2533
    %v2540 = vpack.c.bf16 %v2536, %v2535
    %s2541 = scalar_lea.vmem [#allocation4], 608
    %v2542 = vld [vmem:[%s2541] sm:$0xf]
    %v2543 = vld [vmem:[%s2541 + $0x4] sm:$0xf]
    %v2544 = vld [vmem:[%s2541 + $0x8] sm:$0xf]
    %v2545 = vld [vmem:[%s2541 + $0xc] sm:$0xf]
    %v2546 = vld [vmem:[%s2541 + $0x10] sm:$0xf]
    %v2547 = vld [vmem:[%s2541 + $0x14] sm:$0xf]
    %v2548 = vld [vmem:[%s2541 + $0x18] sm:$0xf]
    %v2549 = vld [vmem:[%s2541 + $0x1c] sm:$0xf]
    %v2558 = vunpack.c.l.b16 %v2542
    %v2559 = vunpack.c.l.b16 %v2543
    %v2560 = vunpack.c.l.b16 %v2544
    %v2561 = vunpack.c.l.b16 %v2545
    %v2562 = vunpack.c.l.b16 %v2546
    %v2563 = vunpack.c.l.b16 %v2547
    %v2564 = vunpack.c.l.b16 %v2548
    %v2565 = vunpack.c.l.b16 %v2549
    %v2566 = vpack.c.b16 %v2559, %v2558
    %v2567 = vpack.c.b16 %v2561, %v2560
    %v2568 = vpack.c.b16 %v2563, %v2562
    %v2569 = vpack.c.b16 %v2565, %v2564
    %v2575 = vsel %vm52, %v2537, 0
    %v2578 = vsel %vm52, %v2538, 0
    %v2581 = vsel %vm52, %v2539, 0
    %v2584 = vsel %vm52, %v2540, 0
    %2586 = vmatprep.subr.bf16.mxu0 0
    %2587 = vmatpush1.bf16.msra.mxu0 %v2566
    %2588 = vmatprep.subr.bf16.mxu0 0
    %2589 = vmatpush1.bf16.msra.mxu0 %v2567
    %2590 = vmatprep.subr.bf16.mxu0 0
    %2591 = vmatpush1.bf16.msra.mxu0 %v2568
    %2592 = vmatprep.subr.bf16.mxu0 0
    %2593 = vmatpush1.bf16.msra.mxu0 %v2569
    %2594 = vmatprep.subr.bf16.mxu0 0
    %2595 = vmatpush1.bf16.msra.mxu0 0
    %2596 = vmatprep.subr.bf16.mxu0 0
    %2597 = vmatpush1.bf16.msra.mxu0 0
    %2598 = vmatprep.subr.bf16.mxu0 0
    %2599 = vmatpush1.bf16.msra.mxu0 0
    %2600 = vmatprep.subr.bf16.mxu0 0
    %2601 = vmatpush1.bf16.msra.mxu0 0
    %2602 = vmatprep.subr.bf16.mxu0 0
    %2603 = vmatpush1.bf16.msra.mxu0 0
    %2604 = vmatprep.subr.bf16.mxu0 0
    %2605 = vmatpush1.bf16.msra.mxu0 0
    %2606 = vmatprep.subr.bf16.mxu0 0
    %2607 = vmatpush1.bf16.msra.mxu0 0
    %2608 = vmatprep.subr.bf16.mxu0 0
    %2609 = vmatpush1.bf16.msra.mxu0 0
    %2610 = vmatprep.subr.bf16.mxu0 0
    %2611 = vmatpush1.bf16.msra.mxu0 0
    %2612 = vmatprep.subr.bf16.mxu0 0
    %2613 = vmatpush1.bf16.msra.mxu0 0
    %2614 = vmatprep.subr.bf16.mxu0 0
    %2615 = vmatpush1.bf16.msra.mxu0 0
    %2616 = vmatprep.subr.bf16.mxu0 0
    %2617 = vmatpush1.bf16.msra.mxu0 0
    %2618 = vmatprep.mubr.bf16.mxu0 0
    %2619 = vmatmul.mubr.bf16.gmra.mrb[0].mxu0 %v2575
    %v2620 = vpop.f32.mrb[0].mxu0
    %v2621 = vadd.f32 0.0, %v2620
    %v2622 = vpop.f32.mrb[0].mxu0
    %v2623 = vpop.f32.mrb[0].mxu0
    %v2624 = vadd.f32 0.0, %v2623
    %v2625 = vpop.f32.mrb[0].mxu0
    %2626 = vmatprep.mubr.bf16.mxu0 0
    %2627 = vmatmul.mubr.bf16.gmra.mrb[0].mxu0 %v2578
    %v2628 = vpop.f32.mrb[0].mxu0
    %v2629 = vpop.f32.mrb[0].mxu0
    %v2630 = vpop.f32.mrb[0].mxu0
    %v2631 = vpop.f32.mrb[0].mxu0
    %2632 = vmatprep.mubr.bf16.mxu0 0
    %2633 = vmatmul.mubr.bf16.gmra.mrb[0].mxu0 %v2581
    %v2634 = vpop.f32.mrb[0].mxu0
    %v2635 = vadd.f32 0.0, %v2634
    %v2636 = vpop.f32.mrb[0].mxu0
    %v2637 = vpop.f32.mrb[0].mxu0
    %v2638 = vadd.f32 0.0, %v2637
    %v2639 = vpop.f32.mrb[0].mxu0
    %2640 = vmatprep.mubr.bf16.mxu0 0
    %2641 = vmatmul.mubr.bf16.gmra.mrb[0].mxu0 %v2584
    %v2642 = vpop.f32.mrb[0].mxu0
    %v2643 = vpop.f32.mrb[0].mxu0
    %v2644 = vpop.f32.mrb[0].mxu0
    %v2645 = vpop.f32.mrb[0].mxu0
    %2646 = vdwg.mxu0
    %v2647 = vadd.f32 %v2525, %v2621
    %v2648 = vadd.f32 %v2526, %v2624
    %v2649 = vadd.f32 %v2527, %v2635
    %v2650 = vadd.f32 %v2528, %v2638
    %s2651 = scalar_lea.vmem %s3, 2
    %v2652 = vld [vmem:[%s2651] sm:$0x1]
    %v2654 = vlaneseq
    %v2655 = vshrl.u32 %v2654, 7
    %v2656 = vsub.s32 0, %v2655
    %v2657 = vrot.slane %v2652, %v2656
    %v2659 = vadd.f32 %v2647, %v2657
    %v2660 = vadd.f32 %v2648, %v2657
    %v2661 = vadd.f32 %v2649, %v2657
    %v2662 = vadd.f32 %v2650, %v2657
    %v2663 = vmax.f32 %v2659, 0.0
    %v2664 = vmax.f32 %v2660, 0.0
    %v2665 = vmax.f32 %v2661, 0.0
    %v2666 = vmax.f32 %v2662, 0.0
    %2667 = vst.msk [vmem:[#allocation2 + $0x4] sm:$0xff] %vm52, %v2663
    %2668 = vst.msk [vmem:[#allocation2 + $0xc] sm:$0xff] %vm52, %v2664
    %2669 = vst.msk [vmem:[#allocation2 + $0x24] sm:$0xff] %vm52, %v2665
    %2670 = vst.msk [vmem:[#allocation2 + $0x2c] sm:$0xff] %vm52, %v2666
    %v2671 = vld [vmem:[#allocation2 + $0x4] sm:$0xff]
    %v2672 = vld [vmem:[#allocation2 + $0xc] sm:$0xff]
    %v2673 = vld [vmem:[#allocation2 + $0x14] sm:$0xff]
    %v2674 = vld [vmem:[#allocation2 + $0x1c] sm:$0xff]
    %v2675 = vld [vmem:[#allocation2 + $0x24] sm:$0xff]
    %v2676 = vld [vmem:[#allocation2 + $0x2c] sm:$0xff]
    %v2677 = vld [vmem:[#allocation2 + $0x34] sm:$0xff]
    %v2678 = vld [vmem:[#allocation2 + $0x3c] sm:$0xff]
    %v2679 = vld [vmem:[#allocation2] sm:$0xff]
    %v2680 = vld [vmem:[#allocation2 + $0x8] sm:$0xff]
    %v2681 = vld [vmem:[#allocation2 + $0x10] sm:$0xff]
    %v2682 = vld [vmem:[#allocation2 + $0x18] sm:$0xff]
    %v2683 = vld [vmem:[#allocation2 + $0x20] sm:$0xff]
    %v2684 = vld [vmem:[#allocation2 + $0x28] sm:$0xff]
    %v2685 = vld [vmem:[#allocation2 + $0x30] sm:$0xff]
    %v2686 = vld [vmem:[#allocation2 + $0x38] sm:$0xff]
    %v2687 = vpack.c.bf16 %v2680, %v2679
    %v2688 = vpack.c.bf16 %v2682, %v2681
    %v2689 = vpack.c.bf16 %v2684, %v2683
    %v2690 = vpack.c.bf16 %v2686, %v2685
    %s2691 = scalar_lea.vmem [#allocation4], 640
    %v2692 = vld [vmem:[%s2691] sm:$0xf]
    %v2693 = vld [vmem:[%s2691 + $0x4] sm:$0xf]
    %v2694 = vld [vmem:[%s2691 + $0x8] sm:$0xf]
    %v2695 = vld [vmem:[%s2691 + $0xc] sm:$0xf]
    %v2696 = vld [vmem:[%s2691 + $0x10] sm:$0xf]
    %v2697 = vld [vmem:[%s2691 + $0x14] sm:$0xf]
    %v2698 = vld [vmem:[%s2691 + $0x18] sm:$0xf]
    %v2699 = vld [vmem:[%s2691 + $0x1c] sm:$0xf]
    %v2700 = vld [vmem:[#allocation2 + $0x1] sm:$0xff]
    %v2701 = vld [vmem:[#allocation2 + $0x9] sm:$0xff]
    %v2702 = vld [vmem:[#allocation2 + $0x11] sm:$0xff]
    %v2703 = vld [vmem:[#allocation2 + $0x19] sm:$0xff]
    %v2704 = vld [vmem:[#allocation2 + $0x21] sm:$0xff]
    %v2705 = vld [vmem:[#allocation2 + $0x29] sm:$0xff]
    %v2706 = vld [vmem:[#allocation2 + $0x31] sm:$0xff]
    %v2707 = vld [vmem:[#allocation2 + $0x39] sm:$0xff]
    %v2708 = vpack.c.bf16 %v2701, %v2700
    %v2709 = vpack.c.bf16 %v2703, %v2702
    %v2710 = vpack.c.bf16 %v2705, %v2704
    %v2711 = vpack.c.bf16 %v2707, %v2706
    %s2712 = scalar_lea.vmem [#allocation4], 672
    %v2713 = vld [vmem:[%s2712] sm:$0xf]
    %v2714 = vld [vmem:[%s2712 + $0x4] sm:$0xf]
    %v2715 = vld [vmem:[%s2712 + $0x8] sm:$0xf]
    %v2716 = vld [vmem:[%s2712 + $0xc] sm:$0xf]
    %v2717 = vld [vmem:[%s2712 + $0x10] sm:$0xf]
    %v2718 = vld [vmem:[%s2712 + $0x14] sm:$0xf]
    %v2719 = vld [vmem:[%s2712 + $0x18] sm:$0xf]
    %v2720 = vld [vmem:[%s2712 + $0x1c] sm:$0xf]
    %v2729 = vunpack.c.l.b16 %v2713
    %v2730 = vunpack.c.l.b16 %v2714
    %v2731 = vunpack.c.l.b16 %v2715
    %v2732 = vunpack.c.l.b16 %v2716
    %v2733 = vunpack.c.l.b16 %v2717
    %v2734 = vunpack.c.l.b16 %v2718
    %v2735 = vunpack.c.l.b16 %v2719
    %v2736 = vunpack.c.l.b16 %v2720
    %v2737 = vpack.c.b16 %v2730, %v2729
    %v2738 = vpack.c.b16 %v2732, %v2731
    %v2739 = vpack.c.b16 %v2734, %v2733
    %v2740 = vpack.c.b16 %v2736, %v2735
    %v2746 = vsel %vm52, %v2708, 0
    %v2749 = vsel %vm52, %v2709, 0
    %v2752 = vsel %vm52, %v2710, 0
    %v2755 = vsel %vm52, %v2711, 0
    %2757 = vmatprep.subr.bf16.mxu0 0
    %2758 = vmatpush1.bf16.msra.mxu0 %v2737
    %2759 = vmatprep.subr.bf16.mxu0 0
    %2760 = vmatpush1.bf16.msra.mxu0 %v2738
    %2761 = vmatprep.subr.bf16.mxu0 0
    %2762 = vmatpush1.bf16.msra.mxu0 %v2739
    %2763 = vmatprep.subr.bf16.mxu0 0
    %2764 = vmatpush1.bf16.msra.mxu0 %v2740
    %2765 = vmatprep.subr.bf16.mxu0 0
    %2766 = vmatpush1.bf16.msra.mxu0 0
    %2767 = vmatprep.subr.bf16.mxu0 0
    %2768 = vmatpush1.bf16.msra.mxu0 0
    %2769 = vmatprep.subr.bf16.mxu0 0
    %2770 = vmatpush1.bf16.msra.mxu0 0
    %2771 = vmatprep.subr.bf16.mxu0 0
    %2772 = vmatpush1.bf16.msra.mxu0 0
    %2773 = vmatprep.subr.bf16.mxu0 0
    %2774 = vmatpush1.bf16.msra.mxu0 0
    %2775 = vmatprep.subr.bf16.mxu0 0
    %2776 = vmatpush1.bf16.msra.mxu0 0
    %2777 = vmatprep.subr.bf16.mxu0 0
    %2778 = vmatpush1.bf16.msra.mxu0 0
    %2779 = vmatprep.subr.bf16.mxu0 0
    %2780 = vmatpush1.bf16.msra.mxu0 0
    %2781 = vmatprep.subr.bf16.mxu0 0
    %2782 = vmatpush1.bf16.msra.mxu0 0
    %2783 = vmatprep.subr.bf16.mxu0 0
    %2784 = vmatpush1.bf16.msra.mxu0 0
    %2785 = vmatprep.subr.bf16.mxu0 0
    %2786 = vmatpush1.bf16.msra.mxu0 0
    %2787 = vmatprep.subr.bf16.mxu0 0
    %2788 = vmatpush1.bf16.msra.mxu0 0
    %2789 = vmatprep.mubr.bf16.mxu0 0
    %2790 = vmatmul.mubr.bf16.gmra.mrb[0].mxu0 %v2746
    %v2791 = vpop.f32.mrb[0].mxu0
    %v2792 = vadd.f32 0.0, %v2791
    %v2793 = vpop.f32.mrb[0].mxu0
    %v2794 = vpop.f32.mrb[0].mxu0
    %v2795 = vadd.f32 0.0, %v2794
    %v2796 = vpop.f32.mrb[0].mxu0
    %2797 = vmatprep.mubr.bf16.mxu0 0
    %2798 = vmatmul.mubr.bf16.gmra.mrb[0].mxu0 %v2749
    %v2799 = vpop.f32.mrb[0].mxu0
    %v2800 = vpop.f32.mrb[0].mxu0
    %v2801 = vpop.f32.mrb[0].mxu0
    %v2802 = vpop.f32.mrb[0].mxu0
    %2803 = vmatprep.mubr.bf16.mxu0 0
    %2804 = vmatmul.mubr.bf16.gmra.mrb[0].mxu0 %v2752
    %v2805 = vpop.f32.mrb[0].mxu0
    %v2806 = vadd.f32 0.0, %v2805
    %v2807 = vpop.f32.mrb[0].mxu0
    %v2808 = vpop.f32.mrb[0].mxu0
    %v2809 = vadd.f32 0.0, %v2808
    %v2810 = vpop.f32.mrb[0].mxu0
    %2811 = vmatprep.mubr.bf16.mxu0 0
    %2812 = vmatmul.mubr.bf16.gmra.mrb[0].mxu0 %v2755
    %v2813 = vpop.f32.mrb[0].mxu0
    %v2814 = vpop.f32.mrb[0].mxu0
    %v2815 = vpop.f32.mrb[0].mxu0
    %v2816 = vpop.f32.mrb[0].mxu0
    %2817 = vdwg.mxu0
    %v2826 = vunpack.c.l.b16 %v2692
    %v2827 = vunpack.c.l.b16 %v2693
    %v2828 = vunpack.c.l.b16 %v2694
    %v2829 = vunpack.c.l.b16 %v2695
    %v2830 = vunpack.c.l.b16 %v2696
    %v2831 = vunpack.c.l.b16 %v2697
    %v2832 = vunpack.c.l.b16 %v2698
    %v2833 = vunpack.c.l.b16 %v2699
    %v2834 = vpack.c.b16 %v2827, %v2826
    %v2835 = vpack.c.b16 %v2829, %v2828
    %v2836 = vpack.c.b16 %v2831, %v2830
    %v2837 = vpack.c.b16 %v2833, %v2832
    %v2843 = vsel %vm52, %v2687, 0
    %v2846 = vsel %vm52, %v2688, 0
    %v2849 = vsel %vm52, %v2689, 0
    %v2852 = vsel %vm52, %v2690, 0
    %2854 = vmatprep.subr.bf16.mxu0 0
    %2855 = vmatpush1.bf16.msra.mxu0 %v2834
    %2856 = vmatprep.subr.bf16.mxu0 0
    %2857 = vmatpush1.bf16.msra.mxu0 %v2835
    %2858 = vmatprep.subr.bf16.mxu0 0
    %2859 = vmatpush1.bf16.msra.mxu0 %v2836
    %2860 = vmatprep.subr.bf16.mxu0 0
    %2861 = vmatpush1.bf16.msra.mxu0 %v2837
    %2862 = vmatprep.subr.bf16.mxu0 0
    %2863 = vmatpush1.bf16.msra.mxu0 0
    %2864 = vmatprep.subr.bf16.mxu0 0
    %2865 = vmatpush1.bf16.msra.mxu0 0
    %2866 = vmatprep.subr.bf16.mxu0 0
    %2867 = vmatpush1.bf16.msra.mxu0 0
    %2868 = vmatprep.subr.bf16.mxu0 0
    %2869 = vmatpush1.bf16.msra.mxu0 0
    %2870 = vmatprep.subr.bf16.mxu0 0
    %2871 = vmatpush1.bf16.msra.mxu0 0
    %2872 = vmatprep.subr.bf16.mxu0 0
    %2873 = vmatpush1.bf16.msra.mxu0 0
    %2874 = vmatprep.subr.bf16.mxu0 0
    %2875 = vmatpush1.bf16.msra.mxu0 0
    %2876 = vmatprep.subr.bf16.mxu0 0
    %2877 = vmatpush1.bf16.msra.mxu0 0
    %2878 = vmatprep.subr.bf16.mxu0 0
    %2879 = vmatpush1.bf16.msra.mxu0 0
    %2880 = vmatprep.subr.bf16.mxu0 0
    %2881 = vmatpush1.bf16.msra.mxu0 0
    %2882 = vmatprep.subr.bf16.mxu0 0
    %2883 = vmatpush1.bf16.msra.mxu0 0
    %2884 = vmatprep.subr.bf16.mxu0 0
    %2885 = vmatpush1.bf16.msra.mxu0 0
    %2886 = vmatprep.mubr.bf16.mxu0 0
    %2887 = vmatmul.mubr.bf16.gmra.mrb[0].mxu0 %v2843
    %v2888 = vpop.f32.mrb[0].mxu0
    %v2889 = vadd.f32 %v2792, %v2888
    %v2890 = vpop.f32.mrb[0].mxu0
    %v2891 = vpop.f32.mrb[0].mxu0
    %v2892 = vadd.f32 %v2795, %v2891
    %v2893 = vpop.f32.mrb[0].mxu0
    %2894 = vmatprep.mubr.bf16.mxu0 0
    %2895 = vmatmul.mubr.bf16.gmra.mrb[0].mxu0 %v2846
    %v2896 = vpop.f32.mrb[0].mxu0
    %v2897 = vpop.f32.mrb[0].mxu0
    %v2898 = vpop.f32.mrb[0].mxu0
    %v2899 = vpop.f32.mrb[0].mxu0
    %2900 = vmatprep.mubr.bf16.mxu0 0
    %2901 = vmatmul.mubr.bf16.gmra.mrb[0].mxu0 %v2849
    %v2902 = vpop.f32.mrb[0].mxu0
    %v2903 = vadd.f32 %v2806, %v2902
    %v2904 = vpop.f32.mrb[0].mxu0
    %v2905 = vpop.f32.mrb[0].mxu0
    %v2906 = vadd.f32 %v2809, %v2905
    %v2907 = vpop.f32.mrb[0].mxu0
    %2908 = vmatprep.mubr.bf16.mxu0 0
    %2909 = vmatmul.mubr.bf16.gmra.mrb[0].mxu0 %v2852
    %v2910 = vpop.f32.mrb[0].mxu0
    %v2911 = vpop.f32.mrb[0].mxu0
    %v2912 = vpop.f32.mrb[0].mxu0
    %v2913 = vpop.f32.mrb[0].mxu0
    %2914 = vdwg.mxu0
    %v2915 = vld [vmem:[#allocation2 + $0x2] sm:$0xff]
    %v2916 = vld [vmem:[#allocation2 + $0xa] sm:$0xff]
    %v2917 = vld [vmem:[#allocation2 + $0x12] sm:$0xff]
    %v2918 = vld [vmem:[#allocation2 + $0x1a] sm:$0xff]
    %v2919 = vld [vmem:[#allocation2 + $0x22] sm:$0xff]
    %v2920 = vld [vmem:[#allocation2 + $0x2a] sm:$0xff]
    %v2921 = vld [vmem:[#allocation2 + $0x32] sm:$0xff]
    %v2922 = vld [vmem:[#allocation2 + $0x3a] sm:$0xff]
    %v2923 = vpack.c.bf16 %v2916, %v2915
    %v2924 = vpack.c.bf16 %v2918, %v2917
    %v2925 = vpack.c.bf16 %v2920, %v2919
    %v2926 = vpack.c.bf16 %v2922, %v2921
    %s2927 = scalar_lea.vmem [#allocation4], 704
    %v2928 = vld [vmem:[%s2927] sm:$0xf]
    %v2929 = vld [vmem:[%s2927 + $0x4] sm:$0xf]
    %v2930 = vld [vmem:[%s2927 + $0x8] sm:$0xf]
    %v2931 = vld [vmem:[%s2927 + $0xc] sm:$0xf]
    %v2932 = vld [vmem:[%s2927 + $0x10] sm:$0xf]
    %v2933 = vld [vmem:[%s2927 + $0x14] sm:$0xf]
    %v2934 = vld [vmem:[%s2927 + $0x18] sm:$0xf]
    %v2935 = vld [vmem:[%s2927 + $0x1c] sm:$0xf]
    %v2944 = vunpack.c.l.b16 %v2928
    %v2945 = vunpack.c.l.b16 %v2929
    %v2946 = vunpack.c.l.b16 %v2930
    %v2947 = vunpack.c.l.b16 %v2931
    %v2948 = vunpack.c.l.b16 %v2932
    %v2949 = vunpack.c.l.b16 %v2933
    %v2950 = vunpack.c.l.b16 %v2934
    %v2951 = vunpack.c.l.b16 %v2935
    %v2952 = vpack.c.b16 %v2945, %v2944
    %v2953 = vpack.c.b16 %v2947, %v2946
    %v2954 = vpack.c.b16 %v2949, %v2948
    %v2955 = vpack.c.b16 %v2951, %v2950
    %v2961 = vsel %vm52, %v2923, 0
    %v2964 = vsel %vm52, %v2924, 0
    %v2967 = vsel %vm52, %v2925, 0
    %v2970 = vsel %vm52, %v2926, 0
    %2972 = vmatprep.subr.bf16.mxu0 0
    %2973 = vmatpush1.bf16.msra.mxu0 %v2952
    %2974 = vmatprep.subr.bf16.mxu0 0
    %2975 = vmatpush1.bf16.msra.mxu0 %v2953
    %2976 = vmatprep.subr.bf16.mxu0 0
    %2977 = vmatpush1.bf16.msra.mxu0 %v2954
    %2978 = vmatprep.subr.bf16.mxu0 0
    %2979 = vmatpush1.bf16.msra.mxu0 %v2955
    %2980 = vmatprep.subr.bf16.mxu0 0
    %2981 = vmatpush1.bf16.msra.mxu0 0
    %2982 = vmatprep.subr.bf16.mxu0 0
    %2983 = vmatpush1.bf16.msra.mxu0 0
    %2984 = vmatprep.subr.bf16.mxu0 0
    %2985 = vmatpush1.bf16.msra.mxu0 0
    %2986 = vmatprep.subr.bf16.mxu0 0
    %2987 = vmatpush1.bf16.msra.mxu0 0
    %2988 = vmatprep.subr.bf16.mxu0 0
    %2989 = vmatpush1.bf16.msra.mxu0 0
    %2990 = vmatprep.subr.bf16.mxu0 0
    %2991 = vmatpush1.bf16.msra.mxu0 0
    %2992 = vmatprep.subr.bf16.mxu0 0
    %2993 = vmatpush1.bf16.msra.mxu0 0
    %2994 = vmatprep.subr.bf16.mxu0 0
    %2995 = vmatpush1.bf16.msra.mxu0 0
    %2996 = vmatprep.subr.bf16.mxu0 0
    %2997 = vmatpush1.bf16.msra.mxu0 0
    %2998 = vmatprep.subr.bf16.mxu0 0
    %2999 = vmatpush1.bf16.msra.mxu0 0
    %3000 = vmatprep.subr.bf16.mxu0 0
    %3001 = vmatpush1.bf16.msra.mxu0 0
    %3002 = vmatprep.subr.bf16.mxu0 0
    %3003 = vmatpush1.bf16.msra.mxu0 0
    %3004 = vmatprep.mubr.bf16.mxu0 0
    %3005 = vmatmul.mubr.bf16.gmra.mrb[0].mxu0 %v2961
    %v3006 = vpop.f32.mrb[0].mxu0
    %v3007 = vadd.f32 0.0, %v3006
    %v3008 = vpop.f32.mrb[0].mxu0
    %v3009 = vpop.f32.mrb[0].mxu0
    %v3010 = vadd.f32 0.0, %v3009
    %v3011 = vpop.f32.mrb[0].mxu0
    %3012 = vmatprep.mubr.bf16.mxu0 0
    %3013 = vmatmul.mubr.bf16.gmra.mrb[0].mxu0 %v2964
    %v3014 = vpop.f32.mrb[0].mxu0
    %v3015 = vpop.f32.mrb[0].mxu0
    %v3016 = vpop.f32.mrb[0].mxu0
    %v3017 = vpop.f32.mrb[0].mxu0
    %3018 = vmatprep.mubr.bf16.mxu0 0
    %3019 = vmatmul.mubr.bf16.gmra.mrb[0].mxu0 %v2967
    %v3020 = vpop.f32.mrb[0].mxu0
    %v3021 = vadd.f32 0.0, %v3020
    %v3022 = vpop.f32.mrb[0].mxu0
    %v3023 = vpop.f32.mrb[0].mxu0
    %v3024 = vadd.f32 0.0, %v3023
    %v3025 = vpop.f32.mrb[0].mxu0
    %3026 = vmatprep.mubr.bf16.mxu0 0
    %3027 = vmatmul.mubr.bf16.gmra.mrb[0].mxu0 %v2970
    %v3028 = vpop.f32.mrb[0].mxu0
    %v3029 = vpop.f32.mrb[0].mxu0
    %v3030 = vpop.f32.mrb[0].mxu0
    %v3031 = vpop.f32.mrb[0].mxu0
    %3032 = vdwg.mxu0
    %v3033 = vadd.f32 %v2889, %v3007
    %v3034 = vadd.f32 %v2892, %v3010
    %v3035 = vadd.f32 %v2903, %v3021
    %v3036 = vadd.f32 %v2906, %v3024
    %v3037 = vld [vmem:[#allocation2 + $0x3] sm:$0xff]
    %v3038 = vld [vmem:[#allocation2 + $0xb] sm:$0xff]
    %v3039 = vld [vmem:[#allocation2 + $0x13] sm:$0xff]
    %v3040 = vld [vmem:[#allocation2 + $0x1b] sm:$0xff]
    %v3041 = vld [vmem:[#allocation2 + $0x23] sm:$0xff]
    %v3042 = vld [vmem:[#allocation2 + $0x2b] sm:$0xff]
    %v3043 = vld [vmem:[#allocation2 + $0x33] sm:$0xff]
    %v3044 = vld [vmem:[#allocation2 + $0x3b] sm:$0xff]
    %v3045 = vpack.c.bf16 %v3038, %v3037
    %v3046 = vpack.c.bf16 %v3040, %v3039
    %v3047 = vpack.c.bf16 %v3042, %v3041
    %v3048 = vpack.c.bf16 %v3044, %v3043
    %s3049 = scalar_lea.vmem [#allocation4], 736
    %v3050 = vld [vmem:[%s3049] sm:$0xf]
    %v3051 = vld [vmem:[%s3049 + $0x4] sm:$0xf]
    %v3052 = vld [vmem:[%s3049 + $0x8] sm:$0xf]
    %v3053 = vld [vmem:[%s3049 + $0xc] sm:$0xf]
    %v3054 = vld [vmem:[%s3049 + $0x10] sm:$0xf]
    %v3055 = vld [vmem:[%s3049 + $0x14] sm:$0xf]
    %v3056 = vld [vmem:[%s3049 + $0x18] sm:$0xf]
    %v3057 = vld [vmem:[%s3049 + $0x1c] sm:$0xf]
    %v3066 = vunpack.c.l.b16 %v3050
    %v3067 = vunpack.c.l.b16 %v3051
    %v3068 = vunpack.c.l.b16 %v3052
    %v3069 = vunpack.c.l.b16 %v3053
    %v3070 = vunpack.c.l.b16 %v3054
    %v3071 = vunpack.c.l.b16 %v3055
    %v3072 = vunpack.c.l.b16 %v3056
    %v3073 = vunpack.c.l.b16 %v3057
    %v3074 = vpack.c.b16 %v3067, %v3066
    %v3075 = vpack.c.b16 %v3069, %v3068
    %v3076 = vpack.c.b16 %v3071, %v3070
    %v3077 = vpack.c.b16 %v3073, %v3072
    %v3083 = vsel %vm52, %v3045, 0
    %v3086 = vsel %vm52, %v3046, 0
    %v3089 = vsel %vm52, %v3047, 0
    %v3092 = vsel %vm52, %v3048, 0
    %3094 = vmatprep.subr.bf16.mxu0 0
    %3095 = vmatpush1.bf16.msra.mxu0 %v3074
    %3096 = vmatprep.subr.bf16.mxu0 0
    %3097 = vmatpush1.bf16.msra.mxu0 %v3075
    %3098 = vmatprep.subr.bf16.mxu0 0
    %3099 = vmatpush1.bf16.msra.mxu0 %v3076
    %3100 = vmatprep.subr.bf16.mxu0 0
    %3101 = vmatpush1.bf16.msra.mxu0 %v3077
    %3102 = vmatprep.subr.bf16.mxu0 0
    %3103 = vmatpush1.bf16.msra.mxu0 0
    %3104 = vmatprep.subr.bf16.mxu0 0
    %3105 = vmatpush1.bf16.msra.mxu0 0
    %3106 = vmatprep.subr.bf16.mxu0 0
    %3107 = vmatpush1.bf16.msra.mxu0 0
    %3108 = vmatprep.subr.bf16.mxu0 0
    %3109 = vmatpush1.bf16.msra.mxu0 0
    %3110 = vmatprep.subr.bf16.mxu0 0
    %3111 = vmatpush1.bf16.msra.mxu0 0
    %3112 = vmatprep.subr.bf16.mxu0 0
    %3113 = vmatpush1.bf16.msra.mxu0 0
    %3114 = vmatprep.subr.bf16.mxu0 0
    %3115 = vmatpush1.bf16.msra.mxu0 0
    %3116 = vmatprep.subr.bf16.mxu0 0
    %3117 = vmatpush1.bf16.msra.mxu0 0
    %3118 = vmatprep.subr.bf16.mxu0 0
    %3119 = vmatpush1.bf16.msra.mxu0 0
    %3120 = vmatprep.subr.bf16.mxu0 0
    %3121 = vmatpush1.bf16.msra.mxu0 0
    %3122 = vmatprep.subr.bf16.mxu0 0
    %3123 = vmatpush1.bf16.msra.mxu0 0
    %3124 = vmatprep.subr.bf16.mxu0 0
    %3125 = vmatpush1.bf16.msra.mxu0 0
    %3126 = vmatprep.mubr.bf16.mxu0 0
    %3127 = vmatmul.mubr.bf16.gmra.mrb[0].mxu0 %v3083
    %v3128 = vpop.f32.mrb[0].mxu0
    %v3129 = vadd.f32 0.0, %v3128
    %v3130 = vpop.f32.mrb[0].mxu0
    %v3131 = vpop.f32.mrb[0].mxu0
    %v3132 = vadd.f32 0.0, %v3131
    %v3133 = vpop.f32.mrb[0].mxu0
    %3134 = vmatprep.mubr.bf16.mxu0 0
    %3135 = vmatmul.mubr.bf16.gmra.mrb[0].mxu0 %v3086
    %v3136 = vpop.f32.mrb[0].mxu0
    %v3137 = vpop.f32.mrb[0].mxu0
    %v3138 = vpop.f32.mrb[0].mxu0
    %v3139 = vpop.f32.mrb[0].mxu0
    %3140 = vmatprep.mubr.bf16.mxu0 0
    %3141 = vmatmul.mubr.bf16.gmra.mrb[0].mxu0 %v3089
    %v3142 = vpop.f32.mrb[0].mxu0
    %v3143 = vadd.f32 0.0, %v3142
    %v3144 = vpop.f32.mrb[0].mxu0
    %v3145 = vpop.f32.mrb[0].mxu0
    %v3146 = vadd.f32 0.0, %v3145
    %v3147 = vpop.f32.mrb[0].mxu0
    %3148 = vmatprep.mubr.bf16.mxu0 0
    %3149 = vmatmul.mubr.bf16.gmra.mrb[0].mxu0 %v3092
    %v3150 = vpop.f32.mrb[0].mxu0
    %v3151 = vpop.f32.mrb[0].mxu0
    %v3152 = vpop.f32.mrb[0].mxu0
    %v3153 = vpop.f32.mrb[0].mxu0
    %3154 = vdwg.mxu0
    %v3155 = vadd.f32 %v3033, %v3129
    %v3156 = vadd.f32 %v3034, %v3132
    %v3157 = vadd.f32 %v3035, %v3143
    %v3158 = vadd.f32 %v3036, %v3146
    %v3159 = vpack.c.bf16 %v2672, %v2671
    %v3160 = vpack.c.bf16 %v2674, %v2673
    %v3161 = vpack.c.bf16 %v2676, %v2675
    %v3162 = vpack.c.bf16 %v2678, %v2677
    %s3163 = scalar_lea.vmem [#allocation4], 768
    %v3164 = vld [vmem:[%s3163] sm:$0xf]
    %v3165 = vld [vmem:[%s3163 + $0x4] sm:$0xf]
    %v3166 = vld [vmem:[%s3163 + $0x8] sm:$0xf]
    %v3167 = vld [vmem:[%s3163 + $0xc] sm:$0xf]
    %v3168 = vld [vmem:[%s3163 + $0x10] sm:$0xf]
    %v3169 = vld [vmem:[%s3163 + $0x14] sm:$0xf]
    %v3170 = vld [vmem:[%s3163 + $0x18] sm:$0xf]
    %v3171 = vld [vmem:[%s3163 + $0x1c] sm:$0xf]
    %v3180 = vunpack.c.l.b16 %v3164
    %v3181 = vunpack.c.l.b16 %v3165
    %v3182 = vunpack.c.l.b16 %v3166
    %v3183 = vunpack.c.l.b16 %v3167
    %v3184 = vunpack.c.l.b16 %v3168
    %v3185 = vunpack.c.l.b16 %v3169
    %v3186 = vunpack.c.l.b16 %v3170
    %v3187 = vunpack.c.l.b16 %v3171
    %v3188 = vpack.c.b16 %v3181, %v3180
    %v3189 = vpack.c.b16 %v3183, %v3182
    %v3190 = vpack.c.b16 %v3185, %v3184
    %v3191 = vpack.c.b16 %v3187, %v3186
    %v3197 = vsel %vm52, %v3159, 0
    %v3200 = vsel %vm52, %v3160, 0
    %v3203 = vsel %vm52, %v3161, 0
    %v3206 = vsel %vm52, %v3162, 0
    %3208 = vmatprep.subr.bf16.mxu0 0
    %3209 = vmatpush1.bf16.msra.mxu0 %v3188
    %3210 = vmatprep.subr.bf16.mxu0 0
    %3211 = vmatpush1.bf16.msra.mxu0 %v3189
    %3212 = vmatprep.subr.bf16.mxu0 0
    %3213 = vmatpush1.bf16.msra.mxu0 %v3190
    %3214 = vmatprep.subr.bf16.mxu0 0
    %3215 = vmatpush1.bf16.msra.mxu0 %v3191
    %3216 = vmatprep.subr.bf16.mxu0 0
    %3217 = vmatpush1.bf16.msra.mxu0 0
    %3218 = vmatprep.subr.bf16.mxu0 0
    %3219 = vmatpush1.bf16.msra.mxu0 0
    %3220 = vmatprep.subr.bf16.mxu0 0
    %3221 = vmatpush1.bf16.msra.mxu0 0
    %3222 = vmatprep.subr.bf16.mxu0 0
    %3223 = vmatpush1.bf16.msra.mxu0 0
    %3224 = vmatprep.subr.bf16.mxu0 0
    %3225 = vmatpush1.bf16.msra.mxu0 0
    %3226 = vmatprep.subr.bf16.mxu0 0
    %3227 = vmatpush1.bf16.msra.mxu0 0
    %3228 = vmatprep.subr.bf16.mxu0 0
    %3229 = vmatpush1.bf16.msra.mxu0 0
    %3230 = vmatprep.subr.bf16.mxu0 0
    %3231 = vmatpush1.bf16.msra.mxu0 0
    %3232 = vmatprep.subr.bf16.mxu0 0
    %3233 = vmatpush1.bf16.msra.mxu0 0
    %3234 = vmatprep.subr.bf16.mxu0 0
    %3235 = vmatpush1.bf16.msra.mxu0 0
    %3236 = vmatprep.subr.bf16.mxu0 0
    %3237 = vmatpush1.bf16.msra.mxu0 0
    %3238 = vmatprep.subr.bf16.mxu0 0
    %3239 = vmatpush1.bf16.msra.mxu0 0
    %3240 = vmatprep.mubr.bf16.mxu0 0
    %3241 = vmatmul.mubr.bf16.gmra.mrb[0].mxu0 %v3197
    %v3242 = vpop.f32.mrb[0].mxu0
    %v3243 = vadd.f32 0.0, %v3242
    %v3244 = vpop.f32.mrb[0].mxu0
    %v3245 = vpop.f32.mrb[0].mxu0
    %v3246 = vadd.f32 0.0, %v3245
    %v3247 = vpop.f32.mrb[0].mxu0
    %3248 = vmatprep.mubr.bf16.mxu0 0
    %3249 = vmatmul.mubr.bf16.gmra.mrb[0].mxu0 %v3200
    %v3250 = vpop.f32.mrb[0].mxu0
    %v3251 = vpop.f32.mrb[0].mxu0
    %v3252 = vpop.f32.mrb[0].mxu0
    %v3253 = vpop.f32.mrb[0].mxu0
    %3254 = vmatprep.mubr.bf16.mxu0 0
    %3255 = vmatmul.mubr.bf16.gmra.mrb[0].mxu0 %v3203
    %v3256 = vpop.f32.mrb[0].mxu0
    %v3257 = vadd.f32 0.0, %v3256
    %v3258 = vpop.f32.mrb[0].mxu0
    %v3259 = vpop.f32.mrb[0].mxu0
    %v3260 = vadd.f32 0.0, %v3259
    %v3261 = vpop.f32.mrb[0].mxu0
    %3262 = vmatprep.mubr.bf16.mxu0 0
    %3263 = vmatmul.mubr.bf16.gmra.mrb[0].mxu0 %v3206
    %v3264 = vpop.f32.mrb[0].mxu0
    %v3265 = vpop.f32.mrb[0].mxu0
    %v3266 = vpop.f32.mrb[0].mxu0
    %v3267 = vpop.f32.mrb[0].mxu0
    %3268 = vdwg.mxu0
    %v3269 = vadd.f32 %v3155, %v3243
    %v3270 = vadd.f32 %v3156, %v3246
    %v3271 = vadd.f32 %v3157, %v3257
    %v3272 = vadd.f32 %v3158, %v3260
    %v3273 = vld [vmem:[#allocation2 + $0x5] sm:$0xff]
    %v3274 = vld [vmem:[#allocation2 + $0xd] sm:$0xff]
    %v3275 = vld [vmem:[#allocation2 + $0x15] sm:$0xff]
    %v3276 = vld [vmem:[#allocation2 + $0x1d] sm:$0xff]
    %v3277 = vld [vmem:[#allocation2 + $0x25] sm:$0xff]
    %v3278 = vld [vmem:[#allocation2 + $0x2d] sm:$0xff]
    %v3279 = vld [vmem:[#allocation2 + $0x35] sm:$0xff]
    %v3280 = vld [vmem:[#allocation2 + $0x3d] sm:$0xff]
    %v3281 = vpack.c.bf16 %v3274, %v3273
    %v3282 = vpack.c.bf16 %v3276, %v3275
    %v3283 = vpack.c.bf16 %v3278, %v3277
    %v3284 = vpack.c.bf16 %v3280, %v3279
    %s3285 = scalar_lea.vmem [#allocation4], 800
    %v3286 = vld [vmem:[%s3285] sm:$0xf]
    %v3287 = vld [vmem:[%s3285 + $0x4] sm:$0xf]
    %v3288 = vld [vmem:[%s3285 + $0x8] sm:$0xf]
    %v3289 = vld [vmem:[%s3285 + $0xc] sm:$0xf]
    %v3290 = vld [vmem:[%s3285 + $0x10] sm:$0xf]
    %v3291 = vld [vmem:[%s3285 + $0x14] sm:$0xf]
    %v3292 = vld [vmem:[%s3285 + $0x18] sm:$0xf]
    %v3293 = vld [vmem:[%s3285 + $0x1c] sm:$0xf]
    %v3302 = vunpack.c.l.b16 %v3286
    %v3303 = vunpack.c.l.b16 %v3287
    %v3304 = vunpack.c.l.b16 %v3288
    %v3305 = vunpack.c.l.b16 %v3289
    %v3306 = vunpack.c.l.b16 %v3290
    %v3307 = vunpack.c.l.b16 %v3291
    %v3308 = vunpack.c.l.b16 %v3292
    %v3309 = vunpack.c.l.b16 %v3293
    %v3310 = vpack.c.b16 %v3303, %v3302
    %v3311 = vpack.c.b16 %v3305, %v3304
    %v3312 = vpack.c.b16 %v3307, %v3306
    %v3313 = vpack.c.b16 %v3309, %v3308
    %v3319 = vsel %vm52, %v3281, 0
    %v3322 = vsel %vm52, %v3282, 0
    %v3325 = vsel %vm52, %v3283, 0
    %v3328 = vsel %vm52, %v3284, 0
    %3330 = vmatprep.subr.bf16.mxu0 0
    %3331 = vmatpush1.bf16.msra.mxu0 %v3310
    %3332 = vmatprep.subr.bf16.mxu0 0
    %3333 = vmatpush1.bf16.msra.mxu0 %v3311
    %3334 = vmatprep.subr.bf16.mxu0 0
    %3335 = vmatpush1.bf16.msra.mxu0 %v3312
    %3336 = vmatprep.subr.bf16.mxu0 0
    %3337 = vmatpush1.bf16.msra.mxu0 %v3313
    %3338 = vmatprep.subr.bf16.mxu0 0
    %3339 = vmatpush1.bf16.msra.mxu0 0
    %3340 = vmatprep.subr.bf16.mxu0 0
    %3341 = vmatpush1.bf16.msra.mxu0 0
    %3342 = vmatprep.subr.bf16.mxu0 0
    %3343 = vmatpush1.bf16.msra.mxu0 0
    %3344 = vmatprep.subr.bf16.mxu0 0
    %3345 = vmatpush1.bf16.msra.mxu0 0
    %3346 = vmatprep.subr.bf16.mxu0 0
    %3347 = vmatpush1.bf16.msra.mxu0 0
    %3348 = vmatprep.subr.bf16.mxu0 0
    %3349 = vmatpush1.bf16.msra.mxu0 0
    %3350 = vmatprep.subr.bf16.mxu0 0
    %3351 = vmatpush1.bf16.msra.mxu0 0
    %3352 = vmatprep.subr.bf16.mxu0 0
    %3353 = vmatpush1.bf16.msra.mxu0 0
    %3354 = vmatprep.subr.bf16.mxu0 0
    %3355 = vmatpush1.bf16.msra.mxu0 0
    %3356 = vmatprep.subr.bf16.mxu0 0
    %3357 = vmatpush1.bf16.msra.mxu0 0
    %3358 = vmatprep.subr.bf16.mxu0 0
    %3359 = vmatpush1.bf16.msra.mxu0 0
    %3360 = vmatprep.subr.bf16.mxu0 0
    %3361 = vmatpush1.bf16.msra.mxu0 0
    %3362 = vmatprep.mubr.bf16.mxu0 0
    %3363 = vmatmul.mubr.bf16.gmra.mrb[0].mxu0 %v3319
    %v3364 = vpop.f32.mrb[0].mxu0
    %v3365 = vadd.f32 0.0, %v3364
    %v3366 = vpop.f32.mrb[0].mxu0
    %v3367 = vpop.f32.mrb[0].mxu0
    %v3368 = vadd.f32 0.0, %v3367
    %v3369 = vpop.f32.mrb[0].mxu0
    %3370 = vmatprep.mubr.bf16.mxu0 0
    %3371 = vmatmul.mubr.bf16.gmra.mrb[0].mxu0 %v3322
    %v3372 = vpop.f32.mrb[0].mxu0
    %v3373 = vpop.f32.mrb[0].mxu0
    %v3374 = vpop.f32.mrb[0].mxu0
    %v3375 = vpop.f32.mrb[0].mxu0
    %3376 = vmatprep.mubr.bf16.mxu0 0
    %3377 = vmatmul.mubr.bf16.gmra.mrb[0].mxu0 %v3325
    %v3378 = vpop.f32.mrb[0].mxu0
    %v3379 = vadd.f32 0.0, %v3378
    %v3380 = vpop.f32.mrb[0].mxu0
    %v3381 = vpop.f32.mrb[0].mxu0
    %v3382 = vadd.f32 0.0, %v3381
    %v3383 = vpop.f32.mrb[0].mxu0
    %3384 = vmatprep.mubr.bf16.mxu0 0
    %3385 = vmatmul.mubr.bf16.gmra.mrb[0].mxu0 %v3328
    %v3386 = vpop.f32.mrb[0].mxu0
    %v3387 = vpop.f32.mrb[0].mxu0
    %v3388 = vpop.f32.mrb[0].mxu0
    %v3389 = vpop.f32.mrb[0].mxu0
    %3390 = vdwg.mxu0
    %v3391 = vadd.f32 %v3269, %v3365
    %v3392 = vadd.f32 %v3270, %v3368
    %v3393 = vadd.f32 %v3271, %v3379
    %v3394 = vadd.f32 %v3272, %v3382
    %v3395 = vld [vmem:[#allocation2 + $0x6] sm:$0xff]
    %v3396 = vld [vmem:[#allocation2 + $0xe] sm:$0xff]
    %v3397 = vld [vmem:[#allocation2 + $0x16] sm:$0xff]
    %v3398 = vld [vmem:[#allocation2 + $0x1e] sm:$0xff]
    %v3399 = vld [vmem:[#allocation2 + $0x26] sm:$0xff]
    %v3400 = vld [vmem:[#allocation2 + $0x2e] sm:$0xff]
    %v3401 = vld [vmem:[#allocation2 + $0x36] sm:$0xff]
    %v3402 = vld [vmem:[#allocation2 + $0x3e] sm:$0xff]
    %v3403 = vpack.c.bf16 %v3396, %v3395
    %v3404 = vpack.c.bf16 %v3398, %v3397
    %v3405 = vpack.c.bf16 %v3400, %v3399
    %v3406 = vpack.c.bf16 %v3402, %v3401
    %s3407 = scalar_lea.vmem [#allocation4], 832
    %v3408 = vld [vmem:[%s3407] sm:$0xf]
    %v3409 = vld [vmem:[%s3407 + $0x4] sm:$0xf]
    %v3410 = vld [vmem:[%s3407 + $0x8] sm:$0xf]
    %v3411 = vld [vmem:[%s3407 + $0xc] sm:$0xf]
    %v3412 = vld [vmem:[%s3407 + $0x10] sm:$0xf]
    %v3413 = vld [vmem:[%s3407 + $0x14] sm:$0xf]
    %v3414 = vld [vmem:[%s3407 + $0x18] sm:$0xf]
    %v3415 = vld [vmem:[%s3407 + $0x1c] sm:$0xf]
    %v3424 = vunpack.c.l.b16 %v3408
    %v3425 = vunpack.c.l.b16 %v3409
    %v3426 = vunpack.c.l.b16 %v3410
    %v3427 = vunpack.c.l.b16 %v3411
    %v3428 = vunpack.c.l.b16 %v3412
    %v3429 = vunpack.c.l.b16 %v3413
    %v3430 = vunpack.c.l.b16 %v3414
    %v3431 = vunpack.c.l.b16 %v3415
    %v3432 = vpack.c.b16 %v3425, %v3424
    %v3433 = vpack.c.b16 %v3427, %v3426
    %v3434 = vpack.c.b16 %v3429, %v3428
    %v3435 = vpack.c.b16 %v3431, %v3430
    %v3441 = vsel %vm52, %v3403, 0
    %v3444 = vsel %vm52, %v3404, 0
    %v3447 = vsel %vm52, %v3405, 0
    %v3450 = vsel %vm52, %v3406, 0
    %3452 = vmatprep.subr.bf16.mxu0 0
    %3453 = vmatpush1.bf16.msra.mxu0 %v3432
    %3454 = vmatprep.subr.bf16.mxu0 0
    %3455 = vmatpush1.bf16.msra.mxu0 %v3433
    %3456 = vmatprep.subr.bf16.mxu0 0
    %3457 = vmatpush1.bf16.msra.mxu0 %v3434
    %3458 = vmatprep.subr.bf16.mxu0 0
    %3459 = vmatpush1.bf16.msra.mxu0 %v3435
    %3460 = vmatprep.subr.bf16.mxu0 0
    %3461 = vmatpush1.bf16.msra.mxu0 0
    %3462 = vmatprep.subr.bf16.mxu0 0
    %3463 = vmatpush1.bf16.msra.mxu0 0
    %3464 = vmatprep.subr.bf16.mxu0 0
    %3465 = vmatpush1.bf16.msra.mxu0 0
    %3466 = vmatprep.subr.bf16.mxu0 0
    %3467 = vmatpush1.bf16.msra.mxu0 0
    %3468 = vmatprep.subr.bf16.mxu0 0
    %3469 = vmatpush1.bf16.msra.mxu0 0
    %3470 = vmatprep.subr.bf16.mxu0 0
    %3471 = vmatpush1.bf16.msra.mxu0 0
    %3472 = vmatprep.subr.bf16.mxu0 0
    %3473 = vmatpush1.bf16.msra.mxu0 0
    %3474 = vmatprep.subr.bf16.mxu0 0
    %3475 = vmatpush1.bf16.msra.mxu0 0
    %3476 = vmatprep.subr.bf16.mxu0 0
    %3477 = vmatpush1.bf16.msra.mxu0 0
    %3478 = vmatprep.subr.bf16.mxu0 0
    %3479 = vmatpush1.bf16.msra.mxu0 0
    %3480 = vmatprep.subr.bf16.mxu0 0
    %3481 = vmatpush1.bf16.msra.mxu0 0
    %3482 = vmatprep.subr.bf16.mxu0 0
    %3483 = vmatpush1.bf16.msra.mxu0 0
    %3484 = vmatprep.mubr.bf16.mxu0 0
    %3485 = vmatmul.mubr.bf16.gmra.mrb[0].mxu0 %v3441
    %v3486 = vpop.f32.mrb[0].mxu0
    %v3487 = vadd.f32 0.0, %v3486
    %v3488 = vpop.f32.mrb[0].mxu0
    %v3489 = vpop.f32.mrb[0].mxu0
    %v3490 = vadd.f32 0.0, %v3489
    %v3491 = vpop.f32.mrb[0].mxu0
    %3492 = vmatprep.mubr.bf16.mxu0 0
    %3493 = vmatmul.mubr.bf16.gmra.mrb[0].mxu0 %v3444
    %v3494 = vpop.f32.mrb[0].mxu0
    %v3495 = vpop.f32.mrb[0].mxu0
    %v3496 = vpop.f32.mrb[0].mxu0
    %v3497 = vpop.f32.mrb[0].mxu0
    %3498 = vmatprep.mubr.bf16.mxu0 0
    %3499 = vmatmul.mubr.bf16.gmra.mrb[0].mxu0 %v3447
    %v3500 = vpop.f32.mrb[0].mxu0
    %v3501 = vadd.f32 0.0, %v3500
    %v3502 = vpop.f32.mrb[0].mxu0
    %v3503 = vpop.f32.mrb[0].mxu0
    %v3504 = vadd.f32 0.0, %v3503
    %v3505 = vpop.f32.mrb[0].mxu0
    %3506 = vmatprep.mubr.bf16.mxu0 0
    %3507 = vmatmul.mubr.bf16.gmra.mrb[0].mxu0 %v3450
    %v3508 = vpop.f32.mrb[0].mxu0
    %v3509 = vpop.f32.mrb[0].mxu0
    %v3510 = vpop.f32.mrb[0].mxu0
    %v3511 = vpop.f32.mrb[0].mxu0
    %3512 = vdwg.mxu0
    %v3513 = vadd.f32 %v3391, %v3487
    %v3514 = vadd.f32 %v3392, %v3490
    %v3515 = vadd.f32 %v3393, %v3501
    %v3516 = vadd.f32 %v3394, %v3504
    %v3517 = vld [vmem:[#allocation2 + $0x7] sm:$0xff]
    %v3518 = vld [vmem:[#allocation2 + $0xf] sm:$0xff]
    %v3519 = vld [vmem:[#allocation2 + $0x17] sm:$0xff]
    %v3520 = vld [vmem:[#allocation2 + $0x1f] sm:$0xff]
    %v3521 = vld [vmem:[#allocation2 + $0x27] sm:$0xff]
    %v3522 = vld [vmem:[#allocation2 + $0x2f] sm:$0xff]
    %v3523 = vld [vmem:[#allocation2 + $0x37] sm:$0xff]
    %v3524 = vld [vmem:[#allocation2 + $0x3f] sm:$0xff]
    %v3525 = vpack.c.bf16 %v3518, %v3517
    %v3526 = vpack.c.bf16 %v3520, %v3519
    %v3527 = vpack.c.bf16 %v3522, %v3521
    %v3528 = vpack.c.bf16 %v3524, %v3523
    %s3529 = scalar_lea.vmem [#allocation4], 864
    %v3530 = vld [vmem:[%s3529] sm:$0xf]
    %v3531 = vld [vmem:[%s3529 + $0x4] sm:$0xf]
    %v3532 = vld [vmem:[%s3529 + $0x8] sm:$0xf]
    %v3533 = vld [vmem:[%s3529 + $0xc] sm:$0xf]
    %v3534 = vld [vmem:[%s3529 + $0x10] sm:$0xf]
    %v3535 = vld [vmem:[%s3529 + $0x14] sm:$0xf]
    %v3536 = vld [vmem:[%s3529 + $0x18] sm:$0xf]
    %v3537 = vld [vmem:[%s3529 + $0x1c] sm:$0xf]
    %v3546 = vunpack.c.l.b16 %v3530
    %v3547 = vunpack.c.l.b16 %v3531
    %v3548 = vunpack.c.l.b16 %v3532
    %v3549 = vunpack.c.l.b16 %v3533
    %v3550 = vunpack.c.l.b16 %v3534
    %v3551 = vunpack.c.l.b16 %v3535
    %v3552 = vunpack.c.l.b16 %v3536
    %v3553 = vunpack.c.l.b16 %v3537
    %v3554 = vpack.c.b16 %v3547, %v3546
    %v3555 = vpack.c.b16 %v3549, %v3548
    %v3556 = vpack.c.b16 %v3551, %v3550
    %v3557 = vpack.c.b16 %v3553, %v3552
    %v3563 = vsel %vm52, %v3525, 0
    %v3566 = vsel %vm52, %v3526, 0
    %v3569 = vsel %vm52, %v3527, 0
    %v3572 = vsel %vm52, %v3528, 0
    %3574 = vmatprep.subr.bf16.mxu0 0
    %3575 = vmatpush1.bf16.msra.mxu0 %v3554
    %3576 = vmatprep.subr.bf16.mxu0 0
    %3577 = vmatpush1.bf16.msra.mxu0 %v3555
    %3578 = vmatprep.subr.bf16.mxu0 0
    %3579 = vmatpush1.bf16.msra.mxu0 %v3556
    %3580 = vmatprep.subr.bf16.mxu0 0
    %3581 = vmatpush1.bf16.msra.mxu0 %v3557
    %3582 = vmatprep.subr.bf16.mxu0 0
    %3583 = vmatpush1.bf16.msra.mxu0 0
    %3584 = vmatprep.subr.bf16.mxu0 0
    %3585 = vmatpush1.bf16.msra.mxu0 0
    %3586 = vmatprep.subr.bf16.mxu0 0
    %3587 = vmatpush1.bf16.msra.mxu0 0
    %3588 = vmatprep.subr.bf16.mxu0 0
    %3589 = vmatpush1.bf16.msra.mxu0 0
    %3590 = vmatprep.subr.bf16.mxu0 0
    %3591 = vmatpush1.bf16.msra.mxu0 0
    %3592 = vmatprep.subr.bf16.mxu0 0
    %3593 = vmatpush1.bf16.msra.mxu0 0
    %3594 = vmatprep.subr.bf16.mxu0 0
    %3595 = vmatpush1.bf16.msra.mxu0 0
    %3596 = vmatprep.subr.bf16.mxu0 0
    %3597 = vmatpush1.bf16.msra.mxu0 0
    %3598 = vmatprep.subr.bf16.mxu0 0
    %3599 = vmatpush1.bf16.msra.mxu0 0
    %3600 = vmatprep.subr.bf16.mxu0 0
    %3601 = vmatpush1.bf16.msra.mxu0 0
    %3602 = vmatprep.subr.bf16.mxu0 0
    %3603 = vmatpush1.bf16.msra.mxu0 0
    %3604 = vmatprep.subr.bf16.mxu0 0
    %3605 = vmatpush1.bf16.msra.mxu0 0
    %3606 = vmatprep.mubr.bf16.mxu0 0
    %3607 = vmatmul.mubr.bf16.gmra.mrb[0].mxu0 %v3563
    %v3608 = vpop.f32.mrb[0].mxu0
    %v3609 = vadd.f32 0.0, %v3608
    %v3610 = vpop.f32.mrb[0].mxu0
    %v3611 = vpop.f32.mrb[0].mxu0
    %v3612 = vadd.f32 0.0, %v3611
    %v3613 = vpop.f32.mrb[0].mxu0
    %3614 = vmatprep.mubr.bf16.mxu0 0
    %3615 = vmatmul.mubr.bf16.gmra.mrb[0].mxu0 %v3566
    %v3616 = vpop.f32.mrb[0].mxu0
    %v3617 = vpop.f32.mrb[0].mxu0
    %v3618 = vpop.f32.mrb[0].mxu0
    %v3619 = vpop.f32.mrb[0].mxu0
    %3620 = vmatprep.mubr.bf16.mxu0 0
    %3621 = vmatmul.mubr.bf16.gmra.mrb[0].mxu0 %v3569
    %v3622 = vpop.f32.mrb[0].mxu0
    %v3623 = vadd.f32 0.0, %v3622
    %v3624 = vpop.f32.mrb[0].mxu0
    %v3625 = vpop.f32.mrb[0].mxu0
    %v3626 = vadd.f32 0.0, %v3625
    %v3627 = vpop.f32.mrb[0].mxu0
    %3628 = vmatprep.mubr.bf16.mxu0 0
    %3629 = vmatmul.mubr.bf16.gmra.mrb[0].mxu0 %v3572
    %v3630 = vpop.f32.mrb[0].mxu0
    %v3631 = vpop.f32.mrb[0].mxu0
    %v3632 = vpop.f32.mrb[0].mxu0
    %v3633 = vpop.f32.mrb[0].mxu0
    %3634 = vdwg.mxu0
    %v3635 = vadd.f32 %v3513, %v3609
    %v3636 = vadd.f32 %v3514, %v3612
    %v3637 = vadd.f32 %v3515, %v3623
    %v3638 = vadd.f32 %v3516, %v3626
    %v3639 = vld [vmem:[#allocation2 + $0x8] sm:$0xff]
    %v3640 = vld [vmem:[#allocation2 + $0x10] sm:$0xff]
    %v3641 = vld [vmem:[#allocation2 + $0x18] sm:$0xff]
    %v3642 = vld [vmem:[#allocation2 + $0x20] sm:$0xff]
    %v3643 = vld [vmem:[#allocation2 + $0x28] sm:$0xff]
    %v3644 = vld [vmem:[#allocation2 + $0x30] sm:$0xff]
    %v3645 = vld [vmem:[#allocation2 + $0x38] sm:$0xff]
    %v3646 = vld [vmem:[#allocation2 + $0x40] sm:$0xff]
    %v3647 = vpack.c.bf16 %v3640, %v3639
    %v3648 = vpack.c.bf16 %v3642, %v3641
    %v3649 = vpack.c.bf16 %v3644, %v3643
    %v3650 = vpack.c.bf16 %v3646, %v3645
    %s3651 = scalar_lea.vmem [#allocation4], 896
    %v3652 = vld [vmem:[%s3651] sm:$0xf]
    %v3653 = vld [vmem:[%s3651 + $0x4] sm:$0xf]
    %v3654 = vld [vmem:[%s3651 + $0x8] sm:$0xf]
    %v3655 = vld [vmem:[%s3651 + $0xc] sm:$0xf]
    %v3656 = vld [vmem:[%s3651 + $0x10] sm:$0xf]
    %v3657 = vld [vmem:[%s3651 + $0x14] sm:$0xf]
    %v3658 = vld [vmem:[%s3651 + $0x18] sm:$0xf]
    %v3659 = vld [vmem:[%s3651 + $0x1c] sm:$0xf]
    %v3668 = vunpack.c.l.b16 %v3652
    %v3669 = vunpack.c.l.b16 %v3653
    %v3670 = vunpack.c.l.b16 %v3654
    %v3671 = vunpack.c.l.b16 %v3655
    %v3672 = vunpack.c.l.b16 %v3656
    %v3673 = vunpack.c.l.b16 %v3657
    %v3674 = vunpack.c.l.b16 %v3658
    %v3675 = vunpack.c.l.b16 %v3659
    %v3676 = vpack.c.b16 %v3669, %v3668
    %v3677 = vpack.c.b16 %v3671, %v3670
    %v3678 = vpack.c.b16 %v3673, %v3672
    %v3679 = vpack.c.b16 %v3675, %v3674
    %v3685 = vsel %vm52, %v3647, 0
    %v3688 = vsel %vm52, %v3648, 0
    %v3691 = vsel %vm52, %v3649, 0
    %v3694 = vsel %vm52, %v3650, 0
    %3696 = vmatprep.subr.bf16.mxu0 0
    %3697 = vmatpush1.bf16.msra.mxu0 %v3676
    %3698 = vmatprep.subr.bf16.mxu0 0
    %3699 = vmatpush1.bf16.msra.mxu0 %v3677
    %3700 = vmatprep.subr.bf16.mxu0 0
    %3701 = vmatpush1.bf16.msra.mxu0 %v3678
    %3702 = vmatprep.subr.bf16.mxu0 0
    %3703 = vmatpush1.bf16.msra.mxu0 %v3679
    %3704 = vmatprep.subr.bf16.mxu0 0
    %3705 = vmatpush1.bf16.msra.mxu0 0
    %3706 = vmatprep.subr.bf16.mxu0 0
    %3707 = vmatpush1.bf16.msra.mxu0 0
    %3708 = vmatprep.subr.bf16.mxu0 0
    %3709 = vmatpush1.bf16.msra.mxu0 0
    %3710 = vmatprep.subr.bf16.mxu0 0
    %3711 = vmatpush1.bf16.msra.mxu0 0
    %3712 = vmatprep.subr.bf16.mxu0 0
    %3713 = vmatpush1.bf16.msra.mxu0 0
    %3714 = vmatprep.subr.bf16.mxu0 0
    %3715 = vmatpush1.bf16.msra.mxu0 0
    %3716 = vmatprep.subr.bf16.mxu0 0
    %3717 = vmatpush1.bf16.msra.mxu0 0
    %3718 = vmatprep.subr.bf16.mxu0 0
    %3719 = vmatpush1.bf16.msra.mxu0 0
    %3720 = vmatprep.subr.bf16.mxu0 0
    %3721 = vmatpush1.bf16.msra.mxu0 0
    %3722 = vmatprep.subr.bf16.mxu0 0
    %3723 = vmatpush1.bf16.msra.mxu0 0
    %3724 = vmatprep.subr.bf16.mxu0 0
    %3725 = vmatpush1.bf16.msra.mxu0 0
    %3726 = vmatprep.subr.bf16.mxu0 0
    %3727 = vmatpush1.bf16.msra.mxu0 0
    %3728 = vmatprep.mubr.bf16.mxu0 0
    %3729 = vmatmul.mubr.bf16.gmra.mrb[0].mxu0 %v3685
    %v3730 = vpop.f32.mrb[0].mxu0
    %v3731 = vadd.f32 0.0, %v3730
    %v3732 = vpop.f32.mrb[0].mxu0
    %v3733 = vpop.f32.mrb[0].mxu0
    %v3734 = vadd.f32 0.0, %v3733
    %v3735 = vpop.f32.mrb[0].mxu0
    %3736 = vmatprep.mubr.bf16.mxu0 0
    %3737 = vmatmul.mubr.bf16.gmra.mrb[0].mxu0 %v3688
    %v3738 = vpop.f32.mrb[0].mxu0
    %v3739 = vpop.f32.mrb[0].mxu0
    %v3740 = vpop.f32.mrb[0].mxu0
    %v3741 = vpop.f32.mrb[0].mxu0
    %3742 = vmatprep.mubr.bf16.mxu0 0
    %3743 = vmatmul.mubr.bf16.gmra.mrb[0].mxu0 %v3691
    %v3744 = vpop.f32.mrb[0].mxu0
    %v3745 = vadd.f32 0.0, %v3744
    %v3746 = vpop.f32.mrb[0].mxu0
    %v3747 = vpop.f32.mrb[0].mxu0
    %v3748 = vadd.f32 0.0, %v3747
    %v3749 = vpop.f32.mrb[0].mxu0
    %3750 = vmatprep.mubr.bf16.mxu0 0
    %3751 = vmatmul.mubr.bf16.gmra.mrb[0].mxu0 %v3694
    %v3752 = vpop.f32.mrb[0].mxu0
    %v3753 = vpop.f32.mrb[0].mxu0
    %v3754 = vpop.f32.mrb[0].mxu0
    %v3755 = vpop.f32.mrb[0].mxu0
    %3756 = vdwg.mxu0
    %v3757 = vadd.f32 %v3635, %v3731
    %v3758 = vadd.f32 %v3636, %v3734
    %v3759 = vadd.f32 %v3637, %v3745
    %v3760 = vadd.f32 %v3638, %v3748
    %v3761 = vld [vmem:[#allocation2 + $0x9] sm:$0xff]
    %v3762 = vld [vmem:[#allocation2 + $0x11] sm:$0xff]
    %v3763 = vld [vmem:[#allocation2 + $0x19] sm:$0xff]
    %v3764 = vld [vmem:[#allocation2 + $0x21] sm:$0xff]
    %v3765 = vld [vmem:[#allocation2 + $0x29] sm:$0xff]
    %v3766 = vld [vmem:[#allocation2 + $0x31] sm:$0xff]
    %v3767 = vld [vmem:[#allocation2 + $0x39] sm:$0xff]
    %v3768 = vld [vmem:[#allocation2 + $0x41] sm:$0xff]
    %v3769 = vpack.c.bf16 %v3762, %v3761
    %v3770 = vpack.c.bf16 %v3764, %v3763
    %v3771 = vpack.c.bf16 %v3766, %v3765
    %v3772 = vpack.c.bf16 %v3768, %v3767
    %s3773 = scalar_lea.vmem [#allocation4], 928
    %v3774 = vld [vmem:[%s3773] sm:$0xf]
    %v3775 = vld [vmem:[%s3773 + $0x4] sm:$0xf]
    %v3776 = vld [vmem:[%s3773 + $0x8] sm:$0xf]
    %v3777 = vld [vmem:[%s3773 + $0xc] sm:$0xf]
    %v3778 = vld [vmem:[%s3773 + $0x10] sm:$0xf]
    %v3779 = vld [vmem:[%s3773 + $0x14] sm:$0xf]
    %v3780 = vld [vmem:[%s3773 + $0x18] sm:$0xf]
    %v3781 = vld [vmem:[%s3773 + $0x1c] sm:$0xf]
    %v3790 = vunpack.c.l.b16 %v3774
    %v3791 = vunpack.c.l.b16 %v3775
    %v3792 = vunpack.c.l.b16 %v3776
    %v3793 = vunpack.c.l.b16 %v3777
    %v3794 = vunpack.c.l.b16 %v3778
    %v3795 = vunpack.c.l.b16 %v3779
    %v3796 = vunpack.c.l.b16 %v3780
    %v3797 = vunpack.c.l.b16 %v3781
    %v3798 = vpack.c.b16 %v3791, %v3790
    %v3799 = vpack.c.b16 %v3793, %v3792
    %v3800 = vpack.c.b16 %v3795, %v3794
    %v3801 = vpack.c.b16 %v3797, %v3796
    %v3807 = vsel %vm52, %v3769, 0
    %v3810 = vsel %vm52, %v3770, 0
    %v3813 = vsel %vm52, %v3771, 0
    %v3816 = vsel %vm52, %v3772, 0
    %3818 = vmatprep.subr.bf16.mxu0 0
    %3819 = vmatpush1.bf16.msra.mxu0 %v3798
    %3820 = vmatprep.subr.bf16.mxu0 0
    %3821 = vmatpush1.bf16.msra.mxu0 %v3799
    %3822 = vmatprep.subr.bf16.mxu0 0
    %3823 = vmatpush1.bf16.msra.mxu0 %v3800
    %3824 = vmatprep.subr.bf16.mxu0 0
    %3825 = vmatpush1.bf16.msra.mxu0 %v3801
    %3826 = vmatprep.subr.bf16.mxu0 0
    %3827 = vmatpush1.bf16.msra.mxu0 0
    %3828 = vmatprep.subr.bf16.mxu0 0
    %3829 = vmatpush1.bf16.msra.mxu0 0
    %3830 = vmatprep.subr.bf16.mxu0 0
    %3831 = vmatpush1.bf16.msra.mxu0 0
    %3832 = vmatprep.subr.bf16.mxu0 0
    %3833 = vmatpush1.bf16.msra.mxu0 0
    %3834 = vmatprep.subr.bf16.mxu0 0
    %3835 = vmatpush1.bf16.msra.mxu0 0
    %3836 = vmatprep.subr.bf16.mxu0 0
    %3837 = vmatpush1.bf16.msra.mxu0 0
    %3838 = vmatprep.subr.bf16.mxu0 0
    %3839 = vmatpush1.bf16.msra.mxu0 0
    %3840 = vmatprep.subr.bf16.mxu0 0
    %3841 = vmatpush1.bf16.msra.mxu0 0
    %3842 = vmatprep.subr.bf16.mxu0 0
    %3843 = vmatpush1.bf16.msra.mxu0 0
    %3844 = vmatprep.subr.bf16.mxu0 0
    %3845 = vmatpush1.bf16.msra.mxu0 0
    %3846 = vmatprep.subr.bf16.mxu0 0
    %3847 = vmatpush1.bf16.msra.mxu0 0
    %3848 = vmatprep.subr.bf16.mxu0 0
    %3849 = vmatpush1.bf16.msra.mxu0 0
    %3850 = vmatprep.mubr.bf16.mxu0 0
    %3851 = vmatmul.mubr.bf16.gmra.mrb[0].mxu0 %v3807
    %v3852 = vpop.f32.mrb[0].mxu0
    %v3853 = vadd.f32 0.0, %v3852
    %v3854 = vpop.f32.mrb[0].mxu0
    %v3855 = vpop.f32.mrb[0].mxu0
    %v3856 = vadd.f32 0.0, %v3855
    %v3857 = vpop.f32.mrb[0].mxu0
    %3858 = vmatprep.mubr.bf16.mxu0 0
    %3859 = vmatmul.mubr.bf16.gmra.mrb[0].mxu0 %v3810
    %v3860 = vpop.f32.mrb[0].mxu0
    %v3861 = vpop.f32.mrb[0].mxu0
    %v3862 = vpop.f32.mrb[0].mxu0
    %v3863 = vpop.f32.mrb[0].mxu0
    %3864 = vmatprep.mubr.bf16.mxu0 0
    %3865 = vmatmul.mubr.bf16.gmra.mrb[0].mxu0 %v3813
    %v3866 = vpop.f32.mrb[0].mxu0
    %v3867 = vadd.f32 0.0, %v3866
    %v3868 = vpop.f32.mrb[0].mxu0
    %v3869 = vpop.f32.mrb[0].mxu0
    %v3870 = vadd.f32 0.0, %v3869
    %v3871 = vpop.f32.mrb[0].mxu0
    %3872 = vmatprep.mubr.bf16.mxu0 0
    %3873 = vmatmul.mubr.bf16.gmra.mrb[0].mxu0 %v3816
    %v3874 = vpop.f32.mrb[0].mxu0
    %v3875 = vpop.f32.mrb[0].mxu0
    %v3876 = vpop.f32.mrb[0].mxu0
    %v3877 = vpop.f32.mrb[0].mxu0
    %3878 = vdwg.mxu0
    %v3879 = vadd.f32 %v3757, %v3853
    %v3880 = vadd.f32 %v3758, %v3856
    %v3881 = vadd.f32 %v3759, %v3867
    %v3882 = vadd.f32 %v3760, %v3870
    %s3883 = scalar_lea.vmem %s3, 3
    %v3884 = vld [vmem:[%s3883] sm:$0x1]
    %v3886 = vlaneseq
    %v3887 = vshrl.u32 %v3886, 7
    %v3888 = vsub.s32 0, %v3887
    %v3889 = vrot.slane %v3884, %v3888
    %v3891 = vadd.f32 %v3879, %v3889
    %v3892 = vadd.f32 %v3880, %v3889
    %v3893 = vadd.f32 %v3881, %v3889
    %v3894 = vadd.f32 %v3882, %v3889
    %v3895 = vmax.f32 %v3891, 0.0
    %v3896 = vmax.f32 %v3892, 0.0
    %v3897 = vmax.f32 %v3893, 0.0
    %v3898 = vmax.f32 %v3894, 0.0
    %v3899 = vadd.f32 %v3895, %v2671
    %v3900 = vadd.f32 %v3896, %v2672
    %v3901 = vadd.f32 %v3897, %v2675
    %v3902 = vadd.f32 %v3898, %v2676
    %3903 = vst.msk [vmem:[#allocation2 + $0x4] sm:$0xff] %vm52, %v3899
    %3904 = vst.msk [vmem:[#allocation2 + $0xc] sm:$0xff] %vm52, %v3900
    %3905 = vst.msk [vmem:[#allocation2 + $0x24] sm:$0xff] %vm52, %v3901
    %3906 = vst.msk [vmem:[#allocation2 + $0x2c] sm:$0xff] %vm52, %v3902
    %v3907 = vld [vmem:[#allocation2] sm:$0xff]
    %v3908 = vld [vmem:[#allocation2 + $0x8] sm:$0xff]
    %v3909 = vld [vmem:[#allocation2 + $0x10] sm:$0xff]
    %v3910 = vld [vmem:[#allocation2 + $0x18] sm:$0xff]
    %v3911 = vld [vmem:[#allocation2 + $0x20] sm:$0xff]
    %v3912 = vld [vmem:[#allocation2 + $0x28] sm:$0xff]
    %v3913 = vld [vmem:[#allocation2 + $0x30] sm:$0xff]
    %v3914 = vld [vmem:[#allocation2 + $0x38] sm:$0xff]
    %v3915 = vpack.c.bf16 %v3908, %v3907
    %v3916 = vpack.c.bf16 %v3910, %v3909
    %v3917 = vpack.c.bf16 %v3912, %v3911
    %v3918 = vpack.c.bf16 %v3914, %v3913
    %s3919 = scalar_lea.vmem [#allocation4], 960
    %v3920 = vld [vmem:[%s3919] sm:$0xf]
    %v3921 = vld [vmem:[%s3919 + $0x4] sm:$0xf]
    %v3922 = vld [vmem:[%s3919 + $0x8] sm:$0xf]
    %v3923 = vld [vmem:[%s3919 + $0xc] sm:$0xf]
    %v3924 = vld [vmem:[%s3919 + $0x10] sm:$0xf]
    %v3925 = vld [vmem:[%s3919 + $0x14] sm:$0xf]
    %v3926 = vld [vmem:[%s3919 + $0x18] sm:$0xf]
    %v3927 = vld [vmem:[%s3919 + $0x1c] sm:$0xf]
    %v3928 = vld [vmem:[#allocation2 + $0x1] sm:$0xff]
    %v3929 = vld [vmem:[#allocation2 + $0x9] sm:$0xff]
    %v3930 = vld [vmem:[#allocation2 + $0x11] sm:$0xff]
    %v3931 = vld [vmem:[#allocation2 + $0x19] sm:$0xff]
    %v3932 = vld [vmem:[#allocation2 + $0x21] sm:$0xff]
    %v3933 = vld [vmem:[#allocation2 + $0x29] sm:$0xff]
    %v3934 = vld [vmem:[#allocation2 + $0x31] sm:$0xff]
    %v3935 = vld [vmem:[#allocation2 + $0x39] sm:$0xff]
    %v3936 = vpack.c.bf16 %v3929, %v3928
    %v3937 = vpack.c.bf16 %v3931, %v3930
    %v3938 = vpack.c.bf16 %v3933, %v3932
    %v3939 = vpack.c.bf16 %v3935, %v3934
    %s3940 = scalar_lea.vmem [#allocation4], 992
    %v3941 = vld [vmem:[%s3940] sm:$0xf]
    %v3942 = vld [vmem:[%s3940 + $0x4] sm:$0xf]
    %v3943 = vld [vmem:[%s3940 + $0x8] sm:$0xf]
    %v3944 = vld [vmem:[%s3940 + $0xc] sm:$0xf]
    %v3945 = vld [vmem:[%s3940 + $0x10] sm:$0xf]
    %v3946 = vld [vmem:[%s3940 + $0x14] sm:$0xf]
    %v3947 = vld [vmem:[%s3940 + $0x18] sm:$0xf]
    %v3948 = vld [vmem:[%s3940 + $0x1c] sm:$0xf]
    %v3957 = vunpack.c.l.b16 %v3941
    %v3958 = vunpack.c.l.b16 %v3942
    %v3959 = vunpack.c.l.b16 %v3943
    %v3960 = vunpack.c.l.b16 %v3944
    %v3961 = vunpack.c.l.b16 %v3945
    %v3962 = vunpack.c.l.b16 %v3946
    %v3963 = vunpack.c.l.b16 %v3947
    %v3964 = vunpack.c.l.b16 %v3948
    %v3965 = vpack.c.b16 %v3958, %v3957
    %v3966 = vpack.c.b16 %v3960, %v3959
    %v3967 = vpack.c.b16 %v3962, %v3961
    %v3968 = vpack.c.b16 %v3964, %v3963
    %v3974 = vsel %vm52, %v3936, 0
    %v3977 = vsel %vm52, %v3937, 0
    %v3980 = vsel %vm52, %v3938, 0
    %v3983 = vsel %vm52, %v3939, 0
    %3985 = vmatprep.subr.bf16.mxu0 0
    %3986 = vmatpush1.bf16.msra.mxu0 %v3965
    %3987 = vmatprep.subr.bf16.mxu0 0
    %3988 = vmatpush1.bf16.msra.mxu0 %v3966
    %3989 = vmatprep.subr.bf16.mxu0 0
    %3990 = vmatpush1.bf16.msra.mxu0 %v3967
    %3991 = vmatprep.subr.bf16.mxu0 0
    %3992 = vmatpush1.bf16.msra.mxu0 %v3968
    %3993 = vmatprep.subr.bf16.mxu0 0
    %3994 = vmatpush1.bf16.msra.mxu0 0
    %3995 = vmatprep.subr.bf16.mxu0 0
    %3996 = vmatpush1.bf16.msra.mxu0 0
    %3997 = vmatprep.subr.bf16.mxu0 0
    %3998 = vmatpush1.bf16.msra.mxu0 0
    %3999 = vmatprep.subr.bf16.mxu0 0
    %4000 = vmatpush1.bf16.msra.mxu0 0
    %4001 = vmatprep.subr.bf16.mxu0 0
    %4002 = vmatpush1.bf16.msra.mxu0 0
    %4003 = vmatprep.subr.bf16.mxu0 0
    %4004 = vmatpush1.bf16.msra.mxu0 0
    %4005 = vmatprep.subr.bf16.mxu0 0
    %4006 = vmatpush1.bf16.msra.mxu0 0
    %4007 = vmatprep.subr.bf16.mxu0 0
    %4008 = vmatpush1.bf16.msra.mxu0 0
    %4009 = vmatprep.subr.bf16.mxu0 0
    %4010 = vmatpush1.bf16.msra.mxu0 0
    %4011 = vmatprep.subr.bf16.mxu0 0
    %4012 = vmatpush1.bf16.msra.mxu0 0
    %4013 = vmatprep.subr.bf16.mxu0 0
    %4014 = vmatpush1.bf16.msra.mxu0 0
    %4015 = vmatprep.subr.bf16.mxu0 0
    %4016 = vmatpush1.bf16.msra.mxu0 0
    %4017 = vmatprep.mubr.bf16.mxu0 0
    %4018 = vmatmul.mubr.bf16.gmra.mrb[0].mxu0 %v3974
    %v4019 = vpop.f32.mrb[0].mxu0
    %v4020 = vadd.f32 0.0, %v4019
    %v4021 = vpop.f32.mrb[0].mxu0
    %v4022 = vpop.f32.mrb[0].mxu0
    %v4023 = vadd.f32 0.0, %v4022
    %v4024 = vpop.f32.mrb[0].mxu0
    %4025 = vmatprep.mubr.bf16.mxu0 0
    %4026 = vmatmul.mubr.bf16.gmra.mrb[0].mxu0 %v3977
    %v4027 = vpop.f32.mrb[0].mxu0
    %v4028 = vpop.f32.mrb[0].mxu0
    %v4029 = vpop.f32.mrb[0].mxu0
    %v4030 = vpop.f32.mrb[0].mxu0
    %4031 = vmatprep.mubr.bf16.mxu0 0
    %4032 = vmatmul.mubr.bf16.gmra.mrb[0].mxu0 %v3980
    %v4033 = vpop.f32.mrb[0].mxu0
    %v4034 = vadd.f32 0.0, %v4033
    %v4035 = vpop.f32.mrb[0].mxu0
    %v4036 = vpop.f32.mrb[0].mxu0
    %v4037 = vadd.f32 0.0, %v4036
    %v4038 = vpop.f32.mrb[0].mxu0
    %4039 = vmatprep.mubr.bf16.mxu0 0
    %4040 = vmatmul.mubr.bf16.gmra.mrb[0].mxu0 %v3983
    %v4041 = vpop.f32.mrb[0].mxu0
    %v4042 = vpop.f32.mrb[0].mxu0
    %v4043 = vpop.f32.mrb[0].mxu0
    %v4044 = vpop.f32.mrb[0].mxu0
    %4045 = vdwg.mxu0
    %v4054 = vunpack.c.l.b16 %v3920
    %v4055 = vunpack.c.l.b16 %v3921
    %v4056 = vunpack.c.l.b16 %v3922
    %v4057 = vunpack.c.l.b16 %v3923
    %v4058 = vunpack.c.l.b16 %v3924
    %v4059 = vunpack.c.l.b16 %v3925
    %v4060 = vunpack.c.l.b16 %v3926
    %v4061 = vunpack.c.l.b16 %v3927
    %v4062 = vpack.c.b16 %v4055, %v4054
    %v4063 = vpack.c.b16 %v4057, %v4056
    %v4064 = vpack.c.b16 %v4059, %v4058
    %v4065 = vpack.c.b16 %v4061, %v4060
    %v4071 = vsel %vm52, %v3915, 0
    %v4074 = vsel %vm52, %v3916, 0
    %v4077 = vsel %vm52, %v3917, 0
    %v4080 = vsel %vm52, %v3918, 0
    %4082 = vmatprep.subr.bf16.mxu0 0
    %4083 = vmatpush1.bf16.msra.mxu0 %v4062
    %4084 = vmatprep.subr.bf16.mxu0 0
    %4085 = vmatpush1.bf16.msra.mxu0 %v4063
    %4086 = vmatprep.subr.bf16.mxu0 0
    %4087 = vmatpush1.bf16.msra.mxu0 %v4064
    %4088 = vmatprep.subr.bf16.mxu0 0
    %4089 = vmatpush1.bf16.msra.mxu0 %v4065
    %4090 = vmatprep.subr.bf16.mxu0 0
    %4091 = vmatpush1.bf16.msra.mxu0 0
    %4092 = vmatprep.subr.bf16.mxu0 0
    %4093 = vmatpush1.bf16.msra.mxu0 0
    %4094 = vmatprep.subr.bf16.mxu0 0
    %4095 = vmatpush1.bf16.msra.mxu0 0
    %4096 = vmatprep.subr.bf16.mxu0 0
    %4097 = vmatpush1.bf16.msra.mxu0 0
    %4098 = vmatprep.subr.bf16.mxu0 0
    %4099 = vmatpush1.bf16.msra.mxu0 0
    %4100 = vmatprep.subr.bf16.mxu0 0
    %4101 = vmatpush1.bf16.msra.mxu0 0
    %4102 = vmatprep.subr.bf16.mxu0 0
    %4103 = vmatpush1.bf16.msra.mxu0 0
    %4104 = vmatprep.subr.bf16.mxu0 0
    %4105 = vmatpush1.bf16.msra.mxu0 0
    %4106 = vmatprep.subr.bf16.mxu0 0
    %4107 = vmatpush1.bf16.msra.mxu0 0
    %4108 = vmatprep.subr.bf16.mxu0 0
    %4109 = vmatpush1.bf16.msra.mxu0 0
    %4110 = vmatprep.subr.bf16.mxu0 0
    %4111 = vmatpush1.bf16.msra.mxu0 0
    %4112 = vmatprep.subr.bf16.mxu0 0
    %4113 = vmatpush1.bf16.msra.mxu0 0
    %4114 = vmatprep.mubr.bf16.mxu0 0
    %4115 = vmatmul.mubr.bf16.gmra.mrb[0].mxu0 %v4071
    %v4116 = vpop.f32.mrb[0].mxu0
    %v4117 = vadd.f32 %v4020, %v4116
    %v4118 = vpop.f32.mrb[0].mxu0
    %v4119 = vpop.f32.mrb[0].mxu0
    %v4120 = vadd.f32 %v4023, %v4119
    %v4121 = vpop.f32.mrb[0].mxu0
    %4122 = vmatprep.mubr.bf16.mxu0 0
    %4123 = vmatmul.mubr.bf16.gmra.mrb[0].mxu0 %v4074
    %v4124 = vpop.f32.mrb[0].mxu0
    %v4125 = vpop.f32.mrb[0].mxu0
    %v4126 = vpop.f32.mrb[0].mxu0
    %v4127 = vpop.f32.mrb[0].mxu0
    %4128 = vmatprep.mubr.bf16.mxu0 0
    %4129 = vmatmul.mubr.bf16.gmra.mrb[0].mxu0 %v4077
    %v4130 = vpop.f32.mrb[0].mxu0
    %v4131 = vadd.f32 %v4034, %v4130
    %v4132 = vpop.f32.mrb[0].mxu0
    %v4133 = vpop.f32.mrb[0].mxu0
    %v4134 = vadd.f32 %v4037, %v4133
    %v4135 = vpop.f32.mrb[0].mxu0
    %4136 = vmatprep.mubr.bf16.mxu0 0
    %4137 = vmatmul.mubr.bf16.gmra.mrb[0].mxu0 %v4080
    %v4138 = vpop.f32.mrb[0].mxu0
    %v4139 = vpop.f32.mrb[0].mxu0
    %v4140 = vpop.f32.mrb[0].mxu0
    %v4141 = vpop.f32.mrb[0].mxu0
    %4142 = vdwg.mxu0
    %v4143 = vld [vmem:[#allocation2 + $0x2] sm:$0xff]
    %v4144 = vld [vmem:[#allocation2 + $0xa] sm:$0xff]
    %v4145 = vld [vmem:[#allocation2 + $0x12] sm:$0xff]
    %v4146 = vld [vmem:[#allocation2 + $0x1a] sm:$0xff]
    %v4147 = vld [vmem:[#allocation2 + $0x22] sm:$0xff]
    %v4148 = vld [vmem:[#allocation2 + $0x2a] sm:$0xff]
    %v4149 = vld [vmem:[#allocation2 + $0x32] sm:$0xff]
    %v4150 = vld [vmem:[#allocation2 + $0x3a] sm:$0xff]
    %v4151 = vpack.c.bf16 %v4144, %v4143
    %v4152 = vpack.c.bf16 %v4146, %v4145
    %v4153 = vpack.c.bf16 %v4148, %v4147
    %v4154 = vpack.c.bf16 %v4150, %v4149
    %s4155 = scalar_lea.vmem [#allocation4], 1024
    %v4156 = vld [vmem:[%s4155] sm:$0xf]
    %v4157 = vld [vmem:[%s4155 + $0x4] sm:$0xf]
    %v4158 = vld [vmem:[%s4155 + $0x8] sm:$0xf]
    %v4159 = vld [vmem:[%s4155 + $0xc] sm:$0xf]
    %v4160 = vld [vmem:[%s4155 + $0x10] sm:$0xf]
    %v4161 = vld [vmem:[%s4155 + $0x14] sm:$0xf]
    %v4162 = vld [vmem:[%s4155 + $0x18] sm:$0xf]
    %v4163 = vld [vmem:[%s4155 + $0x1c] sm:$0xf]
    %v4172 = vunpack.c.l.b16 %v4156
    %v4173 = vunpack.c.l.b16 %v4157
    %v4174 = vunpack.c.l.b16 %v4158
    %v4175 = vunpack.c.l.b16 %v4159
    %v4176 = vunpack.c.l.b16 %v4160
    %v4177 = vunpack.c.l.b16 %v4161
    %v4178 = vunpack.c.l.b16 %v4162
    %v4179 = vunpack.c.l.b16 %v4163
    %v4180 = vpack.c.b16 %v4173, %v4172
    %v4181 = vpack.c.b16 %v4175, %v4174
    %v4182 = vpack.c.b16 %v4177, %v4176
    %v4183 = vpack.c.b16 %v4179, %v4178
    %v4189 = vsel %vm52, %v4151, 0
    %v4192 = vsel %vm52, %v4152, 0
    %v4195 = vsel %vm52, %v4153, 0
    %v4198 = vsel %vm52, %v4154, 0
    %4200 = vmatprep.subr.bf16.mxu0 0
    %4201 = vmatpush1.bf16.msra.mxu0 %v4180
    %4202 = vmatprep.subr.bf16.mxu0 0
    %4203 = vmatpush1.bf16.msra.mxu0 %v4181
    %4204 = vmatprep.subr.bf16.mxu0 0
    %4205 = vmatpush1.bf16.msra.mxu0 %v4182
    %4206 = vmatprep.subr.bf16.mxu0 0
    %4207 = vmatpush1.bf16.msra.mxu0 %v4183
    %4208 = vmatprep.subr.bf16.mxu0 0
    %4209 = vmatpush1.bf16.msra.mxu0 0
    %4210 = vmatprep.subr.bf16.mxu0 0
    %4211 = vmatpush1.bf16.msra.mxu0 0
    %4212 = vmatprep.subr.bf16.mxu0 0
    %4213 = vmatpush1.bf16.msra.mxu0 0
    %4214 = vmatprep.subr.bf16.mxu0 0
    %4215 = vmatpush1.bf16.msra.mxu0 0
    %4216 = vmatprep.subr.bf16.mxu0 0
    %4217 = vmatpush1.bf16.msra.mxu0 0
    %4218 = vmatprep.subr.bf16.mxu0 0
    %4219 = vmatpush1.bf16.msra.mxu0 0
    %4220 = vmatprep.subr.bf16.mxu0 0
    %4221 = vmatpush1.bf16.msra.mxu0 0
    %4222 = vmatprep.subr.bf16.mxu0 0
    %4223 = vmatpush1.bf16.msra.mxu0 0
    %4224 = vmatprep.subr.bf16.mxu0 0
    %4225 = vmatpush1.bf16.msra.mxu0 0
    %4226 = vmatprep.subr.bf16.mxu0 0
    %4227 = vmatpush1.bf16.msra.mxu0 0
    %4228 = vmatprep.subr.bf16.mxu0 0
    %4229 = vmatpush1.bf16.msra.mxu0 0
    %4230 = vmatprep.subr.bf16.mxu0 0
    %4231 = vmatpush1.bf16.msra.mxu0 0
    %4232 = vmatprep.mubr.bf16.mxu0 0
    %4233 = vmatmul.mubr.bf16.gmra.mrb[0].mxu0 %v4189
    %v4234 = vpop.f32.mrb[0].mxu0
    %v4235 = vadd.f32 0.0, %v4234
    %v4236 = vpop.f32.mrb[0].mxu0
    %v4237 = vpop.f32.mrb[0].mxu0
    %v4238 = vadd.f32 0.0, %v4237
    %v4239 = vpop.f32.mrb[0].mxu0
    %4240 = vmatprep.mubr.bf16.mxu0 0
    %4241 = vmatmul.mubr.bf16.gmra.mrb[0].mxu0 %v4192
    %v4242 = vpop.f32.mrb[0].mxu0
    %v4243 = vpop.f32.mrb[0].mxu0
    %v4244 = vpop.f32.mrb[0].mxu0
    %v4245 = vpop.f32.mrb[0].mxu0
    %4246 = vmatprep.mubr.bf16.mxu0 0
    %4247 = vmatmul.mubr.bf16.gmra.mrb[0].mxu0 %v4195
    %v4248 = vpop.f32.mrb[0].mxu0
    %v4249 = vadd.f32 0.0, %v4248
    %v4250 = vpop.f32.mrb[0].mxu0
    %v4251 = vpop.f32.mrb[0].mxu0
    %v4252 = vadd.f32 0.0, %v4251
    %v4253 = vpop.f32.mrb[0].mxu0
    %4254 = vmatprep.mubr.bf16.mxu0 0
    %4255 = vmatmul.mubr.bf16.gmra.mrb[0].mxu0 %v4198
    %v4256 = vpop.f32.mrb[0].mxu0
    %v4257 = vpop.f32.mrb[0].mxu0
    %v4258 = vpop.f32.mrb[0].mxu0
    %v4259 = vpop.f32.mrb[0].mxu0
    %4260 = vdwg.mxu0
    %v4261 = vadd.f32 %v4117, %v4235
    %v4262 = vadd.f32 %v4120, %v4238
    %v4263 = vadd.f32 %v4131, %v4249
    %v4264 = vadd.f32 %v4134, %v4252
    %v4265 = vld [vmem:[#allocation2 + $0x3] sm:$0xff]
    %v4266 = vld [vmem:[#allocation2 + $0xb] sm:$0xff]
    %v4267 = vld [vmem:[#allocation2 + $0x13] sm:$0xff]
    %v4268 = vld [vmem:[#allocation2 + $0x1b] sm:$0xff]
    %v4269 = vld [vmem:[#allocation2 + $0x23] sm:$0xff]
    %v4270 = vld [vmem:[#allocation2 + $0x2b] sm:$0xff]
    %v4271 = vld [vmem:[#allocation2 + $0x33] sm:$0xff]
    %v4272 = vld [vmem:[#allocation2 + $0x3b] sm:$0xff]
    %v4273 = vpack.c.bf16 %v4266, %v4265
    %v4274 = vpack.c.bf16 %v4268, %v4267
    %v4275 = vpack.c.bf16 %v4270, %v4269
    %v4276 = vpack.c.bf16 %v4272, %v4271
    %s4277 = scalar_lea.vmem [#allocation4], 1056
    %v4278 = vld [vmem:[%s4277] sm:$0xf]
    %v4279 = vld [vmem:[%s4277 + $0x4] sm:$0xf]
    %v4280 = vld [vmem:[%s4277 + $0x8] sm:$0xf]
    %v4281 = vld [vmem:[%s4277 + $0xc] sm:$0xf]
    %v4282 = vld [vmem:[%s4277 + $0x10] sm:$0xf]
    %v4283 = vld [vmem:[%s4277 + $0x14] sm:$0xf]
    %v4284 = vld [vmem:[%s4277 + $0x18] sm:$0xf]
    %v4285 = vld [vmem:[%s4277 + $0x1c] sm:$0xf]
    %v4294 = vunpack.c.l.b16 %v4278
    %v4295 = vunpack.c.l.b16 %v4279
    %v4296 = vunpack.c.l.b16 %v4280
    %v4297 = vunpack.c.l.b16 %v4281
    %v4298 = vunpack.c.l.b16 %v4282
    %v4299 = vunpack.c.l.b16 %v4283
    %v4300 = vunpack.c.l.b16 %v4284
    %v4301 = vunpack.c.l.b16 %v4285
    %v4302 = vpack.c.b16 %v4295, %v4294
    %v4303 = vpack.c.b16 %v4297, %v4296
    %v4304 = vpack.c.b16 %v4299, %v4298
    %v4305 = vpack.c.b16 %v4301, %v4300
    %v4311 = vsel %vm52, %v4273, 0
    %v4314 = vsel %vm52, %v4274, 0
    %v4317 = vsel %vm52, %v4275, 0
    %v4320 = vsel %vm52, %v4276, 0
    %4322 = vmatprep.subr.bf16.mxu0 0
    %4323 = vmatpush1.bf16.msra.mxu0 %v4302
    %4324 = vmatprep.subr.bf16.mxu0 0
    %4325 = vmatpush1.bf16.msra.mxu0 %v4303
    %4326 = vmatprep.subr.bf16.mxu0 0
    %4327 = vmatpush1.bf16.msra.mxu0 %v4304
    %4328 = vmatprep.subr.bf16.mxu0 0
    %4329 = vmatpush1.bf16.msra.mxu0 %v4305
    %4330 = vmatprep.subr.bf16.mxu0 0
    %4331 = vmatpush1.bf16.msra.mxu0 0
    %4332 = vmatprep.subr.bf16.mxu0 0
    %4333 = vmatpush1.bf16.msra.mxu0 0
    %4334 = vmatprep.subr.bf16.mxu0 0
    %4335 = vmatpush1.bf16.msra.mxu0 0
    %4336 = vmatprep.subr.bf16.mxu0 0
    %4337 = vmatpush1.bf16.msra.mxu0 0
    %4338 = vmatprep.subr.bf16.mxu0 0
    %4339 = vmatpush1.bf16.msra.mxu0 0
    %4340 = vmatprep.subr.bf16.mxu0 0
    %4341 = vmatpush1.bf16.msra.mxu0 0
    %4342 = vmatprep.subr.bf16.mxu0 0
    %4343 = vmatpush1.bf16.msra.mxu0 0
    %4344 = vmatprep.subr.bf16.mxu0 0
    %4345 = vmatpush1.bf16.msra.mxu0 0
    %4346 = vmatprep.subr.bf16.mxu0 0
    %4347 = vmatpush1.bf16.msra.mxu0 0
    %4348 = vmatprep.subr.bf16.mxu0 0
    %4349 = vmatpush1.bf16.msra.mxu0 0
    %4350 = vmatprep.subr.bf16.mxu0 0
    %4351 = vmatpush1.bf16.msra.mxu0 0
    %4352 = vmatprep.subr.bf16.mxu0 0
    %4353 = vmatpush1.bf16.msra.mxu0 0
    %4354 = vmatprep.mubr.bf16.mxu0 0
    %4355 = vmatmul.mubr.bf16.gmra.mrb[0].mxu0 %v4311
    %v4356 = vpop.f32.mrb[0].mxu0
    %v4357 = vadd.f32 0.0, %v4356
    %v4358 = vpop.f32.mrb[0].mxu0
    %v4359 = vpop.f32.mrb[0].mxu0
    %v4360 = vadd.f32 0.0, %v4359
    %v4361 = vpop.f32.mrb[0].mxu0
    %4362 = vmatprep.mubr.bf16.mxu0 0
    %4363 = vmatmul.mubr.bf16.gmra.mrb[0].mxu0 %v4314
    %v4364 = vpop.f32.mrb[0].mxu0
    %v4365 = vpop.f32.mrb[0].mxu0
    %v4366 = vpop.f32.mrb[0].mxu0
    %v4367 = vpop.f32.mrb[0].mxu0
    %4368 = vmatprep.mubr.bf16.mxu0 0
    %4369 = vmatmul.mubr.bf16.gmra.mrb[0].mxu0 %v4317
    %v4370 = vpop.f32.mrb[0].mxu0
    %v4371 = vadd.f32 0.0, %v4370
    %v4372 = vpop.f32.mrb[0].mxu0
    %v4373 = vpop.f32.mrb[0].mxu0
    %v4374 = vadd.f32 0.0, %v4373
    %v4375 = vpop.f32.mrb[0].mxu0
    %4376 = vmatprep.mubr.bf16.mxu0 0
    %4377 = vmatmul.mubr.bf16.gmra.mrb[0].mxu0 %v4320
    %v4378 = vpop.f32.mrb[0].mxu0
    %v4379 = vpop.f32.mrb[0].mxu0
    %v4380 = vpop.f32.mrb[0].mxu0
    %v4381 = vpop.f32.mrb[0].mxu0
    %4382 = vdwg.mxu0
    %v4383 = vadd.f32 %v4261, %v4357
    %v4384 = vadd.f32 %v4262, %v4360
    %v4385 = vadd.f32 %v4263, %v4371
    %v4386 = vadd.f32 %v4264, %v4374
    %v4387 = vld [vmem:[#allocation2 + $0x4] sm:$0xff]
    %v4388 = vld [vmem:[#allocation2 + $0xc] sm:$0xff]
    %v4389 = vld [vmem:[#allocation2 + $0x14] sm:$0xff]
    %v4390 = vld [vmem:[#allocation2 + $0x1c] sm:$0xff]
    %v4391 = vld [vmem:[#allocation2 + $0x24] sm:$0xff]
    %v4392 = vld [vmem:[#allocation2 + $0x2c] sm:$0xff]
    %v4393 = vld [vmem:[#allocation2 + $0x34] sm:$0xff]
    %v4394 = vld [vmem:[#allocation2 + $0x3c] sm:$0xff]
    %v4395 = vpack.c.bf16 %v4388, %v4387
    %v4396 = vpack.c.bf16 %v4390, %v4389
    %v4397 = vpack.c.bf16 %v4392, %v4391
    %v4398 = vpack.c.bf16 %v4394, %v4393
    %s4399 = scalar_lea.vmem [#allocation4], 1088
    %v4400 = vld [vmem:[%s4399] sm:$0xf]
    %v4401 = vld [vmem:[%s4399 + $0x4] sm:$0xf]
    %v4402 = vld [vmem:[%s4399 + $0x8] sm:$0xf]
    %v4403 = vld [vmem:[%s4399 + $0xc] sm:$0xf]
    %v4404 = vld [vmem:[%s4399 + $0x10] sm:$0xf]
    %v4405 = vld [vmem:[%s4399 + $0x14] sm:$0xf]
    %v4406 = vld [vmem:[%s4399 + $0x18] sm:$0xf]
    %v4407 = vld [vmem:[%s4399 + $0x1c] sm:$0xf]
    %v4416 = vunpack.c.l.b16 %v4400
    %v4417 = vunpack.c.l.b16 %v4401
    %v4418 = vunpack.c.l.b16 %v4402
    %v4419 = vunpack.c.l.b16 %v4403
    %v4420 = vunpack.c.l.b16 %v4404
    %v4421 = vunpack.c.l.b16 %v4405
    %v4422 = vunpack.c.l.b16 %v4406
    %v4423 = vunpack.c.l.b16 %v4407
    %v4424 = vpack.c.b16 %v4417, %v4416
    %v4425 = vpack.c.b16 %v4419, %v4418
    %v4426 = vpack.c.b16 %v4421, %v4420
    %v4427 = vpack.c.b16 %v4423, %v4422
    %v4433 = vsel %vm52, %v4395, 0
    %v4436 = vsel %vm52, %v4396, 0
    %v4439 = vsel %vm52, %v4397, 0
    %v4442 = vsel %vm52, %v4398, 0
    %4444 = vmatprep.subr.bf16.mxu0 0
    %4445 = vmatpush1.bf16.msra.mxu0 %v4424
    %4446 = vmatprep.subr.bf16.mxu0 0
    %4447 = vmatpush1.bf16.msra.mxu0 %v4425
    %4448 = vmatprep.subr.bf16.mxu0 0
    %4449 = vmatpush1.bf16.msra.mxu0 %v4426
    %4450 = vmatprep.subr.bf16.mxu0 0
    %4451 = vmatpush1.bf16.msra.mxu0 %v4427
    %4452 = vmatprep.subr.bf16.mxu0 0
    %4453 = vmatpush1.bf16.msra.mxu0 0
    %4454 = vmatprep.subr.bf16.mxu0 0
    %4455 = vmatpush1.bf16.msra.mxu0 0
    %4456 = vmatprep.subr.bf16.mxu0 0
    %4457 = vmatpush1.bf16.msra.mxu0 0
    %4458 = vmatprep.subr.bf16.mxu0 0
    %4459 = vmatpush1.bf16.msra.mxu0 0
    %4460 = vmatprep.subr.bf16.mxu0 0
    %4461 = vmatpush1.bf16.msra.mxu0 0
    %4462 = vmatprep.subr.bf16.mxu0 0
    %4463 = vmatpush1.bf16.msra.mxu0 0
    %4464 = vmatprep.subr.bf16.mxu0 0
    %4465 = vmatpush1.bf16.msra.mxu0 0
    %4466 = vmatprep.subr.bf16.mxu0 0
    %4467 = vmatpush1.bf16.msra.mxu0 0
    %4468 = vmatprep.subr.bf16.mxu0 0
    %4469 = vmatpush1.bf16.msra.mxu0 0
    %4470 = vmatprep.subr.bf16.mxu0 0
    %4471 = vmatpush1.bf16.msra.mxu0 0
    %4472 = vmatprep.subr.bf16.mxu0 0
    %4473 = vmatpush1.bf16.msra.mxu0 0
    %4474 = vmatprep.subr.bf16.mxu0 0
    %4475 = vmatpush1.bf16.msra.mxu0 0
    %4476 = vmatprep.mubr.bf16.mxu0 0
    %4477 = vmatmul.mubr.bf16.gmra.mrb[0].mxu0 %v4433
    %v4478 = vpop.f32.mrb[0].mxu0
    %v4479 = vadd.f32 0.0, %v4478
    %v4480 = vpop.f32.mrb[0].mxu0
    %v4481 = vpop.f32.mrb[0].mxu0
    %v4482 = vadd.f32 0.0, %v4481
    %v4483 = vpop.f32.mrb[0].mxu0
    %4484 = vmatprep.mubr.bf16.mxu0 0
    %4485 = vmatmul.mubr.bf16.gmra.mrb[0].mxu0 %v4436
    %v4486 = vpop.f32.mrb[0].mxu0
    %v4487 = vpop.f32.mrb[0].mxu0
    %v4488 = vpop.f32.mrb[0].mxu0
    %v4489 = vpop.f32.mrb[0].mxu0
    %4490 = vmatprep.mubr.bf16.mxu0 0
    %4491 = vmatmul.mubr.bf16.gmra.mrb[0].mxu0 %v4439
    %v4492 = vpop.f32.mrb[0].mxu0
    %v4493 = vadd.f32 0.0, %v4492
    %v4494 = vpop.f32.mrb[0].mxu0
    %v4495 = vpop.f32.mrb[0].mxu0
    %v4496 = vadd.f32 0.0, %v4495
    %v4497 = vpop.f32.mrb[0].mxu0
    %4498 = vmatprep.mubr.bf16.mxu0 0
    %4499 = vmatmul.mubr.bf16.gmra.mrb[0].mxu0 %v4442
    %v4500 = vpop.f32.mrb[0].mxu0
    %v4501 = vpop.f32.mrb[0].mxu0
    %v4502 = vpop.f32.mrb[0].mxu0
    %v4503 = vpop.f32.mrb[0].mxu0
    %4504 = vdwg.mxu0
    %v4505 = vadd.f32 %v4383, %v4479
    %v4506 = vadd.f32 %v4384, %v4482
    %v4507 = vadd.f32 %v4385, %v4493
    %v4508 = vadd.f32 %v4386, %v4496
    %v4509 = vld [vmem:[#allocation2 + $0x5] sm:$0xff]
    %v4510 = vld [vmem:[#allocation2 + $0xd] sm:$0xff]
    %v4511 = vld [vmem:[#allocation2 + $0x15] sm:$0xff]
    %v4512 = vld [vmem:[#allocation2 + $0x1d] sm:$0xff]
    %v4513 = vld [vmem:[#allocation2 + $0x25] sm:$0xff]
    %v4514 = vld [vmem:[#allocation2 + $0x2d] sm:$0xff]
    %v4515 = vld [vmem:[#allocation2 + $0x35] sm:$0xff]
    %v4516 = vld [vmem:[#allocation2 + $0x3d] sm:$0xff]
    %v4517 = vpack.c.bf16 %v4510, %v4509
    %v4518 = vpack.c.bf16 %v4512, %v4511
    %v4519 = vpack.c.bf16 %v4514, %v4513
    %v4520 = vpack.c.bf16 %v4516, %v4515
    %s4521 = scalar_lea.vmem [#allocation4], 1120
    %v4522 = vld [vmem:[%s4521] sm:$0xf]
    %v4523 = vld [vmem:[%s4521 + $0x4] sm:$0xf]
    %v4524 = vld [vmem:[%s4521 + $0x8] sm:$0xf]
    %v4525 = vld [vmem:[%s4521 + $0xc] sm:$0xf]
    %v4526 = vld [vmem:[%s4521 + $0x10] sm:$0xf]
    %v4527 = vld [vmem:[%s4521 + $0x14] sm:$0xf]
    %v4528 = vld [vmem:[%s4521 + $0x18] sm:$0xf]
    %v4529 = vld [vmem:[%s4521 + $0x1c] sm:$0xf]
    %v4538 = vunpack.c.l.b16 %v4522
    %v4539 = vunpack.c.l.b16 %v4523
    %v4540 = vunpack.c.l.b16 %v4524
    %v4541 = vunpack.c.l.b16 %v4525
    %v4542 = vunpack.c.l.b16 %v4526
    %v4543 = vunpack.c.l.b16 %v4527
    %v4544 = vunpack.c.l.b16 %v4528
    %v4545 = vunpack.c.l.b16 %v4529
    %v4546 = vpack.c.b16 %v4539, %v4538
    %v4547 = vpack.c.b16 %v4541, %v4540
    %v4548 = vpack.c.b16 %v4543, %v4542
    %v4549 = vpack.c.b16 %v4545, %v4544
    %v4555 = vsel %vm52, %v4517, 0
    %v4558 = vsel %vm52, %v4518, 0
    %v4561 = vsel %vm52, %v4519, 0
    %v4564 = vsel %vm52, %v4520, 0
    %4566 = vmatprep.subr.bf16.mxu0 0
    %4567 = vmatpush1.bf16.msra.mxu0 %v4546
    %4568 = vmatprep.subr.bf16.mxu0 0
    %4569 = vmatpush1.bf16.msra.mxu0 %v4547
    %4570 = vmatprep.subr.bf16.mxu0 0
    %4571 = vmatpush1.bf16.msra.mxu0 %v4548
    %4572 = vmatprep.subr.bf16.mxu0 0
    %4573 = vmatpush1.bf16.msra.mxu0 %v4549
    %4574 = vmatprep.subr.bf16.mxu0 0
    %4575 = vmatpush1.bf16.msra.mxu0 0
    %4576 = vmatprep.subr.bf16.mxu0 0
    %4577 = vmatpush1.bf16.msra.mxu0 0
    %4578 = vmatprep.subr.bf16.mxu0 0
    %4579 = vmatpush1.bf16.msra.mxu0 0
    %4580 = vmatprep.subr.bf16.mxu0 0
    %4581 = vmatpush1.bf16.msra.mxu0 0
    %4582 = vmatprep.subr.bf16.mxu0 0
    %4583 = vmatpush1.bf16.msra.mxu0 0
    %4584 = vmatprep.subr.bf16.mxu0 0
    %4585 = vmatpush1.bf16.msra.mxu0 0
    %4586 = vmatprep.subr.bf16.mxu0 0
    %4587 = vmatpush1.bf16.msra.mxu0 0
    %4588 = vmatprep.subr.bf16.mxu0 0
    %4589 = vmatpush1.bf16.msra.mxu0 0
    %4590 = vmatprep.subr.bf16.mxu0 0
    %4591 = vmatpush1.bf16.msra.mxu0 0
    %4592 = vmatprep.subr.bf16.mxu0 0
    %4593 = vmatpush1.bf16.msra.mxu0 0
    %4594 = vmatprep.subr.bf16.mxu0 0
    %4595 = vmatpush1.bf16.msra.mxu0 0
    %4596 = vmatprep.subr.bf16.mxu0 0
    %4597 = vmatpush1.bf16.msra.mxu0 0
    %4598 = vmatprep.mubr.bf16.mxu0 0
    %4599 = vmatmul.mubr.bf16.gmra.mrb[0].mxu0 %v4555
    %v4600 = vpop.f32.mrb[0].mxu0
    %v4601 = vadd.f32 0.0, %v4600
    %v4602 = vpop.f32.mrb[0].mxu0
    %v4603 = vpop.f32.mrb[0].mxu0
    %v4604 = vadd.f32 0.0, %v4603
    %v4605 = vpop.f32.mrb[0].mxu0
    %4606 = vmatprep.mubr.bf16.mxu0 0
    %4607 = vmatmul.mubr.bf16.gmra.mrb[0].mxu0 %v4558
    %v4608 = vpop.f32.mrb[0].mxu0
    %v4609 = vpop.f32.mrb[0].mxu0
    %v4610 = vpop.f32.mrb[0].mxu0
    %v4611 = vpop.f32.mrb[0].mxu0
    %4612 = vmatprep.mubr.bf16.mxu0 0
    %4613 = vmatmul.mubr.bf16.gmra.mrb[0].mxu0 %v4561
    %v4614 = vpop.f32.mrb[0].mxu0
    %v4615 = vadd.f32 0.0, %v4614
    %v4616 = vpop.f32.mrb[0].mxu0
    %v4617 = vpop.f32.mrb[0].mxu0
    %v4618 = vadd.f32 0.0, %v4617
    %v4619 = vpop.f32.mrb[0].mxu0
    %4620 = vmatprep.mubr.bf16.mxu0 0
    %4621 = vmatmul.mubr.bf16.gmra.mrb[0].mxu0 %v4564
    %v4622 = vpop.f32.mrb[0].mxu0
    %v4623 = vpop.f32.mrb[0].mxu0
    %v4624 = vpop.f32.mrb[0].mxu0
    %v4625 = vpop.f32.mrb[0].mxu0
    %4626 = vdwg.mxu0
    %v4627 = vadd.f32 %v4505, %v4601
    %v4628 = vadd.f32 %v4506, %v4604
    %v4629 = vadd.f32 %v4507, %v4615
    %v4630 = vadd.f32 %v4508, %v4618
    %v4631 = vld [vmem:[#allocation2 + $0x6] sm:$0xff]
    %v4632 = vld [vmem:[#allocation2 + $0xe] sm:$0xff]
    %v4633 = vld [vmem:[#allocation2 + $0x16] sm:$0xff]
    %v4634 = vld [vmem:[#allocation2 + $0x1e] sm:$0xff]
    %v4635 = vld [vmem:[#allocation2 + $0x26] sm:$0xff]
    %v4636 = vld [vmem:[#allocation2 + $0x2e] sm:$0xff]
    %v4637 = vld [vmem:[#allocation2 + $0x36] sm:$0xff]
    %v4638 = vld [vmem:[#allocation2 + $0x3e] sm:$0xff]
    %v4639 = vpack.c.bf16 %v4632, %v4631
    %v4640 = vpack.c.bf16 %v4634, %v4633
    %v4641 = vpack.c.bf16 %v4636, %v4635
    %v4642 = vpack.c.bf16 %v4638, %v4637
    %s4643 = scalar_lea.vmem [#allocation4], 1152
    %v4644 = vld [vmem:[%s4643] sm:$0xf]
    %v4645 = vld [vmem:[%s4643 + $0x4] sm:$0xf]
    %v4646 = vld [vmem:[%s4643 + $0x8] sm:$0xf]
    %v4647 = vld [vmem:[%s4643 + $0xc] sm:$0xf]
    %v4648 = vld [vmem:[%s4643 + $0x10] sm:$0xf]
    %v4649 = vld [vmem:[%s4643 + $0x14] sm:$0xf]
    %v4650 = vld [vmem:[%s4643 + $0x18] sm:$0xf]
    %v4651 = vld [vmem:[%s4643 + $0x1c] sm:$0xf]
    %v4660 = vunpack.c.l.b16 %v4644
    %v4661 = vunpack.c.l.b16 %v4645
    %v4662 = vunpack.c.l.b16 %v4646
    %v4663 = vunpack.c.l.b16 %v4647
    %v4664 = vunpack.c.l.b16 %v4648
    %v4665 = vunpack.c.l.b16 %v4649
    %v4666 = vunpack.c.l.b16 %v4650
    %v4667 = vunpack.c.l.b16 %v4651
    %v4668 = vpack.c.b16 %v4661, %v4660
    %v4669 = vpack.c.b16 %v4663, %v4662
    %v4670 = vpack.c.b16 %v4665, %v4664
    %v4671 = vpack.c.b16 %v4667, %v4666
    %v4677 = vsel %vm52, %v4639, 0
    %v4680 = vsel %vm52, %v4640, 0
    %v4683 = vsel %vm52, %v4641, 0
    %v4686 = vsel %vm52, %v4642, 0
    %4688 = vmatprep.subr.bf16.mxu0 0
    %4689 = vmatpush1.bf16.msra.mxu0 %v4668
    %4690 = vmatprep.subr.bf16.mxu0 0
    %4691 = vmatpush1.bf16.msra.mxu0 %v4669
    %4692 = vmatprep.subr.bf16.mxu0 0
    %4693 = vmatpush1.bf16.msra.mxu0 %v4670
    %4694 = vmatprep.subr.bf16.mxu0 0
    %4695 = vmatpush1.bf16.msra.mxu0 %v4671
    %4696 = vmatprep.subr.bf16.mxu0 0
    %4697 = vmatpush1.bf16.msra.mxu0 0
    %4698 = vmatprep.subr.bf16.mxu0 0
    %4699 = vmatpush1.bf16.msra.mxu0 0
    %4700 = vmatprep.subr.bf16.mxu0 0
    %4701 = vmatpush1.bf16.msra.mxu0 0
    %4702 = vmatprep.subr.bf16.mxu0 0
    %4703 = vmatpush1.bf16.msra.mxu0 0
    %4704 = vmatprep.subr.bf16.mxu0 0
    %4705 = vmatpush1.bf16.msra.mxu0 0
    %4706 = vmatprep.subr.bf16.mxu0 0
    %4707 = vmatpush1.bf16.msra.mxu0 0
    %4708 = vmatprep.subr.bf16.mxu0 0
    %4709 = vmatpush1.bf16.msra.mxu0 0
    %4710 = vmatprep.subr.bf16.mxu0 0
    %4711 = vmatpush1.bf16.msra.mxu0 0
    %4712 = vmatprep.subr.bf16.mxu0 0
    %4713 = vmatpush1.bf16.msra.mxu0 0
    %4714 = vmatprep.subr.bf16.mxu0 0
    %4715 = vmatpush1.bf16.msra.mxu0 0
    %4716 = vmatprep.subr.bf16.mxu0 0
    %4717 = vmatpush1.bf16.msra.mxu0 0
    %4718 = vmatprep.subr.bf16.mxu0 0
    %4719 = vmatpush1.bf16.msra.mxu0 0
    %4720 = vmatprep.mubr.bf16.mxu0 0
    %4721 = vmatmul.mubr.bf16.gmra.mrb[0].mxu0 %v4677
    %v4722 = vpop.f32.mrb[0].mxu0
    %v4723 = vadd.f32 0.0, %v4722
    %v4724 = vpop.f32.mrb[0].mxu0
    %v4725 = vpop.f32.mrb[0].mxu0
    %v4726 = vadd.f32 0.0, %v4725
    %v4727 = vpop.f32.mrb[0].mxu0
    %4728 = vmatprep.mubr.bf16.mxu0 0
    %4729 = vmatmul.mubr.bf16.gmra.mrb[0].mxu0 %v4680
    %v4730 = vpop.f32.mrb[0].mxu0
    %v4731 = vpop.f32.mrb[0].mxu0
    %v4732 = vpop.f32.mrb[0].mxu0
    %v4733 = vpop.f32.mrb[0].mxu0
    %4734 = vmatprep.mubr.bf16.mxu0 0
    %4735 = vmatmul.mubr.bf16.gmra.mrb[0].mxu0 %v4683
    %v4736 = vpop.f32.mrb[0].mxu0
    %v4737 = vadd.f32 0.0, %v4736
    %v4738 = vpop.f32.mrb[0].mxu0
    %v4739 = vpop.f32.mrb[0].mxu0
    %v4740 = vadd.f32 0.0, %v4739
    %v4741 = vpop.f32.mrb[0].mxu0
    %4742 = vmatprep.mubr.bf16.mxu0 0
    %4743 = vmatmul.mubr.bf16.gmra.mrb[0].mxu0 %v4686
    %v4744 = vpop.f32.mrb[0].mxu0
    %v4745 = vpop.f32.mrb[0].mxu0
    %v4746 = vpop.f32.mrb[0].mxu0
    %v4747 = vpop.f32.mrb[0].mxu0
    %4748 = vdwg.mxu0
    %v4749 = vadd.f32 %v4627, %v4723
    %v4750 = vadd.f32 %v4628, %v4726
    %v4751 = vadd.f32 %v4629, %v4737
    %v4752 = vadd.f32 %v4630, %v4740
    %v4753 = vld [vmem:[#allocation2 + $0x7] sm:$0xff]
    %v4754 = vld [vmem:[#allocation2 + $0xf] sm:$0xff]
    %v4755 = vld [vmem:[#allocation2 + $0x17] sm:$0xff]
    %v4756 = vld [vmem:[#allocation2 + $0x1f] sm:$0xff]
    %v4757 = vld [vmem:[#allocation2 + $0x27] sm:$0xff]
    %v4758 = vld [vmem:[#allocation2 + $0x2f] sm:$0xff]
    %v4759 = vld [vmem:[#allocation2 + $0x37] sm:$0xff]
    %v4760 = vld [vmem:[#allocation2 + $0x3f] sm:$0xff]
    %v4761 = vpack.c.bf16 %v4754, %v4753
    %v4762 = vpack.c.bf16 %v4756, %v4755
    %v4763 = vpack.c.bf16 %v4758, %v4757
    %v4764 = vpack.c.bf16 %v4760, %v4759
    %s4765 = scalar_lea.vmem [#allocation4], 1184
    %v4766 = vld [vmem:[%s4765] sm:$0xf]
    %v4767 = vld [vmem:[%s4765 + $0x4] sm:$0xf]
    %v4768 = vld [vmem:[%s4765 + $0x8] sm:$0xf]
    %v4769 = vld [vmem:[%s4765 + $0xc] sm:$0xf]
    %v4770 = vld [vmem:[%s4765 + $0x10] sm:$0xf]
    %v4771 = vld [vmem:[%s4765 + $0x14] sm:$0xf]
    %v4772 = vld [vmem:[%s4765 + $0x18] sm:$0xf]
    %v4773 = vld [vmem:[%s4765 + $0x1c] sm:$0xf]
    %v4782 = vunpack.c.l.b16 %v4766
    %v4783 = vunpack.c.l.b16 %v4767
    %v4784 = vunpack.c.l.b16 %v4768
    %v4785 = vunpack.c.l.b16 %v4769
    %v4786 = vunpack.c.l.b16 %v4770
    %v4787 = vunpack.c.l.b16 %v4771
    %v4788 = vunpack.c.l.b16 %v4772
    %v4789 = vunpack.c.l.b16 %v4773
    %v4790 = vpack.c.b16 %v4783, %v4782
    %v4791 = vpack.c.b16 %v4785, %v4784
    %v4792 = vpack.c.b16 %v4787, %v4786
    %v4793 = vpack.c.b16 %v4789, %v4788
    %v4799 = vsel %vm52, %v4761, 0
    %v4802 = vsel %vm52, %v4762, 0
    %v4805 = vsel %vm52, %v4763, 0
    %v4808 = vsel %vm52, %v4764, 0
    %4810 = vmatprep.subr.bf16.mxu0 0
    %4811 = vmatpush1.bf16.msra.mxu0 %v4790
    %4812 = vmatprep.subr.bf16.mxu0 0
    %4813 = vmatpush1.bf16.msra.mxu0 %v4791
    %4814 = vmatprep.subr.bf16.mxu0 0
    %4815 = vmatpush1.bf16.msra.mxu0 %v4792
    %4816 = vmatprep.subr.bf16.mxu0 0
    %4817 = vmatpush1.bf16.msra.mxu0 %v4793
    %4818 = vmatprep.subr.bf16.mxu0 0
    %4819 = vmatpush1.bf16.msra.mxu0 0
    %4820 = vmatprep.subr.bf16.mxu0 0
    %4821 = vmatpush1.bf16.msra.mxu0 0
    %4822 = vmatprep.subr.bf16.mxu0 0
    %4823 = vmatpush1.bf16.msra.mxu0 0
    %4824 = vmatprep.subr.bf16.mxu0 0
    %4825 = vmatpush1.bf16.msra.mxu0 0
    %4826 = vmatprep.subr.bf16.mxu0 0
    %4827 = vmatpush1.bf16.msra.mxu0 0
    %4828 = vmatprep.subr.bf16.mxu0 0
    %4829 = vmatpush1.bf16.msra.mxu0 0
    %4830 = vmatprep.subr.bf16.mxu0 0
    %4831 = vmatpush1.bf16.msra.mxu0 0
    %4832 = vmatprep.subr.bf16.mxu0 0
    %4833 = vmatpush1.bf16.msra.mxu0 0
    %4834 = vmatprep.subr.bf16.mxu0 0
    %4835 = vmatpush1.bf16.msra.mxu0 0
    %4836 = vmatprep.subr.bf16.mxu0 0
    %4837 = vmatpush1.bf16.msra.mxu0 0
    %4838 = vmatprep.subr.bf16.mxu0 0
    %4839 = vmatpush1.bf16.msra.mxu0 0
    %4840 = vmatprep.subr.bf16.mxu0 0
    %4841 = vmatpush1.bf16.msra.mxu0 0
    %4842 = vmatprep.mubr.bf16.mxu0 0
    %4843 = vmatmul.mubr.bf16.gmra.mrb[0].mxu0 %v4799
    %v4844 = vpop.f32.mrb[0].mxu0
    %v4845 = vadd.f32 0.0, %v4844
    %v4846 = vpop.f32.mrb[0].mxu0
    %v4847 = vpop.f32.mrb[0].mxu0
    %v4848 = vadd.f32 0.0, %v4847
    %v4849 = vpop.f32.mrb[0].mxu0
    %4850 = vmatprep.mubr.bf16.mxu0 0
    %4851 = vmatmul.mubr.bf16.gmra.mrb[0].mxu0 %v4802
    %v4852 = vpop.f32.mrb[0].mxu0
    %v4853 = vpop.f32.mrb[0].mxu0
    %v4854 = vpop.f32.mrb[0].mxu0
    %v4855 = vpop.f32.mrb[0].mxu0
    %4856 = vmatprep.mubr.bf16.mxu0 0
    %4857 = vmatmul.mubr.bf16.gmra.mrb[0].mxu0 %v4805
    %v4858 = vpop.f32.mrb[0].mxu0
    %v4859 = vadd.f32 0.0, %v4858
    %v4860 = vpop.f32.mrb[0].mxu0
    %v4861 = vpop.f32.mrb[0].mxu0
    %v4862 = vadd.f32 0.0, %v4861
    %v4863 = vpop.f32.mrb[0].mxu0
    %4864 = vmatprep.mubr.bf16.mxu0 0
    %4865 = vmatmul.mubr.bf16.gmra.mrb[0].mxu0 %v4808
    %v4866 = vpop.f32.mrb[0].mxu0
    %v4867 = vpop.f32.mrb[0].mxu0
    %v4868 = vpop.f32.mrb[0].mxu0
    %v4869 = vpop.f32.mrb[0].mxu0
    %4870 = vdwg.mxu0
    %v4871 = vadd.f32 %v4749, %v4845
    %v4872 = vadd.f32 %v4750, %v4848
    %v4873 = vadd.f32 %v4751, %v4859
    %v4874 = vadd.f32 %v4752, %v4862
    %v4875 = vld [vmem:[#allocation2 + $0x8] sm:$0xff]
    %v4876 = vld [vmem:[#allocation2 + $0x10] sm:$0xff]
    %v4877 = vld [vmem:[#allocation2 + $0x18] sm:$0xff]
    %v4878 = vld [vmem:[#allocation2 + $0x20] sm:$0xff]
    %v4879 = vld [vmem:[#allocation2 + $0x28] sm:$0xff]
    %v4880 = vld [vmem:[#allocation2 + $0x30] sm:$0xff]
    %v4881 = vld [vmem:[#allocation2 + $0x38] sm:$0xff]
    %v4882 = vld [vmem:[#allocation2 + $0x40] sm:$0xff]
    %v4883 = vpack.c.bf16 %v4876, %v4875
    %v4884 = vpack.c.bf16 %v4878, %v4877
    %v4885 = vpack.c.bf16 %v4880, %v4879
    %v4886 = vpack.c.bf16 %v4882, %v4881
    %s4887 = scalar_lea.vmem [#allocation4], 1216
    %v4888 = vld [vmem:[%s4887] sm:$0xf]
    %v4889 = vld [vmem:[%s4887 + $0x4] sm:$0xf]
    %v4890 = vld [vmem:[%s4887 + $0x8] sm:$0xf]
    %v4891 = vld [vmem:[%s4887 + $0xc] sm:$0xf]
    %v4892 = vld [vmem:[%s4887 + $0x10] sm:$0xf]
    %v4893 = vld [vmem:[%s4887 + $0x14] sm:$0xf]
    %v4894 = vld [vmem:[%s4887 + $0x18] sm:$0xf]
    %v4895 = vld [vmem:[%s4887 + $0x1c] sm:$0xf]
    %v4904 = vunpack.c.l.b16 %v4888
    %v4905 = vunpack.c.l.b16 %v4889
    %v4906 = vunpack.c.l.b16 %v4890
    %v4907 = vunpack.c.l.b16 %v4891
    %v4908 = vunpack.c.l.b16 %v4892
    %v4909 = vunpack.c.l.b16 %v4893
    %v4910 = vunpack.c.l.b16 %v4894
    %v4911 = vunpack.c.l.b16 %v4895
    %v4912 = vpack.c.b16 %v4905, %v4904
    %v4913 = vpack.c.b16 %v4907, %v4906
    %v4914 = vpack.c.b16 %v4909, %v4908
    %v4915 = vpack.c.b16 %v4911, %v4910
    %v4921 = vsel %vm52, %v4883, 0
    %v4924 = vsel %vm52, %v4884, 0
    %v4927 = vsel %vm52, %v4885, 0
    %v4930 = vsel %vm52, %v4886, 0
    %4932 = vmatprep.subr.bf16.mxu0 0
    %4933 = vmatpush1.bf16.msra.mxu0 %v4912
    %4934 = vmatprep.subr.bf16.mxu0 0
    %4935 = vmatpush1.bf16.msra.mxu0 %v4913
    %4936 = vmatprep.subr.bf16.mxu0 0
    %4937 = vmatpush1.bf16.msra.mxu0 %v4914
    %4938 = vmatprep.subr.bf16.mxu0 0
    %4939 = vmatpush1.bf16.msra.mxu0 %v4915
    %4940 = vmatprep.subr.bf16.mxu0 0
    %4941 = vmatpush1.bf16.msra.mxu0 0
    %4942 = vmatprep.subr.bf16.mxu0 0
    %4943 = vmatpush1.bf16.msra.mxu0 0
    %4944 = vmatprep.subr.bf16.mxu0 0
    %4945 = vmatpush1.bf16.msra.mxu0 0
    %4946 = vmatprep.subr.bf16.mxu0 0
    %4947 = vmatpush1.bf16.msra.mxu0 0
    %4948 = vmatprep.subr.bf16.mxu0 0
    %4949 = vmatpush1.bf16.msra.mxu0 0
    %4950 = vmatprep.subr.bf16.mxu0 0
    %4951 = vmatpush1.bf16.msra.mxu0 0
    %4952 = vmatprep.subr.bf16.mxu0 0
    %4953 = vmatpush1.bf16.msra.mxu0 0
    %4954 = vmatprep.subr.bf16.mxu0 0
    %4955 = vmatpush1.bf16.msra.mxu0 0
    %4956 = vmatprep.subr.bf16.mxu0 0
    %4957 = vmatpush1.bf16.msra.mxu0 0
    %4958 = vmatprep.subr.bf16.mxu0 0
    %4959 = vmatpush1.bf16.msra.mxu0 0
    %4960 = vmatprep.subr.bf16.mxu0 0
    %4961 = vmatpush1.bf16.msra.mxu0 0
    %4962 = vmatprep.subr.bf16.mxu0 0
    %4963 = vmatpush1.bf16.msra.mxu0 0
    %4964 = vmatprep.mubr.bf16.mxu0 0
    %4965 = vmatmul.mubr.bf16.gmra.mrb[0].mxu0 %v4921
    %v4966 = vpop.f32.mrb[0].mxu0
    %v4967 = vadd.f32 0.0, %v4966
    %v4968 = vpop.f32.mrb[0].mxu0
    %v4969 = vpop.f32.mrb[0].mxu0
    %v4970 = vadd.f32 0.0, %v4969
    %v4971 = vpop.f32.mrb[0].mxu0
    %4972 = vmatprep.mubr.bf16.mxu0 0
    %4973 = vmatmul.mubr.bf16.gmra.mrb[0].mxu0 %v4924
    %v4974 = vpop.f32.mrb[0].mxu0
    %v4975 = vpop.f32.mrb[0].mxu0
    %v4976 = vpop.f32.mrb[0].mxu0
    %v4977 = vpop.f32.mrb[0].mxu0
    %4978 = vmatprep.mubr.bf16.mxu0 0
    %4979 = vmatmul.mubr.bf16.gmra.mrb[0].mxu0 %v4927
    %v4980 = vpop.f32.mrb[0].mxu0
    %v4981 = vadd.f32 0.0, %v4980
    %v4982 = vpop.f32.mrb[0].mxu0
    %v4983 = vpop.f32.mrb[0].mxu0
    %v4984 = vadd.f32 0.0, %v4983
    %v4985 = vpop.f32.mrb[0].mxu0
    %4986 = vmatprep.mubr.bf16.mxu0 0
    %4987 = vmatmul.mubr.bf16.gmra.mrb[0].mxu0 %v4930
    %v4988 = vpop.f32.mrb[0].mxu0
    %v4989 = vpop.f32.mrb[0].mxu0
    %v4990 = vpop.f32.mrb[0].mxu0
    %v4991 = vpop.f32.mrb[0].mxu0
    %4992 = vdwg.mxu0
    %v4993 = vadd.f32 %v4871, %v4967
    %v4994 = vadd.f32 %v4872, %v4970
    %v4995 = vadd.f32 %v4873, %v4981
    %v4996 = vadd.f32 %v4874, %v4984
    %v4997 = vld [vmem:[#allocation2 + $0x9] sm:$0xff]
    %v4998 = vld [vmem:[#allocation2 + $0x11] sm:$0xff]
    %v4999 = vld [vmem:[#allocation2 + $0x19] sm:$0xff]
    %v5000 = vld [vmem:[#allocation2 + $0x21] sm:$0xff]
    %v5001 = vld [vmem:[#allocation2 + $0x29] sm:$0xff]
    %v5002 = vld [vmem:[#allocation2 + $0x31] sm:$0xff]
    %v5003 = vld [vmem:[#allocation2 + $0x39] sm:$0xff]
    %v5004 = vld [vmem:[#allocation2 + $0x41] sm:$0xff]
    %v5005 = vpack.c.bf16 %v4998, %v4997
    %v5006 = vpack.c.bf16 %v5000, %v4999
    %v5007 = vpack.c.bf16 %v5002, %v5001
    %v5008 = vpack.c.bf16 %v5004, %v5003
    %s5009 = scalar_lea.vmem [#allocation4], 1248
    %v5010 = vld [vmem:[%s5009] sm:$0xf]
    %v5011 = vld [vmem:[%s5009 + $0x4] sm:$0xf]
    %v5012 = vld [vmem:[%s5009 + $0x8] sm:$0xf]
    %v5013 = vld [vmem:[%s5009 + $0xc] sm:$0xf]
    %v5014 = vld [vmem:[%s5009 + $0x10] sm:$0xf]
    %v5015 = vld [vmem:[%s5009 + $0x14] sm:$0xf]
    %v5016 = vld [vmem:[%s5009 + $0x18] sm:$0xf]
    %v5017 = vld [vmem:[%s5009 + $0x1c] sm:$0xf]
    %v5026 = vunpack.c.l.b16 %v5010
    %v5027 = vunpack.c.l.b16 %v5011
    %v5028 = vunpack.c.l.b16 %v5012
    %v5029 = vunpack.c.l.b16 %v5013
    %v5030 = vunpack.c.l.b16 %v5014
    %v5031 = vunpack.c.l.b16 %v5015
    %v5032 = vunpack.c.l.b16 %v5016
    %v5033 = vunpack.c.l.b16 %v5017
    %v5034 = vpack.c.b16 %v5027, %v5026
    %v5035 = vpack.c.b16 %v5029, %v5028
    %v5036 = vpack.c.b16 %v5031, %v5030
    %v5037 = vpack.c.b16 %v5033, %v5032
    %v5043 = vsel %vm52, %v5005, 0
    %v5046 = vsel %vm52, %v5006, 0
    %v5049 = vsel %vm52, %v5007, 0
    %v5052 = vsel %vm52, %v5008, 0
    %5054 = vmatprep.subr.bf16.mxu0 0
    %5055 = vmatpush1.bf16.msra.mxu0 %v5034
    %5056 = vmatprep.subr.bf16.mxu0 0
    %5057 = vmatpush1.bf16.msra.mxu0 %v5035
    %5058 = vmatprep.subr.bf16.mxu0 0
    %5059 = vmatpush1.bf16.msra.mxu0 %v5036
    %5060 = vmatprep.subr.bf16.mxu0 0
    %5061 = vmatpush1.bf16.msra.mxu0 %v5037
    %5062 = vmatprep.subr.bf16.mxu0 0
    %5063 = vmatpush1.bf16.msra.mxu0 0
    %5064 = vmatprep.subr.bf16.mxu0 0
    %5065 = vmatpush1.bf16.msra.mxu0 0
    %5066 = vmatprep.subr.bf16.mxu0 0
    %5067 = vmatpush1.bf16.msra.mxu0 0
    %5068 = vmatprep.subr.bf16.mxu0 0
    %5069 = vmatpush1.bf16.msra.mxu0 0
    %5070 = vmatprep.subr.bf16.mxu0 0
    %5071 = vmatpush1.bf16.msra.mxu0 0
    %5072 = vmatprep.subr.bf16.mxu0 0
    %5073 = vmatpush1.bf16.msra.mxu0 0
    %5074 = vmatprep.subr.bf16.mxu0 0
    %5075 = vmatpush1.bf16.msra.mxu0 0
    %5076 = vmatprep.subr.bf16.mxu0 0
    %5077 = vmatpush1.bf16.msra.mxu0 0
    %5078 = vmatprep.subr.bf16.mxu0 0
    %5079 = vmatpush1.bf16.msra.mxu0 0
    %5080 = vmatprep.subr.bf16.mxu0 0
    %5081 = vmatpush1.bf16.msra.mxu0 0
    %5082 = vmatprep.subr.bf16.mxu0 0
    %5083 = vmatpush1.bf16.msra.mxu0 0
    %5084 = vmatprep.subr.bf16.mxu0 0
    %5085 = vmatpush1.bf16.msra.mxu0 0
    %5086 = vmatprep.mubr.bf16.mxu0 0
    %5087 = vmatmul.mubr.bf16.gmra.mrb[0].mxu0 %v5043
    %v5088 = vpop.f32.mrb[0].mxu0
    %v5089 = vadd.f32 0.0, %v5088
    %v5090 = vpop.f32.mrb[0].mxu0
    %v5091 = vpop.f32.mrb[0].mxu0
    %v5092 = vadd.f32 0.0, %v5091
    %v5093 = vpop.f32.mrb[0].mxu0
    %5094 = vmatprep.mubr.bf16.mxu0 0
    %5095 = vmatmul.mubr.bf16.gmra.mrb[0].mxu0 %v5046
    %v5096 = vpop.f32.mrb[0].mxu0
    %v5097 = vpop.f32.mrb[0].mxu0
    %v5098 = vpop.f32.mrb[0].mxu0
    %v5099 = vpop.f32.mrb[0].mxu0
    %5100 = vmatprep.mubr.bf16.mxu0 0
    %5101 = vmatmul.mubr.bf16.gmra.mrb[0].mxu0 %v5049
    %v5102 = vpop.f32.mrb[0].mxu0
    %v5103 = vadd.f32 0.0, %v5102
    %v5104 = vpop.f32.mrb[0].mxu0
    %v5105 = vpop.f32.mrb[0].mxu0
    %v5106 = vadd.f32 0.0, %v5105
    %v5107 = vpop.f32.mrb[0].mxu0
    %5108 = vmatprep.mubr.bf16.mxu0 0
    %5109 = vmatmul.mubr.bf16.gmra.mrb[0].mxu0 %v5052
    %v5110 = vpop.f32.mrb[0].mxu0
    %v5111 = vpop.f32.mrb[0].mxu0
    %v5112 = vpop.f32.mrb[0].mxu0
    %v5113 = vpop.f32.mrb[0].mxu0
    %5114 = vdwg.mxu0
    %v5115 = vadd.f32 %v4993, %v5089
    %v5116 = vadd.f32 %v4994, %v5092
    %v5117 = vadd.f32 %v4995, %v5103
    %v5118 = vadd.f32 %v4996, %v5106
    %s5119 = scalar_lea.vmem %s3, 4
    %v5120 = vld [vmem:[%s5119] sm:$0x1]
    %v5122 = vlaneseq
    %v5123 = vshrl.u32 %v5122, 7
    %v5124 = vsub.s32 0, %v5123
    %v5125 = vrot.slane %v5120, %v5124
    %v5127 = vadd.f32 %v5115, %v5125
    %v5128 = vadd.f32 %v5116, %v5125
    %v5129 = vadd.f32 %v5117, %v5125
    %v5130 = vadd.f32 %v5118, %v5125
    %v5131 = vmax.f32 %v5127, 0.0
    %v5132 = vmax.f32 %v5128, 0.0
    %v5133 = vmax.f32 %v5129, 0.0
    %v5134 = vmax.f32 %v5130, 0.0
    %v5135 = vsel %vm52, %v5131, -inf
    %vm5136 = vcmask 517120
    %v5137 = vsel %vm5136, %v5132, -inf
    %v5138 = vmax.f32 %v5135, %v5137
    %v5139 = vrot.slane %v5138, 4
    %v5140 = vmax.f32 %v5138, %v5139
    %v5141 = vrot.slane %v5140, 2
    %v5142 = vmax.f32 %v5140, %v5141
    %v5143 = vrot.slane %v5142, 1
    %v5144 = vmax.f32 %v5142, %v5143
    %vm5145 = vcmask 516096
    %5146 = vst.msk [vmem:[#allocation2 + $0x4] sm:$0x1] %vm5145, %v5144
    %vm5147 = vcmask 523268
    %v5148 = vsel %vm5147, %v5131, -inf
    %vm5149 = vcmask 521216
    %v5150 = vsel %vm5149, %v5132, -inf
    %v5151 = vmax.f32 %v5148, %v5150
    %v5152 = vrot.slane %v5151, 4
    %v5153 = vmax.f32 %v5151, %v5152
    %v5154 = vrot.slane %v5153, 2
    %v5155 = vmax.f32 %v5153, %v5154
    %v5156 = vrot.slane %v5155, 1
    %v5157 = vmax.f32 %v5155, %v5156
    %5158 = vst.msk [vmem:[#allocation2 + $0x5] sm:$0x1] %vm5145, %v5157
    %5159 = vst.msk [vmem:[#allocation2 + $0x6] sm:$0xff] %vm52, 0.0
    %5160 = vst.msk [vmem:[#allocation2 + $0xe] sm:$0x3f] %vm5149, 0.0
    %v5161 = vsel %vm52, %v5133, -inf
    %v5162 = vsel %vm5136, %v5134, -inf
    %v5163 = vmax.f32 %v5161, %v5162
    %v5164 = vrot.slane %v5163, 4
    %v5165 = vmax.f32 %v5163, %v5164
    %v5166 = vrot.slane %v5165, 2
    %v5167 = vmax.f32 %v5165, %v5166
    %v5168 = vrot.slane %v5167, 1
    %v5169 = vmax.f32 %v5167, %v5168
    %5170 = vst.msk [vmem:[#allocation2 + $0x24] sm:$0x1] %vm5145, %v5169
    %v5171 = vsel %vm5147, %v5133, -inf
    %v5172 = vsel %vm5149, %v5134, -inf
    %v5173 = vmax.f32 %v5171, %v5172
    %v5174 = vrot.slane %v5173, 4
    %v5175 = vmax.f32 %v5173, %v5174
    %v5176 = vrot.slane %v5175, 2
    %v5177 = vmax.f32 %v5175, %v5176
    %v5178 = vrot.slane %v5177, 1
    %v5179 = vmax.f32 %v5177, %v5178
    %5180 = vst.msk [vmem:[#allocation2 + $0x25] sm:$0x1] %vm5145, %v5179
    %5181 = vst.msk [vmem:[#allocation2 + $0x26] sm:$0xff] %vm52, 0.0
    %5182 = vst.msk [vmem:[#allocation2 + $0x2e] sm:$0x3f] %vm5149, 0.0
    %v5183 = vld [vmem:[#allocation2 + $0x4] sm:$0xff]
    %v5184 = vld [vmem:[#allocation2 + $0xc] sm:$0xff]
    %v5185 = vld [vmem:[#allocation2 + $0x14] sm:$0xff]
    %v5186 = vld [vmem:[#allocation2 + $0x1c] sm:$0xff]
    %v5187 = vld [vmem:[#allocation2 + $0x24] sm:$0xff]
    %v5188 = vld [vmem:[#allocation2 + $0x2c] sm:$0xff]
    %v5189 = vld [vmem:[#allocation2 + $0x34] sm:$0xff]
    %v5190 = vld [vmem:[#allocation2 + $0x3c] sm:$0xff]
    %v5191 = vld [vmem:[#allocation2] sm:$0xff]
    %v5192 = vld [vmem:[#allocation2 + $0x8] sm:$0xff]
    %v5193 = vld [vmem:[#allocation2 + $0x10] sm:$0xff]
    %v5194 = vld [vmem:[#allocation2 + $0x18] sm:$0xff]
    %v5195 = vld [vmem:[#allocation2 + $0x20] sm:$0xff]
    %v5196 = vld [vmem:[#allocation2 + $0x28] sm:$0xff]
    %v5197 = vld [vmem:[#allocation2 + $0x30] sm:$0xff]
    %v5198 = vld [vmem:[#allocation2 + $0x38] sm:$0xff]
    %v5199 = vpack.c.bf16 %v5192, %v5191
    %v5200 = vpack.c.bf16 %v5194, %v5193
    %v5201 = vpack.c.bf16 %v5196, %v5195
    %v5202 = vpack.c.bf16 %v5198, %v5197
    %s5203 = scalar_lea.vmem [#allocation4], 1280
    %v5204 = vld [vmem:[%s5203] sm:$0xf]
    %v5205 = vld [vmem:[%s5203 + $0x4] sm:$0xf]
    %v5206 = vld [vmem:[%s5203 + $0x8] sm:$0xf]
    %v5207 = vld [vmem:[%s5203 + $0xc] sm:$0xf]
    %v5208 = vld [vmem:[%s5203 + $0x10] sm:$0xf]
    %v5209 = vld [vmem:[%s5203 + $0x14] sm:$0xf]
    %v5210 = vld [vmem:[%s5203 + $0x18] sm:$0xf]
    %v5211 = vld [vmem:[%s5203 + $0x1c] sm:$0xf]
    %v5212 = vld [vmem:[#allocation2 + $0x1] sm:$0xff]
    %v5213 = vld [vmem:[#allocation2 + $0x9] sm:$0xff]
    %v5214 = vld [vmem:[#allocation2 + $0x11] sm:$0xff]
    %v5215 = vld [vmem:[#allocation2 + $0x19] sm:$0xff]
    %v5216 = vld [vmem:[#allocation2 + $0x21] sm:$0xff]
    %v5217 = vld [vmem:[#allocation2 + $0x29] sm:$0xff]
    %v5218 = vld [vmem:[#allocation2 + $0x31] sm:$0xff]
    %v5219 = vld [vmem:[#allocation2 + $0x39] sm:$0xff]
    %v5220 = vpack.c.bf16 %v5213, %v5212
    %v5221 = vpack.c.bf16 %v5215, %v5214
    %v5222 = vpack.c.bf16 %v5217, %v5216
    %v5223 = vpack.c.bf16 %v5219, %v5218
    %s5224 = scalar_lea.vmem [#allocation4], 1312
    %v5225 = vld [vmem:[%s5224] sm:$0xf]
    %v5226 = vld [vmem:[%s5224 + $0x4] sm:$0xf]
    %v5227 = vld [vmem:[%s5224 + $0x8] sm:$0xf]
    %v5228 = vld [vmem:[%s5224 + $0xc] sm:$0xf]
    %v5229 = vld [vmem:[%s5224 + $0x10] sm:$0xf]
    %v5230 = vld [vmem:[%s5224 + $0x14] sm:$0xf]
    %v5231 = vld [vmem:[%s5224 + $0x18] sm:$0xf]
    %v5232 = vld [vmem:[%s5224 + $0x1c] sm:$0xf]
    %v5241 = vunpack.c.l.b16 %v5225
    %v5242 = vunpack.c.l.b16 %v5226
    %v5243 = vunpack.c.l.b16 %v5227
    %v5244 = vunpack.c.l.b16 %v5228
    %v5245 = vunpack.c.l.b16 %v5229
    %v5246 = vunpack.c.l.b16 %v5230
    %v5247 = vunpack.c.l.b16 %v5231
    %v5248 = vunpack.c.l.b16 %v5232
    %v5249 = vpack.c.b16 %v5242, %v5241
    %v5250 = vpack.c.b16 %v5244, %v5243
    %v5251 = vpack.c.b16 %v5246, %v5245
    %v5252 = vpack.c.b16 %v5248, %v5247
    %v5258 = vsel %vm52, %v5220, 0
    %v5261 = vsel %vm52, %v5221, 0
    %v5264 = vsel %vm52, %v5222, 0
    %v5267 = vsel %vm52, %v5223, 0
    %5269 = vmatprep.subr.bf16.mxu0 0
    %5270 = vmatpush1.bf16.msra.mxu0 %v5249
    %5271 = vmatprep.subr.bf16.mxu0 0
    %5272 = vmatpush1.bf16.msra.mxu0 %v5250
    %5273 = vmatprep.subr.bf16.mxu0 0
    %5274 = vmatpush1.bf16.msra.mxu0 %v5251
    %5275 = vmatprep.subr.bf16.mxu0 0
    %5276 = vmatpush1.bf16.msra.mxu0 %v5252
    %5277 = vmatprep.subr.bf16.mxu0 0
    %5278 = vmatpush1.bf16.msra.mxu0 0
    %5279 = vmatprep.subr.bf16.mxu0 0
    %5280 = vmatpush1.bf16.msra.mxu0 0
    %5281 = vmatprep.subr.bf16.mxu0 0
    %5282 = vmatpush1.bf16.msra.mxu0 0
    %5283 = vmatprep.subr.bf16.mxu0 0
    %5284 = vmatpush1.bf16.msra.mxu0 0
    %5285 = vmatprep.subr.bf16.mxu0 0
    %5286 = vmatpush1.bf16.msra.mxu0 0
    %5287 = vmatprep.subr.bf16.mxu0 0
    %5288 = vmatpush1.bf16.msra.mxu0 0
    %5289 = vmatprep.subr.bf16.mxu0 0
    %5290 = vmatpush1.bf16.msra.mxu0 0
    %5291 = vmatprep.subr.bf16.mxu0 0
    %5292 = vmatpush1.bf16.msra.mxu0 0
    %5293 = vmatprep.subr.bf16.mxu0 0
    %5294 = vmatpush1.bf16.msra.mxu0 0
    %5295 = vmatprep.subr.bf16.mxu0 0
    %5296 = vmatpush1.bf16.msra.mxu0 0
    %5297 = vmatprep.subr.bf16.mxu0 0
    %5298 = vmatpush1.bf16.msra.mxu0 0
    %5299 = vmatprep.subr.bf16.mxu0 0
    %5300 = vmatpush1.bf16.msra.mxu0 0
    %5301 = vmatprep.mubr.bf16.mxu0 0
    %5302 = vmatmul.mubr.bf16.gmra.mrb[0].mxu0 %v5258
    %v5303 = vpop.f32.mrb[0].mxu0
    %v5304 = vadd.f32 0.0, %v5303
    %v5305 = vpop.f32.mrb[0].mxu0
    %v5306 = vpop.f32.mrb[0].mxu0
    %v5307 = vpop.f32.mrb[0].mxu0
    %5308 = vmatprep.mubr.bf16.mxu0 0
    %5309 = vmatmul.mubr.bf16.gmra.mrb[0].mxu0 %v5261
    %v5310 = vpop.f32.mrb[0].mxu0
    %v5311 = vpop.f32.mrb[0].mxu0
    %v5312 = vpop.f32.mrb[0].mxu0
    %v5313 = vpop.f32.mrb[0].mxu0
    %5314 = vmatprep.mubr.bf16.mxu0 0
    %5315 = vmatmul.mubr.bf16.gmra.mrb[0].mxu0 %v5264
    %v5316 = vpop.f32.mrb[0].mxu0
    %v5317 = vadd.f32 0.0, %v5316
    %v5318 = vpop.f32.mrb[0].mxu0
    %v5319 = vpop.f32.mrb[0].mxu0
    %v5320 = vpop.f32.mrb[0].mxu0
    %5321 = vmatprep.mubr.bf16.mxu0 0
    %5322 = vmatmul.mubr.bf16.gmra.mrb[0].mxu0 %v5267
    %v5323 = vpop.f32.mrb[0].mxu0
    %v5324 = vpop.f32.mrb[0].mxu0
    %v5325 = vpop.f32.mrb[0].mxu0
    %v5326 = vpop.f32.mrb[0].mxu0
    %5327 = vdwg.mxu0
    %v5336 = vunpack.c.l.b16 %v5204
    %v5337 = vunpack.c.l.b16 %v5205
    %v5338 = vunpack.c.l.b16 %v5206
    %v5339 = vunpack.c.l.b16 %v5207
    %v5340 = vunpack.c.l.b16 %v5208
    %v5341 = vunpack.c.l.b16 %v5209
    %v5342 = vunpack.c.l.b16 %v5210
    %v5343 = vunpack.c.l.b16 %v5211
    %v5344 = vpack.c.b16 %v5337, %v5336
    %v5345 = vpack.c.b16 %v5339, %v5338
    %v5346 = vpack.c.b16 %v5341, %v5340
    %v5347 = vpack.c.b16 %v5343, %v5342
    %v5353 = vsel %vm52, %v5199, 0
    %v5356 = vsel %vm52, %v5200, 0
    %v5359 = vsel %vm52, %v5201, 0
    %v5362 = vsel %vm52, %v5202, 0
    %5364 = vmatprep.subr.bf16.mxu0 0
    %5365 = vmatpush1.bf16.msra.mxu0 %v5344
    %5366 = vmatprep.subr.bf16.mxu0 0
    %5367 = vmatpush1.bf16.msra.mxu0 %v5345
    %5368 = vmatprep.subr.bf16.mxu0 0
    %5369 = vmatpush1.bf16.msra.mxu0 %v5346
    %5370 = vmatprep.subr.bf16.mxu0 0
    %5371 = vmatpush1.bf16.msra.mxu0 %v5347
    %5372 = vmatprep.subr.bf16.mxu0 0
    %5373 = vmatpush1.bf16.msra.mxu0 0
    %5374 = vmatprep.subr.bf16.mxu0 0
    %5375 = vmatpush1.bf16.msra.mxu0 0
    %5376 = vmatprep.subr.bf16.mxu0 0
    %5377 = vmatpush1.bf16.msra.mxu0 0
    %5378 = vmatprep.subr.bf16.mxu0 0
    %5379 = vmatpush1.bf16.msra.mxu0 0
    %5380 = vmatprep.subr.bf16.mxu0 0
    %5381 = vmatpush1.bf16.msra.mxu0 0
    %5382 = vmatprep.subr.bf16.mxu0 0
    %5383 = vmatpush1.bf16.msra.mxu0 0
    %5384 = vmatprep.subr.bf16.mxu0 0
    %5385 = vmatpush1.bf16.msra.mxu0 0
    %5386 = vmatprep.subr.bf16.mxu0 0
    %5387 = vmatpush1.bf16.msra.mxu0 0
    %5388 = vmatprep.subr.bf16.mxu0 0
    %5389 = vmatpush1.bf16.msra.mxu0 0
    %5390 = vmatprep.subr.bf16.mxu0 0
    %5391 = vmatpush1.bf16.msra.mxu0 0
    %5392 = vmatprep.subr.bf16.mxu0 0
    %5393 = vmatpush1.bf16.msra.mxu0 0
    %5394 = vmatprep.subr.bf16.mxu0 0
    %5395 = vmatpush1.bf16.msra.mxu0 0
    %5396 = vmatprep.mubr.bf16.mxu0 0
    %5397 = vmatmul.mubr.bf16.gmra.mrb[0].mxu0 %v5353
    %v5398 = vpop.f32.mrb[0].mxu0
    %v5399 = vadd.f32 %v5304, %v5398
    %v5400 = vpop.f32.mrb[0].mxu0
    %v5401 = vpop.f32.mrb[0].mxu0
    %v5402 = vpop.f32.mrb[0].mxu0
    %5403 = vmatprep.mubr.bf16.mxu0 0
    %5404 = vmatmul.mubr.bf16.gmra.mrb[0].mxu0 %v5356
    %v5405 = vpop.f32.mrb[0].mxu0
    %v5406 = vpop.f32.mrb[0].mxu0
    %v5407 = vpop.f32.mrb[0].mxu0
    %v5408 = vpop.f32.mrb[0].mxu0
    %5409 = vmatprep.mubr.bf16.mxu0 0
    %5410 = vmatmul.mubr.bf16.gmra.mrb[0].mxu0 %v5359
    %v5411 = vpop.f32.mrb[0].mxu0
    %v5412 = vadd.f32 %v5317, %v5411
    %v5413 = vpop.f32.mrb[0].mxu0
    %v5414 = vpop.f32.mrb[0].mxu0
    %v5415 = vpop.f32.mrb[0].mxu0
    %5416 = vmatprep.mubr.bf16.mxu0 0
    %5417 = vmatmul.mubr.bf16.gmra.mrb[0].mxu0 %v5362
    %v5418 = vpop.f32.mrb[0].mxu0
    %v5419 = vpop.f32.mrb[0].mxu0
    %v5420 = vpop.f32.mrb[0].mxu0
    %v5421 = vpop.f32.mrb[0].mxu0
    %5422 = vdwg.mxu0
    %v5423 = vld [vmem:[#allocation2 + $0x2] sm:$0xff]
    %v5424 = vld [vmem:[#allocation2 + $0xa] sm:$0xff]
    %v5425 = vld [vmem:[#allocation2 + $0x12] sm:$0xff]
    %v5426 = vld [vmem:[#allocation2 + $0x1a] sm:$0xff]
    %v5427 = vld [vmem:[#allocation2 + $0x22] sm:$0xff]
    %v5428 = vld [vmem:[#allocation2 + $0x2a] sm:$0xff]
    %v5429 = vld [vmem:[#allocation2 + $0x32] sm:$0xff]
    %v5430 = vld [vmem:[#allocation2 + $0x3a] sm:$0xff]
    %v5431 = vpack.c.bf16 %v5424, %v5423
    %v5432 = vpack.c.bf16 %v5426, %v5425
    %v5433 = vpack.c.bf16 %v5428, %v5427
    %v5434 = vpack.c.bf16 %v5430, %v5429
    %s5435 = scalar_lea.vmem [#allocation4], 1344
    %v5436 = vld [vmem:[%s5435] sm:$0xf]
    %v5437 = vld [vmem:[%s5435 + $0x4] sm:$0xf]
    %v5438 = vld [vmem:[%s5435 + $0x8] sm:$0xf]
    %v5439 = vld [vmem:[%s5435 + $0xc] sm:$0xf]
    %v5440 = vld [vmem:[%s5435 + $0x10] sm:$0xf]
    %v5441 = vld [vmem:[%s5435 + $0x14] sm:$0xf]
    %v5442 = vld [vmem:[%s5435 + $0x18] sm:$0xf]
    %v5443 = vld [vmem:[%s5435 + $0x1c] sm:$0xf]
    %v5452 = vunpack.c.l.b16 %v5436
    %v5453 = vunpack.c.l.b16 %v5437
    %v5454 = vunpack.c.l.b16 %v5438
    %v5455 = vunpack.c.l.b16 %v5439
    %v5456 = vunpack.c.l.b16 %v5440
    %v5457 = vunpack.c.l.b16 %v5441
    %v5458 = vunpack.c.l.b16 %v5442
    %v5459 = vunpack.c.l.b16 %v5443
    %v5460 = vpack.c.b16 %v5453, %v5452
    %v5461 = vpack.c.b16 %v5455, %v5454
    %v5462 = vpack.c.b16 %v5457, %v5456
    %v5463 = vpack.c.b16 %v5459, %v5458
    %v5469 = vsel %vm52, %v5431, 0
    %v5472 = vsel %vm52, %v5432, 0
    %v5475 = vsel %vm52, %v5433, 0
    %v5478 = vsel %vm52, %v5434, 0
    %5480 = vmatprep.subr.bf16.mxu0 0
    %5481 = vmatpush1.bf16.msra.mxu0 %v5460
    %5482 = vmatprep.subr.bf16.mxu0 0
    %5483 = vmatpush1.bf16.msra.mxu0 %v5461
    %5484 = vmatprep.subr.bf16.mxu0 0
    %5485 = vmatpush1.bf16.msra.mxu0 %v5462
    %5486 = vmatprep.subr.bf16.mxu0 0
    %5487 = vmatpush1.bf16.msra.mxu0 %v5463
    %5488 = vmatprep.subr.bf16.mxu0 0
    %5489 = vmatpush1.bf16.msra.mxu0 0
    %5490 = vmatprep.subr.bf16.mxu0 0
    %5491 = vmatpush1.bf16.msra.mxu0 0
    %5492 = vmatprep.subr.bf16.mxu0 0
    %5493 = vmatpush1.bf16.msra.mxu0 0
    %5494 = vmatprep.subr.bf16.mxu0 0
    %5495 = vmatpush1.bf16.msra.mxu0 0
    %5496 = vmatprep.subr.bf16.mxu0 0
    %5497 = vmatpush1.bf16.msra.mxu0 0
    %5498 = vmatprep.subr.bf16.mxu0 0
    %5499 = vmatpush1.bf16.msra.mxu0 0
    %5500 = vmatprep.subr.bf16.mxu0 0
    %5501 = vmatpush1.bf16.msra.mxu0 0
    %5502 = vmatprep.subr.bf16.mxu0 0
    %5503 = vmatpush1.bf16.msra.mxu0 0
    %5504 = vmatprep.subr.bf16.mxu0 0
    %5505 = vmatpush1.bf16.msra.mxu0 0
    %5506 = vmatprep.subr.bf16.mxu0 0
    %5507 = vmatpush1.bf16.msra.mxu0 0
    %5508 = vmatprep.subr.bf16.mxu0 0
    %5509 = vmatpush1.bf16.msra.mxu0 0
    %5510 = vmatprep.subr.bf16.mxu0 0
    %5511 = vmatpush1.bf16.msra.mxu0 0
    %5512 = vmatprep.mubr.bf16.mxu0 0
    %5513 = vmatmul.mubr.bf16.gmra.mrb[0].mxu0 %v5469
    %v5514 = vpop.f32.mrb[0].mxu0
    %v5515 = vadd.f32 0.0, %v5514
    %v5516 = vpop.f32.mrb[0].mxu0
    %v5517 = vpop.f32.mrb[0].mxu0
    %v5518 = vpop.f32.mrb[0].mxu0
    %5519 = vmatprep.mubr.bf16.mxu0 0
    %5520 = vmatmul.mubr.bf16.gmra.mrb[0].mxu0 %v5472
    %v5521 = vpop.f32.mrb[0].mxu0
    %v5522 = vpop.f32.mrb[0].mxu0
    %v5523 = vpop.f32.mrb[0].mxu0
    %v5524 = vpop.f32.mrb[0].mxu0
    %5525 = vmatprep.mubr.bf16.mxu0 0
    %5526 = vmatmul.mubr.bf16.gmra.mrb[0].mxu0 %v5475
    %v5527 = vpop.f32.mrb[0].mxu0
    %v5528 = vadd.f32 0.0, %v5527
    %v5529 = vpop.f32.mrb[0].mxu0
    %v5530 = vpop.f32.mrb[0].mxu0
    %v5531 = vpop.f32.mrb[0].mxu0
    %5532 = vmatprep.mubr.bf16.mxu0 0
    %5533 = vmatmul.mubr.bf16.gmra.mrb[0].mxu0 %v5478
    %v5534 = vpop.f32.mrb[0].mxu0
    %v5535 = vpop.f32.mrb[0].mxu0
    %v5536 = vpop.f32.mrb[0].mxu0
    %v5537 = vpop.f32.mrb[0].mxu0
    %5538 = vdwg.mxu0
    %v5539 = vadd.f32 %v5399, %v5515
    %v5540 = vadd.f32 %v5412, %v5528
    %v5541 = vld [vmem:[#allocation2 + $0x3] sm:$0xff]
    %v5542 = vld [vmem:[#allocation2 + $0xb] sm:$0xff]
    %v5543 = vld [vmem:[#allocation2 + $0x13] sm:$0xff]
    %v5544 = vld [vmem:[#allocation2 + $0x1b] sm:$0xff]
    %v5545 = vld [vmem:[#allocation2 + $0x23] sm:$0xff]
    %v5546 = vld [vmem:[#allocation2 + $0x2b] sm:$0xff]
    %v5547 = vld [vmem:[#allocation2 + $0x33] sm:$0xff]
    %v5548 = vld [vmem:[#allocation2 + $0x3b] sm:$0xff]
    %v5549 = vpack.c.bf16 %v5542, %v5541
    %v5550 = vpack.c.bf16 %v5544, %v5543
    %v5551 = vpack.c.bf16 %v5546, %v5545
    %v5552 = vpack.c.bf16 %v5548, %v5547
    %s5553 = scalar_lea.vmem [#allocation4], 1376
    %v5554 = vld [vmem:[%s5553] sm:$0xf]
    %v5555 = vld [vmem:[%s5553 + $0x4] sm:$0xf]
    %v5556 = vld [vmem:[%s5553 + $0x8] sm:$0xf]
    %v5557 = vld [vmem:[%s5553 + $0xc] sm:$0xf]
    %v5558 = vld [vmem:[%s5553 + $0x10] sm:$0xf]
    %v5559 = vld [vmem:[%s5553 + $0x14] sm:$0xf]
    %v5560 = vld [vmem:[%s5553 + $0x18] sm:$0xf]
    %v5561 = vld [vmem:[%s5553 + $0x1c] sm:$0xf]
    %v5570 = vunpack.c.l.b16 %v5554
    %v5571 = vunpack.c.l.b16 %v5555
    %v5572 = vunpack.c.l.b16 %v5556
    %v5573 = vunpack.c.l.b16 %v5557
    %v5574 = vunpack.c.l.b16 %v5558
    %v5575 = vunpack.c.l.b16 %v5559
    %v5576 = vunpack.c.l.b16 %v5560
    %v5577 = vunpack.c.l.b16 %v5561
    %v5578 = vpack.c.b16 %v5571, %v5570
    %v5579 = vpack.c.b16 %v5573, %v5572
    %v5580 = vpack.c.b16 %v5575, %v5574
    %v5581 = vpack.c.b16 %v5577, %v5576
    %v5587 = vsel %vm52, %v5549, 0
    %v5590 = vsel %vm52, %v5550, 0
    %v5593 = vsel %vm52, %v5551, 0
    %v5596 = vsel %vm52, %v5552, 0
    %5598 = vmatprep.subr.bf16.mxu0 0
    %5599 = vmatpush1.bf16.msra.mxu0 %v5578
    %5600 = vmatprep.subr.bf16.mxu0 0
    %5601 = vmatpush1.bf16.msra.mxu0 %v5579
    %5602 = vmatprep.subr.bf16.mxu0 0
    %5603 = vmatpush1.bf16.msra.mxu0 %v5580
    %5604 = vmatprep.subr.bf16.mxu0 0
    %5605 = vmatpush1.bf16.msra.mxu0 %v5581
    %5606 = vmatprep.subr.bf16.mxu0 0
    %5607 = vmatpush1.bf16.msra.mxu0 0
    %5608 = vmatprep.subr.bf16.mxu0 0
    %5609 = vmatpush1.bf16.msra.mxu0 0
    %5610 = vmatprep.subr.bf16.mxu0 0
    %5611 = vmatpush1.bf16.msra.mxu0 0
    %5612 = vmatprep.subr.bf16.mxu0 0
    %5613 = vmatpush1.bf16.msra.mxu0 0
    %5614 = vmatprep.subr.bf16.mxu0 0
    %5615 = vmatpush1.bf16.msra.mxu0 0
    %5616 = vmatprep.subr.bf16.mxu0 0
    %5617 = vmatpush1.bf16.msra.mxu0 0
    %5618 = vmatprep.subr.bf16.mxu0 0
    %5619 = vmatpush1.bf16.msra.mxu0 0
    %5620 = vmatprep.subr.bf16.mxu0 0
    %5621 = vmatpush1.bf16.msra.mxu0 0
    %5622 = vmatprep.subr.bf16.mxu0 0
    %5623 = vmatpush1.bf16.msra.mxu0 0
    %5624 = vmatprep.subr.bf16.mxu0 0
    %5625 = vmatpush1.bf16.msra.mxu0 0
    %5626 = vmatprep.subr.bf16.mxu0 0
    %5627 = vmatpush1.bf16.msra.mxu0 0
    %5628 = vmatprep.subr.bf16.mxu0 0
    %5629 = vmatpush1.bf16.msra.mxu0 0
    %5630 = vmatprep.mubr.bf16.mxu0 0
    %5631 = vmatmul.mubr.bf16.gmra.mrb[0].mxu0 %v5587
    %v5632 = vpop.f32.mrb[0].mxu0
    %v5633 = vadd.f32 0.0, %v5632
    %v5634 = vpop.f32.mrb[0].mxu0
    %v5635 = vpop.f32.mrb[0].mxu0
    %v5636 = vpop.f32.mrb[0].mxu0
    %5637 = vmatprep.mubr.bf16.mxu0 0
    %5638 = vmatmul.mubr.bf16.gmra.mrb[0].mxu0 %v5590
    %v5639 = vpop.f32.mrb[0].mxu0
    %v5640 = vpop.f32.mrb[0].mxu0
    %v5641 = vpop.f32.mrb[0].mxu0
    %v5642 = vpop.f32.mrb[0].mxu0
    %5643 = vmatprep.mubr.bf16.mxu0 0
    %5644 = vmatmul.mubr.bf16.gmra.mrb[0].mxu0 %v5593
    %v5645 = vpop.f32.mrb[0].mxu0
    %v5646 = vadd.f32 0.0, %v5645
    %v5647 = vpop.f32.mrb[0].mxu0
    %v5648 = vpop.f32.mrb[0].mxu0
    %v5649 = vpop.f32.mrb[0].mxu0
    %5650 = vmatprep.mubr.bf16.mxu0 0
    %5651 = vmatmul.mubr.bf16.gmra.mrb[0].mxu0 %v5596
    %v5652 = vpop.f32.mrb[0].mxu0
    %v5653 = vpop.f32.mrb[0].mxu0
    %v5654 = vpop.f32.mrb[0].mxu0
    %v5655 = vpop.f32.mrb[0].mxu0
    %5656 = vdwg.mxu0
    %v5657 = vadd.f32 %v5539, %v5633
    %v5658 = vadd.f32 %v5540, %v5646
    %v5659 = vpack.c.bf16 %v5184, %v5183
    %v5660 = vpack.c.bf16 %v5186, %v5185
    %v5661 = vpack.c.bf16 %v5188, %v5187
    %v5662 = vpack.c.bf16 %v5190, %v5189
    %s5663 = scalar_lea.vmem [#allocation4], 1408
    %v5664 = vld [vmem:[%s5663] sm:$0xf]
    %v5665 = vld [vmem:[%s5663 + $0x4] sm:$0xf]
    %v5666 = vld [vmem:[%s5663 + $0x8] sm:$0xf]
    %v5667 = vld [vmem:[%s5663 + $0xc] sm:$0xf]
    %v5668 = vld [vmem:[%s5663 + $0x10] sm:$0xf]
    %v5669 = vld [vmem:[%s5663 + $0x14] sm:$0xf]
    %v5670 = vld [vmem:[%s5663 + $0x18] sm:$0xf]
    %v5671 = vld [vmem:[%s5663 + $0x1c] sm:$0xf]
    %v5680 = vunpack.c.l.b16 %v5664
    %v5681 = vunpack.c.l.b16 %v5665
    %v5682 = vunpack.c.l.b16 %v5666
    %v5683 = vunpack.c.l.b16 %v5667
    %v5684 = vunpack.c.l.b16 %v5668
    %v5685 = vunpack.c.l.b16 %v5669
    %v5686 = vunpack.c.l.b16 %v5670
    %v5687 = vunpack.c.l.b16 %v5671
    %v5688 = vpack.c.b16 %v5681, %v5680
    %v5689 = vpack.c.b16 %v5683, %v5682
    %v5690 = vpack.c.b16 %v5685, %v5684
    %v5691 = vpack.c.b16 %v5687, %v5686
    %v5697 = vsel %vm52, %v5659, 0
    %v5700 = vsel %vm52, %v5660, 0
    %v5703 = vsel %vm52, %v5661, 0
    %v5706 = vsel %vm52, %v5662, 0
    %5708 = vmatprep.subr.bf16.mxu0 0
    %5709 = vmatpush1.bf16.msra.mxu0 %v5688
    %5710 = vmatprep.subr.bf16.mxu0 0
    %5711 = vmatpush1.bf16.msra.mxu0 %v5689
    %5712 = vmatprep.subr.bf16.mxu0 0
    %5713 = vmatpush1.bf16.msra.mxu0 %v5690
    %5714 = vmatprep.subr.bf16.mxu0 0
    %5715 = vmatpush1.bf16.msra.mxu0 %v5691
    %5716 = vmatprep.subr.bf16.mxu0 0
    %5717 = vmatpush1.bf16.msra.mxu0 0
    %5718 = vmatprep.subr.bf16.mxu0 0
    %5719 = vmatpush1.bf16.msra.mxu0 0
    %5720 = vmatprep.subr.bf16.mxu0 0
    %5721 = vmatpush1.bf16.msra.mxu0 0
    %5722 = vmatprep.subr.bf16.mxu0 0
    %5723 = vmatpush1.bf16.msra.mxu0 0
    %5724 = vmatprep.subr.bf16.mxu0 0
    %5725 = vmatpush1.bf16.msra.mxu0 0
    %5726 = vmatprep.subr.bf16.mxu0 0
    %5727 = vmatpush1.bf16.msra.mxu0 0
    %5728 = vmatprep.subr.bf16.mxu0 0
    %5729 = vmatpush1.bf16.msra.mxu0 0
    %5730 = vmatprep.subr.bf16.mxu0 0
    %5731 = vmatpush1.bf16.msra.mxu0 0
    %5732 = vmatprep.subr.bf16.mxu0 0
    %5733 = vmatpush1.bf16.msra.mxu0 0
    %5734 = vmatprep.subr.bf16.mxu0 0
    %5735 = vmatpush1.bf16.msra.mxu0 0
    %5736 = vmatprep.subr.bf16.mxu0 0
    %5737 = vmatpush1.bf16.msra.mxu0 0
    %5738 = vmatprep.subr.bf16.mxu0 0
    %5739 = vmatpush1.bf16.msra.mxu0 0
    %5740 = vmatprep.mubr.bf16.mxu0 0
    %5741 = vmatmul.mubr.bf16.gmra.mrb[0].mxu0 %v5697
    %v5742 = vpop.f32.mrb[0].mxu0
    %v5743 = vadd.f32 0.0, %v5742
    %v5744 = vpop.f32.mrb[0].mxu0
    %v5745 = vpop.f32.mrb[0].mxu0
    %v5746 = vpop.f32.mrb[0].mxu0
    %5747 = vmatprep.mubr.bf16.mxu0 0
    %5748 = vmatmul.mubr.bf16.gmra.mrb[0].mxu0 %v5700
    %v5749 = vpop.f32.mrb[0].mxu0
    %v5750 = vpop.f32.mrb[0].mxu0
    %v5751 = vpop.f32.mrb[0].mxu0
    %v5752 = vpop.f32.mrb[0].mxu0
    %5753 = vmatprep.mubr.bf16.mxu0 0
    %5754 = vmatmul.mubr.bf16.gmra.mrb[0].mxu0 %v5703
    %v5755 = vpop.f32.mrb[0].mxu0
    %v5756 = vadd.f32 0.0, %v5755
    %v5757 = vpop.f32.mrb[0].mxu0
    %v5758 = vpop.f32.mrb[0].mxu0
    %v5759 = vpop.f32.mrb[0].mxu0
    %5760 = vmatprep.mubr.bf16.mxu0 0
    %5761 = vmatmul.mubr.bf16.gmra.mrb[0].mxu0 %v5706
    %v5762 = vpop.f32.mrb[0].mxu0
    %v5763 = vpop.f32.mrb[0].mxu0
    %v5764 = vpop.f32.mrb[0].mxu0
    %v5765 = vpop.f32.mrb[0].mxu0
    %5766 = vdwg.mxu0
    %v5767 = vadd.f32 %v5657, %v5743
    %v5768 = vadd.f32 %v5658, %v5756
    %v5769 = vld [vmem:[#allocation2 + $0x5] sm:$0xff]
    %v5770 = vld [vmem:[#allocation2 + $0xd] sm:$0xff]
    %v5771 = vld [vmem:[#allocation2 + $0x15] sm:$0xff]
    %v5772 = vld [vmem:[#allocation2 + $0x1d] sm:$0xff]
    %v5773 = vld [vmem:[#allocation2 + $0x25] sm:$0xff]
    %v5774 = vld [vmem:[#allocation2 + $0x2d] sm:$0xff]
    %v5775 = vld [vmem:[#allocation2 + $0x35] sm:$0xff]
    %v5776 = vld [vmem:[#allocation2 + $0x3d] sm:$0xff]
    %v5777 = vpack.c.bf16 %v5770, %v5769
    %v5778 = vpack.c.bf16 %v5772, %v5771
    %v5779 = vpack.c.bf16 %v5774, %v5773
    %v5780 = vpack.c.bf16 %v5776, %v5775
    %s5781 = scalar_lea.vmem [#allocation4], 1440
    %v5782 = vld [vmem:[%s5781] sm:$0xf]
    %v5783 = vld [vmem:[%s5781 + $0x4] sm:$0xf]
    %v5784 = vld [vmem:[%s5781 + $0x8] sm:$0xf]
    %v5785 = vld [vmem:[%s5781 + $0xc] sm:$0xf]
    %v5786 = vld [vmem:[%s5781 + $0x10] sm:$0xf]
    %v5787 = vld [vmem:[%s5781 + $0x14] sm:$0xf]
    %v5788 = vld [vmem:[%s5781 + $0x18] sm:$0xf]
    %v5789 = vld [vmem:[%s5781 + $0x1c] sm:$0xf]
    %v5798 = vunpack.c.l.b16 %v5782
    %v5799 = vunpack.c.l.b16 %v5783
    %v5800 = vunpack.c.l.b16 %v5784
    %v5801 = vunpack.c.l.b16 %v5785
    %v5802 = vunpack.c.l.b16 %v5786
    %v5803 = vunpack.c.l.b16 %v5787
    %v5804 = vunpack.c.l.b16 %v5788
    %v5805 = vunpack.c.l.b16 %v5789
    %v5806 = vpack.c.b16 %v5799, %v5798
    %v5807 = vpack.c.b16 %v5801, %v5800
    %v5808 = vpack.c.b16 %v5803, %v5802
    %v5809 = vpack.c.b16 %v5805, %v5804
    %v5815 = vsel %vm52, %v5777, 0
    %v5818 = vsel %vm52, %v5778, 0
    %v5821 = vsel %vm52, %v5779, 0
    %v5824 = vsel %vm52, %v5780, 0
    %5826 = vmatprep.subr.bf16.mxu0 0
    %5827 = vmatpush1.bf16.msra.mxu0 %v5806
    %5828 = vmatprep.subr.bf16.mxu0 0
    %5829 = vmatpush1.bf16.msra.mxu0 %v5807
    %5830 = vmatprep.subr.bf16.mxu0 0
    %5831 = vmatpush1.bf16.msra.mxu0 %v5808
    %5832 = vmatprep.subr.bf16.mxu0 0
    %5833 = vmatpush1.bf16.msra.mxu0 %v5809
    %5834 = vmatprep.subr.bf16.mxu0 0
    %5835 = vmatpush1.bf16.msra.mxu0 0
    %5836 = vmatprep.subr.bf16.mxu0 0
    %5837 = vmatpush1.bf16.msra.mxu0 0
    %5838 = vmatprep.subr.bf16.mxu0 0
    %5839 = vmatpush1.bf16.msra.mxu0 0
    %5840 = vmatprep.subr.bf16.mxu0 0
    %5841 = vmatpush1.bf16.msra.mxu0 0
    %5842 = vmatprep.subr.bf16.mxu0 0
    %5843 = vmatpush1.bf16.msra.mxu0 0
    %5844 = vmatprep.subr.bf16.mxu0 0
    %5845 = vmatpush1.bf16.msra.mxu0 0
    %5846 = vmatprep.subr.bf16.mxu0 0
    %5847 = vmatpush1.bf16.msra.mxu0 0
    %5848 = vmatprep.subr.bf16.mxu0 0
    %5849 = vmatpush1.bf16.msra.mxu0 0
    %5850 = vmatprep.subr.bf16.mxu0 0
    %5851 = vmatpush1.bf16.msra.mxu0 0
    %5852 = vmatprep.subr.bf16.mxu0 0
    %5853 = vmatpush1.bf16.msra.mxu0 0
    %5854 = vmatprep.subr.bf16.mxu0 0
    %5855 = vmatpush1.bf16.msra.mxu0 0
    %5856 = vmatprep.subr.bf16.mxu0 0
    %5857 = vmatpush1.bf16.msra.mxu0 0
    %5858 = vmatprep.mubr.bf16.mxu0 0
    %5859 = vmatmul.mubr.bf16.gmra.mrb[0].mxu0 %v5815
    %v5860 = vpop.f32.mrb[0].mxu0
    %v5861 = vadd.f32 0.0, %v5860
    %v5862 = vpop.f32.mrb[0].mxu0
    %v5863 = vpop.f32.mrb[0].mxu0
    %v5864 = vpop.f32.mrb[0].mxu0
    %5865 = vmatprep.mubr.bf16.mxu0 0
    %5866 = vmatmul.mubr.bf16.gmra.mrb[0].mxu0 %v5818
    %v5867 = vpop.f32.mrb[0].mxu0
    %v5868 = vpop.f32.mrb[0].mxu0
    %v5869 = vpop.f32.mrb[0].mxu0
    %v5870 = vpop.f32.mrb[0].mxu0
    %5871 = vmatprep.mubr.bf16.mxu0 0
    %5872 = vmatmul.mubr.bf16.gmra.mrb[0].mxu0 %v5821
    %v5873 = vpop.f32.mrb[0].mxu0
    %v5874 = vadd.f32 0.0, %v5873
    %v5875 = vpop.f32.mrb[0].mxu0
    %v5876 = vpop.f32.mrb[0].mxu0
    %v5877 = vpop.f32.mrb[0].mxu0
    %5878 = vmatprep.mubr.bf16.mxu0 0
    %5879 = vmatmul.mubr.bf16.gmra.mrb[0].mxu0 %v5824
    %v5880 = vpop.f32.mrb[0].mxu0
    %v5881 = vpop.f32.mrb[0].mxu0
    %v5882 = vpop.f32.mrb[0].mxu0
    %v5883 = vpop.f32.mrb[0].mxu0
    %5884 = vdwg.mxu0
    %v5885 = vadd.f32 %v5767, %v5861
    %v5886 = vadd.f32 %v5768, %v5874
    %v5887 = vld [vmem:[#allocation2 + $0x6] sm:$0xff]
    %v5888 = vld [vmem:[#allocation2 + $0xe] sm:$0xff]
    %v5889 = vld [vmem:[#allocation2 + $0x16] sm:$0xff]
    %v5890 = vld [vmem:[#allocation2 + $0x1e] sm:$0xff]
    %v5891 = vld [vmem:[#allocation2 + $0x26] sm:$0xff]
    %v5892 = vld [vmem:[#allocation2 + $0x2e] sm:$0xff]
    %v5893 = vld [vmem:[#allocation2 + $0x36] sm:$0xff]
    %v5894 = vld [vmem:[#allocation2 + $0x3e] sm:$0xff]
    %v5895 = vpack.c.bf16 %v5888, %v5887
    %v5896 = vpack.c.bf16 %v5890, %v5889
    %v5897 = vpack.c.bf16 %v5892, %v5891
    %v5898 = vpack.c.bf16 %v5894, %v5893
    %s5899 = scalar_lea.vmem [#allocation4], 1472
    %v5900 = vld [vmem:[%s5899] sm:$0xf]
    %v5901 = vld [vmem:[%s5899 + $0x4] sm:$0xf]
    %v5902 = vld [vmem:[%s5899 + $0x8] sm:$0xf]
    %v5903 = vld [vmem:[%s5899 + $0xc] sm:$0xf]
    %v5904 = vld [vmem:[%s5899 + $0x10] sm:$0xf]
    %v5905 = vld [vmem:[%s5899 + $0x14] sm:$0xf]
    %v5906 = vld [vmem:[%s5899 + $0x18] sm:$0xf]
    %v5907 = vld [vmem:[%s5899 + $0x1c] sm:$0xf]
    %v5916 = vunpack.c.l.b16 %v5900
    %v5917 = vunpack.c.l.b16 %v5901
    %v5918 = vunpack.c.l.b16 %v5902
    %v5919 = vunpack.c.l.b16 %v5903
    %v5920 = vunpack.c.l.b16 %v5904
    %v5921 = vunpack.c.l.b16 %v5905
    %v5922 = vunpack.c.l.b16 %v5906
    %v5923 = vunpack.c.l.b16 %v5907
    %v5924 = vpack.c.b16 %v5917, %v5916
    %v5925 = vpack.c.b16 %v5919, %v5918
    %v5926 = vpack.c.b16 %v5921, %v5920
    %v5927 = vpack.c.b16 %v5923, %v5922
    %v5933 = vsel %vm52, %v5895, 0
    %v5936 = vsel %vm52, %v5896, 0
    %v5939 = vsel %vm52, %v5897, 0
    %v5942 = vsel %vm52, %v5898, 0
    %5944 = vmatprep.subr.bf16.mxu0 0
    %5945 = vmatpush1.bf16.msra.mxu0 %v5924
    %5946 = vmatprep.subr.bf16.mxu0 0
    %5947 = vmatpush1.bf16.msra.mxu0 %v5925
    %5948 = vmatprep.subr.bf16.mxu0 0
    %5949 = vmatpush1.bf16.msra.mxu0 %v5926
    %5950 = vmatprep.subr.bf16.mxu0 0
    %5951 = vmatpush1.bf16.msra.mxu0 %v5927
    %5952 = vmatprep.subr.bf16.mxu0 0
    %5953 = vmatpush1.bf16.msra.mxu0 0
    %5954 = vmatprep.subr.bf16.mxu0 0
    %5955 = vmatpush1.bf16.msra.mxu0 0
    %5956 = vmatprep.subr.bf16.mxu0 0
    %5957 = vmatpush1.bf16.msra.mxu0 0
    %5958 = vmatprep.subr.bf16.mxu0 0
    %5959 = vmatpush1.bf16.msra.mxu0 0
    %5960 = vmatprep.subr.bf16.mxu0 0
    %5961 = vmatpush1.bf16.msra.mxu0 0
    %5962 = vmatprep.subr.bf16.mxu0 0
    %5963 = vmatpush1.bf16.msra.mxu0 0
    %5964 = vmatprep.subr.bf16.mxu0 0
    %5965 = vmatpush1.bf16.msra.mxu0 0
    %5966 = vmatprep.subr.bf16.mxu0 0
    %5967 = vmatpush1.bf16.msra.mxu0 0
    %5968 = vmatprep.subr.bf16.mxu0 0
    %5969 = vmatpush1.bf16.msra.mxu0 0
    %5970 = vmatprep.subr.bf16.mxu0 0
    %5971 = vmatpush1.bf16.msra.mxu0 0
    %5972 = vmatprep.subr.bf16.mxu0 0
    %5973 = vmatpush1.bf16.msra.mxu0 0
    %5974 = vmatprep.subr.bf16.mxu0 0
    %5975 = vmatpush1.bf16.msra.mxu0 0
    %5976 = vmatprep.mubr.bf16.mxu0 0
    %5977 = vmatmul.mubr.bf16.gmra.mrb[0].mxu0 %v5933
    %v5978 = vpop.f32.mrb[0].mxu0
    %v5979 = vadd.f32 0.0, %v5978
    %v5980 = vpop.f32.mrb[0].mxu0
    %v5981 = vpop.f32.mrb[0].mxu0
    %v5982 = vpop.f32.mrb[0].mxu0
    %5983 = vmatprep.mubr.bf16.mxu0 0
    %5984 = vmatmul.mubr.bf16.gmra.mrb[0].mxu0 %v5936
    %v5985 = vpop.f32.mrb[0].mxu0
    %v5986 = vpop.f32.mrb[0].mxu0
    %v5987 = vpop.f32.mrb[0].mxu0
    %v5988 = vpop.f32.mrb[0].mxu0
    %5989 = vmatprep.mubr.bf16.mxu0 0
    %5990 = vmatmul.mubr.bf16.gmra.mrb[0].mxu0 %v5939
    %v5991 = vpop.f32.mrb[0].mxu0
    %v5992 = vadd.f32 0.0, %v5991
    %v5993 = vpop.f32.mrb[0].mxu0
    %v5994 = vpop.f32.mrb[0].mxu0
    %v5995 = vpop.f32.mrb[0].mxu0
    %5996 = vmatprep.mubr.bf16.mxu0 0
    %5997 = vmatmul.mubr.bf16.gmra.mrb[0].mxu0 %v5942
    %v5998 = vpop.f32.mrb[0].mxu0
    %v5999 = vpop.f32.mrb[0].mxu0
    %v6000 = vpop.f32.mrb[0].mxu0
    %v6001 = vpop.f32.mrb[0].mxu0
    %6002 = vdwg.mxu0
    %v6003 = vadd.f32 %v5885, %v5979
    %v6004 = vadd.f32 %v5886, %v5992
    %v6005 = vld [vmem:[#allocation2 + $0x7] sm:$0xff]
    %v6006 = vld [vmem:[#allocation2 + $0xf] sm:$0xff]
    %v6007 = vld [vmem:[#allocation2 + $0x17] sm:$0xff]
    %v6008 = vld [vmem:[#allocation2 + $0x1f] sm:$0xff]
    %v6009 = vld [vmem:[#allocation2 + $0x27] sm:$0xff]
    %v6010 = vld [vmem:[#allocation2 + $0x2f] sm:$0xff]
    %v6011 = vld [vmem:[#allocation2 + $0x37] sm:$0xff]
    %v6012 = vld [vmem:[#allocation2 + $0x3f] sm:$0xff]
    %v6013 = vpack.c.bf16 %v6006, %v6005
    %v6014 = vpack.c.bf16 %v6008, %v6007
    %v6015 = vpack.c.bf16 %v6010, %v6009
    %v6016 = vpack.c.bf16 %v6012, %v6011
    %s6017 = scalar_lea.vmem [#allocation4], 1504
    %v6018 = vld [vmem:[%s6017] sm:$0xf]
    %v6019 = vld [vmem:[%s6017 + $0x4] sm:$0xf]
    %v6020 = vld [vmem:[%s6017 + $0x8] sm:$0xf]
    %v6021 = vld [vmem:[%s6017 + $0xc] sm:$0xf]
    %v6022 = vld [vmem:[%s6017 + $0x10] sm:$0xf]
    %v6023 = vld [vmem:[%s6017 + $0x14] sm:$0xf]
    %v6024 = vld [vmem:[%s6017 + $0x18] sm:$0xf]
    %v6025 = vld [vmem:[%s6017 + $0x1c] sm:$0xf]
    %v6034 = vunpack.c.l.b16 %v6018
    %v6035 = vunpack.c.l.b16 %v6019
    %v6036 = vunpack.c.l.b16 %v6020
    %v6037 = vunpack.c.l.b16 %v6021
    %v6038 = vunpack.c.l.b16 %v6022
    %v6039 = vunpack.c.l.b16 %v6023
    %v6040 = vunpack.c.l.b16 %v6024
    %v6041 = vunpack.c.l.b16 %v6025
    %v6042 = vpack.c.b16 %v6035, %v6034
    %v6043 = vpack.c.b16 %v6037, %v6036
    %v6044 = vpack.c.b16 %v6039, %v6038
    %v6045 = vpack.c.b16 %v6041, %v6040
    %v6051 = vsel %vm52, %v6013, 0
    %v6054 = vsel %vm52, %v6014, 0
    %v6057 = vsel %vm52, %v6015, 0
    %v6060 = vsel %vm52, %v6016, 0
    %6062 = vmatprep.subr.bf16.mxu0 0
    %6063 = vmatpush1.bf16.msra.mxu0 %v6042
    %6064 = vmatprep.subr.bf16.mxu0 0
    %6065 = vmatpush1.bf16.msra.mxu0 %v6043
    %6066 = vmatprep.subr.bf16.mxu0 0
    %6067 = vmatpush1.bf16.msra.mxu0 %v6044
    %6068 = vmatprep.subr.bf16.mxu0 0
    %6069 = vmatpush1.bf16.msra.mxu0 %v6045
    %6070 = vmatprep.subr.bf16.mxu0 0
    %6071 = vmatpush1.bf16.msra.mxu0 0
    %6072 = vmatprep.subr.bf16.mxu0 0
    %6073 = vmatpush1.bf16.msra.mxu0 0
    %6074 = vmatprep.subr.bf16.mxu0 0
    %6075 = vmatpush1.bf16.msra.mxu0 0
    %6076 = vmatprep.subr.bf16.mxu0 0
    %6077 = vmatpush1.bf16.msra.mxu0 0
    %6078 = vmatprep.subr.bf16.mxu0 0
    %6079 = vmatpush1.bf16.msra.mxu0 0
    %6080 = vmatprep.subr.bf16.mxu0 0
    %6081 = vmatpush1.bf16.msra.mxu0 0
    %6082 = vmatprep.subr.bf16.mxu0 0
    %6083 = vmatpush1.bf16.msra.mxu0 0
    %6084 = vmatprep.subr.bf16.mxu0 0
    %6085 = vmatpush1.bf16.msra.mxu0 0
    %6086 = vmatprep.subr.bf16.mxu0 0
    %6087 = vmatpush1.bf16.msra.mxu0 0
    %6088 = vmatprep.subr.bf16.mxu0 0
    %6089 = vmatpush1.bf16.msra.mxu0 0
    %6090 = vmatprep.subr.bf16.mxu0 0
    %6091 = vmatpush1.bf16.msra.mxu0 0
    %6092 = vmatprep.subr.bf16.mxu0 0
    %6093 = vmatpush1.bf16.msra.mxu0 0
    %6094 = vmatprep.mubr.bf16.mxu0 0
    %6095 = vmatmul.mubr.bf16.gmra.mrb[0].mxu0 %v6051
    %v6096 = vpop.f32.mrb[0].mxu0
    %v6097 = vadd.f32 0.0, %v6096
    %v6098 = vpop.f32.mrb[0].mxu0
    %v6099 = vpop.f32.mrb[0].mxu0
    %v6100 = vpop.f32.mrb[0].mxu0
    %6101 = vmatprep.mubr.bf16.mxu0 0
    %6102 = vmatmul.mubr.bf16.gmra.mrb[0].mxu0 %v6054
    %v6103 = vpop.f32.mrb[0].mxu0
    %v6104 = vpop.f32.mrb[0].mxu0
    %v6105 = vpop.f32.mrb[0].mxu0
    %v6106 = vpop.f32.mrb[0].mxu0
    %6107 = vmatprep.mubr.bf16.mxu0 0
    %6108 = vmatmul.mubr.bf16.gmra.mrb[0].mxu0 %v6057
    %v6109 = vpop.f32.mrb[0].mxu0
    %v6110 = vadd.f32 0.0, %v6109
    %v6111 = vpop.f32.mrb[0].mxu0
    %v6112 = vpop.f32.mrb[0].mxu0
    %v6113 = vpop.f32.mrb[0].mxu0
    %6114 = vmatprep.mubr.bf16.mxu0 0
    %6115 = vmatmul.mubr.bf16.gmra.mrb[0].mxu0 %v6060
    %v6116 = vpop.f32.mrb[0].mxu0
    %v6117 = vpop.f32.mrb[0].mxu0
    %v6118 = vpop.f32.mrb[0].mxu0
    %v6119 = vpop.f32.mrb[0].mxu0
    %6120 = vdwg.mxu0
    %v6121 = vadd.f32 %v6003, %v6097
    %v6122 = vadd.f32 %v6004, %v6110
    %v6123 = vld [vmem:[#allocation2 + $0x8] sm:$0xff]
    %v6124 = vld [vmem:[#allocation2 + $0x10] sm:$0xff]
    %v6125 = vld [vmem:[#allocation2 + $0x18] sm:$0xff]
    %v6126 = vld [vmem:[#allocation2 + $0x20] sm:$0xff]
    %v6127 = vld [vmem:[#allocation2 + $0x28] sm:$0xff]
    %v6128 = vld [vmem:[#allocation2 + $0x30] sm:$0xff]
    %v6129 = vld [vmem:[#allocation2 + $0x38] sm:$0xff]
    %v6130 = vld [vmem:[#allocation2 + $0x40] sm:$0xff]
    %v6131 = vpack.c.bf16 %v6124, %v6123
    %v6132 = vpack.c.bf16 %v6126, %v6125
    %v6133 = vpack.c.bf16 %v6128, %v6127
    %v6134 = vpack.c.bf16 %v6130, %v6129
    %s6135 = scalar_lea.vmem [#allocation4], 1536
    %v6136 = vld [vmem:[%s6135] sm:$0xf]
    %v6137 = vld [vmem:[%s6135 + $0x4] sm:$0xf]
    %v6138 = vld [vmem:[%s6135 + $0x8] sm:$0xf]
    %v6139 = vld [vmem:[%s6135 + $0xc] sm:$0xf]
    %v6140 = vld [vmem:[%s6135 + $0x10] sm:$0xf]
    %v6141 = vld [vmem:[%s6135 + $0x14] sm:$0xf]
    %v6142 = vld [vmem:[%s6135 + $0x18] sm:$0xf]
    %v6143 = vld [vmem:[%s6135 + $0x1c] sm:$0xf]
    %v6152 = vunpack.c.l.b16 %v6136
    %v6153 = vunpack.c.l.b16 %v6137
    %v6154 = vunpack.c.l.b16 %v6138
    %v6155 = vunpack.c.l.b16 %v6139
    %v6156 = vunpack.c.l.b16 %v6140
    %v6157 = vunpack.c.l.b16 %v6141
    %v6158 = vunpack.c.l.b16 %v6142
    %v6159 = vunpack.c.l.b16 %v6143
    %v6160 = vpack.c.b16 %v6153, %v6152
    %v6161 = vpack.c.b16 %v6155, %v6154
    %v6162 = vpack.c.b16 %v6157, %v6156
    %v6163 = vpack.c.b16 %v6159, %v6158
    %v6169 = vsel %vm52, %v6131, 0
    %v6172 = vsel %vm52, %v6132, 0
    %v6175 = vsel %vm52, %v6133, 0
    %v6178 = vsel %vm52, %v6134, 0
    %6180 = vmatprep.subr.bf16.mxu0 0
    %6181 = vmatpush1.bf16.msra.mxu0 %v6160
    %6182 = vmatprep.subr.bf16.mxu0 0
    %6183 = vmatpush1.bf16.msra.mxu0 %v6161
    %6184 = vmatprep.subr.bf16.mxu0 0
    %6185 = vmatpush1.bf16.msra.mxu0 %v6162
    %6186 = vmatprep.subr.bf16.mxu0 0
    %6187 = vmatpush1.bf16.msra.mxu0 %v6163
    %6188 = vmatprep.subr.bf16.mxu0 0
    %6189 = vmatpush1.bf16.msra.mxu0 0
    %6190 = vmatprep.subr.bf16.mxu0 0
    %6191 = vmatpush1.bf16.msra.mxu0 0
    %6192 = vmatprep.subr.bf16.mxu0 0
    %6193 = vmatpush1.bf16.msra.mxu0 0
    %6194 = vmatprep.subr.bf16.mxu0 0
    %6195 = vmatpush1.bf16.msra.mxu0 0
    %6196 = vmatprep.subr.bf16.mxu0 0
    %6197 = vmatpush1.bf16.msra.mxu0 0
    %6198 = vmatprep.subr.bf16.mxu0 0
    %6199 = vmatpush1.bf16.msra.mxu0 0
    %6200 = vmatprep.subr.bf16.mxu0 0
    %6201 = vmatpush1.bf16.msra.mxu0 0
    %6202 = vmatprep.subr.bf16.mxu0 0
    %6203 = vmatpush1.bf16.msra.mxu0 0
    %6204 = vmatprep.subr.bf16.mxu0 0
    %6205 = vmatpush1.bf16.msra.mxu0 0
    %6206 = vmatprep.subr.bf16.mxu0 0
    %6207 = vmatpush1.bf16.msra.mxu0 0
    %6208 = vmatprep.subr.bf16.mxu0 0
    %6209 = vmatpush1.bf16.msra.mxu0 0
    %6210 = vmatprep.subr.bf16.mxu0 0
    %6211 = vmatpush1.bf16.msra.mxu0 0
    %6212 = vmatprep.mubr.bf16.mxu0 0
    %6213 = vmatmul.mubr.bf16.gmra.mrb[0].mxu0 %v6169
    %v6214 = vpop.f32.mrb[0].mxu0
    %v6215 = vadd.f32 0.0, %v6214
    %v6216 = vpop.f32.mrb[0].mxu0
    %v6217 = vpop.f32.mrb[0].mxu0
    %v6218 = vpop.f32.mrb[0].mxu0
    %6219 = vmatprep.mubr.bf16.mxu0 0
    %6220 = vmatmul.mubr.bf16.gmra.mrb[0].mxu0 %v6172
    %v6221 = vpop.f32.mrb[0].mxu0
    %v6222 = vpop.f32.mrb[0].mxu0
    %v6223 = vpop.f32.mrb[0].mxu0
    %v6224 = vpop.f32.mrb[0].mxu0
    %6225 = vmatprep.mubr.bf16.mxu0 0
    %6226 = vmatmul.mubr.bf16.gmra.mrb[0].mxu0 %v6175
    %v6227 = vpop.f32.mrb[0].mxu0
    %v6228 = vadd.f32 0.0, %v6227
    %v6229 = vpop.f32.mrb[0].mxu0
    %v6230 = vpop.f32.mrb[0].mxu0
    %v6231 = vpop.f32.mrb[0].mxu0
    %6232 = vmatprep.mubr.bf16.mxu0 0
    %6233 = vmatmul.mubr.bf16.gmra.mrb[0].mxu0 %v6178
    %v6234 = vpop.f32.mrb[0].mxu0
    %v6235 = vpop.f32.mrb[0].mxu0
    %v6236 = vpop.f32.mrb[0].mxu0
    %v6237 = vpop.f32.mrb[0].mxu0
    %6238 = vdwg.mxu0
    %v6239 = vadd.f32 %v6121, %v6215
    %v6240 = vadd.f32 %v6122, %v6228
    %v6241 = vld [vmem:[#allocation2 + $0x9] sm:$0xff]
    %v6242 = vld [vmem:[#allocation2 + $0x11] sm:$0xff]
    %v6243 = vld [vmem:[#allocation2 + $0x19] sm:$0xff]
    %v6244 = vld [vmem:[#allocation2 + $0x21] sm:$0xff]
    %v6245 = vld [vmem:[#allocation2 + $0x29] sm:$0xff]
    %v6246 = vld [vmem:[#allocation2 + $0x31] sm:$0xff]
    %v6247 = vld [vmem:[#allocation2 + $0x39] sm:$0xff]
    %v6248 = vld [vmem:[#allocation2 + $0x41] sm:$0xff]
    %v6249 = vpack.c.bf16 %v6242, %v6241
    %v6250 = vpack.c.bf16 %v6244, %v6243
    %v6251 = vpack.c.bf16 %v6246, %v6245
    %v6252 = vpack.c.bf16 %v6248, %v6247
    %s6253 = scalar_lea.vmem [#allocation4], 1568
    %v6254 = vld [vmem:[%s6253] sm:$0xf]
    %v6255 = vld [vmem:[%s6253 + $0x4] sm:$0xf]
    %v6256 = vld [vmem:[%s6253 + $0x8] sm:$0xf]
    %v6257 = vld [vmem:[%s6253 + $0xc] sm:$0xf]
    %v6258 = vld [vmem:[%s6253 + $0x10] sm:$0xf]
    %v6259 = vld [vmem:[%s6253 + $0x14] sm:$0xf]
    %v6260 = vld [vmem:[%s6253 + $0x18] sm:$0xf]
    %v6261 = vld [vmem:[%s6253 + $0x1c] sm:$0xf]
    %v6270 = vunpack.c.l.b16 %v6254
    %v6271 = vunpack.c.l.b16 %v6255
    %v6272 = vunpack.c.l.b16 %v6256
    %v6273 = vunpack.c.l.b16 %v6257
    %v6274 = vunpack.c.l.b16 %v6258
    %v6275 = vunpack.c.l.b16 %v6259
    %v6276 = vunpack.c.l.b16 %v6260
    %v6277 = vunpack.c.l.b16 %v6261
    %v6278 = vpack.c.b16 %v6271, %v6270
    %v6279 = vpack.c.b16 %v6273, %v6272
    %v6280 = vpack.c.b16 %v6275, %v6274
    %v6281 = vpack.c.b16 %v6277, %v6276
    %v6287 = vsel %vm52, %v6249, 0
    %v6290 = vsel %vm52, %v6250, 0
    %v6293 = vsel %vm52, %v6251, 0
    %v6296 = vsel %vm52, %v6252, 0
    %6298 = vmatprep.subr.bf16.mxu0 0
    %6299 = vmatpush1.bf16.msra.mxu0 %v6278
    %6300 = vmatprep.subr.bf16.mxu0 0
    %6301 = vmatpush1.bf16.msra.mxu0 %v6279
    %6302 = vmatprep.subr.bf16.mxu0 0
    %6303 = vmatpush1.bf16.msra.mxu0 %v6280
    %6304 = vmatprep.subr.bf16.mxu0 0
    %6305 = vmatpush1.bf16.msra.mxu0 %v6281
    %6306 = vmatprep.subr.bf16.mxu0 0
    %6307 = vmatpush1.bf16.msra.mxu0 0
    %6308 = vmatprep.subr.bf16.mxu0 0
    %6309 = vmatpush1.bf16.msra.mxu0 0
    %6310 = vmatprep.subr.bf16.mxu0 0
    %6311 = vmatpush1.bf16.msra.mxu0 0
    %6312 = vmatprep.subr.bf16.mxu0 0
    %6313 = vmatpush1.bf16.msra.mxu0 0
    %6314 = vmatprep.subr.bf16.mxu0 0
    %6315 = vmatpush1.bf16.msra.mxu0 0
    %6316 = vmatprep.subr.bf16.mxu0 0
    %6317 = vmatpush1.bf16.msra.mxu0 0
    %6318 = vmatprep.subr.bf16.mxu0 0
    %6319 = vmatpush1.bf16.msra.mxu0 0
    %6320 = vmatprep.subr.bf16.mxu0 0
    %6321 = vmatpush1.bf16.msra.mxu0 0
    %6322 = vmatprep.subr.bf16.mxu0 0
    %6323 = vmatpush1.bf16.msra.mxu0 0
    %6324 = vmatprep.subr.bf16.mxu0 0
    %6325 = vmatpush1.bf16.msra.mxu0 0
    %6326 = vmatprep.subr.bf16.mxu0 0
    %6327 = vmatpush1.bf16.msra.mxu0 0
    %6328 = vmatprep.subr.bf16.mxu0 0
    %6329 = vmatpush1.bf16.msra.mxu0 0
    %6330 = vmatprep.mubr.bf16.mxu0 0
    %6331 = vmatmul.mubr.bf16.gmra.mrb[0].mxu0 %v6287
    %v6332 = vpop.f32.mrb[0].mxu0
    %v6333 = vadd.f32 0.0, %v6332
    %v6334 = vpop.f32.mrb[0].mxu0
    %v6335 = vpop.f32.mrb[0].mxu0
    %v6336 = vpop.f32.mrb[0].mxu0
    %6337 = vmatprep.mubr.bf16.mxu0 0
    %6338 = vmatmul.mubr.bf16.gmra.mrb[0].mxu0 %v6290
    %v6339 = vpop.f32.mrb[0].mxu0
    %v6340 = vpop.f32.mrb[0].mxu0
    %v6341 = vpop.f32.mrb[0].mxu0
    %v6342 = vpop.f32.mrb[0].mxu0
    %6343 = vmatprep.mubr.bf16.mxu0 0
    %6344 = vmatmul.mubr.bf16.gmra.mrb[0].mxu0 %v6293
    %v6345 = vpop.f32.mrb[0].mxu0
    %v6346 = vadd.f32 0.0, %v6345
    %v6347 = vpop.f32.mrb[0].mxu0
    %v6348 = vpop.f32.mrb[0].mxu0
    %v6349 = vpop.f32.mrb[0].mxu0
    %6350 = vmatprep.mubr.bf16.mxu0 0
    %6351 = vmatmul.mubr.bf16.gmra.mrb[0].mxu0 %v6296
    %v6352 = vpop.f32.mrb[0].mxu0
    %v6353 = vpop.f32.mrb[0].mxu0
    %v6354 = vpop.f32.mrb[0].mxu0
    %v6355 = vpop.f32.mrb[0].mxu0
    %6356 = vdwg.mxu0
    %v6357 = vadd.f32 %v6239, %v6333
    %v6358 = vadd.f32 %v6240, %v6346
    %s6359 = scalar_lea.vmem %s3, 5
    %v6360 = vld [vmem:[%s6359] sm:$0x1]
    %v6362 = vlaneseq
    %v6363 = vshrl.u32 %v6362, 7
    %v6364 = vsub.s32 0, %v6363
    %v6365 = vrot.slane %v6360, %v6364
    %v6367 = vadd.f32 %v6357, %v6365
    %v6368 = vadd.f32 %v6358, %v6365
    %v6369 = vmax.f32 %v6367, 0.0
    %v6370 = vmax.f32 %v6368, 0.0
    %v6371 = vadd.f32 %v6369, %v5183
    %v6372 = vadd.f32 %v6370, %v5187
    %6373 = vst.msk [vmem:[#allocation2 + $0x4] sm:$0x3] %vm5136, %v6371
    %6374 = vst.msk [vmem:[#allocation2 + $0x24] sm:$0x3] %vm5136, %v6372
    %v6375 = vld [vmem:[#allocation2 + $0x4] sm:$0x1]
    %v6376 = vld [vmem:[#allocation2 + $0x24] sm:$0x1]
    %v6378 = vrot.slane %v6376, 7
    %vm6380 = vcmask 1040384
    %v6381 = vsel %vm6380, %v6375, %v6378
    %v6382 = vpack.c.bf16 %v6381, %v6381
    %v6383 = vld [vmem:[%s4] sm:$0xf]
    %v6384 = vld [vmem:[%s4 + $0x4] sm:$0xf]
    %v6385 = vld [vmem:[%s4 + $0x8] sm:$0xf]
    %v6386 = vld [vmem:[%s4 + $0xc] sm:$0xf]
    %v6387 = vld [vmem:[%s4 + $0x10] sm:$0xf]
    %v6388 = vld [vmem:[%s4 + $0x14] sm:$0xf]
    %v6389 = vld [vmem:[%s4 + $0x18] sm:$0xf]
    %v6390 = vld [vmem:[%s4 + $0x1c] sm:$0xf]
    %v6391 = vld [vmem:[#allocation2 + $0x5] sm:$0x1]
    %v6392 = vld [vmem:[#allocation2 + $0x25] sm:$0x1]
    %v6394 = vrot.slane %v6392, 7
    %v6396 = vsel %vm6380, %v6391, %v6394
    %v6397 = vpack.c.bf16 %v6396, %v6396
    %s6398 = scalar_lea.vmem %s4, 32
    %v6399 = vld [vmem:[%s6398] sm:$0xf]
    %v6400 = vld [vmem:[%s6398 + $0x4] sm:$0xf]
    %v6401 = vld [vmem:[%s6398 + $0x8] sm:$0xf]
    %v6402 = vld [vmem:[%s6398 + $0xc] sm:$0xf]
    %v6403 = vld [vmem:[%s6398 + $0x10] sm:$0xf]
    %v6404 = vld [vmem:[%s6398 + $0x14] sm:$0xf]
    %v6405 = vld [vmem:[%s6398 + $0x18] sm:$0xf]
    %v6406 = vld [vmem:[%s6398 + $0x1c] sm:$0xf]
    %v6415 = vunpack.c.l.b16 %v6399
    %v6416 = vunpack.c.l.b16 %v6400
    %v6417 = vunpack.c.l.b16 %v6401
    %v6418 = vunpack.c.l.b16 %v6402
    %v6419 = vunpack.c.l.b16 %v6403
    %v6420 = vunpack.c.l.b16 %v6404
    %v6421 = vunpack.c.l.b16 %v6405
    %v6422 = vunpack.c.l.b16 %v6406
    %v6423 = vpack.c.b16 %v6416, %v6415
    %v6424 = vpack.c.b16 %v6418, %v6417
    %v6425 = vpack.c.b16 %v6420, %v6419
    %v6426 = vpack.c.b16 %v6422, %v6421
    %v6432 = vsel %vm52, %v6397, 0
    %6434 = vmatprep.subr.bf16.mxu0 0
    %6435 = vmatpush1.bf16.msra.mxu0 %v6423
    %6436 = vmatprep.subr.bf16.mxu0 0
    %6437 = vmatpush1.bf16.msra.mxu0 %v6424
    %6438 = vmatprep.subr.bf16.mxu0 0
    %6439 = vmatpush1.bf16.msra.mxu0 %v6425
    %6440 = vmatprep.subr.bf16.mxu0 0
    %6441 = vmatpush1.bf16.msra.mxu0 %v6426
    %6442 = vmatprep.subr.bf16.mxu0 0
    %6443 = vmatpush1.bf16.msra.mxu0 0
    %6444 = vmatprep.subr.bf16.mxu0 0
    %6445 = vmatpush1.bf16.msra.mxu0 0
    %6446 = vmatprep.subr.bf16.mxu0 0
    %6447 = vmatpush1.bf16.msra.mxu0 0
    %6448 = vmatprep.subr.bf16.mxu0 0
    %6449 = vmatpush1.bf16.msra.mxu0 0
    %6450 = vmatprep.subr.bf16.mxu0 0
    %6451 = vmatpush1.bf16.msra.mxu0 0
    %6452 = vmatprep.subr.bf16.mxu0 0
    %6453 = vmatpush1.bf16.msra.mxu0 0
    %6454 = vmatprep.subr.bf16.mxu0 0
    %6455 = vmatpush1.bf16.msra.mxu0 0
    %6456 = vmatprep.subr.bf16.mxu0 0
    %6457 = vmatpush1.bf16.msra.mxu0 0
    %6458 = vmatprep.subr.bf16.mxu0 0
    %6459 = vmatpush1.bf16.msra.mxu0 0
    %6460 = vmatprep.subr.bf16.mxu0 0
    %6461 = vmatpush1.bf16.msra.mxu0 0
    %6462 = vmatprep.subr.bf16.mxu0 0
    %6463 = vmatpush1.bf16.msra.mxu0 0
    %6464 = vmatprep.subr.bf16.mxu0 0
    %6465 = vmatpush1.bf16.msra.mxu0 0
    %6466 = vmatprep.mubr.bf16.mxu0 0
    %6467 = vmatmul.mubr.bf16.gmra.mrb[0].mxu0 %v6432
    %v6468 = vpop.f32.mrb[0].mxu0
    %v6469 = vadd.f32 0.0, %v6468
    %v6470 = vpop.f32.mrb[0].mxu0
    %v6471 = vpop.f32.mrb[0].mxu0
    %v6472 = vpop.f32.mrb[0].mxu0
    %6473 = vdwg.mxu0
    %v6482 = vunpack.c.l.b16 %v6383
    %v6483 = vunpack.c.l.b16 %v6384
    %v6484 = vunpack.c.l.b16 %v6385
    %v6485 = vunpack.c.l.b16 %v6386
    %v6486 = vunpack.c.l.b16 %v6387
    %v6487 = vunpack.c.l.b16 %v6388
    %v6488 = vunpack.c.l.b16 %v6389
    %v6489 = vunpack.c.l.b16 %v6390
    %v6490 = vpack.c.b16 %v6483, %v6482
    %v6491 = vpack.c.b16 %v6485, %v6484
    %v6492 = vpack.c.b16 %v6487, %v6486
    %v6493 = vpack.c.b16 %v6489, %v6488
    %v6499 = vsel %vm52, %v6382, 0
    %6501 = vmatprep.subr.bf16.mxu0 0
    %6502 = vmatpush1.bf16.msra.mxu0 %v6490
    %6503 = vmatprep.subr.bf16.mxu0 0
    %6504 = vmatpush1.bf16.msra.mxu0 %v6491
    %6505 = vmatprep.subr.bf16.mxu0 0
    %6506 = vmatpush1.bf16.msra.mxu0 %v6492
    %6507 = vmatprep.subr.bf16.mxu0 0
    %6508 = vmatpush1.bf16.msra.mxu0 %v6493
    %6509 = vmatprep.subr.bf16.mxu0 0
    %6510 = vmatpush1.bf16.msra.mxu0 0
    %6511 = vmatprep.subr.bf16.mxu0 0
    %6512 = vmatpush1.bf16.msra.mxu0 0
    %6513 = vmatprep.subr.bf16.mxu0 0
    %6514 = vmatpush1.bf16.msra.mxu0 0
    %6515 = vmatprep.subr.bf16.mxu0 0
    %6516 = vmatpush1.bf16.msra.mxu0 0
    %6517 = vmatprep.subr.bf16.mxu0 0
    %6518 = vmatpush1.bf16.msra.mxu0 0
    %6519 = vmatprep.subr.bf16.mxu0 0
    %6520 = vmatpush1.bf16.msra.mxu0 0
    %6521 = vmatprep.subr.bf16.mxu0 0
    %6522 = vmatpush1.bf16.msra.mxu0 0
    %6523 = vmatprep.subr.bf16.mxu0 0
    %6524 = vmatpush1.bf16.msra.mxu0 0
    %6525 = vmatprep.subr.bf16.mxu0 0
    %6526 = vmatpush1.bf16.msra.mxu0 0
    %6527 = vmatprep.subr.bf16.mxu0 0
    %6528 = vmatpush1.bf16.msra.mxu0 0
    %6529 = vmatprep.subr.bf16.mxu0 0
    %6530 = vmatpush1.bf16.msra.mxu0 0
    %6531 = vmatprep.subr.bf16.mxu0 0
    %6532 = vmatpush1.bf16.msra.mxu0 0
    %6533 = vmatprep.mubr.bf16.mxu0 0
    %6534 = vmatmul.mubr.bf16.gmra.mrb[0].mxu0 %v6499
    %v6535 = vpop.f32.mrb[0].mxu0
    %v6536 = vadd.f32 %v6469, %v6535
    %v6537 = vpop.f32.mrb[0].mxu0
    %v6538 = vpop.f32.mrb[0].mxu0
    %v6539 = vpop.f32.mrb[0].mxu0
    %6540 = vdwg.mxu0
    %v6541 = vld [vmem:[%s5] sm:$0x1]
    %v6543 = vlaneseq
    %v6544 = vshrl.u32 %v6543, 7
    %v6545 = vsub.s32 0, %v6544
    %v6546 = vrot.slane %v6541, %v6545
    %v6548 = vadd.f32 %v6536, %v6546
    %v6549 = vmax.f32 %v6548, 0.0
    %v6550 = vpack.c.bf16 %v6549, %v6549
    %v6551 = vld [vmem:[%s6] sm:$0xf]
    %v6552 = vld [vmem:[%s6 + $0x4] sm:$0xf]
    %v6553 = vld [vmem:[%s6 + $0x8] sm:$0xf]
    %v6554 = vld [vmem:[%s6 + $0xc] sm:$0xf]
    %v6555 = vld [vmem:[%s7] sm:$0x1]
    %v6557 = vlaneseq
    %v6558 = vshrl.u32 %v6557, 7
    %v6559 = vsub.s32 0, %v6558
    %v6560 = vrot.slane %v6555, %v6559
    %v6566 = vunpack.c.l.b16 %v6551
    %v6567 = vunpack.c.l.b16 %v6552
    %v6568 = vunpack.c.l.b16 %v6553
    %v6569 = vunpack.c.l.b16 %v6554
    %v6570 = vpack.c.b16 %v6567, %v6566
    %v6571 = vpack.c.b16 %v6569, %v6568
    %vm6574 = vcmask 261120
    %v6576 = vsel %vm6574, %v6550, 0
    %6578 = vmatprep.subr.bf16.mxu0 0
    %6579 = vmatpush1.bf16.msra.mxu0 %v6570
    %6580 = vmatprep.subr.bf16.mxu0 0
    %6581 = vmatpush1.bf16.msra.mxu0 %v6571
    %6582 = vmatprep.subr.bf16.mxu0 0
    %6583 = vmatpush1.bf16.msra.mxu0 0
    %6584 = vmatprep.subr.bf16.mxu0 0
    %6585 = vmatpush1.bf16.msra.mxu0 0
    %6586 = vmatprep.subr.bf16.mxu0 0
    %6587 = vmatpush1.bf16.msra.mxu0 0
    %6588 = vmatprep.subr.bf16.mxu0 0
    %6589 = vmatpush1.bf16.msra.mxu0 0
    %6590 = vmatprep.subr.bf16.mxu0 0
    %6591 = vmatpush1.bf16.msra.mxu0 0
    %6592 = vmatprep.subr.bf16.mxu0 0
    %6593 = vmatpush1.bf16.msra.mxu0 0
    %6594 = vmatprep.subr.bf16.mxu0 0
    %6595 = vmatpush1.bf16.msra.mxu0 0
    %6596 = vmatprep.subr.bf16.mxu0 0
    %6597 = vmatpush1.bf16.msra.mxu0 0
    %6598 = vmatprep.subr.bf16.mxu0 0
    %6599 = vmatpush1.bf16.msra.mxu0 0
    %6600 = vmatprep.subr.bf16.mxu0 0
    %6601 = vmatpush1.bf16.msra.mxu0 0
    %6602 = vmatprep.subr.bf16.mxu0 0
    %6603 = vmatpush1.bf16.msra.mxu0 0
    %6604 = vmatprep.subr.bf16.mxu0 0
    %6605 = vmatpush1.bf16.msra.mxu0 0
    %6606 = vmatprep.subr.bf16.mxu0 0
    %6607 = vmatpush1.bf16.msra.mxu0 0
    %6608 = vmatprep.subr.bf16.mxu0 0
    %6609 = vmatpush1.bf16.msra.mxu0 0
    %6610 = vmatprep.mubr.bf16.mxu0 0
    %6611 = vmatmul.mubr.bf16.gmra.mrb[0].mxu0 %v6576
    %v6612 = vpop.f32.mrb[0].mxu0
    %v6613 = vadd.f32 %v6560, %v6612
    %v6614 = vpop.f32.mrb[0].mxu0
    %v6615 = vpop.f32.mrb[0].mxu0
    %v6616 = vpop.f32.mrb[0].mxu0
    %6617 = vdwg.mxu0
    %v6618 = vmax.f32 %v6613, 0.0
    %v6619 = vpack.c.bf16 %v6618, %v6618
    %v6620 = vld [vmem:[%s8] sm:$0xf]
    %v6621 = vld [vmem:[%s8 + $0x4] sm:$0xf]
    %v6622 = vld [vmem:[%s8 + $0x8] sm:$0xf]
    %v6623 = vld [vmem:[%s8 + $0xc] sm:$0xf]
    %v6624 = vld [vmem:[#allocation3] sm:$0x1]
    %v6626 = vlaneseq
    %v6627 = vshrl.u32 %v6626, 7
    %v6628 = vsub.s32 0, %v6627
    %v6629 = vrot.slane %v6624, %v6628
    %v6635 = vunpack.c.l.b16 %v6620
    %v6636 = vunpack.c.l.b16 %v6621
    %v6637 = vunpack.c.l.b16 %v6622
    %v6638 = vunpack.c.l.b16 %v6623
    %v6639 = vpack.c.b16 %v6636, %v6635
    %v6640 = vpack.c.b16 %v6638, %v6637
    %v6644 = vsel %vm6574, %v6619, 0
    %6646 = vmatprep.subr.bf16.mxu0 0
    %6647 = vmatpush1.bf16.msra.mxu0 %v6639
    %6648 = vmatprep.subr.bf16.mxu0 0
    %6649 = vmatpush1.bf16.msra.mxu0 %v6640
    %6650 = vmatprep.subr.bf16.mxu0 0
    %6651 = vmatpush1.bf16.msra.mxu0 0
    %6652 = vmatprep.subr.bf16.mxu0 0
    %6653 = vmatpush1.bf16.msra.mxu0 0
    %6654 = vmatprep.subr.bf16.mxu0 0
    %6655 = vmatpush1.bf16.msra.mxu0 0
    %6656 = vmatprep.subr.bf16.mxu0 0
    %6657 = vmatpush1.bf16.msra.mxu0 0
    %6658 = vmatprep.subr.bf16.mxu0 0
    %6659 = vmatpush1.bf16.msra.mxu0 0
    %6660 = vmatprep.subr.bf16.mxu0 0
    %6661 = vmatpush1.bf16.msra.mxu0 0
    %6662 = vmatprep.subr.bf16.mxu0 0
    %6663 = vmatpush1.bf16.msra.mxu0 0
    %6664 = vmatprep.subr.bf16.mxu0 0
    %6665 = vmatpush1.bf16.msra.mxu0 0
    %6666 = vmatprep.subr.bf16.mxu0 0
    %6667 = vmatpush1.bf16.msra.mxu0 0
    %6668 = vmatprep.subr.bf16.mxu0 0
    %6669 = vmatpush1.bf16.msra.mxu0 0
    %6670 = vmatprep.subr.bf16.mxu0 0
    %6671 = vmatpush1.bf16.msra.mxu0 0
    %6672 = vmatprep.subr.bf16.mxu0 0
    %6673 = vmatpush1.bf16.msra.mxu0 0
    %6674 = vmatprep.subr.bf16.mxu0 0
    %6675 = vmatpush1.bf16.msra.mxu0 0
    %6676 = vmatprep.subr.bf16.mxu0 0
    %6677 = vmatpush1.bf16.msra.mxu0 0
    %6678 = vmatprep.mubr.bf16.mxu0 0
    %6679 = vmatmul.mubr.bf16.gmra.mrb[0].mxu0 %v6644
    %v6680 = vpop.f32.mrb[0].mxu0
    %v6681 = vadd.f32 %v6629, %v6680
    %v6682 = vpop.f32.mrb[0].mxu0
    %v6683 = vpop.f32.mrb[0].mxu0
    %v6684 = vpop.f32.mrb[0].mxu0
    %6685 = vdwg.mxu0
    %vm6686 = vcmask 1024
    %6687 = vst.msk [vmem:[%s10] sm:$0x3] %vm6686, %v6681
    // Predicated region
    $region46: #{tpu_custom_call.1} parent=1 // pred_check
      _
    $region47: #{tpu_custom_call.1} parent=1 // pred_check_branch
      %6689 = sbr.rel (0) target = $region49
    $region48: #{tpu_custom_call.1} parent=1 // pred_region
      _
    $region49: #{tpu_custom_call.1} parent=1 // pred_fallthru
      _
    // Predicated region
    $region50: #{tpu_custom_call.1} parent=1 // pred_check
      _
    $region51: #{tpu_custom_call.1} parent=1 // pred_check_branch
      %6691 = sbr.rel (0) target = $region53
    $region52: #{tpu_custom_call.1} parent=1 // pred_region
      _
    $region53: #{tpu_custom_call.1} parent=1 // pred_fallthru
      _
    %6692 = vsyncpa [#allocation5], 1

</llo_original>
